<compile_context>
chip_gen: v7x
topology: tpu7x:2x2x1
jax: 0.10.0
libtpu: 0.0.40
codegen_flags: <defaults>
</compile_context>

<pallas_src>
import functools

import jax
import jax.numpy as jnp
from jax.experimental import pallas as pl
from jax.experimental.pallas import tpu as pltpu

EPS = 1e-5
VMEM_LIMIT = 64 * 1024 * 1024


# ----------------------------------------------------------------------------
# helpers
# ----------------------------------------------------------------------------
def _bn_rows(x, g, b):
    """BatchNorm1d with batch statistics over rows (training-mode semantics)."""
    mean = jnp.mean(x, axis=0, keepdims=True)
    var = jnp.mean((x - mean) ** 2, axis=0, keepdims=True)   # biased, like PyTorch
    return (x - mean) * jax.lax.rsqrt(var + EPS) * g + b


def _pick_t_block(T, cap=48):
    """Largest divisor of T that is <= cap; whole sequence if T is prime-ish."""
    best = 1
    for tb in range(2, min(T, cap) + 1):
        if T % tb == 0:
            best = tb
    return T if best == 1 else best


# ----------------------------------------------------------------------------
# Unified (bi)directional LSTM kernel.
#   grid = (D, T // t_blk); D in {1, 2}.  Gate order: [i, f, o, g].
#   x is presented as a 2-D (T*B, F) bf16 array; a time block is t_blk*B rows.
# ----------------------------------------------------------------------------
def _lstm_kernel(x_ref, wih_ref, whh_ref, b_ref, h0_ref, c0_ref, *refs,
                 t_blk, batch, bidir, store_y):
    if store_y:
        y_ref, hT_ref, cT_ref, h_sc, c_sc = refs
    else:
        y_ref = None
        hT_ref, cT_ref, h_sc, c_sc = refs

    t = pl.program_id(1)

    @pl.when(t == 0)
    def _():
        h_sc[...] = h0_ref[0]
        c_sc[...] = c0_ref[0]

    B = batch
    H = h_sc.shape[-1]

    # Hoisted input projection: one well-shaped MXU matmul per time block.
    xp = (jnp.dot(x_ref[...], wih_ref[0], preferred_element_type=jnp.float32)
          + b_ref[0])                                   # (t_blk*B, 4H) f32
    whh = whh_ref[0]                                    # (H, 4H) bf16

    def run(order):
        # Only h @ W_hh + gate math on the serial path; all indices are static.
        h = h_sc[...]
        c = c_sc[...]
        for s in order:
            gates = xp[s * B:(s + 1) * B, :] + jnp.dot(
                h.astype(jnp.bfloat16), whh, preferred_element_type=jnp.float32)
            sig = jax.nn.sigmoid(gates[:, :3 * H])      # one EUP slab: i, f, o
            g_g = jnp.tanh(gates[:, 3 * H:])
            i_g = sig[:, 0 * H:1 * H]
            f_g = sig[:, 1 * H:2 * H]
            o_g = sig[:, 2 * H:3 * H]
            c = f_g * c + i_g * g_g
            h = o_g * jnp.tanh(c)
            if store_y:
                y_ref[0, s] = h
        h_sc[...] = h
        c_sc[...] = c

    if bidir:
        d = pl.program_id(0)

        @pl.when(d == 0)
        def _():
            run(range(t_blk))

        @pl.when(d == 1)
        def _():
            run(range(t_blk - 1, -1, -1))               # reversed in-block walk
    else:
        run(range(t_blk))

    @pl.when(t == pl.num_programs(1) - 1)               # write final states once
    def _():
        hT_ref[0] = h_sc[...]
        cT_ref[0] = c_sc[...]


def lstm_pallas(x_tbf, w_ih, w_hh, b, h0, c0, *, bidirectional, need_y=True):
    """PyTorch-semantics (bi)LSTM on a time-major input.

    x_tbf : (T, B, F) float          w_ih : (D, F, 4H) bf16
    w_hh  : (D, H, 4H) bf16          b    : (D, 1, 4H) f32
    h0/c0 : (D, B, H) f32
    Returns (y, hT, cT); y is (D, T, B, H) f32 when need_y=True, else None.
    """
    T, B, F = x_tbf.shape
    D = w_ih.shape[0]
    H = h0.shape[-1]
    t_blk = _pick_t_block(T)
    nblk = T // t_blk

    x2d = x_tbf.reshape(T * B, F).astype(jnp.bfloat16)  # one boundary reshape/cast

    def tsel(d, t):
        if bidirectional:
            return jax.lax.select(d == 1, nblk - 1 - t, t)
        return t

    in_specs = [
        pl.BlockSpec((t_blk * B, F), lambda d, t: (tsel(d, t), 0)),
        pl.BlockSpec((1, F, 4 * H), lambda d, t: (d, 0, 0)),
        pl.BlockSpec((1, H, 4 * H), lambda d, t: (d, 0, 0)),
        pl.BlockSpec((1, 1, 4 * H), lambda d, t: (d, 0, 0)),
        pl.BlockSpec((1, B, H), lambda d, t: (d, 0, 0)),
        pl.BlockSpec((1, B, H), lambda d, t: (d, 0, 0)),
    ]
    state_spec = pl.BlockSpec((1, B, H), lambda d, t: (d, 0, 0))
    state_shape = jax.ShapeDtypeStruct((D, B, H), jnp.float32)
    scratch = [pltpu.VMEM((B, H), jnp.float32), pltpu.VMEM((B, H), jnp.float32)]
    cparams = pltpu.CompilerParams(
        dimension_semantics=("parallel", "arbitrary"),
        vmem_limit_bytes=VMEM_LIMIT)
    kernel = functools.partial(_lstm_kernel, t_blk=t_blk, batch=B,
                               bidir=bidirectional, store_y=need_y)

    if need_y:
        out_shape = (jax.ShapeDtypeStruct((D, T, B, H), jnp.float32),
                     state_shape, state_shape)
        out_specs = (pl.BlockSpec((1, t_blk, B, H),
                                  lambda d, t: (d, tsel(d, t), 0, 0)),
                     state_spec, state_spec)
        y, hT, cT = pl.pallas_call(
            kernel, out_shape=out_shape, grid=(D, nblk),
            in_specs=in_specs, out_specs=out_specs,
            scratch_shapes=scratch, compiler_params=cparams,
        )(x2d, w_ih, w_hh, b, h0, c0)
        return y, hT, cT

    out_shape = (state_shape, state_shape)
    out_specs = (state_spec, state_spec)
    hT, cT = pl.pallas_call(
        kernel, out_shape=out_shape, grid=(D, nblk),
        in_specs=in_specs, out_specs=out_specs,
        scratch_shapes=scratch, compiler_params=cparams,
    )(x2d, w_ih, w_hh, b, h0, c0)
    return None, hT, cT


# ----------------------------------------------------------------------------
# Fused epilogue kernels (single block each).
# ----------------------------------------------------------------------------
def _bn_bidir_kernel(y_ref, g_ref, b_ref, o_ref):
    """BN_1 + fwd/bwd concat; one lane-dense (N, 2H) store in bf16."""
    H = y_ref.shape[-1]
    parts = [_bn_rows(y_ref[dd],
                      g_ref[:, dd * H:(dd + 1) * H],
                      b_ref[:, dd * H:(dd + 1) * H]) for dd in range(2)]
    o_ref[...] = jnp.concatenate(parts, axis=-1).astype(o_ref.dtype)


def bn_bidir_pallas(y, gamma, beta):
    _, N, H = y.shape
    return pl.pallas_call(
        _bn_bidir_kernel,
        out_shape=jax.ShapeDtypeStruct((N, 2 * H), jnp.bfloat16),
        compiler_params=pltpu.CompilerParams(vmem_limit_bytes=VMEM_LIMIT),
    )(y, gamma.reshape(1, 2 * H), beta.reshape(1, 2 * H))


def _head_latent_kernel(s_ref, g2_ref, b2_ref, nw_ref, nb_ref, gc_ref, bc_ref,
                        hw_ref, hb_ref, hg_ref, hbt_ref,
                        cw_ref, cb_ref, cg_ref, cbt_ref, h_ref, c_ref):
    """BN_2 -> neck -> ReLU -> BN_Codelayer -> (Linear+BN+ReLU) x2, fully fused.

    `latent` stays resident in VMEM; bf16 matmul operands, f32 accumulation/BN."""
    x = _bn_rows(s_ref[...], g2_ref[...], b2_ref[...])
    lat = jnp.dot(x.astype(jnp.bfloat16), nw_ref[...],
                  preferred_element_type=jnp.float32) + nb_ref[...]
    lat = jnp.maximum(lat, 0.0)
    lat = _bn_rows(lat, gc_ref[...], bc_ref[...])
    lat_bf = lat.astype(jnp.bfloat16)

    def block(w, b, g, bt):
        y = jnp.dot(lat_bf, w[...], preferred_element_type=jnp.float32) + b[...]
        return jnp.maximum(_bn_rows(y, g[...], bt[...]), 0.0)

    h_ref[...] = block(hw_ref, hb_ref, hg_ref, hbt_ref)
    c_ref[...] = block(cw_ref, cb_ref, cg_ref, cbt_ref)


def head_latent_pallas(states, g2, b2, nw, nb, gc, bc,
                       hw, hb, hg, hbt, cw, cb, cg, cbt):
    B = states.shape[0]
    L = hw.shape[1]
    return pl.pallas_call(
        _head_latent_kernel,
        out_shape=(jax.ShapeDtypeStruct((B, L), jnp.float32),
                   jax.ShapeDtypeStruct((B, L), jnp.float32)),
    )(states, g2.reshape(1, -1), b2.reshape(1, -1), nw, nb.reshape(1, -1),
      gc.reshape(1, -1), bc.reshape(1, -1),
      hw, hb.reshape(1, -1), hg.reshape(1, -1), hbt.reshape(1, -1),
      cw, cb.reshape(1, -1), cg.reshape(1, -1), cbt.reshape(1, -1))


def _decoder_tail_kernel(y_ref, g_ref, bt_ref, w_ref, b_ref, o_ref):
    """BN_Decoder_1 -> Dense_Decoder_1 -> LogSoftmax, fused (lane-padded width)."""
    x = _bn_rows(y_ref[...], g_ref[...], bt_ref[...])
    logits = jnp.dot(x.astype(jnp.bfloat16), w_ref[...],
                     preferred_element_type=jnp.float32) + b_ref[...]
    m = jnp.max(logits, axis=-1, keepdims=True)
    z = logits - m
    o_ref[...] = z - jnp.log(jnp.sum(jnp.exp(z), axis=-1, keepdims=True))


def decoder_tail_pallas(y, gamma, beta, w, b):
    N = y.shape[0]
    L, O = w.shape
    Op = ((O + 127) // 128) * 128
    # pad to lane-dense output: zero weight cols + -1e30 bias => exp() -> 0,
    # so the log-softmax over the real columns is untouched; slice outside.
    w_p = jnp.zeros((L, Op), w.dtype).at[:, :O].set(w)
    b_p = jnp.full((1, Op), -1e30, jnp.float32).at[0, :O].set(b)
    out = pl.pallas_call(
        _decoder_tail_kernel,
        out_shape=jax.ShapeDtypeStruct((N, Op), jnp.float32),
        compiler_params=pltpu.CompilerParams(vmem_limit_bytes=VMEM_LIMIT),
    )(y, gamma.reshape(1, -1), beta.reshape(1, -1), w_p, b_p)
    return out[:, :O]


# ----------------------------------------------------------------------------
# Parameter construction (deterministic, synthetic weights).
# Weights feeding the MXU are stored in bf16; biases / BN params in f32.
# ----------------------------------------------------------------------------
def init_params(key, f_enc, lstm_dim, codelayer_dim, f_dec, output_dims):
    h1 = lstm_dim // 2
    keys = iter(jax.random.split(key, 64))

    def nrm(shape, scale=0.1):
        return scale * jax.random.normal(next(keys), shape, jnp.float32)

    def lstm_p(n_dir, inp, hid):
        return (nrm((n_dir, inp, 4 * hid)).astype(jnp.bfloat16),   # w_ih
                nrm((n_dir, hid, 4 * hid)).astype(jnp.bfloat16),   # w_hh
                nrm((n_dir, 1, 4 * hid)))                          # bias (f32)

    p = {}
    # Mol_to_latent_model
    p['enc1_wih'], p['enc1_whh'], p['enc1_b'] = lstm_p(2, f_enc, h1)
    p['bn1_g'] = 1.0 + nrm((lstm_dim,)); p['bn1_b'] = nrm((lstm_dim,))
    p['enc2_wih'], p['enc2_whh'], p['enc2_b'] = lstm_p(2, lstm_dim, h1)
    p['bn2_g'] = 1.0 + nrm((4 * lstm_dim,)); p['bn2_b'] = nrm((4 * lstm_dim,))
    p['neck_w'] = nrm((4 * lstm_dim, codelayer_dim)).astype(jnp.bfloat16)
    p['neck_b'] = nrm((codelayer_dim,))
    p['bnc_g'] = 1.0 + nrm((codelayer_dim,)); p['bnc_b'] = nrm((codelayer_dim,))
    # Latent_to_states_model (Linear -> BN -> ReLU for h and c)
    p['h_w'] = nrm((codelayer_dim, lstm_dim)).astype(jnp.bfloat16)
    p['h_b'] = nrm((lstm_dim,))
    p['h_bn_g'] = 1.0 + nrm((lstm_dim,)); p['h_bn_b'] = nrm((lstm_dim,))
    p['c_w'] = nrm((codelayer_dim, lstm_dim)).astype(jnp.bfloat16)
    p['c_b'] = nrm((lstm_dim,))
    p['c_bn_g'] = 1.0 + nrm((lstm_dim,)); p['c_bn_b'] = nrm((lstm_dim,))
    # Batch_model (td_dense_dim == 0 branch)
    p['dec_wih'], p['dec_whh'], p['dec_b'] = lstm_p(1, f_dec, lstm_dim)
    p['bnd_g'] = 1.0 + nrm((lstm_dim,)); p['bnd_b'] = nrm((lstm_dim,))
    p['dense_w'] = nrm((lstm_dim, output_dims)).astype(jnp.bfloat16)
    p['dense_b'] = nrm((output_dims,))
    return p


# ----------------------------------------------------------------------------
# Build_model_mols.forward
# ----------------------------------------------------------------------------
def build_model_mols_forward(p, encoder_inputs, decoder_inputs, lstm_dim):
    h1 = lstm_dim // 2
    B = encoder_inputs.shape[0]

    # single boundary transpose into the internal time-major layout
    x = jnp.transpose(encoder_inputs, (1, 0, 2))                 # (T, B, F)
    T = x.shape[0]
    z2 = jnp.zeros((2, B, h1), jnp.float32)

    # --- Mol_to_latent_model ---
    y1, h1s, c1s = lstm_pallas(x, p['enc1_wih'], p['enc1_whh'], p['enc1_b'],
                               z2, z2, bidirectional=True, need_y=True)
    # BN_1 (+ fwd/bwd feature concat); row-order invariant, so the (T*B) view is fine
    y1_bn = bn_bidir_pallas(y1.reshape(2, T * B, h1), p['bn1_g'], p['bn1_b'])
    y1_bn = y1_bn.reshape(T, B, lstm_dim)                        # bf16 layer-2 input

    # second encoder layer: only the final states are consumed (no y output at all)
    _, h2s, c2s = lstm_pallas(y1_bn, p['enc2_wih'], p['enc2_whh'], p['enc2_b'],
                              z2, z2, bidirectional=True, need_y=False)

    states = jnp.concatenate([h1s[0], c1s[0], h2s[0], c2s[0],
                              h1s[1], c1s[1], h2s[1], c2s[1]], axis=-1)  # (B, 4*lstm_dim)

    # --- encoder head + Latent_to_states_model, fused (latent stays in VMEM) ---
    # The dec_layers loop reuses the same blocks, so every appended (h, c) is
    # identical; Batch_model only consumes decoder_state_list[0] and [1].
    h0, c0 = head_latent_pallas(states, p['bn2_g'], p['bn2_b'],
                                p['neck_w'], p['neck_b'], p['bnc_g'], p['bnc_b'],
                                p['h_w'], p['h_b'], p['h_bn_g'], p['h_bn_b'],
                                p['c_w'], p['c_b'], p['c_bn_g'], p['c_bn_b'])

    # --- Batch_model ---
    xd = jnp.transpose(decoder_inputs, (1, 0, 2))                # (Td, B, Fd)
    Td = xd.shape[0]
    y_dec, _, _ = lstm_pallas(xd, p['dec_wih'], p['dec_whh'], p['dec_b'],
                              h0[None], c0[None], bidirectional=False, need_y=True)
    out = decoder_tail_pallas(y_dec[0].reshape(Td * B, lstm_dim),
                              p['bnd_g'], p['bnd_b'], p['dense_w'], p['dense_b'])
    out = out.reshape(Td, B, -1)
    return jnp.transpose(out, (1, 0, 2))                         # back to batch-first


if __name__ == "__main__":
    # Small shapes consistent with the module (original: (138, 35), lstm_dim=128).
    B = 8
    T_ENC, F_ENC = 8, 16          # input_shape
    T_DEC, F_DEC = 8, 16          # dec_input_shape
    LSTM_DIM = 32
    CODELAYER_DIM = 24
    OUTPUT_DIMS = F_DEC           # output_dims = input_shape[-1]

    key = jax.random.PRNGKey(0)
    k_p, k_enc, k_dec = jax.random.split(key, 3)
    params = init_params(k_p, F_ENC, LSTM_DIM, CODELAYER_DIM, F_DEC, OUTPUT_DIMS)
    encoder_inputs = jax.random.normal(k_enc, (B, T_ENC, F_ENC), jnp.float32)
    decoder_inputs = jax.random.normal(k_dec, (B, T_DEC, F_DEC), jnp.float32)

    fwd = jax.jit(functools.partial(build_model_mols_forward, lstm_dim=LSTM_DIM))
    out = fwd(params, encoder_inputs, decoder_inputs)
    out = jax.block_until_ready(out)

    assert out.shape == (B, T_DEC, OUTPUT_DIMS), out.shape
    assert bool(jnp.all(jnp.isfinite(out)))
    # log-softmax rows should sum (in prob space) to ~1
    assert bool(jnp.allclose(jnp.sum(jnp.exp(out), axis=-1), 1.0, atol=1e-3))
    print("KERNEL_OK")
</pallas_src>

<mosaic_0001>
module attributes {stable_mosaic.version = 11 : i64} {
  func.func @_lstm_kernel(%arg0: i32, %arg1: i32, %arg2: memref<64x16xbf16, #tpu.memory_space<vmem>>, %arg3: memref<1x16x64xbf16, #tpu.memory_space<vmem>>, %arg4: memref<1x16x64xbf16, #tpu.memory_space<vmem>>, %arg5: memref<1x1x64xf32, #tpu.memory_space<vmem>>, %arg6: memref<1x8x16xf32, #tpu.memory_space<vmem>>, %arg7: memref<1x8x16xf32, #tpu.memory_space<vmem>>, %arg8: memref<1x8x8x16xf32, #tpu.memory_space<vmem>>, %arg9: memref<1x8x16xf32, #tpu.memory_space<vmem>>, %arg10: memref<1x8x16xf32, #tpu.memory_space<vmem>>, %arg11: memref<8x16xf32, #tpu.memory_space<vmem>>, %arg12: memref<8x16xf32, #tpu.memory_space<vmem>>) attributes {dimension_semantics = [#tpu.dimension_semantics<parallel>, #tpu.dimension_semantics<arbitrary>], iteration_bounds = array<i64: 2, 1>, scalar_prefetch = 0 : i64, scratch_operands = 2 : i64, tpu.core_type = #tpu.core_type<tc>, window_params = [{transform_indices = @transform_0, window_bounds = array<i64: 64, 16>}, {transform_indices = @transform_1, window_bounds = array<i64: 1, 16, 64>}, {transform_indices = @transform_2, window_bounds = array<i64: 1, 16, 64>}, {transform_indices = @transform_3, window_bounds = array<i64: 1, 1, 64>}, {transform_indices = @transform_4, window_bounds = array<i64: 1, 8, 16>}, {transform_indices = @transform_5, window_bounds = array<i64: 1, 8, 16>}, {transform_indices = @transform_6, window_bounds = array<i64: 1, 8, 8, 16>}, {transform_indices = @transform_7, window_bounds = array<i64: 1, 8, 16>}, {transform_indices = @transform_8, window_bounds = array<i64: 1, 8, 16>}]} {
    %c0_i32 = arith.constant 0 : i32
    %0 = arith.cmpi eq, %arg1, %c0_i32 : i32
    %1 = arith.extui %0 : i1 to i32
    %c0_i32_0 = arith.constant 0 : i32
    %2 = arith.cmpi ne, %1, %c0_i32_0 : i32
    scf.if %2 {
      %c0_16 = arith.constant 0 : index
      %c0_17 = arith.constant 0 : index
      %c0_18 = arith.constant 0 : index
      %22 = vector.load %arg6[%c0_16, %c0_17, %c0_18] : memref<1x8x16xf32, #tpu.memory_space<vmem>>, vector<1x8x16xf32>
      %23 = vector.shape_cast %22 : vector<1x8x16xf32> to vector<8x16xf32>
      %c0_19 = arith.constant 0 : index
      %c0_20 = arith.constant 0 : index
      %24 = vector.load %arg11[%c0_19, %c0_20] : memref<8x16xf32, #tpu.memory_space<vmem>>, vector<8x16xf32>
      tpu.vector_store %arg11[%c0_19, %c0_20], %23 {strides = array<i32>} : memref<8x16xf32, #tpu.memory_space<vmem>>, vector<8x16xf32>,
      %c0_21 = arith.constant 0 : index
      %c0_22 = arith.constant 0 : index
      %c0_23 = arith.constant 0 : index
      %25 = vector.load %arg7[%c0_21, %c0_22, %c0_23] : memref<1x8x16xf32, #tpu.memory_space<vmem>>, vector<1x8x16xf32>
      %26 = vector.shape_cast %25 : vector<1x8x16xf32> to vector<8x16xf32>
      %c0_24 = arith.constant 0 : index
      %c0_25 = arith.constant 0 : index
      %27 = vector.load %arg12[%c0_24, %c0_25] : memref<8x16xf32, #tpu.memory_space<vmem>>, vector<8x16xf32>
      tpu.vector_store %arg12[%c0_24, %c0_25], %26 {strides = array<i32>} : memref<8x16xf32, #tpu.memory_space<vmem>>, vector<8x16xf32>,
    } else {
    }
    %c0 = arith.constant 0 : index
    %c0_1 = arith.constant 0 : index
    %3 = vector.load %arg2[%c0, %c0_1] : memref<64x16xbf16, #tpu.memory_space<vmem>>, vector<64x16xbf16>
    %c0_2 = arith.constant 0 : index
    %c0_3 = arith.constant 0 : index
    %c0_4 = arith.constant 0 : index
    %4 = vector.load %arg3[%c0_2, %c0_3, %c0_4] : memref<1x16x64xbf16, #tpu.memory_space<vmem>>, vector<1x16x64xbf16>
    %5 = vector.shape_cast %4 : vector<1x16x64xbf16> to vector<16x64xbf16>
    %cst = arith.constant dense<0.000000e+00> : vector<64x64xf32>
    %6 = tpu.matmul %3, %5, %cst {dimension_numbers = #tpu.dot_dimension_numbers<[1], [0], [0], [1], [0, 0, 1, 1], [], []>} : vector<64x16xbf16>, vector<16x64xbf16>, vector<64x64xf32> -> vector<64x64xf32>
    %c0_5 = arith.constant 0 : index
    %c0_6 = arith.constant 0 : index
    %c0_7 = arith.constant 0 : index
    %7 = vector.load %arg5[%c0_5, %c0_6, %c0_7] : memref<1x1x64xf32, #tpu.memory_space<vmem>>, vector<1x1x64xf32>
    %8 = vector.shape_cast %7 : vector<1x1x64xf32> to vector<1x64xf32>
    %9 = vector.broadcast %8 : vector<1x64xf32> to vector<64x64xf32>
    %10 = arith.addf %6, %9 : vector<64x64xf32>
    %c0_8 = arith.constant 0 : index
    %c0_9 = arith.constant 0 : index
    %c0_10 = arith.constant 0 : index
    %11 = vector.load %arg4[%c0_8, %c0_9, %c0_10] : memref<1x16x64xbf16, #tpu.memory_space<vmem>>, vector<1x16x64xbf16>
    %12 = vector.shape_cast %11 : vector<1x16x64xbf16> to vector<16x64xbf16>
    %c0_i32_11 = arith.constant 0 : i32
    %13 = arith.cmpi eq, %arg0, %c0_i32_11 : i32
    %14 = arith.extui %13 : i1 to i32
    %c0_i32_12 = arith.constant 0 : i32
    %15 = arith.cmpi ne, %14, %c0_i32_12 : i32
    scf.if %15 {
      %c0_16 = arith.constant 0 : index
      %c0_17 = arith.constant 0 : index
      %22 = vector.load %arg11[%c0_16, %c0_17] : memref<8x16xf32, #tpu.memory_space<vmem>>, vector<8x16xf32>
      %c0_18 = arith.constant 0 : index
      %c0_19 = arith.constant 0 : index
      %23 = vector.load %arg12[%c0_18, %c0_19] : memref<8x16xf32, #tpu.memory_space<vmem>>, vector<8x16xf32>
      %24 = vector.extract_strided_slice %10 {offsets = [0, 0], sizes = [8, 64], strides = [1, 1]} : vector<64x64xf32> to vector<8x64xf32>
      %25 = arith.truncf %22 : vector<8x16xf32> to vector<8x16xbf16>
      %cst_20 = arith.constant dense<0.000000e+00> : vector<8x64xf32>
      %26 = tpu.matmul %25, %12, %cst_20 {dimension_numbers = #tpu.dot_dimension_numbers<[1], [0], [0], [1], [0, 0, 1, 1], [], []>} : vector<8x16xbf16>, vector<16x64xbf16>, vector<8x64xf32> -> vector<8x64xf32>
      %27 = arith.addf %24, %26 : vector<8x64xf32>
      %28 = vector.extract_strided_slice %27 {offsets = [0, 0], sizes = [8, 48], strides = [1, 1]} : vector<8x64xf32> to vector<8x48xf32>
      %29 = arith.negf %28 : vector<8x48xf32>
      %30 = math.exp %29 : vector<8x48xf32>
      %cst_21 = arith.constant 1.000000e+00 : f32
      %31 = vector.broadcast %cst_21 : f32 to vector<8x48xf32>
      %32 = arith.addf %31, %30 : vector<8x48xf32>
      %33 = arith.divf %31, %32 : vector<8x48xf32>
      %34 = vector.extract_strided_slice %27 {offsets = [0, 48], sizes = [8, 16], strides = [1, 1]} : vector<8x64xf32> to vector<8x16xf32>
      %35 = math.tanh %34 : vector<8x16xf32>
      %36 = vector.extract_strided_slice %33 {offsets = [0, 0], sizes = [8, 16], strides = [1, 1]} : vector<8x48xf32> to vector<8x16xf32>
      %37 = vector.extract_strided_slice %33 {offsets = [0, 16], sizes = [8, 16], strides = [1, 1]} : vector<8x48xf32> to vector<8x16xf32>
      %38 = vector.extract_strided_slice %33 {offsets = [0, 32], sizes = [8, 16], strides = [1, 1]} : vector<8x48xf32> to vector<8x16xf32>
      %39 = arith.mulf %37, %23 : vector<8x16xf32>
      %40 = arith.mulf %36, %35 : vector<8x16xf32>
      %41 = arith.addf %39, %40 : vector<8x16xf32>
      %42 = math.tanh %41 : vector<8x16xf32>
      %43 = arith.mulf %38, %42 : vector<8x16xf32>
      %c0_22 = arith.constant 0 : index
      %c0_23 = arith.constant 0 : index
      %c0_24 = arith.constant 0 : index
      %c0_25 = arith.constant 0 : index
      %44 = vector.load %arg8[%c0_22, %c0_23, %c0_24, %c0_25] : memref<1x8x8x16xf32, #tpu.memory_space<vmem>>, vector<1x1x8x16xf32>
      %45 = vector.shape_cast %44 : vector<1x1x8x16xf32> to vector<8x16xf32>
      %46 = vector.shape_cast %43 : vector<8x16xf32> to vector<1x1x8x16xf32>
      tpu.vector_store %arg8[%c0_22, %c0_23, %c0_24, %c0_25], %46 {strides = array<i32>} : memref<1x8x8x16xf32, #tpu.memory_space<vmem>>, vector<1x1x8x16xf32>,
      %47 = vector.extract_strided_slice %10 {offsets = [8, 0], sizes = [8, 64], strides = [1, 1]} : vector<64x64xf32> to vector<8x64xf32>
      %48 = arith.truncf %43 : vector<8x16xf32> to vector<8x16xbf16>
      %cst_26 = arith.constant dense<0.000000e+00> : vector<8x64xf32>
      %49 = tpu.matmul %48, %12, %cst_26 {dimension_numbers = #tpu.dot_dimension_numbers<[1], [0], [0], [1], [0, 0, 1, 1], [], []>} : vector<8x16xbf16>, vector<16x64xbf16>, vector<8x64xf32> -> vector<8x64xf32>
      %50 = arith.addf %47, %49 : vector<8x64xf32>
      %51 = vector.extract_strided_slice %50 {offsets = [0, 0], sizes = [8, 48], strides = [1, 1]} : vector<8x64xf32> to vector<8x48xf32>
      %52 = arith.negf %51 : vector<8x48xf32>
      %53 = math.exp %52 : vector<8x48xf32>
      %cst_27 = arith.constant 1.000000e+00 : f32
      %54 = vector.broadcast %cst_27 : f32 to vector<8x48xf32>
      %55 = arith.addf %54, %53 : vector<8x48xf32>
      %56 = arith.divf %54, %55 : vector<8x48xf32>
      %57 = vector.extract_strided_slice %50 {offsets = [0, 48], sizes = [8, 16], strides = [1, 1]} : vector<8x64xf32> to vector<8x16xf32>
      %58 = math.tanh %57 : vector<8x16xf32>
      %59 = vector.extract_strided_slice %56 {offsets = [0, 0], sizes = [8, 16], strides = [1, 1]} : vector<8x48xf32> to vector<8x16xf32>
      %60 = vector.extract_strided_slice %56 {offsets = [0, 16], sizes = [8, 16], strides = [1, 1]} : vector<8x48xf32> to vector<8x16xf32>
      %61 = vector.extract_strided_slice %56 {offsets = [0, 32], sizes = [8, 16], strides = [1, 1]} : vector<8x48xf32> to vector<8x16xf32>
      %62 = arith.mulf %60, %41 : vector<8x16xf32>
      %63 = arith.mulf %59, %58 : vector<8x16xf32>
      %64 = arith.addf %62, %63 : vector<8x16xf32>
      %65 = math.tanh %64 : vector<8x16xf32>
      %66 = arith.mulf %61, %65 : vector<8x16xf32>
      %c0_28 = arith.constant 0 : index
      %c1 = arith.constant 1 : index
      %c0_29 = arith.constant 0 : index
      %c0_30 = arith.constant 0 : index
      %67 = vector.load %arg8[%c0_28, %c1, %c0_29, %c0_30] : memref<1x8x8x16xf32, #tpu.memory_space<vmem>>, vector<1x1x8x16xf32>
      %68 = vector.shape_cast %67 : vector<1x1x8x16xf32> to vector<8x16xf32>
      %69 = vector.shape_cast %66 : vector<8x16xf32> to vector<1x1x8x16xf32>
      tpu.vector_store %arg8[%c0_28, %c1, %c0_29, %c0_30], %69 {strides = array<i32>} : memref<1x8x8x16xf32, #tpu.memory_space<vmem>>, vector<1x1x8x16xf32>,
      %70 = vector.extract_strided_slice %10 {offsets = [16, 0], sizes = [8, 64], strides = [1, 1]} : vector<64x64xf32> to vector<8x64xf32>
      %71 = arith.truncf %66 : vector<8x16xf32> to vector<8x16xbf16>
      %cst_31 = arith.constant dense<0.000000e+00> : vector<8x64xf32>
      %72 = tpu.matmul %71, %12, %cst_31 {dimension_numbers = #tpu.dot_dimension_numbers<[1], [0], [0], [1], [0, 0, 1, 1], [], []>} : vector<8x16xbf16>, vector<16x64xbf16>, vector<8x64xf32> -> vector<8x64xf32>
      %73 = arith.addf %70, %72 : vector<8x64xf32>
      %74 = vector.extract_strided_slice %73 {offsets = [0, 0], sizes = [8, 48], strides = [1, 1]} : vector<8x64xf32> to vector<8x48xf32>
      %75 = arith.negf %74 : vector<8x48xf32>
      %76 = math.exp %75 : vector<8x48xf32>
      %cst_32 = arith.constant 1.000000e+00 : f32
      %77 = vector.broadcast %cst_32 : f32 to vector<8x48xf32>
      %78 = arith.addf %77, %76 : vector<8x48xf32>
      %79 = arith.divf %77, %78 : vector<8x48xf32>
      %80 = vector.extract_strided_slice %73 {offsets = [0, 48], sizes = [8, 16], strides = [1, 1]} : vector<8x64xf32> to vector<8x16xf32>
      %81 = math.tanh %80 : vector<8x16xf32>
      %82 = vector.extract_strided_slice %79 {offsets = [0, 0], sizes = [8, 16], strides = [1, 1]} : vector<8x48xf32> to vector<8x16xf32>
      %83 = vector.extract_strided_slice %79 {offsets = [0, 16], sizes = [8, 16], strides = [1, 1]} : vector<8x48xf32> to vector<8x16xf32>
      %84 = vector.extract_strided_slice %79 {offsets = [0, 32], sizes = [8, 16], strides = [1, 1]} : vector<8x48xf32> to vector<8x16xf32>
      %85 = arith.mulf %83, %64 : vector<8x16xf32>
      %86 = arith.mulf %82, %81 : vector<8x16xf32>
      %87 = arith.addf %85, %86 : vector<8x16xf32>
      %88 = math.tanh %87 : vector<8x16xf32>
      %89 = arith.mulf %84, %88 : vector<8x16xf32>
      %c0_33 = arith.constant 0 : index
      %c2 = arith.constant 2 : index
      %c0_34 = arith.constant 0 : index
      %c0_35 = arith.constant 0 : index
      %90 = vector.load %arg8[%c0_33, %c2, %c0_34, %c0_35] : memref<1x8x8x16xf32, #tpu.memory_space<vmem>>, vector<1x1x8x16xf32>
      %91 = vector.shape_cast %90 : vector<1x1x8x16xf32> to vector<8x16xf32>
      %92 = vector.shape_cast %89 : vector<8x16xf32> to vector<1x1x8x16xf32>
      tpu.vector_store %arg8[%c0_33, %c2, %c0_34, %c0_35], %92 {strides = array<i32>} : memref<1x8x8x16xf32, #tpu.memory_space<vmem>>, vector<1x1x8x16xf32>,
      %93 = vector.extract_strided_slice %10 {offsets = [24, 0], sizes = [8, 64], strides = [1, 1]} : vector<64x64xf32> to vector<8x64xf32>
      %94 = arith.truncf %89 : vector<8x16xf32> to vector<8x16xbf16>
      %cst_36 = arith.constant dense<0.000000e+00> : vector<8x64xf32>
      %95 = tpu.matmul %94, %12, %cst_36 {dimension_numbers = #tpu.dot_dimension_numbers<[1], [0], [0], [1], [0, 0, 1, 1], [], []>} : vector<8x16xbf16>, vector<16x64xbf16>, vector<8x64xf32> -> vector<8x64xf32>
      %96 = arith.addf %93, %95 : vector<8x64xf32>
      %97 = vector.extract_strided_slice %96 {offsets = [0, 0], sizes = [8, 48], strides = [1, 1]} : vector<8x64xf32> to vector<8x48xf32>
      %98 = arith.negf %97 : vector<8x48xf32>
      %99 = math.exp %98 : vector<8x48xf32>
      %cst_37 = arith.constant 1.000000e+00 : f32
      %100 = vector.broadcast %cst_37 : f32 to vector<8x48xf32>
      %101 = arith.addf %100, %99 : vector<8x48xf32>
      %102 = arith.divf %100, %101 : vector<8x48xf32>
      %103 = vector.extract_strided_slice %96 {offsets = [0, 48], sizes = [8, 16], strides = [1, 1]} : vector<8x64xf32> to vector<8x16xf32>
      %104 = math.tanh %103 : vector<8x16xf32>
      %105 = vector.extract_strided_slice %102 {offsets = [0, 0], sizes = [8, 16], strides = [1, 1]} : vector<8x48xf32> to vector<8x16xf32>
      %106 = vector.extract_strided_slice %102 {offsets = [0, 16], sizes = [8, 16], strides = [1, 1]} : vector<8x48xf32> to vector<8x16xf32>
      %107 = vector.extract_strided_slice %102 {offsets = [0, 32], sizes = [8, 16], strides = [1, 1]} : vector<8x48xf32> to vector<8x16xf32>
      %108 = arith.mulf %106, %87 : vector<8x16xf32>
      %109 = arith.mulf %105, %104 : vector<8x16xf32>
      %110 = arith.addf %108, %109 : vector<8x16xf32>
      %111 = math.tanh %110 : vector<8x16xf32>
      %112 = arith.mulf %107, %111 : vector<8x16xf32>
      %c0_38 = arith.constant 0 : index
      %c3 = arith.constant 3 : index
      %c0_39 = arith.constant 0 : index
      %c0_40 = arith.constant 0 : index
      %113 = vector.load %arg8[%c0_38, %c3, %c0_39, %c0_40] : memref<1x8x8x16xf32, #tpu.memory_space<vmem>>, vector<1x1x8x16xf32>
      %114 = vector.shape_cast %113 : vector<1x1x8x16xf32> to vector<8x16xf32>
      %115 = vector.shape_cast %112 : vector<8x16xf32> to vector<1x1x8x16xf32>
      tpu.vector_store %arg8[%c0_38, %c3, %c0_39, %c0_40], %115 {strides = array<i32>} : memref<1x8x8x16xf32, #tpu.memory_space<vmem>>, vector<1x1x8x16xf32>,
      %116 = vector.extract_strided_slice %10 {offsets = [32, 0], sizes = [8, 64], strides = [1, 1]} : vector<64x64xf32> to vector<8x64xf32>
      %117 = arith.truncf %112 : vector<8x16xf32> to vector<8x16xbf16>
      %cst_41 = arith.constant dense<0.000000e+00> : vector<8x64xf32>
      %118 = tpu.matmul %117, %12, %cst_41 {dimension_numbers = #tpu.dot_dimension_numbers<[1], [0], [0], [1], [0, 0, 1, 1], [], []>} : vector<8x16xbf16>, vector<16x64xbf16>, vector<8x64xf32> -> vector<8x64xf32>
      %119 = arith.addf %116, %118 : vector<8x64xf32>
      %120 = vector.extract_strided_slice %119 {offsets = [0, 0], sizes = [8, 48], strides = [1, 1]} : vector<8x64xf32> to vector<8x48xf32>
      %121 = arith.negf %120 : vector<8x48xf32>
      %122 = math.exp %121 : vector<8x48xf32>
      %cst_42 = arith.constant 1.000000e+00 : f32
      %123 = vector.broadcast %cst_42 : f32 to vector<8x48xf32>
      %124 = arith.addf %123, %122 : vector<8x48xf32>
      %125 = arith.divf %123, %124 : vector<8x48xf32>
      %126 = vector.extract_strided_slice %119 {offsets = [0, 48], sizes = [8, 16], strides = [1, 1]} : vector<8x64xf32> to vector<8x16xf32>
      %127 = math.tanh %126 : vector<8x16xf32>
      %128 = vector.extract_strided_slice %125 {offsets = [0, 0], sizes = [8, 16], strides = [1, 1]} : vector<8x48xf32> to vector<8x16xf32>
      %129 = vector.extract_strided_slice %125 {offsets = [0, 16], sizes = [8, 16], strides = [1, 1]} : vector<8x48xf32> to vector<8x16xf32>
      %130 = vector.extract_strided_slice %125 {offsets = [0, 32], sizes = [8, 16], strides = [1, 1]} : vector<8x48xf32> to vector<8x16xf32>
      %131 = arith.mulf %129, %110 : vector<8x16xf32>
      %132 = arith.mulf %128, %127 : vector<8x16xf32>
      %133 = arith.addf %131, %132 : vector<8x16xf32>
      %134 = math.tanh %133 : vector<8x16xf32>
      %135 = arith.mulf %130, %134 : vector<8x16xf32>
      %c0_43 = arith.constant 0 : index
      %c4 = arith.constant 4 : index
      %c0_44 = arith.constant 0 : index
      %c0_45 = arith.constant 0 : index
      %136 = vector.load %arg8[%c0_43, %c4, %c0_44, %c0_45] : memref<1x8x8x16xf32, #tpu.memory_space<vmem>>, vector<1x1x8x16xf32>
      %137 = vector.shape_cast %136 : vector<1x1x8x16xf32> to vector<8x16xf32>
      %138 = vector.shape_cast %135 : vector<8x16xf32> to vector<1x1x8x16xf32>
      tpu.vector_store %arg8[%c0_43, %c4, %c0_44, %c0_45], %138 {strides = array<i32>} : memref<1x8x8x16xf32, #tpu.memory_space<vmem>>, vector<1x1x8x16xf32>,
      %139 = vector.extract_strided_slice %10 {offsets = [40, 0], sizes = [8, 64], strides = [1, 1]} : vector<64x64xf32> to vector<8x64xf32>
      %140 = arith.truncf %135 : vector<8x16xf32> to vector<8x16xbf16>
      %cst_46 = arith.constant dense<0.000000e+00> : vector<8x64xf32>
      %141 = tpu.matmul %140, %12, %cst_46 {dimension_numbers = #tpu.dot_dimension_numbers<[1], [0], [0], [1], [0, 0, 1, 1], [], []>} : vector<8x16xbf16>, vector<16x64xbf16>, vector<8x64xf32> -> vector<8x64xf32>
      %142 = arith.addf %139, %141 : vector<8x64xf32>
      %143 = vector.extract_strided_slice %142 {offsets = [0, 0], sizes = [8, 48], strides = [1, 1]} : vector<8x64xf32> to vector<8x48xf32>
      %144 = arith.negf %143 : vector<8x48xf32>
      %145 = math.exp %144 : vector<8x48xf32>
      %cst_47 = arith.constant 1.000000e+00 : f32
      %146 = vector.broadcast %cst_47 : f32 to vector<8x48xf32>
      %147 = arith.addf %146, %145 : vector<8x48xf32>
      %148 = arith.divf %146, %147 : vector<8x48xf32>
      %149 = vector.extract_strided_slice %142 {offsets = [0, 48], sizes = [8, 16], strides = [1, 1]} : vector<8x64xf32> to vector<8x16xf32>
      %150 = math.tanh %149 : vector<8x16xf32>
      %151 = vector.extract_strided_slice %148 {offsets = [0, 0], sizes = [8, 16], strides = [1, 1]} : vector<8x48xf32> to vector<8x16xf32>
      %152 = vector.extract_strided_slice %148 {offsets = [0, 16], sizes = [8, 16], strides = [1, 1]} : vector<8x48xf32> to vector<8x16xf32>
      %153 = vector.extract_strided_slice %148 {offsets = [0, 32], sizes = [8, 16], strides = [1, 1]} : vector<8x48xf32> to vector<8x16xf32>
      %154 = arith.mulf %152, %133 : vector<8x16xf32>
      %155 = arith.mulf %151, %150 : vector<8x16xf32>
      %156 = arith.addf %154, %155 : vector<8x16xf32>
      %157 = math.tanh %156 : vector<8x16xf32>
      %158 = arith.mulf %153, %157 : vector<8x16xf32>
      %c0_48 = arith.constant 0 : index
      %c5 = arith.constant 5 : index
      %c0_49 = arith.constant 0 : index
      %c0_50 = arith.constant 0 : index
      %159 = vector.load %arg8[%c0_48, %c5, %c0_49, %c0_50] : memref<1x8x8x16xf32, #tpu.memory_space<vmem>>, vector<1x1x8x16xf32>
      %160 = vector.shape_cast %159 : vector<1x1x8x16xf32> to vector<8x16xf32>
      %161 = vector.shape_cast %158 : vector<8x16xf32> to vector<1x1x8x16xf32>
      tpu.vector_store %arg8[%c0_48, %c5, %c0_49, %c0_50], %161 {strides = array<i32>} : memref<1x8x8x16xf32, #tpu.memory_space<vmem>>, vector<1x1x8x16xf32>,
      %162 = vector.extract_strided_slice %10 {offsets = [48, 0], sizes = [8, 64], strides = [1, 1]} : vector<64x64xf32> to vector<8x64xf32>
      %163 = arith.truncf %158 : vector<8x16xf32> to vector<8x16xbf16>
      %cst_51 = arith.constant dense<0.000000e+00> : vector<8x64xf32>
      %164 = tpu.matmul %163, %12, %cst_51 {dimension_numbers = #tpu.dot_dimension_numbers<[1], [0], [0], [1], [0, 0, 1, 1], [], []>} : vector<8x16xbf16>, vector<16x64xbf16>, vector<8x64xf32> -> vector<8x64xf32>
      %165 = arith.addf %162, %164 : vector<8x64xf32>
      %166 = vector.extract_strided_slice %165 {offsets = [0, 0], sizes = [8, 48], strides = [1, 1]} : vector<8x64xf32> to vector<8x48xf32>
      %167 = arith.negf %166 : vector<8x48xf32>
      %168 = math.exp %167 : vector<8x48xf32>
      %cst_52 = arith.constant 1.000000e+00 : f32
      %169 = vector.broadcast %cst_52 : f32 to vector<8x48xf32>
      %170 = arith.addf %169, %168 : vector<8x48xf32>
      %171 = arith.divf %169, %170 : vector<8x48xf32>
      %172 = vector.extract_strided_slice %165 {offsets = [0, 48], sizes = [8, 16], strides = [1, 1]} : vector<8x64xf32> to vector<8x16xf32>
      %173 = math.tanh %172 : vector<8x16xf32>
      %174 = vector.extract_strided_slice %171 {offsets = [0, 0], sizes = [8, 16], strides = [1, 1]} : vector<8x48xf32> to vector<8x16xf32>
      %175 = vector.extract_strided_slice %171 {offsets = [0, 16], sizes = [8, 16], strides = [1, 1]} : vector<8x48xf32> to vector<8x16xf32>
      %176 = vector.extract_strided_slice %171 {offsets = [0, 32], sizes = [8, 16], strides = [1, 1]} : vector<8x48xf32> to vector<8x16xf32>
      %177 = arith.mulf %175, %156 : vector<8x16xf32>
      %178 = arith.mulf %174, %173 : vector<8x16xf32>
      %179 = arith.addf %177, %178 : vector<8x16xf32>
      %180 = math.tanh %179 : vector<8x16xf32>
      %181 = arith.mulf %176, %180 : vector<8x16xf32>
      %c0_53 = arith.constant 0 : index
      %c6 = arith.constant 6 : index
      %c0_54 = arith.constant 0 : index
      %c0_55 = arith.constant 0 : index
      %182 = vector.load %arg8[%c0_53, %c6, %c0_54, %c0_55] : memref<1x8x8x16xf32, #tpu.memory_space<vmem>>, vector<1x1x8x16xf32>
      %183 = vector.shape_cast %182 : vector<1x1x8x16xf32> to vector<8x16xf32>
      %184 = vector.shape_cast %181 : vector<8x16xf32> to vector<1x1x8x16xf32>
      tpu.vector_store %arg8[%c0_53, %c6, %c0_54, %c0_55], %184 {strides = array<i32>} : memref<1x8x8x16xf32, #tpu.memory_space<vmem>>, vector<1x1x8x16xf32>,
      %185 = vector.extract_strided_slice %10 {offsets = [56, 0], sizes = [8, 64], strides = [1, 1]} : vector<64x64xf32> to vector<8x64xf32>
      %186 = arith.truncf %181 : vector<8x16xf32> to vector<8x16xbf16>
      %cst_56 = arith.constant dense<0.000000e+00> : vector<8x64xf32>
      %187 = tpu.matmul %186, %12, %cst_56 {dimension_numbers = #tpu.dot_dimension_numbers<[1], [0], [0], [1], [0, 0, 1, 1], [], []>} : vector<8x16xbf16>, vector<16x64xbf16>, vector<8x64xf32> -> vector<8x64xf32>
      %188 = arith.addf %185, %187 : vector<8x64xf32>
      %189 = vector.extract_strided_slice %188 {offsets = [0, 0], sizes = [8, 48], strides = [1, 1]} : vector<8x64xf32> to vector<8x48xf32>
      %190 = arith.negf %189 : vector<8x48xf32>
      %191 = math.exp %190 : vector<8x48xf32>
      %cst_57 = arith.constant 1.000000e+00 : f32
      %192 = vector.broadcast %cst_57 : f32 to vector<8x48xf32>
      %193 = arith.addf %192, %191 : vector<8x48xf32>
      %194 = arith.divf %192, %193 : vector<8x48xf32>
      %195 = vector.extract_strided_slice %188 {offsets = [0, 48], sizes = [8, 16], strides = [1, 1]} : vector<8x64xf32> to vector<8x16xf32>
      %196 = math.tanh %195 : vector<8x16xf32>
      %197 = vector.extract_strided_slice %194 {offsets = [0, 0], sizes = [8, 16], strides = [1, 1]} : vector<8x48xf32> to vector<8x16xf32>
      %198 = vector.extract_strided_slice %194 {offsets = [0, 16], sizes = [8, 16], strides = [1, 1]} : vector<8x48xf32> to vector<8x16xf32>
      %199 = vector.extract_strided_slice %194 {offsets = [0, 32], sizes = [8, 16], strides = [1, 1]} : vector<8x48xf32> to vector<8x16xf32>
      %200 = arith.mulf %198, %179 : vector<8x16xf32>
      %201 = arith.mulf %197, %196 : vector<8x16xf32>
      %202 = arith.addf %200, %201 : vector<8x16xf32>
      %203 = math.tanh %202 : vector<8x16xf32>
      %204 = arith.mulf %199, %203 : vector<8x16xf32>
      %c0_58 = arith.constant 0 : index
      %c7 = arith.constant 7 : index
      %c0_59 = arith.constant 0 : index
      %c0_60 = arith.constant 0 : index
      %205 = vector.load %arg8[%c0_58, %c7, %c0_59, %c0_60] : memref<1x8x8x16xf32, #tpu.memory_space<vmem>>, vector<1x1x8x16xf32>
      %206 = vector.shape_cast %205 : vector<1x1x8x16xf32> to vector<8x16xf32>
      %207 = vector.shape_cast %204 : vector<8x16xf32> to vector<1x1x8x16xf32>
      tpu.vector_store %arg8[%c0_58, %c7, %c0_59, %c0_60], %207 {strides = array<i32>} : memref<1x8x8x16xf32, #tpu.memory_space<vmem>>, vector<1x1x8x16xf32>,
      %c0_61 = arith.constant 0 : index
      %c0_62 = arith.constant 0 : index
      %208 = vector.load %arg11[%c0_61, %c0_62] : memref<8x16xf32, #tpu.memory_space<vmem>>, vector<8x16xf32>
      tpu.vector_store %arg11[%c0_61, %c0_62], %204 {strides = array<i32>} : memref<8x16xf32, #tpu.memory_space<vmem>>, vector<8x16xf32>,
      %c0_63 = arith.constant 0 : index
      %c0_64 = arith.constant 0 : index
      %209 = vector.load %arg12[%c0_63, %c0_64] : memref<8x16xf32, #tpu.memory_space<vmem>>, vector<8x16xf32>
      tpu.vector_store %arg12[%c0_63, %c0_64], %202 {strides = array<i32>} : memref<8x16xf32, #tpu.memory_space<vmem>>, vector<8x16xf32>,
    } else {
    }
    %c1_i32 = arith.constant 1 : i32
    %16 = arith.cmpi eq, %arg0, %c1_i32 : i32
    %17 = arith.extui %16 : i1 to i32
    %c0_i32_13 = arith.constant 0 : i32
    %18 = arith.cmpi ne, %17, %c0_i32_13 : i32
    scf.if %18 {
      %c0_16 = arith.constant 0 : index
      %c0_17 = arith.constant 0 : index
      %22 = vector.load %arg11[%c0_16, %c0_17] : memref<8x16xf32, #tpu.memory_space<vmem>>, vector<8x16xf32>
      %c0_18 = arith.constant 0 : index
      %c0_19 = arith.constant 0 : index
      %23 = vector.load %arg12[%c0_18, %c0_19] : memref<8x16xf32, #tpu.memory_space<vmem>>, vector<8x16xf32>
      %24 = vector.extract_strided_slice %10 {offsets = [56, 0], sizes = [8, 64], strides = [1, 1]} : vector<64x64xf32> to vector<8x64xf32>
      %25 = arith.truncf %22 : vector<8x16xf32> to vector<8x16xbf16>
      %cst_20 = arith.constant dense<0.000000e+00> : vector<8x64xf32>
      %26 = tpu.matmul %25, %12, %cst_20 {dimension_numbers = #tpu.dot_dimension_numbers<[1], [0], [0], [1], [0, 0, 1, 1], [], []>} : vector<8x16xbf16>, vector<16x64xbf16>, vector<8x64xf32> -> vector<8x64xf32>
      %27 = arith.addf %24, %26 : vector<8x64xf32>
      %28 = vector.extract_strided_slice %27 {offsets = [0, 0], sizes = [8, 48], strides = [1, 1]} : vector<8x64xf32> to vector<8x48xf32>
      %29 = arith.negf %28 : vector<8x48xf32>
      %30 = math.exp %29 : vector<8x48xf32>
      %cst_21 = arith.constant 1.000000e+00 : f32
      %31 = vector.broadcast %cst_21 : f32 to vector<8x48xf32>
      %32 = arith.addf %31, %30 : vector<8x48xf32>
      %33 = arith.divf %31, %32 : vector<8x48xf32>
      %34 = vector.extract_strided_slice %27 {offsets = [0, 48], sizes = [8, 16], strides = [1, 1]} : vector<8x64xf32> to vector<8x16xf32>
      %35 = math.tanh %34 : vector<8x16xf32>
      %36 = vector.extract_strided_slice %33 {offsets = [0, 0], sizes = [8, 16], strides = [1, 1]} : vector<8x48xf32> to vector<8x16xf32>
      %37 = vector.extract_strided_slice %33 {offsets = [0, 16], sizes = [8, 16], strides = [1, 1]} : vector<8x48xf32> to vector<8x16xf32>
      %38 = vector.extract_strided_slice %33 {offsets = [0, 32], sizes = [8, 16], strides = [1, 1]} : vector<8x48xf32> to vector<8x16xf32>
      %39 = arith.mulf %37, %23 : vector<8x16xf32>
      %40 = arith.mulf %36, %35 : vector<8x16xf32>
      %41 = arith.addf %39, %40 : vector<8x16xf32>
      %42 = math.tanh %41 : vector<8x16xf32>
      %43 = arith.mulf %38, %42 : vector<8x16xf32>
      %c0_22 = arith.constant 0 : index
      %c7 = arith.constant 7 : index
      %c0_23 = arith.constant 0 : index
      %c0_24 = arith.constant 0 : index
      %44 = vector.load %arg8[%c0_22, %c7, %c0_23, %c0_24] : memref<1x8x8x16xf32, #tpu.memory_space<vmem>>, vector<1x1x8x16xf32>
      %45 = vector.shape_cast %44 : vector<1x1x8x16xf32> to vector<8x16xf32>
      %46 = vector.shape_cast %43 : vector<8x16xf32> to vector<1x1x8x16xf32>
      tpu.vector_store %arg8[%c0_22, %c7, %c0_23, %c0_24], %46 {strides = array<i32>} : memref<1x8x8x16xf32, #tpu.memory_space<vmem>>, vector<1x1x8x16xf32>,
      %47 = vector.extract_strided_slice %10 {offsets = [48, 0], sizes = [8, 64], strides = [1, 1]} : vector<64x64xf32> to vector<8x64xf32>
      %48 = arith.truncf %43 : vector<8x16xf32> to vector<8x16xbf16>
      %cst_25 = arith.constant dense<0.000000e+00> : vector<8x64xf32>
      %49 = tpu.matmul %48, %12, %cst_25 {dimension_numbers = #tpu.dot_dimension_numbers<[1], [0], [0], [1], [0, 0, 1, 1], [], []>} : vector<8x16xbf16>, vector<16x64xbf16>, vector<8x64xf32> -> vector<8x64xf32>
      %50 = arith.addf %47, %49 : vector<8x64xf32>
      %51 = vector.extract_strided_slice %50 {offsets = [0, 0], sizes = [8, 48], strides = [1, 1]} : vector<8x64xf32> to vector<8x48xf32>
      %52 = arith.negf %51 : vector<8x48xf32>
      %53 = math.exp %52 : vector<8x48xf32>
      %cst_26 = arith.constant 1.000000e+00 : f32
      %54 = vector.broadcast %cst_26 : f32 to vector<8x48xf32>
      %55 = arith.addf %54, %53 : vector<8x48xf32>
      %56 = arith.divf %54, %55 : vector<8x48xf32>
      %57 = vector.extract_strided_slice %50 {offsets = [0, 48], sizes = [8, 16], strides = [1, 1]} : vector<8x64xf32> to vector<8x16xf32>
      %58 = math.tanh %57 : vector<8x16xf32>
      %59 = vector.extract_strided_slice %56 {offsets = [0, 0], sizes = [8, 16], strides = [1, 1]} : vector<8x48xf32> to vector<8x16xf32>
      %60 = vector.extract_strided_slice %56 {offsets = [0, 16], sizes = [8, 16], strides = [1, 1]} : vector<8x48xf32> to vector<8x16xf32>
      %61 = vector.extract_strided_slice %56 {offsets = [0, 32], sizes = [8, 16], strides = [1, 1]} : vector<8x48xf32> to vector<8x16xf32>
      %62 = arith.mulf %60, %41 : vector<8x16xf32>
      %63 = arith.mulf %59, %58 : vector<8x16xf32>
      %64 = arith.addf %62, %63 : vector<8x16xf32>
      %65 = math.tanh %64 : vector<8x16xf32>
      %66 = arith.mulf %61, %65 : vector<8x16xf32>
      %c0_27 = arith.constant 0 : index
      %c6 = arith.constant 6 : index
      %c0_28 = arith.constant 0 : index
      %c0_29 = arith.constant 0 : index
      %67 = vector.load %arg8[%c0_27, %c6, %c0_28, %c0_29] : memref<1x8x8x16xf32, #tpu.memory_space<vmem>>, vector<1x1x8x16xf32>
      %68 = vector.shape_cast %67 : vector<1x1x8x16xf32> to vector<8x16xf32>
      %69 = vector.shape_cast %66 : vector<8x16xf32> to vector<1x1x8x16xf32>
      tpu.vector_store %arg8[%c0_27, %c6, %c0_28, %c0_29], %69 {strides = array<i32>} : memref<1x8x8x16xf32, #tpu.memory_space<vmem>>, vector<1x1x8x16xf32>,
      %70 = vector.extract_strided_slice %10 {offsets = [40, 0], sizes = [8, 64], strides = [1, 1]} : vector<64x64xf32> to vector<8x64xf32>
      %71 = arith.truncf %66 : vector<8x16xf32> to vector<8x16xbf16>
      %cst_30 = arith.constant dense<0.000000e+00> : vector<8x64xf32>
      %72 = tpu.matmul %71, %12, %cst_30 {dimension_numbers = #tpu.dot_dimension_numbers<[1], [0], [0], [1], [0, 0, 1, 1], [], []>} : vector<8x16xbf16>, vector<16x64xbf16>, vector<8x64xf32> -> vector<8x64xf32>
      %73 = arith.addf %70, %72 : vector<8x64xf32>
      %74 = vector.extract_strided_slice %73 {offsets = [0, 0], sizes = [8, 48], strides = [1, 1]} : vector<8x64xf32> to vector<8x48xf32>
      %75 = arith.negf %74 : vector<8x48xf32>
      %76 = math.exp %75 : vector<8x48xf32>
      %cst_31 = arith.constant 1.000000e+00 : f32
      %77 = vector.broadcast %cst_31 : f32 to vector<8x48xf32>
      %78 = arith.addf %77, %76 : vector<8x48xf32>
      %79 = arith.divf %77, %78 : vector<8x48xf32>
      %80 = vector.extract_strided_slice %73 {offsets = [0, 48], sizes = [8, 16], strides = [1, 1]} : vector<8x64xf32> to vector<8x16xf32>
      %81 = math.tanh %80 : vector<8x16xf32>
      %82 = vector.extract_strided_slice %79 {offsets = [0, 0], sizes = [8, 16], strides = [1, 1]} : vector<8x48xf32> to vector<8x16xf32>
      %83 = vector.extract_strided_slice %79 {offsets = [0, 16], sizes = [8, 16], strides = [1, 1]} : vector<8x48xf32> to vector<8x16xf32>
      %84 = vector.extract_strided_slice %79 {offsets = [0, 32], sizes = [8, 16], strides = [1, 1]} : vector<8x48xf32> to vector<8x16xf32>
      %85 = arith.mulf %83, %64 : vector<8x16xf32>
      %86 = arith.mulf %82, %81 : vector<8x16xf32>
      %87 = arith.addf %85, %86 : vector<8x16xf32>
      %88 = math.tanh %87 : vector<8x16xf32>
      %89 = arith.mulf %84, %88 : vector<8x16xf32>
      %c0_32 = arith.constant 0 : index
      %c5 = arith.constant 5 : index
      %c0_33 = arith.constant 0 : index
      %c0_34 = arith.constant 0 : index
      %90 = vector.load %arg8[%c0_32, %c5, %c0_33, %c0_34] : memref<1x8x8x16xf32, #tpu.memory_space<vmem>>, vector<1x1x8x16xf32>
      %91 = vector.shape_cast %90 : vector<1x1x8x16xf32> to vector<8x16xf32>
      %92 = vector.shape_cast %89 : vector<8x16xf32> to vector<1x1x8x16xf32>
      tpu.vector_store %arg8[%c0_32, %c5, %c0_33, %c0_34], %92 {strides = array<i32>} : memref<1x8x8x16xf32, #tpu.memory_space<vmem>>, vector<1x1x8x16xf32>,
      %93 = vector.extract_strided_slice %10 {offsets = [32, 0], sizes = [8, 64], strides = [1, 1]} : vector<64x64xf32> to vector<8x64xf32>
      %94 = arith.truncf %89 : vector<8x16xf32> to vector<8x16xbf16>
      %cst_35 = arith.constant dense<0.000000e+00> : vector<8x64xf32>
      %95 = tpu.matmul %94, %12, %cst_35 {dimension_numbers = #tpu.dot_dimension_numbers<[1], [0], [0], [1], [0, 0, 1, 1], [], []>} : vector<8x16xbf16>, vector<16x64xbf16>, vector<8x64xf32> -> vector<8x64xf32>
      %96 = arith.addf %93, %95 : vector<8x64xf32>
      %97 = vector.extract_strided_slice %96 {offsets = [0, 0], sizes = [8, 48], strides = [1, 1]} : vector<8x64xf32> to vector<8x48xf32>
      %98 = arith.negf %97 : vector<8x48xf32>
      %99 = math.exp %98 : vector<8x48xf32>
      %cst_36 = arith.constant 1.000000e+00 : f32
      %100 = vector.broadcast %cst_36 : f32 to vector<8x48xf32>
      %101 = arith.addf %100, %99 : vector<8x48xf32>
      %102 = arith.divf %100, %101 : vector<8x48xf32>
      %103 = vector.extract_strided_slice %96 {offsets = [0, 48], sizes = [8, 16], strides = [1, 1]} : vector<8x64xf32> to vector<8x16xf32>
      %104 = math.tanh %103 : vector<8x16xf32>
      %105 = vector.extract_strided_slice %102 {offsets = [0, 0], sizes = [8, 16], strides = [1, 1]} : vector<8x48xf32> to vector<8x16xf32>
      %106 = vector.extract_strided_slice %102 {offsets = [0, 16], sizes = [8, 16], strides = [1, 1]} : vector<8x48xf32> to vector<8x16xf32>
      %107 = vector.extract_strided_slice %102 {offsets = [0, 32], sizes = [8, 16], strides = [1, 1]} : vector<8x48xf32> to vector<8x16xf32>
      %108 = arith.mulf %106, %87 : vector<8x16xf32>
      %109 = arith.mulf %105, %104 : vector<8x16xf32>
      %110 = arith.addf %108, %109 : vector<8x16xf32>
      %111 = math.tanh %110 : vector<8x16xf32>
      %112 = arith.mulf %107, %111 : vector<8x16xf32>
      %c0_37 = arith.constant 0 : index
      %c4 = arith.constant 4 : index
      %c0_38 = arith.constant 0 : index
      %c0_39 = arith.constant 0 : index
      %113 = vector.load %arg8[%c0_37, %c4, %c0_38, %c0_39] : memref<1x8x8x16xf32, #tpu.memory_space<vmem>>, vector<1x1x8x16xf32>
      %114 = vector.shape_cast %113 : vector<1x1x8x16xf32> to vector<8x16xf32>
      %115 = vector.shape_cast %112 : vector<8x16xf32> to vector<1x1x8x16xf32>
      tpu.vector_store %arg8[%c0_37, %c4, %c0_38, %c0_39], %115 {strides = array<i32>} : memref<1x8x8x16xf32, #tpu.memory_space<vmem>>, vector<1x1x8x16xf32>,
      %116 = vector.extract_strided_slice %10 {offsets = [24, 0], sizes = [8, 64], strides = [1, 1]} : vector<64x64xf32> to vector<8x64xf32>
      %117 = arith.truncf %112 : vector<8x16xf32> to vector<8x16xbf16>
      %cst_40 = arith.constant dense<0.000000e+00> : vector<8x64xf32>
      %118 = tpu.matmul %117, %12, %cst_40 {dimension_numbers = #tpu.dot_dimension_numbers<[1], [0], [0], [1], [0, 0, 1, 1], [], []>} : vector<8x16xbf16>, vector<16x64xbf16>, vector<8x64xf32> -> vector<8x64xf32>
      %119 = arith.addf %116, %118 : vector<8x64xf32>
      %120 = vector.extract_strided_slice %119 {offsets = [0, 0], sizes = [8, 48], strides = [1, 1]} : vector<8x64xf32> to vector<8x48xf32>
      %121 = arith.negf %120 : vector<8x48xf32>
      %122 = math.exp %121 : vector<8x48xf32>
      %cst_41 = arith.constant 1.000000e+00 : f32
      %123 = vector.broadcast %cst_41 : f32 to vector<8x48xf32>
      %124 = arith.addf %123, %122 : vector<8x48xf32>
      %125 = arith.divf %123, %124 : vector<8x48xf32>
      %126 = vector.extract_strided_slice %119 {offsets = [0, 48], sizes = [8, 16], strides = [1, 1]} : vector<8x64xf32> to vector<8x16xf32>
      %127 = math.tanh %126 : vector<8x16xf32>
      %128 = vector.extract_strided_slice %125 {offsets = [0, 0], sizes = [8, 16], strides = [1, 1]} : vector<8x48xf32> to vector<8x16xf32>
      %129 = vector.extract_strided_slice %125 {offsets = [0, 16], sizes = [8, 16], strides = [1, 1]} : vector<8x48xf32> to vector<8x16xf32>
      %130 = vector.extract_strided_slice %125 {offsets = [0, 32], sizes = [8, 16], strides = [1, 1]} : vector<8x48xf32> to vector<8x16xf32>
      %131 = arith.mulf %129, %110 : vector<8x16xf32>
      %132 = arith.mulf %128, %127 : vector<8x16xf32>
      %133 = arith.addf %131, %132 : vector<8x16xf32>
      %134 = math.tanh %133 : vector<8x16xf32>
      %135 = arith.mulf %130, %134 : vector<8x16xf32>
      %c0_42 = arith.constant 0 : index
      %c3 = arith.constant 3 : index
      %c0_43 = arith.constant 0 : index
      %c0_44 = arith.constant 0 : index
      %136 = vector.load %arg8[%c0_42, %c3, %c0_43, %c0_44] : memref<1x8x8x16xf32, #tpu.memory_space<vmem>>, vector<1x1x8x16xf32>
      %137 = vector.shape_cast %136 : vector<1x1x8x16xf32> to vector<8x16xf32>
      %138 = vector.shape_cast %135 : vector<8x16xf32> to vector<1x1x8x16xf32>
      tpu.vector_store %arg8[%c0_42, %c3, %c0_43, %c0_44], %138 {strides = array<i32>} : memref<1x8x8x16xf32, #tpu.memory_space<vmem>>, vector<1x1x8x16xf32>,
      %139 = vector.extract_strided_slice %10 {offsets = [16, 0], sizes = [8, 64], strides = [1, 1]} : vector<64x64xf32> to vector<8x64xf32>
      %140 = arith.truncf %135 : vector<8x16xf32> to vector<8x16xbf16>
      %cst_45 = arith.constant dense<0.000000e+00> : vector<8x64xf32>
      %141 = tpu.matmul %140, %12, %cst_45 {dimension_numbers = #tpu.dot_dimension_numbers<[1], [0], [0], [1], [0, 0, 1, 1], [], []>} : vector<8x16xbf16>, vector<16x64xbf16>, vector<8x64xf32> -> vector<8x64xf32>
      %142 = arith.addf %139, %141 : vector<8x64xf32>
      %143 = vector.extract_strided_slice %142 {offsets = [0, 0], sizes = [8, 48], strides = [1, 1]} : vector<8x64xf32> to vector<8x48xf32>
      %144 = arith.negf %143 : vector<8x48xf32>
      %145 = math.exp %144 : vector<8x48xf32>
      %cst_46 = arith.constant 1.000000e+00 : f32
      %146 = vector.broadcast %cst_46 : f32 to vector<8x48xf32>
      %147 = arith.addf %146, %145 : vector<8x48xf32>
      %148 = arith.divf %146, %147 : vector<8x48xf32>
      %149 = vector.extract_strided_slice %142 {offsets = [0, 48], sizes = [8, 16], strides = [1, 1]} : vector<8x64xf32> to vector<8x16xf32>
      %150 = math.tanh %149 : vector<8x16xf32>
      %151 = vector.extract_strided_slice %148 {offsets = [0, 0], sizes = [8, 16], strides = [1, 1]} : vector<8x48xf32> to vector<8x16xf32>
      %152 = vector.extract_strided_slice %148 {offsets = [0, 16], sizes = [8, 16], strides = [1, 1]} : vector<8x48xf32> to vector<8x16xf32>
      %153 = vector.extract_strided_slice %148 {offsets = [0, 32], sizes = [8, 16], strides = [1, 1]} : vector<8x48xf32> to vector<8x16xf32>
      %154 = arith.mulf %152, %133 : vector<8x16xf32>
      %155 = arith.mulf %151, %150 : vector<8x16xf32>
      %156 = arith.addf %154, %155 : vector<8x16xf32>
      %157 = math.tanh %156 : vector<8x16xf32>
      %158 = arith.mulf %153, %157 : vector<8x16xf32>
      %c0_47 = arith.constant 0 : index
      %c2 = arith.constant 2 : index
      %c0_48 = arith.constant 0 : index
      %c0_49 = arith.constant 0 : index
      %159 = vector.load %arg8[%c0_47, %c2, %c0_48, %c0_49] : memref<1x8x8x16xf32, #tpu.memory_space<vmem>>, vector<1x1x8x16xf32>
      %160 = vector.shape_cast %159 : vector<1x1x8x16xf32> to vector<8x16xf32>
      %161 = vector.shape_cast %158 : vector<8x16xf32> to vector<1x1x8x16xf32>
      tpu.vector_store %arg8[%c0_47, %c2, %c0_48, %c0_49], %161 {strides = array<i32>} : memref<1x8x8x16xf32, #tpu.memory_space<vmem>>, vector<1x1x8x16xf32>,
      %162 = vector.extract_strided_slice %10 {offsets = [8, 0], sizes = [8, 64], strides = [1, 1]} : vector<64x64xf32> to vector<8x64xf32>
      %163 = arith.truncf %158 : vector<8x16xf32> to vector<8x16xbf16>
      %cst_50 = arith.constant dense<0.000000e+00> : vector<8x64xf32>
      %164 = tpu.matmul %163, %12, %cst_50 {dimension_numbers = #tpu.dot_dimension_numbers<[1], [0], [0], [1], [0, 0, 1, 1], [], []>} : vector<8x16xbf16>, vector<16x64xbf16>, vector<8x64xf32> -> vector<8x64xf32>
      %165 = arith.addf %162, %164 : vector<8x64xf32>
      %166 = vector.extract_strided_slice %165 {offsets = [0, 0], sizes = [8, 48], strides = [1, 1]} : vector<8x64xf32> to vector<8x48xf32>
      %167 = arith.negf %166 : vector<8x48xf32>
      %168 = math.exp %167 : vector<8x48xf32>
      %cst_51 = arith.constant 1.000000e+00 : f32
      %169 = vector.broadcast %cst_51 : f32 to vector<8x48xf32>
      %170 = arith.addf %169, %168 : vector<8x48xf32>
      %171 = arith.divf %169, %170 : vector<8x48xf32>
      %172 = vector.extract_strided_slice %165 {offsets = [0, 48], sizes = [8, 16], strides = [1, 1]} : vector<8x64xf32> to vector<8x16xf32>
      %173 = math.tanh %172 : vector<8x16xf32>
      %174 = vector.extract_strided_slice %171 {offsets = [0, 0], sizes = [8, 16], strides = [1, 1]} : vector<8x48xf32> to vector<8x16xf32>
      %175 = vector.extract_strided_slice %171 {offsets = [0, 16], sizes = [8, 16], strides = [1, 1]} : vector<8x48xf32> to vector<8x16xf32>
      %176 = vector.extract_strided_slice %171 {offsets = [0, 32], sizes = [8, 16], strides = [1, 1]} : vector<8x48xf32> to vector<8x16xf32>
      %177 = arith.mulf %175, %156 : vector<8x16xf32>
      %178 = arith.mulf %174, %173 : vector<8x16xf32>
      %179 = arith.addf %177, %178 : vector<8x16xf32>
      %180 = math.tanh %179 : vector<8x16xf32>
      %181 = arith.mulf %176, %180 : vector<8x16xf32>
      %c0_52 = arith.constant 0 : index
      %c1 = arith.constant 1 : index
      %c0_53 = arith.constant 0 : index
      %c0_54 = arith.constant 0 : index
      %182 = vector.load %arg8[%c0_52, %c1, %c0_53, %c0_54] : memref<1x8x8x16xf32, #tpu.memory_space<vmem>>, vector<1x1x8x16xf32>
      %183 = vector.shape_cast %182 : vector<1x1x8x16xf32> to vector<8x16xf32>
      %184 = vector.shape_cast %181 : vector<8x16xf32> to vector<1x1x8x16xf32>
      tpu.vector_store %arg8[%c0_52, %c1, %c0_53, %c0_54], %184 {strides = array<i32>} : memref<1x8x8x16xf32, #tpu.memory_space<vmem>>, vector<1x1x8x16xf32>,
      %185 = vector.extract_strided_slice %10 {offsets = [0, 0], sizes = [8, 64], strides = [1, 1]} : vector<64x64xf32> to vector<8x64xf32>
      %186 = arith.truncf %181 : vector<8x16xf32> to vector<8x16xbf16>
      %cst_55 = arith.constant dense<0.000000e+00> : vector<8x64xf32>
      %187 = tpu.matmul %186, %12, %cst_55 {dimension_numbers = #tpu.dot_dimension_numbers<[1], [0], [0], [1], [0, 0, 1, 1], [], []>} : vector<8x16xbf16>, vector<16x64xbf16>, vector<8x64xf32> -> vector<8x64xf32>
      %188 = arith.addf %185, %187 : vector<8x64xf32>
      %189 = vector.extract_strided_slice %188 {offsets = [0, 0], sizes = [8, 48], strides = [1, 1]} : vector<8x64xf32> to vector<8x48xf32>
      %190 = arith.negf %189 : vector<8x48xf32>
      %191 = math.exp %190 : vector<8x48xf32>
      %cst_56 = arith.constant 1.000000e+00 : f32
      %192 = vector.broadcast %cst_56 : f32 to vector<8x48xf32>
      %193 = arith.addf %192, %191 : vector<8x48xf32>
      %194 = arith.divf %192, %193 : vector<8x48xf32>
      %195 = vector.extract_strided_slice %188 {offsets = [0, 48], sizes = [8, 16], strides = [1, 1]} : vector<8x64xf32> to vector<8x16xf32>
      %196 = math.tanh %195 : vector<8x16xf32>
      %197 = vector.extract_strided_slice %194 {offsets = [0, 0], sizes = [8, 16], strides = [1, 1]} : vector<8x48xf32> to vector<8x16xf32>
      %198 = vector.extract_strided_slice %194 {offsets = [0, 16], sizes = [8, 16], strides = [1, 1]} : vector<8x48xf32> to vector<8x16xf32>
      %199 = vector.extract_strided_slice %194 {offsets = [0, 32], sizes = [8, 16], strides = [1, 1]} : vector<8x48xf32> to vector<8x16xf32>
      %200 = arith.mulf %198, %179 : vector<8x16xf32>
      %201 = arith.mulf %197, %196 : vector<8x16xf32>
      %202 = arith.addf %200, %201 : vector<8x16xf32>
      %203 = math.tanh %202 : vector<8x16xf32>
      %204 = arith.mulf %199, %203 : vector<8x16xf32>
      %c0_57 = arith.constant 0 : index
      %c0_58 = arith.constant 0 : index
      %c0_59 = arith.constant 0 : index
      %c0_60 = arith.constant 0 : index
      %205 = vector.load %arg8[%c0_57, %c0_58, %c0_59, %c0_60] : memref<1x8x8x16xf32, #tpu.memory_space<vmem>>, vector<1x1x8x16xf32>
      %206 = vector.shape_cast %205 : vector<1x1x8x16xf32> to vector<8x16xf32>
      %207 = vector.shape_cast %204 : vector<8x16xf32> to vector<1x1x8x16xf32>
      tpu.vector_store %arg8[%c0_57, %c0_58, %c0_59, %c0_60], %207 {strides = array<i32>} : memref<1x8x8x16xf32, #tpu.memory_space<vmem>>, vector<1x1x8x16xf32>,
      %c0_61 = arith.constant 0 : index
      %c0_62 = arith.constant 0 : index
      %208 = vector.load %arg11[%c0_61, %c0_62] : memref<8x16xf32, #tpu.memory_space<vmem>>, vector<8x16xf32>
      tpu.vector_store %arg11[%c0_61, %c0_62], %204 {strides = array<i32>} : memref<8x16xf32, #tpu.memory_space<vmem>>, vector<8x16xf32>,
      %c0_63 = arith.constant 0 : index
      %c0_64 = arith.constant 0 : index
      %209 = vector.load %arg12[%c0_63, %c0_64] : memref<8x16xf32, #tpu.memory_space<vmem>>, vector<8x16xf32>
      tpu.vector_store %arg12[%c0_63, %c0_64], %202 {strides = array<i32>} : memref<8x16xf32, #tpu.memory_space<vmem>>, vector<8x16xf32>,
    } else {
    }
    %c0_i32_14 = arith.constant 0 : i32
    %19 = arith.cmpi eq, %arg1, %c0_i32_14 : i32
    %20 = arith.extui %19 : i1 to i32
    %c0_i32_15 = arith.constant 0 : i32
    %21 = arith.cmpi ne, %20, %c0_i32_15 : i32
    scf.if %21 {
      %c0_16 = arith.constant 0 : index
      %c0_17 = arith.constant 0 : index
      %22 = vector.load %arg11[%c0_16, %c0_17] : memref<8x16xf32, #tpu.memory_space<vmem>>, vector<8x16xf32>
      %c0_18 = arith.constant 0 : index
      %c0_19 = arith.constant 0 : index
      %c0_20 = arith.constant 0 : index
      %23 = vector.load %arg9[%c0_18, %c0_19, %c0_20] : memref<1x8x16xf32, #tpu.memory_space<vmem>>, vector<1x8x16xf32>
      %24 = vector.shape_cast %23 : vector<1x8x16xf32> to vector<8x16xf32>
      %25 = vector.shape_cast %22 : vector<8x16xf32> to vector<1x8x16xf32>
      tpu.vector_store %arg9[%c0_18, %c0_19, %c0_20], %25 {strides = array<i32>} : memref<1x8x16xf32, #tpu.memory_space<vmem>>, vector<1x8x16xf32>,
      %c0_21 = arith.constant 0 : index
      %c0_22 = arith.constant 0 : index
      %26 = vector.load %arg12[%c0_21, %c0_22] : memref<8x16xf32, #tpu.memory_space<vmem>>, vector<8x16xf32>
      %c0_23 = arith.constant 0 : index
      %c0_24 = arith.constant 0 : index
      %c0_25 = arith.constant 0 : index
      %27 = vector.load %arg10[%c0_23, %c0_24, %c0_25] : memref<1x8x16xf32, #tpu.memory_space<vmem>>, vector<1x8x16xf32>
      %28 = vector.shape_cast %27 : vector<1x8x16xf32> to vector<8x16xf32>
      %29 = vector.shape_cast %26 : vector<8x16xf32> to vector<1x8x16xf32>
      tpu.vector_store %arg10[%c0_23, %c0_24, %c0_25], %29 {strides = array<i32>} : memref<1x8x16xf32, #tpu.memory_space<vmem>>, vector<1x8x16xf32>,
    } else {
    }
    return
  }
  func.func @transform_0(%arg0: i32, %arg1: i32) -> (i32, i32) {
    %c1_i32 = arith.constant 1 : i32
    %0 = arith.cmpi eq, %arg0, %c1_i32 : i32
    %c0_i32 = arith.constant 0 : i32
    %1 = arith.subi %c0_i32, %arg1 : i32
    %2 = arith.select %0, %1, %arg1 : i32
    %c0_i32_0 = arith.constant 0 : i32
    %c0_i32_1 = arith.constant 0 : i32
    return %2, %c0_i32_0 : i32, i32
  }
  func.func @transform_1(%arg0: i32, %arg1: i32) -> (i32, i32, i32) {
    %c0_i32 = arith.constant 0 : i32
    %c0_i32_0 = arith.constant 0 : i32
    %c0_i32_1 = arith.constant 0 : i32
    return %arg0, %c0_i32, %c0_i32_0 : i32, i32, i32
  }
  func.func @transform_2(%arg0: i32, %arg1: i32) -> (i32, i32, i32) {
    %c0_i32 = arith.constant 0 : i32
    %c0_i32_0 = arith.constant 0 : i32
    %c0_i32_1 = arith.constant 0 : i32
    return %arg0, %c0_i32, %c0_i32_0 : i32, i32, i32
  }
  func.func @transform_3(%arg0: i32, %arg1: i32) -> (i32, i32, i32) {
    %c0_i32 = arith.constant 0 : i32
    %c0_i32_0 = arith.constant 0 : i32
    %c0_i32_1 = arith.constant 0 : i32
    return %arg0, %c0_i32, %c0_i32_0 : i32, i32, i32
  }
  func.func @transform_4(%arg0: i32, %arg1: i32) -> (i32, i32, i32) {
    %c0_i32 = arith.constant 0 : i32
    %c0_i32_0 = arith.constant 0 : i32
    %c0_i32_1 = arith.constant 0 : i32
    return %arg0, %c0_i32, %c0_i32_0 : i32, i32, i32
  }
  func.func @transform_5(%arg0: i32, %arg1: i32) -> (i32, i32, i32) {
    %c0_i32 = arith.constant 0 : i32
    %c0_i32_0 = arith.constant 0 : i32
    %c0_i32_1 = arith.constant 0 : i32
    return %arg0, %c0_i32, %c0_i32_0 : i32, i32, i32
  }
  func.func @transform_6(%arg0: i32, %arg1: i32) -> (i32, i32, i32, i32) {
    %c1_i32 = arith.constant 1 : i32
    %0 = arith.cmpi eq, %arg0, %c1_i32 : i32
    %c0_i32 = arith.constant 0 : i32
    %1 = arith.subi %c0_i32, %arg1 : i32
    %2 = arith.select %0, %1, %arg1 : i32
    %c0_i32_0 = arith.constant 0 : i32
    %c0_i32_1 = arith.constant 0 : i32
    %c0_i32_2 = arith.constant 0 : i32
    return %arg0, %2, %c0_i32_0, %c0_i32_1 : i32, i32, i32, i32
  }
  func.func @transform_7(%arg0: i32, %arg1: i32) -> (i32, i32, i32) {
    %c0_i32 = arith.constant 0 : i32
    %c0_i32_0 = arith.constant 0 : i32
    %c0_i32_1 = arith.constant 0 : i32
    return %arg0, %c0_i32, %c0_i32_0 : i32, i32, i32
  }
  func.func @transform_8(%arg0: i32, %arg1: i32) -> (i32, i32, i32) {
    %c0_i32 = arith.constant 0 : i32
    %c0_i32_0 = arith.constant 0 : i32
    %c0_i32_1 = arith.constant 0 : i32
    return %arg0, %c0_i32, %c0_i32_0 : i32, i32, i32
  }
}

module attributes {stable_mosaic.version = 11 : i64} {
  func.func @_bn_bidir_kernel(%arg0: memref<2x64x16xf32, #tpu.memory_space<vmem>>, %arg1: memref<1x32xf32, #tpu.memory_space<vmem>>, %arg2: memref<1x32xf32, #tpu.memory_space<vmem>>, %arg3: memref<64x32xbf16, #tpu.memory_space<vmem>>) attributes {dimension_semantics = [], scalar_prefetch = 0 : i64, scratch_operands = 0 : i64, tpu.core_type = #tpu.core_type<tc>} {
    %c0 = arith.constant 0 : index
    %c0_0 = arith.constant 0 : index
    %c0_1 = arith.constant 0 : index
    %0 = vector.load %arg0[%c0, %c0_0, %c0_1] : memref<2x64x16xf32, #tpu.memory_space<vmem>>, vector<1x64x16xf32>
    %1 = vector.shape_cast %0 : vector<1x64x16xf32> to vector<64x16xf32>
    %c0_2 = arith.constant 0 : index
    %c0_3 = arith.constant 0 : index
    %2 = vector.load %arg1[%c0_2, %c0_3] : memref<1x32xf32, #tpu.memory_space<vmem>>, vector<1x16xf32>
    %c0_4 = arith.constant 0 : index
    %c0_5 = arith.constant 0 : index
    %3 = vector.load %arg2[%c0_4, %c0_5] : memref<1x32xf32, #tpu.memory_space<vmem>>, vector<1x16xf32>
    %cst = arith.constant dense<0.000000e+00> : vector<16xf32>
    %4 = vector.multi_reduction <add>, %1, %cst [0] : vector<64x16xf32> to vector<16xf32>
    %5 = vector.shape_cast %4 : vector<16xf32> to vector<1x16xf32>
    %cst_6 = arith.constant 6.400000e+01 : f32
    %6 = vector.broadcast %cst_6 : f32 to vector<1x16xf32>
    %7 = arith.divf %5, %6 : vector<1x16xf32>
    %8 = vector.broadcast %7 : vector<1x16xf32> to vector<64x16xf32>
    %9 = arith.subf %1, %8 : vector<64x16xf32>
    %10 = arith.mulf %9, %9 : vector<64x16xf32>
    %cst_7 = arith.constant dense<0.000000e+00> : vector<16xf32>
    %11 = vector.multi_reduction <add>, %10, %cst_7 [0] : vector<64x16xf32> to vector<16xf32>
    %12 = vector.shape_cast %11 : vector<16xf32> to vector<1x16xf32>
    %cst_8 = arith.constant 6.400000e+01 : f32
    %13 = vector.broadcast %cst_8 : f32 to vector<1x16xf32>
    %14 = arith.divf %12, %13 : vector<1x16xf32>
    %15 = vector.broadcast %7 : vector<1x16xf32> to vector<64x16xf32>
    %16 = arith.subf %1, %15 : vector<64x16xf32>
    %cst_9 = arith.constant 9.99999974E-6 : f32
    %17 = vector.broadcast %cst_9 : f32 to vector<1x16xf32>
    %18 = arith.addf %14, %17 : vector<1x16xf32>
    %19 = math.rsqrt %18 : vector<1x16xf32>
    %20 = vector.broadcast %19 : vector<1x16xf32> to vector<64x16xf32>
    %21 = arith.mulf %16, %20 : vector<64x16xf32>
    %22 = vector.broadcast %2 : vector<1x16xf32> to vector<64x16xf32>
    %23 = arith.mulf %21, %22 : vector<64x16xf32>
    %24 = vector.broadcast %3 : vector<1x16xf32> to vector<64x16xf32>
    %25 = arith.addf %23, %24 : vector<64x16xf32>
    %c1 = arith.constant 1 : index
    %c0_10 = arith.constant 0 : index
    %c0_11 = arith.constant 0 : index
    %26 = vector.load %arg0[%c1, %c0_10, %c0_11] : memref<2x64x16xf32, #tpu.memory_space<vmem>>, vector<1x64x16xf32>
    %27 = vector.shape_cast %26 : vector<1x64x16xf32> to vector<64x16xf32>
    %c0_12 = arith.constant 0 : index
    %c16 = arith.constant 16 : index
    %28 = vector.load %arg1[%c0_12, %c16] : memref<1x32xf32, #tpu.memory_space<vmem>>, vector<1x16xf32>
    %c0_13 = arith.constant 0 : index
    %c16_14 = arith.constant 16 : index
    %29 = vector.load %arg2[%c0_13, %c16_14] : memref<1x32xf32, #tpu.memory_space<vmem>>, vector<1x16xf32>
    %cst_15 = arith.constant dense<0.000000e+00> : vector<16xf32>
    %30 = vector.multi_reduction <add>, %27, %cst_15 [0] : vector<64x16xf32> to vector<16xf32>
    %31 = vector.shape_cast %30 : vector<16xf32> to vector<1x16xf32>
    %cst_16 = arith.constant 6.400000e+01 : f32
    %32 = vector.broadcast %cst_16 : f32 to vector<1x16xf32>
    %33 = arith.divf %31, %32 : vector<1x16xf32>
    %34 = vector.broadcast %33 : vector<1x16xf32> to vector<64x16xf32>
    %35 = arith.subf %27, %34 : vector<64x16xf32>
    %36 = arith.mulf %35, %35 : vector<64x16xf32>
    %cst_17 = arith.constant dense<0.000000e+00> : vector<16xf32>
    %37 = vector.multi_reduction <add>, %36, %cst_17 [0] : vector<64x16xf32> to vector<16xf32>
    %38 = vector.shape_cast %37 : vector<16xf32> to vector<1x16xf32>
    %cst_18 = arith.constant 6.400000e+01 : f32
    %39 = vector.broadcast %cst_18 : f32 to vector<1x16xf32>
    %40 = arith.divf %38, %39 : vector<1x16xf32>
    %41 = vector.broadcast %33 : vector<1x16xf32> to vector<64x16xf32>
    %42 = arith.subf %27, %41 : vector<64x16xf32>
    %cst_19 = arith.constant 9.99999974E-6 : f32
    %43 = vector.broadcast %cst_19 : f32 to vector<1x16xf32>
    %44 = arith.addf %40, %43 : vector<1x16xf32>
    %45 = math.rsqrt %44 : vector<1x16xf32>
    %46 = vector.broadcast %45 : vector<1x16xf32> to vector<64x16xf32>
    %47 = arith.mulf %42, %46 : vector<64x16xf32>
    %48 = vector.broadcast %28 : vector<1x16xf32> to vector<64x16xf32>
    %49 = arith.mulf %47, %48 : vector<64x16xf32>
    %50 = vector.broadcast %29 : vector<1x16xf32> to vector<64x16xf32>
    %51 = arith.addf %49, %50 : vector<64x16xf32>
    %52 = tpu.concatenate %25, %51 in 1 : vector<64x16xf32>, vector<64x16xf32> -> vector<64x32xf32>
    %53 = arith.truncf %52 : vector<64x32xf32> to vector<64x32xbf16>
    %c0_20 = arith.constant 0 : index
    %c0_21 = arith.constant 0 : index
    %54 = vector.load %arg3[%c0_20, %c0_21] : memref<64x32xbf16, #tpu.memory_space<vmem>>, vector<64x32xbf16>
    tpu.vector_store %arg3[%c0_20, %c0_21], %53 {strides = array<i32>} : memref<64x32xbf16, #tpu.memory_space<vmem>>, vector<64x32xbf16>,
    return
  }
}

module attributes {stable_mosaic.version = 11 : i64} {
  func.func @_lstm_kernel(%arg0: i32, %arg1: i32, %arg2: memref<64x32xbf16, #tpu.memory_space<vmem>>, %arg3: memref<1x32x64xbf16, #tpu.memory_space<vmem>>, %arg4: memref<1x16x64xbf16, #tpu.memory_space<vmem>>, %arg5: memref<1x1x64xf32, #tpu.memory_space<vmem>>, %arg6: memref<1x8x16xf32, #tpu.memory_space<vmem>>, %arg7: memref<1x8x16xf32, #tpu.memory_space<vmem>>, %arg8: memref<1x8x16xf32, #tpu.memory_space<vmem>>, %arg9: memref<1x8x16xf32, #tpu.memory_space<vmem>>, %arg10: memref<8x16xf32, #tpu.memory_space<vmem>>, %arg11: memref<8x16xf32, #tpu.memory_space<vmem>>) attributes {dimension_semantics = [#tpu.dimension_semantics<parallel>, #tpu.dimension_semantics<arbitrary>], iteration_bounds = array<i64: 2, 1>, scalar_prefetch = 0 : i64, scratch_operands = 2 : i64, tpu.core_type = #tpu.core_type<tc>, window_params = [{transform_indices = @transform_0, window_bounds = array<i64: 64, 32>}, {transform_indices = @transform_1, window_bounds = array<i64: 1, 32, 64>}, {transform_indices = @transform_2, window_bounds = array<i64: 1, 16, 64>}, {transform_indices = @transform_3, window_bounds = array<i64: 1, 1, 64>}, {transform_indices = @transform_4, window_bounds = array<i64: 1, 8, 16>}, {transform_indices = @transform_5, window_bounds = array<i64: 1, 8, 16>}, {transform_indices = @transform_6, window_bounds = array<i64: 1, 8, 16>}, {transform_indices = @transform_7, window_bounds = array<i64: 1, 8, 16>}]} {
    %c0_i32 = arith.constant 0 : i32
    %0 = arith.cmpi eq, %arg1, %c0_i32 : i32
    %1 = arith.extui %0 : i1 to i32
    %c0_i32_0 = arith.constant 0 : i32
    %2 = arith.cmpi ne, %1, %c0_i32_0 : i32
    scf.if %2 {
      %c0_16 = arith.constant 0 : index
      %c0_17 = arith.constant 0 : index
      %c0_18 = arith.constant 0 : index
      %22 = vector.load %arg6[%c0_16, %c0_17, %c0_18] : memref<1x8x16xf32, #tpu.memory_space<vmem>>, vector<1x8x16xf32>
      %23 = vector.shape_cast %22 : vector<1x8x16xf32> to vector<8x16xf32>
      %c0_19 = arith.constant 0 : index
      %c0_20 = arith.constant 0 : index
      %24 = vector.load %arg10[%c0_19, %c0_20] : memref<8x16xf32, #tpu.memory_space<vmem>>, vector<8x16xf32>
      tpu.vector_store %arg10[%c0_19, %c0_20], %23 {strides = array<i32>} : memref<8x16xf32, #tpu.memory_space<vmem>>, vector<8x16xf32>,
      %c0_21 = arith.constant 0 : index
      %c0_22 = arith.constant 0 : index
      %c0_23 = arith.constant 0 : index
      %25 = vector.load %arg7[%c0_21, %c0_22, %c0_23] : memref<1x8x16xf32, #tpu.memory_space<vmem>>, vector<1x8x16xf32>
      %26 = vector.shape_cast %25 : vector<1x8x16xf32> to vector<8x16xf32>
      %c0_24 = arith.constant 0 : index
      %c0_25 = arith.constant 0 : index
      %27 = vector.load %arg11[%c0_24, %c0_25] : memref<8x16xf32, #tpu.memory_space<vmem>>, vector<8x16xf32>
      tpu.vector_store %arg11[%c0_24, %c0_25], %26 {strides = array<i32>} : memref<8x16xf32, #tpu.memory_space<vmem>>, vector<8x16xf32>,
    } else {
    }
    %c0 = arith.constant 0 : index
    %c0_1 = arith.constant 0 : index
    %3 = vector.load %arg2[%c0, %c0_1] : memref<64x32xbf16, #tpu.memory_space<vmem>>, vector<64x32xbf16>
    %c0_2 = arith.constant 0 : index
    %c0_3 = arith.constant 0 : index
    %c0_4 = arith.constant 0 : index
    %4 = vector.load %arg3[%c0_2, %c0_3, %c0_4] : memref<1x32x64xbf16, #tpu.memory_space<vmem>>, vector<1x32x64xbf16>
    %5 = vector.shape_cast %4 : vector<1x32x64xbf16> to vector<32x64xbf16>
    %cst = arith.constant dense<0.000000e+00> : vector<64x64xf32>
    %6 = tpu.matmul %3, %5, %cst {dimension_numbers = #tpu.dot_dimension_numbers<[1], [0], [0], [1], [0, 0, 1, 1], [], []>} : vector<64x32xbf16>, vector<32x64xbf16>, vector<64x64xf32> -> vector<64x64xf32>
    %c0_5 = arith.constant 0 : index
    %c0_6 = arith.constant 0 : index
    %c0_7 = arith.constant 0 : index
    %7 = vector.load %arg5[%c0_5, %c0_6, %c0_7] : memref<1x1x64xf32, #tpu.memory_space<vmem>>, vector<1x1x64xf32>
    %8 = vector.shape_cast %7 : vector<1x1x64xf32> to vector<1x64xf32>
    %9 = vector.broadcast %8 : vector<1x64xf32> to vector<64x64xf32>
    %10 = arith.addf %6, %9 : vector<64x64xf32>
    %c0_8 = arith.constant 0 : index
    %c0_9 = arith.constant 0 : index
    %c0_10 = arith.constant 0 : index
    %11 = vector.load %arg4[%c0_8, %c0_9, %c0_10] : memref<1x16x64xbf16, #tpu.memory_space<vmem>>, vector<1x16x64xbf16>
    %12 = vector.shape_cast %11 : vector<1x16x64xbf16> to vector<16x64xbf16>
    %c0_i32_11 = arith.constant 0 : i32
    %13 = arith.cmpi eq, %arg0, %c0_i32_11 : i32
    %14 = arith.extui %13 : i1 to i32
    %c0_i32_12 = arith.constant 0 : i32
    %15 = arith.cmpi ne, %14, %c0_i32_12 : i32
    scf.if %15 {
      %c0_16 = arith.constant 0 : index
      %c0_17 = arith.constant 0 : index
      %22 = vector.load %arg10[%c0_16, %c0_17] : memref<8x16xf32, #tpu.memory_space<vmem>>, vector<8x16xf32>
      %c0_18 = arith.constant 0 : index
      %c0_19 = arith.constant 0 : index
      %23 = vector.load %arg11[%c0_18, %c0_19] : memref<8x16xf32, #tpu.memory_space<vmem>>, vector<8x16xf32>
      %24 = vector.extract_strided_slice %10 {offsets = [0, 0], sizes = [8, 64], strides = [1, 1]} : vector<64x64xf32> to vector<8x64xf32>
      %25 = arith.truncf %22 : vector<8x16xf32> to vector<8x16xbf16>
      %cst_20 = arith.constant dense<0.000000e+00> : vector<8x64xf32>
      %26 = tpu.matmul %25, %12, %cst_20 {dimension_numbers = #tpu.dot_dimension_numbers<[1], [0], [0], [1], [0, 0, 1, 1], [], []>} : vector<8x16xbf16>, vector<16x64xbf16>, vector<8x64xf32> -> vector<8x64xf32>
      %27 = arith.addf %24, %26 : vector<8x64xf32>
      %28 = vector.extract_strided_slice %27 {offsets = [0, 0], sizes = [8, 48], strides = [1, 1]} : vector<8x64xf32> to vector<8x48xf32>
      %29 = arith.negf %28 : vector<8x48xf32>
      %30 = math.exp %29 : vector<8x48xf32>
      %cst_21 = arith.constant 1.000000e+00 : f32
      %31 = vector.broadcast %cst_21 : f32 to vector<8x48xf32>
      %32 = arith.addf %31, %30 : vector<8x48xf32>
      %33 = arith.divf %31, %32 : vector<8x48xf32>
      %34 = vector.extract_strided_slice %27 {offsets = [0, 48], sizes = [8, 16], strides = [1, 1]} : vector<8x64xf32> to vector<8x16xf32>
      %35 = math.tanh %34 : vector<8x16xf32>
      %36 = vector.extract_strided_slice %33 {offsets = [0, 0], sizes = [8, 16], strides = [1, 1]} : vector<8x48xf32> to vector<8x16xf32>
      %37 = vector.extract_strided_slice %33 {offsets = [0, 16], sizes = [8, 16], strides = [1, 1]} : vector<8x48xf32> to vector<8x16xf32>
      %38 = vector.extract_strided_slice %33 {offsets = [0, 32], sizes = [8, 16], strides = [1, 1]} : vector<8x48xf32> to vector<8x16xf32>
      %39 = arith.mulf %37, %23 : vector<8x16xf32>
      %40 = arith.mulf %36, %35 : vector<8x16xf32>
      %41 = arith.addf %39, %40 : vector<8x16xf32>
      %42 = math.tanh %41 : vector<8x16xf32>
      %43 = arith.mulf %38, %42 : vector<8x16xf32>
      %44 = vector.extract_strided_slice %10 {offsets = [8, 0], sizes = [8, 64], strides = [1, 1]} : vector<64x64xf32> to vector<8x64xf32>
      %45 = arith.truncf %43 : vector<8x16xf32> to vector<8x16xbf16>
      %cst_22 = arith.constant dense<0.000000e+00> : vector<8x64xf32>
      %46 = tpu.matmul %45, %12, %cst_22 {dimension_numbers = #tpu.dot_dimension_numbers<[1], [0], [0], [1], [0, 0, 1, 1], [], []>} : vector<8x16xbf16>, vector<16x64xbf16>, vector<8x64xf32> -> vector<8x64xf32>
      %47 = arith.addf %44, %46 : vector<8x64xf32>
      %48 = vector.extract_strided_slice %47 {offsets = [0, 0], sizes = [8, 48], strides = [1, 1]} : vector<8x64xf32> to vector<8x48xf32>
      %49 = arith.negf %48 : vector<8x48xf32>
      %50 = math.exp %49 : vector<8x48xf32>
      %cst_23 = arith.constant 1.000000e+00 : f32
      %51 = vector.broadcast %cst_23 : f32 to vector<8x48xf32>
      %52 = arith.addf %51, %50 : vector<8x48xf32>
      %53 = arith.divf %51, %52 : vector<8x48xf32>
      %54 = vector.extract_strided_slice %47 {offsets = [0, 48], sizes = [8, 16], strides = [1, 1]} : vector<8x64xf32> to vector<8x16xf32>
      %55 = math.tanh %54 : vector<8x16xf32>
      %56 = vector.extract_strided_slice %53 {offsets = [0, 0], sizes = [8, 16], strides = [1, 1]} : vector<8x48xf32> to vector<8x16xf32>
      %57 = vector.extract_strided_slice %53 {offsets = [0, 16], sizes = [8, 16], strides = [1, 1]} : vector<8x48xf32> to vector<8x16xf32>
      %58 = vector.extract_strided_slice %53 {offsets = [0, 32], sizes = [8, 16], strides = [1, 1]} : vector<8x48xf32> to vector<8x16xf32>
      %59 = arith.mulf %57, %41 : vector<8x16xf32>
      %60 = arith.mulf %56, %55 : vector<8x16xf32>
      %61 = arith.addf %59, %60 : vector<8x16xf32>
      %62 = math.tanh %61 : vector<8x16xf32>
      %63 = arith.mulf %58, %62 : vector<8x16xf32>
      %64 = vector.extract_strided_slice %10 {offsets = [16, 0], sizes = [8, 64], strides = [1, 1]} : vector<64x64xf32> to vector<8x64xf32>
      %65 = arith.truncf %63 : vector<8x16xf32> to vector<8x16xbf16>
      %cst_24 = arith.constant dense<0.000000e+00> : vector<8x64xf32>
      %66 = tpu.matmul %65, %12, %cst_24 {dimension_numbers = #tpu.dot_dimension_numbers<[1], [0], [0], [1], [0, 0, 1, 1], [], []>} : vector<8x16xbf16>, vector<16x64xbf16>, vector<8x64xf32> -> vector<8x64xf32>
      %67 = arith.addf %64, %66 : vector<8x64xf32>
      %68 = vector.extract_strided_slice %67 {offsets = [0, 0], sizes = [8, 48], strides = [1, 1]} : vector<8x64xf32> to vector<8x48xf32>
      %69 = arith.negf %68 : vector<8x48xf32>
      %70 = math.exp %69 : vector<8x48xf32>
      %cst_25 = arith.constant 1.000000e+00 : f32
      %71 = vector.broadcast %cst_25 : f32 to vector<8x48xf32>
      %72 = arith.addf %71, %70 : vector<8x48xf32>
      %73 = arith.divf %71, %72 : vector<8x48xf32>
      %74 = vector.extract_strided_slice %67 {offsets = [0, 48], sizes = [8, 16], strides = [1, 1]} : vector<8x64xf32> to vector<8x16xf32>
      %75 = math.tanh %74 : vector<8x16xf32>
      %76 = vector.extract_strided_slice %73 {offsets = [0, 0], sizes = [8, 16], strides = [1, 1]} : vector<8x48xf32> to vector<8x16xf32>
      %77 = vector.extract_strided_slice %73 {offsets = [0, 16], sizes = [8, 16], strides = [1, 1]} : vector<8x48xf32> to vector<8x16xf32>
      %78 = vector.extract_strided_slice %73 {offsets = [0, 32], sizes = [8, 16], strides = [1, 1]} : vector<8x48xf32> to vector<8x16xf32>
      %79 = arith.mulf %77, %61 : vector<8x16xf32>
      %80 = arith.mulf %76, %75 : vector<8x16xf32>
      %81 = arith.addf %79, %80 : vector<8x16xf32>
      %82 = math.tanh %81 : vector<8x16xf32>
      %83 = arith.mulf %78, %82 : vector<8x16xf32>
      %84 = vector.extract_strided_slice %10 {offsets = [24, 0], sizes = [8, 64], strides = [1, 1]} : vector<64x64xf32> to vector<8x64xf32>
      %85 = arith.truncf %83 : vector<8x16xf32> to vector<8x16xbf16>
      %cst_26 = arith.constant dense<0.000000e+00> : vector<8x64xf32>
      %86 = tpu.matmul %85, %12, %cst_26 {dimension_numbers = #tpu.dot_dimension_numbers<[1], [0], [0], [1], [0, 0, 1, 1], [], []>} : vector<8x16xbf16>, vector<16x64xbf16>, vector<8x64xf32> -> vector<8x64xf32>
      %87 = arith.addf %84, %86 : vector<8x64xf32>
      %88 = vector.extract_strided_slice %87 {offsets = [0, 0], sizes = [8, 48], strides = [1, 1]} : vector<8x64xf32> to vector<8x48xf32>
      %89 = arith.negf %88 : vector<8x48xf32>
      %90 = math.exp %89 : vector<8x48xf32>
      %cst_27 = arith.constant 1.000000e+00 : f32
      %91 = vector.broadcast %cst_27 : f32 to vector<8x48xf32>
      %92 = arith.addf %91, %90 : vector<8x48xf32>
      %93 = arith.divf %91, %92 : vector<8x48xf32>
      %94 = vector.extract_strided_slice %87 {offsets = [0, 48], sizes = [8, 16], strides = [1, 1]} : vector<8x64xf32> to vector<8x16xf32>
      %95 = math.tanh %94 : vector<8x16xf32>
      %96 = vector.extract_strided_slice %93 {offsets = [0, 0], sizes = [8, 16], strides = [1, 1]} : vector<8x48xf32> to vector<8x16xf32>
      %97 = vector.extract_strided_slice %93 {offsets = [0, 16], sizes = [8, 16], strides = [1, 1]} : vector<8x48xf32> to vector<8x16xf32>
      %98 = vector.extract_strided_slice %93 {offsets = [0, 32], sizes = [8, 16], strides = [1, 1]} : vector<8x48xf32> to vector<8x16xf32>
      %99 = arith.mulf %97, %81 : vector<8x16xf32>
      %100 = arith.mulf %96, %95 : vector<8x16xf32>
      %101 = arith.addf %99, %100 : vector<8x16xf32>
      %102 = math.tanh %101 : vector<8x16xf32>
      %103 = arith.mulf %98, %102 : vector<8x16xf32>
      %104 = vector.extract_strided_slice %10 {offsets = [32, 0], sizes = [8, 64], strides = [1, 1]} : vector<64x64xf32> to vector<8x64xf32>
      %105 = arith.truncf %103 : vector<8x16xf32> to vector<8x16xbf16>
      %cst_28 = arith.constant dense<0.000000e+00> : vector<8x64xf32>
      %106 = tpu.matmul %105, %12, %cst_28 {dimension_numbers = #tpu.dot_dimension_numbers<[1], [0], [0], [1], [0, 0, 1, 1], [], []>} : vector<8x16xbf16>, vector<16x64xbf16>, vector<8x64xf32> -> vector<8x64xf32>
      %107 = arith.addf %104, %106 : vector<8x64xf32>
      %108 = vector.extract_strided_slice %107 {offsets = [0, 0], sizes = [8, 48], strides = [1, 1]} : vector<8x64xf32> to vector<8x48xf32>
      %109 = arith.negf %108 : vector<8x48xf32>
      %110 = math.exp %109 : vector<8x48xf32>
      %cst_29 = arith.constant 1.000000e+00 : f32
      %111 = vector.broadcast %cst_29 : f32 to vector<8x48xf32>
      %112 = arith.addf %111, %110 : vector<8x48xf32>
      %113 = arith.divf %111, %112 : vector<8x48xf32>
      %114 = vector.extract_strided_slice %107 {offsets = [0, 48], sizes = [8, 16], strides = [1, 1]} : vector<8x64xf32> to vector<8x16xf32>
      %115 = math.tanh %114 : vector<8x16xf32>
      %116 = vector.extract_strided_slice %113 {offsets = [0, 0], sizes = [8, 16], strides = [1, 1]} : vector<8x48xf32> to vector<8x16xf32>
      %117 = vector.extract_strided_slice %113 {offsets = [0, 16], sizes = [8, 16], strides = [1, 1]} : vector<8x48xf32> to vector<8x16xf32>
      %118 = vector.extract_strided_slice %113 {offsets = [0, 32], sizes = [8, 16], strides = [1, 1]} : vector<8x48xf32> to vector<8x16xf32>
      %119 = arith.mulf %117, %101 : vector<8x16xf32>
      %120 = arith.mulf %116, %115 : vector<8x16xf32>
      %121 = arith.addf %119, %120 : vector<8x16xf32>
      %122 = math.tanh %121 : vector<8x16xf32>
      %123 = arith.mulf %118, %122 : vector<8x16xf32>
      %124 = vector.extract_strided_slice %10 {offsets = [40, 0], sizes = [8, 64], strides = [1, 1]} : vector<64x64xf32> to vector<8x64xf32>
      %125 = arith.truncf %123 : vector<8x16xf32> to vector<8x16xbf16>
      %cst_30 = arith.constant dense<0.000000e+00> : vector<8x64xf32>
      %126 = tpu.matmul %125, %12, %cst_30 {dimension_numbers = #tpu.dot_dimension_numbers<[1], [0], [0], [1], [0, 0, 1, 1], [], []>} : vector<8x16xbf16>, vector<16x64xbf16>, vector<8x64xf32> -> vector<8x64xf32>
      %127 = arith.addf %124, %126 : vector<8x64xf32>
      %128 = vector.extract_strided_slice %127 {offsets = [0, 0], sizes = [8, 48], strides = [1, 1]} : vector<8x64xf32> to vector<8x48xf32>
      %129 = arith.negf %128 : vector<8x48xf32>
      %130 = math.exp %129 : vector<8x48xf32>
      %cst_31 = arith.constant 1.000000e+00 : f32
      %131 = vector.broadcast %cst_31 : f32 to vector<8x48xf32>
      %132 = arith.addf %131, %130 : vector<8x48xf32>
      %133 = arith.divf %131, %132 : vector<8x48xf32>
      %134 = vector.extract_strided_slice %127 {offsets = [0, 48], sizes = [8, 16], strides = [1, 1]} : vector<8x64xf32> to vector<8x16xf32>
      %135 = math.tanh %134 : vector<8x16xf32>
      %136 = vector.extract_strided_slice %133 {offsets = [0, 0], sizes = [8, 16], strides = [1, 1]} : vector<8x48xf32> to vector<8x16xf32>
      %137 = vector.extract_strided_slice %133 {offsets = [0, 16], sizes = [8, 16], strides = [1, 1]} : vector<8x48xf32> to vector<8x16xf32>
      %138 = vector.extract_strided_slice %133 {offsets = [0, 32], sizes = [8, 16], strides = [1, 1]} : vector<8x48xf32> to vector<8x16xf32>
      %139 = arith.mulf %137, %121 : vector<8x16xf32>
      %140 = arith.mulf %136, %135 : vector<8x16xf32>
      %141 = arith.addf %139, %140 : vector<8x16xf32>
      %142 = math.tanh %141 : vector<8x16xf32>
      %143 = arith.mulf %138, %142 : vector<8x16xf32>
      %144 = vector.extract_strided_slice %10 {offsets = [48, 0], sizes = [8, 64], strides = [1, 1]} : vector<64x64xf32> to vector<8x64xf32>
      %145 = arith.truncf %143 : vector<8x16xf32> to vector<8x16xbf16>
      %cst_32 = arith.constant dense<0.000000e+00> : vector<8x64xf32>
      %146 = tpu.matmul %145, %12, %cst_32 {dimension_numbers = #tpu.dot_dimension_numbers<[1], [0], [0], [1], [0, 0, 1, 1], [], []>} : vector<8x16xbf16>, vector<16x64xbf16>, vector<8x64xf32> -> vector<8x64xf32>
      %147 = arith.addf %144, %146 : vector<8x64xf32>
      %148 = vector.extract_strided_slice %147 {offsets = [0, 0], sizes = [8, 48], strides = [1, 1]} : vector<8x64xf32> to vector<8x48xf32>
      %149 = arith.negf %148 : vector<8x48xf32>
      %150 = math.exp %149 : vector<8x48xf32>
      %cst_33 = arith.constant 1.000000e+00 : f32
      %151 = vector.broadcast %cst_33 : f32 to vector<8x48xf32>
      %152 = arith.addf %151, %150 : vector<8x48xf32>
      %153 = arith.divf %151, %152 : vector<8x48xf32>
      %154 = vector.extract_strided_slice %147 {offsets = [0, 48], sizes = [8, 16], strides = [1, 1]} : vector<8x64xf32> to vector<8x16xf32>
      %155 = math.tanh %154 : vector<8x16xf32>
      %156 = vector.extract_strided_slice %153 {offsets = [0, 0], sizes = [8, 16], strides = [1, 1]} : vector<8x48xf32> to vector<8x16xf32>
      %157 = vector.extract_strided_slice %153 {offsets = [0, 16], sizes = [8, 16], strides = [1, 1]} : vector<8x48xf32> to vector<8x16xf32>
      %158 = vector.extract_strided_slice %153 {offsets = [0, 32], sizes = [8, 16], strides = [1, 1]} : vector<8x48xf32> to vector<8x16xf32>
      %159 = arith.mulf %157, %141 : vector<8x16xf32>
      %160 = arith.mulf %156, %155 : vector<8x16xf32>
      %161 = arith.addf %159, %160 : vector<8x16xf32>
      %162 = math.tanh %161 : vector<8x16xf32>
      %163 = arith.mulf %158, %162 : vector<8x16xf32>
      %164 = vector.extract_strided_slice %10 {offsets = [56, 0], sizes = [8, 64], strides = [1, 1]} : vector<64x64xf32> to vector<8x64xf32>
      %165 = arith.truncf %163 : vector<8x16xf32> to vector<8x16xbf16>
      %cst_34 = arith.constant dense<0.000000e+00> : vector<8x64xf32>
      %166 = tpu.matmul %165, %12, %cst_34 {dimension_numbers = #tpu.dot_dimension_numbers<[1], [0], [0], [1], [0, 0, 1, 1], [], []>} : vector<8x16xbf16>, vector<16x64xbf16>, vector<8x64xf32> -> vector<8x64xf32>
      %167 = arith.addf %164, %166 : vector<8x64xf32>
      %168 = vector.extract_strided_slice %167 {offsets = [0, 0], sizes = [8, 48], strides = [1, 1]} : vector<8x64xf32> to vector<8x48xf32>
      %169 = arith.negf %168 : vector<8x48xf32>
      %170 = math.exp %169 : vector<8x48xf32>
      %cst_35 = arith.constant 1.000000e+00 : f32
      %171 = vector.broadcast %cst_35 : f32 to vector<8x48xf32>
      %172 = arith.addf %171, %170 : vector<8x48xf32>
      %173 = arith.divf %171, %172 : vector<8x48xf32>
      %174 = vector.extract_strided_slice %167 {offsets = [0, 48], sizes = [8, 16], strides = [1, 1]} : vector<8x64xf32> to vector<8x16xf32>
      %175 = math.tanh %174 : vector<8x16xf32>
      %176 = vector.extract_strided_slice %173 {offsets = [0, 0], sizes = [8, 16], strides = [1, 1]} : vector<8x48xf32> to vector<8x16xf32>
      %177 = vector.extract_strided_slice %173 {offsets = [0, 16], sizes = [8, 16], strides = [1, 1]} : vector<8x48xf32> to vector<8x16xf32>
      %178 = vector.extract_strided_slice %173 {offsets = [0, 32], sizes = [8, 16], strides = [1, 1]} : vector<8x48xf32> to vector<8x16xf32>
      %179 = arith.mulf %177, %161 : vector<8x16xf32>
      %180 = arith.mulf %176, %175 : vector<8x16xf32>
      %181 = arith.addf %179, %180 : vector<8x16xf32>
      %182 = math.tanh %181 : vector<8x16xf32>
      %183 = arith.mulf %178, %182 : vector<8x16xf32>
      %c0_36 = arith.constant 0 : index
      %c0_37 = arith.constant 0 : index
      %184 = vector.load %arg10[%c0_36, %c0_37] : memref<8x16xf32, #tpu.memory_space<vmem>>, vector<8x16xf32>
      tpu.vector_store %arg10[%c0_36, %c0_37], %183 {strides = array<i32>} : memref<8x16xf32, #tpu.memory_space<vmem>>, vector<8x16xf32>,
      %c0_38 = arith.constant 0 : index
      %c0_39 = arith.constant 0 : index
      %185 = vector.load %arg11[%c0_38, %c0_39] : memref<8x16xf32, #tpu.memory_space<vmem>>, vector<8x16xf32>
      tpu.vector_store %arg11[%c0_38, %c0_39], %181 {strides = array<i32>} : memref<8x16xf32, #tpu.memory_space<vmem>>, vector<8x16xf32>,
    } else {
    }
    %c1_i32 = arith.constant 1 : i32
    %16 = arith.cmpi eq, %arg0, %c1_i32 : i32
    %17 = arith.extui %16 : i1 to i32
    %c0_i32_13 = arith.constant 0 : i32
    %18 = arith.cmpi ne, %17, %c0_i32_13 : i32
    scf.if %18 {
      %c0_16 = arith.constant 0 : index
      %c0_17 = arith.constant 0 : index
      %22 = vector.load %arg10[%c0_16, %c0_17] : memref<8x16xf32, #tpu.memory_space<vmem>>, vector<8x16xf32>
      %c0_18 = arith.constant 0 : index
      %c0_19 = arith.constant 0 : index
      %23 = vector.load %arg11[%c0_18, %c0_19] : memref<8x16xf32, #tpu.memory_space<vmem>>, vector<8x16xf32>
      %24 = vector.extract_strided_slice %10 {offsets = [56, 0], sizes = [8, 64], strides = [1, 1]} : vector<64x64xf32> to vector<8x64xf32>
      %25 = arith.truncf %22 : vector<8x16xf32> to vector<8x16xbf16>
      %cst_20 = arith.constant dense<0.000000e+00> : vector<8x64xf32>
      %26 = tpu.matmul %25, %12, %cst_20 {dimension_numbers = #tpu.dot_dimension_numbers<[1], [0], [0], [1], [0, 0, 1, 1], [], []>} : vector<8x16xbf16>, vector<16x64xbf16>, vector<8x64xf32> -> vector<8x64xf32>
      %27 = arith.addf %24, %26 : vector<8x64xf32>
      %28 = vector.extract_strided_slice %27 {offsets = [0, 0], sizes = [8, 48], strides = [1, 1]} : vector<8x64xf32> to vector<8x48xf32>
      %29 = arith.negf %28 : vector<8x48xf32>
      %30 = math.exp %29 : vector<8x48xf32>
      %cst_21 = arith.constant 1.000000e+00 : f32
      %31 = vector.broadcast %cst_21 : f32 to vector<8x48xf32>
      %32 = arith.addf %31, %30 : vector<8x48xf32>
      %33 = arith.divf %31, %32 : vector<8x48xf32>
      %34 = vector.extract_strided_slice %27 {offsets = [0, 48], sizes = [8, 16], strides = [1, 1]} : vector<8x64xf32> to vector<8x16xf32>
      %35 = math.tanh %34 : vector<8x16xf32>
      %36 = vector.extract_strided_slice %33 {offsets = [0, 0], sizes = [8, 16], strides = [1, 1]} : vector<8x48xf32> to vector<8x16xf32>
      %37 = vector.extract_strided_slice %33 {offsets = [0, 16], sizes = [8, 16], strides = [1, 1]} : vector<8x48xf32> to vector<8x16xf32>
      %38 = vector.extract_strided_slice %33 {offsets = [0, 32], sizes = [8, 16], strides = [1, 1]} : vector<8x48xf32> to vector<8x16xf32>
      %39 = arith.mulf %37, %23 : vector<8x16xf32>
      %40 = arith.mulf %36, %35 : vector<8x16xf32>
      %41 = arith.addf %39, %40 : vector<8x16xf32>
      %42 = math.tanh %41 : vector<8x16xf32>
      %43 = arith.mulf %38, %42 : vector<8x16xf32>
      %44 = vector.extract_strided_slice %10 {offsets = [48, 0], sizes = [8, 64], strides = [1, 1]} : vector<64x64xf32> to vector<8x64xf32>
      %45 = arith.truncf %43 : vector<8x16xf32> to vector<8x16xbf16>
      %cst_22 = arith.constant dense<0.000000e+00> : vector<8x64xf32>
      %46 = tpu.matmul %45, %12, %cst_22 {dimension_numbers = #tpu.dot_dimension_numbers<[1], [0], [0], [1], [0, 0, 1, 1], [], []>} : vector<8x16xbf16>, vector<16x64xbf16>, vector<8x64xf32> -> vector<8x64xf32>
      %47 = arith.addf %44, %46 : vector<8x64xf32>
      %48 = vector.extract_strided_slice %47 {offsets = [0, 0], sizes = [8, 48], strides = [1, 1]} : vector<8x64xf32> to vector<8x48xf32>
      %49 = arith.negf %48 : vector<8x48xf32>
      %50 = math.exp %49 : vector<8x48xf32>
      %cst_23 = arith.constant 1.000000e+00 : f32
      %51 = vector.broadcast %cst_23 : f32 to vector<8x48xf32>
      %52 = arith.addf %51, %50 : vector<8x48xf32>
      %53 = arith.divf %51, %52 : vector<8x48xf32>
      %54 = vector.extract_strided_slice %47 {offsets = [0, 48], sizes = [8, 16], strides = [1, 1]} : vector<8x64xf32> to vector<8x16xf32>
      %55 = math.tanh %54 : vector<8x16xf32>
      %56 = vector.extract_strided_slice %53 {offsets = [0, 0], sizes = [8, 16], strides = [1, 1]} : vector<8x48xf32> to vector<8x16xf32>
      %57 = vector.extract_strided_slice %53 {offsets = [0, 16], sizes = [8, 16], strides = [1, 1]} : vector<8x48xf32> to vector<8x16xf32>
      %58 = vector.extract_strided_slice %53 {offsets = [0, 32], sizes = [8, 16], strides = [1, 1]} : vector<8x48xf32> to vector<8x16xf32>
      %59 = arith.mulf %57, %41 : vector<8x16xf32>
      %60 = arith.mulf %56, %55 : vector<8x16xf32>
      %61 = arith.addf %59, %60 : vector<8x16xf32>
      %62 = math.tanh %61 : vector<8x16xf32>
      %63 = arith.mulf %58, %62 : vector<8x16xf32>
      %64 = vector.extract_strided_slice %10 {offsets = [40, 0], sizes = [8, 64], strides = [1, 1]} : vector<64x64xf32> to vector<8x64xf32>
      %65 = arith.truncf %63 : vector<8x16xf32> to vector<8x16xbf16>
      %cst_24 = arith.constant dense<0.000000e+00> : vector<8x64xf32>
      %66 = tpu.matmul %65, %12, %cst_24 {dimension_numbers = #tpu.dot_dimension_numbers<[1], [0], [0], [1], [0, 0, 1, 1], [], []>} : vector<8x16xbf16>, vector<16x64xbf16>, vector<8x64xf32> -> vector<8x64xf32>
      %67 = arith.addf %64, %66 : vector<8x64xf32>
      %68 = vector.extract_strided_slice %67 {offsets = [0, 0], sizes = [8, 48], strides = [1, 1]} : vector<8x64xf32> to vector<8x48xf32>
      %69 = arith.negf %68 : vector<8x48xf32>
      %70 = math.exp %69 : vector<8x48xf32>
      %cst_25 = arith.constant 1.000000e+00 : f32
      %71 = vector.broadcast %cst_25 : f32 to vector<8x48xf32>
      %72 = arith.addf %71, %70 : vector<8x48xf32>
      %73 = arith.divf %71, %72 : vector<8x48xf32>
      %74 = vector.extract_strided_slice %67 {offsets = [0, 48], sizes = [8, 16], strides = [1, 1]} : vector<8x64xf32> to vector<8x16xf32>
      %75 = math.tanh %74 : vector<8x16xf32>
      %76 = vector.extract_strided_slice %73 {offsets = [0, 0], sizes = [8, 16], strides = [1, 1]} : vector<8x48xf32> to vector<8x16xf32>
      %77 = vector.extract_strided_slice %73 {offsets = [0, 16], sizes = [8, 16], strides = [1, 1]} : vector<8x48xf32> to vector<8x16xf32>
      %78 = vector.extract_strided_slice %73 {offsets = [0, 32], sizes = [8, 16], strides = [1, 1]} : vector<8x48xf32> to vector<8x16xf32>
      %79 = arith.mulf %77, %61 : vector<8x16xf32>
      %80 = arith.mulf %76, %75 : vector<8x16xf32>
      %81 = arith.addf %79, %80 : vector<8x16xf32>
      %82 = math.tanh %81 : vector<8x16xf32>
      %83 = arith.mulf %78, %82 : vector<8x16xf32>
      %84 = vector.extract_strided_slice %10 {offsets = [32, 0], sizes = [8, 64], strides = [1, 1]} : vector<64x64xf32> to vector<8x64xf32>
      %85 = arith.truncf %83 : vector<8x16xf32> to vector<8x16xbf16>
      %cst_26 = arith.constant dense<0.000000e+00> : vector<8x64xf32>
      %86 = tpu.matmul %85, %12, %cst_26 {dimension_numbers = #tpu.dot_dimension_numbers<[1], [0], [0], [1], [0, 0, 1, 1], [], []>} : vector<8x16xbf16>, vector<16x64xbf16>, vector<8x64xf32> -> vector<8x64xf32>
      %87 = arith.addf %84, %86 : vector<8x64xf32>
      %88 = vector.extract_strided_slice %87 {offsets = [0, 0], sizes = [8, 48], strides = [1, 1]} : vector<8x64xf32> to vector<8x48xf32>
      %89 = arith.negf %88 : vector<8x48xf32>
      %90 = math.exp %89 : vector<8x48xf32>
      %cst_27 = arith.constant 1.000000e+00 : f32
      %91 = vector.broadcast %cst_27 : f32 to vector<8x48xf32>
      %92 = arith.addf %91, %90 : vector<8x48xf32>
      %93 = arith.divf %91, %92 : vector<8x48xf32>
      %94 = vector.extract_strided_slice %87 {offsets = [0, 48], sizes = [8, 16], strides = [1, 1]} : vector<8x64xf32> to vector<8x16xf32>
      %95 = math.tanh %94 : vector<8x16xf32>
      %96 = vector.extract_strided_slice %93 {offsets = [0, 0], sizes = [8, 16], strides = [1, 1]} : vector<8x48xf32> to vector<8x16xf32>
      %97 = vector.extract_strided_slice %93 {offsets = [0, 16], sizes = [8, 16], strides = [1, 1]} : vector<8x48xf32> to vector<8x16xf32>
      %98 = vector.extract_strided_slice %93 {offsets = [0, 32], sizes = [8, 16], strides = [1, 1]} : vector<8x48xf32> to vector<8x16xf32>
      %99 = arith.mulf %97, %81 : vector<8x16xf32>
      %100 = arith.mulf %96, %95 : vector<8x16xf32>
      %101 = arith.addf %99, %100 : vector<8x16xf32>
      %102 = math.tanh %101 : vector<8x16xf32>
      %103 = arith.mulf %98, %102 : vector<8x16xf32>
      %104 = vector.extract_strided_slice %10 {offsets = [24, 0], sizes = [8, 64], strides = [1, 1]} : vector<64x64xf32> to vector<8x64xf32>
      %105 = arith.truncf %103 : vector<8x16xf32> to vector<8x16xbf16>
      %cst_28 = arith.constant dense<0.000000e+00> : vector<8x64xf32>
      %106 = tpu.matmul %105, %12, %cst_28 {dimension_numbers = #tpu.dot_dimension_numbers<[1], [0], [0], [1], [0, 0, 1, 1], [], []>} : vector<8x16xbf16>, vector<16x64xbf16>, vector<8x64xf32> -> vector<8x64xf32>
      %107 = arith.addf %104, %106 : vector<8x64xf32>
      %108 = vector.extract_strided_slice %107 {offsets = [0, 0], sizes = [8, 48], strides = [1, 1]} : vector<8x64xf32> to vector<8x48xf32>
      %109 = arith.negf %108 : vector<8x48xf32>
      %110 = math.exp %109 : vector<8x48xf32>
      %cst_29 = arith.constant 1.000000e+00 : f32
      %111 = vector.broadcast %cst_29 : f32 to vector<8x48xf32>
      %112 = arith.addf %111, %110 : vector<8x48xf32>
      %113 = arith.divf %111, %112 : vector<8x48xf32>
      %114 = vector.extract_strided_slice %107 {offsets = [0, 48], sizes = [8, 16], strides = [1, 1]} : vector<8x64xf32> to vector<8x16xf32>
      %115 = math.tanh %114 : vector<8x16xf32>
      %116 = vector.extract_strided_slice %113 {offsets = [0, 0], sizes = [8, 16], strides = [1, 1]} : vector<8x48xf32> to vector<8x16xf32>
      %117 = vector.extract_strided_slice %113 {offsets = [0, 16], sizes = [8, 16], strides = [1, 1]} : vector<8x48xf32> to vector<8x16xf32>
      %118 = vector.extract_strided_slice %113 {offsets = [0, 32], sizes = [8, 16], strides = [1, 1]} : vector<8x48xf32> to vector<8x16xf32>
      %119 = arith.mulf %117, %101 : vector<8x16xf32>
      %120 = arith.mulf %116, %115 : vector<8x16xf32>
      %121 = arith.addf %119, %120 : vector<8x16xf32>
      %122 = math.tanh %121 : vector<8x16xf32>
      %123 = arith.mulf %118, %122 : vector<8x16xf32>
      %124 = vector.extract_strided_slice %10 {offsets = [16, 0], sizes = [8, 64], strides = [1, 1]} : vector<64x64xf32> to vector<8x64xf32>
      %125 = arith.truncf %123 : vector<8x16xf32> to vector<8x16xbf16>
      %cst_30 = arith.constant dense<0.000000e+00> : vector<8x64xf32>
      %126 = tpu.matmul %125, %12, %cst_30 {dimension_numbers = #tpu.dot_dimension_numbers<[1], [0], [0], [1], [0, 0, 1, 1], [], []>} : vector<8x16xbf16>, vector<16x64xbf16>, vector<8x64xf32> -> vector<8x64xf32>
      %127 = arith.addf %124, %126 : vector<8x64xf32>
      %128 = vector.extract_strided_slice %127 {offsets = [0, 0], sizes = [8, 48], strides = [1, 1]} : vector<8x64xf32> to vector<8x48xf32>
      %129 = arith.negf %128 : vector<8x48xf32>
      %130 = math.exp %129 : vector<8x48xf32>
      %cst_31 = arith.constant 1.000000e+00 : f32
      %131 = vector.broadcast %cst_31 : f32 to vector<8x48xf32>
      %132 = arith.addf %131, %130 : vector<8x48xf32>
      %133 = arith.divf %131, %132 : vector<8x48xf32>
      %134 = vector.extract_strided_slice %127 {offsets = [0, 48], sizes = [8, 16], strides = [1, 1]} : vector<8x64xf32> to vector<8x16xf32>
      %135 = math.tanh %134 : vector<8x16xf32>
      %136 = vector.extract_strided_slice %133 {offsets = [0, 0], sizes = [8, 16], strides = [1, 1]} : vector<8x48xf32> to vector<8x16xf32>
      %137 = vector.extract_strided_slice %133 {offsets = [0, 16], sizes = [8, 16], strides = [1, 1]} : vector<8x48xf32> to vector<8x16xf32>
      %138 = vector.extract_strided_slice %133 {offsets = [0, 32], sizes = [8, 16], strides = [1, 1]} : vector<8x48xf32> to vector<8x16xf32>
      %139 = arith.mulf %137, %121 : vector<8x16xf32>
      %140 = arith.mulf %136, %135 : vector<8x16xf32>
      %141 = arith.addf %139, %140 : vector<8x16xf32>
      %142 = math.tanh %141 : vector<8x16xf32>
      %143 = arith.mulf %138, %142 : vector<8x16xf32>
      %144 = vector.extract_strided_slice %10 {offsets = [8, 0], sizes = [8, 64], strides = [1, 1]} : vector<64x64xf32> to vector<8x64xf32>
      %145 = arith.truncf %143 : vector<8x16xf32> to vector<8x16xbf16>
      %cst_32 = arith.constant dense<0.000000e+00> : vector<8x64xf32>
      %146 = tpu.matmul %145, %12, %cst_32 {dimension_numbers = #tpu.dot_dimension_numbers<[1], [0], [0], [1], [0, 0, 1, 1], [], []>} : vector<8x16xbf16>, vector<16x64xbf16>, vector<8x64xf32> -> vector<8x64xf32>
      %147 = arith.addf %144, %146 : vector<8x64xf32>
      %148 = vector.extract_strided_slice %147 {offsets = [0, 0], sizes = [8, 48], strides = [1, 1]} : vector<8x64xf32> to vector<8x48xf32>
      %149 = arith.negf %148 : vector<8x48xf32>
      %150 = math.exp %149 : vector<8x48xf32>
      %cst_33 = arith.constant 1.000000e+00 : f32
      %151 = vector.broadcast %cst_33 : f32 to vector<8x48xf32>
      %152 = arith.addf %151, %150 : vector<8x48xf32>
      %153 = arith.divf %151, %152 : vector<8x48xf32>
      %154 = vector.extract_strided_slice %147 {offsets = [0, 48], sizes = [8, 16], strides = [1, 1]} : vector<8x64xf32> to vector<8x16xf32>
      %155 = math.tanh %154 : vector<8x16xf32>
      %156 = vector.extract_strided_slice %153 {offsets = [0, 0], sizes = [8, 16], strides = [1, 1]} : vector<8x48xf32> to vector<8x16xf32>
      %157 = vector.extract_strided_slice %153 {offsets = [0, 16], sizes = [8, 16], strides = [1, 1]} : vector<8x48xf32> to vector<8x16xf32>
      %158 = vector.extract_strided_slice %153 {offsets = [0, 32], sizes = [8, 16], strides = [1, 1]} : vector<8x48xf32> to vector<8x16xf32>
      %159 = arith.mulf %157, %141 : vector<8x16xf32>
      %160 = arith.mulf %156, %155 : vector<8x16xf32>
      %161 = arith.addf %159, %160 : vector<8x16xf32>
      %162 = math.tanh %161 : vector<8x16xf32>
      %163 = arith.mulf %158, %162 : vector<8x16xf32>
      %164 = vector.extract_strided_slice %10 {offsets = [0, 0], sizes = [8, 64], strides = [1, 1]} : vector<64x64xf32> to vector<8x64xf32>
      %165 = arith.truncf %163 : vector<8x16xf32> to vector<8x16xbf16>
      %cst_34 = arith.constant dense<0.000000e+00> : vector<8x64xf32>
      %166 = tpu.matmul %165, %12, %cst_34 {dimension_numbers = #tpu.dot_dimension_numbers<[1], [0], [0], [1], [0, 0, 1, 1], [], []>} : vector<8x16xbf16>, vector<16x64xbf16>, vector<8x64xf32> -> vector<8x64xf32>
      %167 = arith.addf %164, %166 : vector<8x64xf32>
      %168 = vector.extract_strided_slice %167 {offsets = [0, 0], sizes = [8, 48], strides = [1, 1]} : vector<8x64xf32> to vector<8x48xf32>
      %169 = arith.negf %168 : vector<8x48xf32>
      %170 = math.exp %169 : vector<8x48xf32>
      %cst_35 = arith.constant 1.000000e+00 : f32
      %171 = vector.broadcast %cst_35 : f32 to vector<8x48xf32>
      %172 = arith.addf %171, %170 : vector<8x48xf32>
      %173 = arith.divf %171, %172 : vector<8x48xf32>
      %174 = vector.extract_strided_slice %167 {offsets = [0, 48], sizes = [8, 16], strides = [1, 1]} : vector<8x64xf32> to vector<8x16xf32>
      %175 = math.tanh %174 : vector<8x16xf32>
      %176 = vector.extract_strided_slice %173 {offsets = [0, 0], sizes = [8, 16], strides = [1, 1]} : vector<8x48xf32> to vector<8x16xf32>
      %177 = vector.extract_strided_slice %173 {offsets = [0, 16], sizes = [8, 16], strides = [1, 1]} : vector<8x48xf32> to vector<8x16xf32>
      %178 = vector.extract_strided_slice %173 {offsets = [0, 32], sizes = [8, 16], strides = [1, 1]} : vector<8x48xf32> to vector<8x16xf32>
      %179 = arith.mulf %177, %161 : vector<8x16xf32>
      %180 = arith.mulf %176, %175 : vector<8x16xf32>
      %181 = arith.addf %179, %180 : vector<8x16xf32>
      %182 = math.tanh %181 : vector<8x16xf32>
      %183 = arith.mulf %178, %182 : vector<8x16xf32>
      %c0_36 = arith.constant 0 : index
      %c0_37 = arith.constant 0 : index
      %184 = vector.load %arg10[%c0_36, %c0_37] : memref<8x16xf32, #tpu.memory_space<vmem>>, vector<8x16xf32>
      tpu.vector_store %arg10[%c0_36, %c0_37], %183 {strides = array<i32>} : memref<8x16xf32, #tpu.memory_space<vmem>>, vector<8x16xf32>,
      %c0_38 = arith.constant 0 : index
      %c0_39 = arith.constant 0 : index
      %185 = vector.load %arg11[%c0_38, %c0_39] : memref<8x16xf32, #tpu.memory_space<vmem>>, vector<8x16xf32>
      tpu.vector_store %arg11[%c0_38, %c0_39], %181 {strides = array<i32>} : memref<8x16xf32, #tpu.memory_space<vmem>>, vector<8x16xf32>,
    } else {
    }
    %c0_i32_14 = arith.constant 0 : i32
    %19 = arith.cmpi eq, %arg1, %c0_i32_14 : i32
    %20 = arith.extui %19 : i1 to i32
    %c0_i32_15 = arith.constant 0 : i32
    %21 = arith.cmpi ne, %20, %c0_i32_15 : i32
    scf.if %21 {
      %c0_16 = arith.constant 0 : index
      %c0_17 = arith.constant 0 : index
      %22 = vector.load %arg10[%c0_16, %c0_17] : memref<8x16xf32, #tpu.memory_space<vmem>>, vector<8x16xf32>
      %c0_18 = arith.constant 0 : index
      %c0_19 = arith.constant 0 : index
      %c0_20 = arith.constant 0 : index
      %23 = vector.load %arg8[%c0_18, %c0_19, %c0_20] : memref<1x8x16xf32, #tpu.memory_space<vmem>>, vector<1x8x16xf32>
      %24 = vector.shape_cast %23 : vector<1x8x16xf32> to vector<8x16xf32>
      %25 = vector.shape_cast %22 : vector<8x16xf32> to vector<1x8x16xf32>
      tpu.vector_store %arg8[%c0_18, %c0_19, %c0_20], %25 {strides = array<i32>} : memref<1x8x16xf32, #tpu.memory_space<vmem>>, vector<1x8x16xf32>,
      %c0_21 = arith.constant 0 : index
      %c0_22 = arith.constant 0 : index
      %26 = vector.load %arg11[%c0_21, %c0_22] : memref<8x16xf32, #tpu.memory_space<vmem>>, vector<8x16xf32>
      %c0_23 = arith.constant 0 : index
      %c0_24 = arith.constant 0 : index
      %c0_25 = arith.constant 0 : index
      %27 = vector.load %arg9[%c0_23, %c0_24, %c0_25] : memref<1x8x16xf32, #tpu.memory_space<vmem>>, vector<1x8x16xf32>
      %28 = vector.shape_cast %27 : vector<1x8x16xf32> to vector<8x16xf32>
      %29 = vector.shape_cast %26 : vector<8x16xf32> to vector<1x8x16xf32>
      tpu.vector_store %arg9[%c0_23, %c0_24, %c0_25], %29 {strides = array<i32>} : memref<1x8x16xf32, #tpu.memory_space<vmem>>, vector<1x8x16xf32>,
    } else {
    }
    return
  }
  func.func @transform_0(%arg0: i32, %arg1: i32) -> (i32, i32) {
    %c1_i32 = arith.constant 1 : i32
    %0 = arith.cmpi eq, %arg0, %c1_i32 : i32
    %c0_i32 = arith.constant 0 : i32
    %1 = arith.subi %c0_i32, %arg1 : i32
    %2 = arith.select %0, %1, %arg1 : i32
    %c0_i32_0 = arith.constant 0 : i32
    %c0_i32_1 = arith.constant 0 : i32
    return %2, %c0_i32_0 : i32, i32
  }
  func.func @transform_1(%arg0: i32, %arg1: i32) -> (i32, i32, i32) {
    %c0_i32 = arith.constant 0 : i32
    %c0_i32_0 = arith.constant 0 : i32
    %c0_i32_1 = arith.constant 0 : i32
    return %arg0, %c0_i32, %c0_i32_0 : i32, i32, i32
  }
  func.func @transform_2(%arg0: i32, %arg1: i32) -> (i32, i32, i32) {
    %c0_i32 = arith.constant 0 : i32
    %c0_i32_0 = arith.constant 0 : i32
    %c0_i32_1 = arith.constant 0 : i32
    return %arg0, %c0_i32, %c0_i32_0 : i32, i32, i32
  }
  func.func @transform_3(%arg0: i32, %arg1: i32) -> (i32, i32, i32) {
    %c0_i32 = arith.constant 0 : i32
    %c0_i32_0 = arith.constant 0 : i32
    %c0_i32_1 = arith.constant 0 : i32
    return %arg0, %c0_i32, %c0_i32_0 : i32, i32, i32
  }
  func.func @transform_4(%arg0: i32, %arg1: i32) -> (i32, i32, i32) {
    %c0_i32 = arith.constant 0 : i32
    %c0_i32_0 = arith.constant 0 : i32
    %c0_i32_1 = arith.constant 0 : i32
    return %arg0, %c0_i32, %c0_i32_0 : i32, i32, i32
  }
  func.func @transform_5(%arg0: i32, %arg1: i32) -> (i32, i32, i32) {
    %c0_i32 = arith.constant 0 : i32
    %c0_i32_0 = arith.constant 0 : i32
    %c0_i32_1 = arith.constant 0 : i32
    return %arg0, %c0_i32, %c0_i32_0 : i32, i32, i32
  }
  func.func @transform_6(%arg0: i32, %arg1: i32) -> (i32, i32, i32) {
    %c0_i32 = arith.constant 0 : i32
    %c0_i32_0 = arith.constant 0 : i32
    %c0_i32_1 = arith.constant 0 : i32
    return %arg0, %c0_i32, %c0_i32_0 : i32, i32, i32
  }
  func.func @transform_7(%arg0: i32, %arg1: i32) -> (i32, i32, i32) {
    %c0_i32 = arith.constant 0 : i32
    %c0_i32_0 = arith.constant 0 : i32
    %c0_i32_1 = arith.constant 0 : i32
    return %arg0, %c0_i32, %c0_i32_0 : i32, i32, i32
  }
}

module attributes {stable_mosaic.version = 11 : i64} {
  func.func @_head_latent_kernel(%arg0: memref<8x128xf32, #tpu.memory_space<vmem>>, %arg1: memref<1x128xf32, #tpu.memory_space<vmem>>, %arg2: memref<1x128xf32, #tpu.memory_space<vmem>>, %arg3: memref<128x24xbf16, #tpu.memory_space<vmem>>, %arg4: memref<1x24xf32, #tpu.memory_space<vmem>>, %arg5: memref<1x24xf32, #tpu.memory_space<vmem>>, %arg6: memref<1x24xf32, #tpu.memory_space<vmem>>, %arg7: memref<24x32xbf16, #tpu.memory_space<vmem>>, %arg8: memref<1x32xf32, #tpu.memory_space<vmem>>, %arg9: memref<1x32xf32, #tpu.memory_space<vmem>>, %arg10: memref<1x32xf32, #tpu.memory_space<vmem>>, %arg11: memref<24x32xbf16, #tpu.memory_space<vmem>>, %arg12: memref<1x32xf32, #tpu.memory_space<vmem>>, %arg13: memref<1x32xf32, #tpu.memory_space<vmem>>, %arg14: memref<1x32xf32, #tpu.memory_space<vmem>>, %arg15: memref<8x32xf32, #tpu.memory_space<vmem>>, %arg16: memref<8x32xf32, #tpu.memory_space<vmem>>) attributes {dimension_semantics = [], scalar_prefetch = 0 : i64, scratch_operands = 0 : i64, tpu.core_type = #tpu.core_type<tc>} {
    %c0 = arith.constant 0 : index
    %c0_0 = arith.constant 0 : index
    %0 = vector.load %arg0[%c0, %c0_0] : memref<8x128xf32, #tpu.memory_space<vmem>>, vector<8x128xf32>
    %c0_1 = arith.constant 0 : index
    %c0_2 = arith.constant 0 : index
    %1 = vector.load %arg1[%c0_1, %c0_2] : memref<1x128xf32, #tpu.memory_space<vmem>>, vector<1x128xf32>
    %c0_3 = arith.constant 0 : index
    %c0_4 = arith.constant 0 : index
    %2 = vector.load %arg2[%c0_3, %c0_4] : memref<1x128xf32, #tpu.memory_space<vmem>>, vector<1x128xf32>
    %cst = arith.constant dense<0.000000e+00> : vector<128xf32>
    %3 = vector.multi_reduction <add>, %0, %cst [0] : vector<8x128xf32> to vector<128xf32>
    %4 = vector.shape_cast %3 : vector<128xf32> to vector<1x128xf32>
    %cst_5 = arith.constant 8.000000e+00 : f32
    %5 = vector.broadcast %cst_5 : f32 to vector<1x128xf32>
    %6 = arith.divf %4, %5 : vector<1x128xf32>
    %7 = vector.broadcast %6 : vector<1x128xf32> to vector<8x128xf32>
    %8 = arith.subf %0, %7 : vector<8x128xf32>
    %9 = arith.mulf %8, %8 : vector<8x128xf32>
    %cst_6 = arith.constant dense<0.000000e+00> : vector<128xf32>
    %10 = vector.multi_reduction <add>, %9, %cst_6 [0] : vector<8x128xf32> to vector<128xf32>
    %11 = vector.shape_cast %10 : vector<128xf32> to vector<1x128xf32>
    %cst_7 = arith.constant 8.000000e+00 : f32
    %12 = vector.broadcast %cst_7 : f32 to vector<1x128xf32>
    %13 = arith.divf %11, %12 : vector<1x128xf32>
    %14 = vector.broadcast %6 : vector<1x128xf32> to vector<8x128xf32>
    %15 = arith.subf %0, %14 : vector<8x128xf32>
    %cst_8 = arith.constant 9.99999974E-6 : f32
    %16 = vector.broadcast %cst_8 : f32 to vector<1x128xf32>
    %17 = arith.addf %13, %16 : vector<1x128xf32>
    %18 = math.rsqrt %17 : vector<1x128xf32>
    %19 = vector.broadcast %18 : vector<1x128xf32> to vector<8x128xf32>
    %20 = arith.mulf %15, %19 : vector<8x128xf32>
    %21 = vector.broadcast %1 : vector<1x128xf32> to vector<8x128xf32>
    %22 = arith.mulf %20, %21 : vector<8x128xf32>
    %23 = vector.broadcast %2 : vector<1x128xf32> to vector<8x128xf32>
    %24 = arith.addf %22, %23 : vector<8x128xf32>
    %25 = arith.truncf %24 : vector<8x128xf32> to vector<8x128xbf16>
    %c0_9 = arith.constant 0 : index
    %c0_10 = arith.constant 0 : index
    %26 = vector.load %arg3[%c0_9, %c0_10] : memref<128x24xbf16, #tpu.memory_space<vmem>>, vector<128x24xbf16>
    %cst_11 = arith.constant dense<0.000000e+00> : vector<8x24xf32>
    %27 = tpu.matmul %25, %26, %cst_11 {dimension_numbers = #tpu.dot_dimension_numbers<[1], [0], [0], [1], [0, 0, 1, 1], [], []>} : vector<8x128xbf16>, vector<128x24xbf16>, vector<8x24xf32> -> vector<8x24xf32>
    %c0_12 = arith.constant 0 : index
    %c0_13 = arith.constant 0 : index
    %28 = vector.load %arg4[%c0_12, %c0_13] : memref<1x24xf32, #tpu.memory_space<vmem>>, vector<1x24xf32>
    %29 = vector.broadcast %28 : vector<1x24xf32> to vector<8x24xf32>
    %30 = arith.addf %27, %29 : vector<8x24xf32>
    %cst_14 = arith.constant 0.000000e+00 : f32
    %31 = vector.broadcast %cst_14 : f32 to vector<8x24xf32>
    %32 = arith.maximumf %30, %31 : vector<8x24xf32>
    %c0_15 = arith.constant 0 : index
    %c0_16 = arith.constant 0 : index
    %33 = vector.load %arg5[%c0_15, %c0_16] : memref<1x24xf32, #tpu.memory_space<vmem>>, vector<1x24xf32>
    %c0_17 = arith.constant 0 : index
    %c0_18 = arith.constant 0 : index
    %34 = vector.load %arg6[%c0_17, %c0_18] : memref<1x24xf32, #tpu.memory_space<vmem>>, vector<1x24xf32>
    %cst_19 = arith.constant dense<0.000000e+00> : vector<24xf32>
    %35 = vector.multi_reduction <add>, %32, %cst_19 [0] : vector<8x24xf32> to vector<24xf32>
    %36 = vector.shape_cast %35 : vector<24xf32> to vector<1x24xf32>
    %cst_20 = arith.constant 8.000000e+00 : f32
    %37 = vector.broadcast %cst_20 : f32 to vector<1x24xf32>
    %38 = arith.divf %36, %37 : vector<1x24xf32>
    %39 = vector.broadcast %38 : vector<1x24xf32> to vector<8x24xf32>
    %40 = arith.subf %32, %39 : vector<8x24xf32>
    %41 = arith.mulf %40, %40 : vector<8x24xf32>
    %cst_21 = arith.constant dense<0.000000e+00> : vector<24xf32>
    %42 = vector.multi_reduction <add>, %41, %cst_21 [0] : vector<8x24xf32> to vector<24xf32>
    %43 = vector.shape_cast %42 : vector<24xf32> to vector<1x24xf32>
    %cst_22 = arith.constant 8.000000e+00 : f32
    %44 = vector.broadcast %cst_22 : f32 to vector<1x24xf32>
    %45 = arith.divf %43, %44 : vector<1x24xf32>
    %46 = vector.broadcast %38 : vector<1x24xf32> to vector<8x24xf32>
    %47 = arith.subf %32, %46 : vector<8x24xf32>
    %cst_23 = arith.constant 9.99999974E-6 : f32
    %48 = vector.broadcast %cst_23 : f32 to vector<1x24xf32>
    %49 = arith.addf %45, %48 : vector<1x24xf32>
    %50 = math.rsqrt %49 : vector<1x24xf32>
    %51 = vector.broadcast %50 : vector<1x24xf32> to vector<8x24xf32>
    %52 = arith.mulf %47, %51 : vector<8x24xf32>
    %53 = vector.broadcast %33 : vector<1x24xf32> to vector<8x24xf32>
    %54 = arith.mulf %52, %53 : vector<8x24xf32>
    %55 = vector.broadcast %34 : vector<1x24xf32> to vector<8x24xf32>
    %56 = arith.addf %54, %55 : vector<8x24xf32>
    %57 = arith.truncf %56 : vector<8x24xf32> to vector<8x24xbf16>
    %c0_24 = arith.constant 0 : index
    %c0_25 = arith.constant 0 : index
    %58 = vector.load %arg7[%c0_24, %c0_25] : memref<24x32xbf16, #tpu.memory_space<vmem>>, vector<24x32xbf16>
    %cst_26 = arith.constant dense<0.000000e+00> : vector<8x32xf32>
    %59 = tpu.matmul %57, %58, %cst_26 {dimension_numbers = #tpu.dot_dimension_numbers<[1], [0], [0], [1], [0, 0, 1, 1], [], []>} : vector<8x24xbf16>, vector<24x32xbf16>, vector<8x32xf32> -> vector<8x32xf32>
    %c0_27 = arith.constant 0 : index
    %c0_28 = arith.constant 0 : index
    %60 = vector.load %arg8[%c0_27, %c0_28] : memref<1x32xf32, #tpu.memory_space<vmem>>, vector<1x32xf32>
    %61 = vector.broadcast %60 : vector<1x32xf32> to vector<8x32xf32>
    %62 = arith.addf %59, %61 : vector<8x32xf32>
    %c0_29 = arith.constant 0 : index
    %c0_30 = arith.constant 0 : index
    %63 = vector.load %arg9[%c0_29, %c0_30] : memref<1x32xf32, #tpu.memory_space<vmem>>, vector<1x32xf32>
    %c0_31 = arith.constant 0 : index
    %c0_32 = arith.constant 0 : index
    %64 = vector.load %arg10[%c0_31, %c0_32] : memref<1x32xf32, #tpu.memory_space<vmem>>, vector<1x32xf32>
    %cst_33 = arith.constant dense<0.000000e+00> : vector<32xf32>
    %65 = vector.multi_reduction <add>, %62, %cst_33 [0] : vector<8x32xf32> to vector<32xf32>
    %66 = vector.shape_cast %65 : vector<32xf32> to vector<1x32xf32>
    %cst_34 = arith.constant 8.000000e+00 : f32
    %67 = vector.broadcast %cst_34 : f32 to vector<1x32xf32>
    %68 = arith.divf %66, %67 : vector<1x32xf32>
    %69 = vector.broadcast %68 : vector<1x32xf32> to vector<8x32xf32>
    %70 = arith.subf %62, %69 : vector<8x32xf32>
    %71 = arith.mulf %70, %70 : vector<8x32xf32>
    %cst_35 = arith.constant dense<0.000000e+00> : vector<32xf32>
    %72 = vector.multi_reduction <add>, %71, %cst_35 [0] : vector<8x32xf32> to vector<32xf32>
    %73 = vector.shape_cast %72 : vector<32xf32> to vector<1x32xf32>
    %cst_36 = arith.constant 8.000000e+00 : f32
    %74 = vector.broadcast %cst_36 : f32 to vector<1x32xf32>
    %75 = arith.divf %73, %74 : vector<1x32xf32>
    %76 = vector.broadcast %68 : vector<1x32xf32> to vector<8x32xf32>
    %77 = arith.subf %62, %76 : vector<8x32xf32>
    %cst_37 = arith.constant 9.99999974E-6 : f32
    %78 = vector.broadcast %cst_37 : f32 to vector<1x32xf32>
    %79 = arith.addf %75, %78 : vector<1x32xf32>
    %80 = math.rsqrt %79 : vector<1x32xf32>
    %81 = vector.broadcast %80 : vector<1x32xf32> to vector<8x32xf32>
    %82 = arith.mulf %77, %81 : vector<8x32xf32>
    %83 = vector.broadcast %63 : vector<1x32xf32> to vector<8x32xf32>
    %84 = arith.mulf %82, %83 : vector<8x32xf32>
    %85 = vector.broadcast %64 : vector<1x32xf32> to vector<8x32xf32>
    %86 = arith.addf %84, %85 : vector<8x32xf32>
    %cst_38 = arith.constant 0.000000e+00 : f32
    %87 = vector.broadcast %cst_38 : f32 to vector<8x32xf32>
    %88 = arith.maximumf %86, %87 : vector<8x32xf32>
    %c0_39 = arith.constant 0 : index
    %c0_40 = arith.constant 0 : index
    %89 = vector.load %arg15[%c0_39, %c0_40] : memref<8x32xf32, #tpu.memory_space<vmem>>, vector<8x32xf32>
    tpu.vector_store %arg15[%c0_39, %c0_40], %88 {strides = array<i32>} : memref<8x32xf32, #tpu.memory_space<vmem>>, vector<8x32xf32>,
    %c0_41 = arith.constant 0 : index
    %c0_42 = arith.constant 0 : index
    %90 = vector.load %arg11[%c0_41, %c0_42] : memref<24x32xbf16, #tpu.memory_space<vmem>>, vector<24x32xbf16>
    %cst_43 = arith.constant dense<0.000000e+00> : vector<8x32xf32>
    %91 = tpu.matmul %57, %90, %cst_43 {dimension_numbers = #tpu.dot_dimension_numbers<[1], [0], [0], [1], [0, 0, 1, 1], [], []>} : vector<8x24xbf16>, vector<24x32xbf16>, vector<8x32xf32> -> vector<8x32xf32>
    %c0_44 = arith.constant 0 : index
    %c0_45 = arith.constant 0 : index
    %92 = vector.load %arg12[%c0_44, %c0_45] : memref<1x32xf32, #tpu.memory_space<vmem>>, vector<1x32xf32>
    %93 = vector.broadcast %92 : vector<1x32xf32> to vector<8x32xf32>
    %94 = arith.addf %91, %93 : vector<8x32xf32>
    %c0_46 = arith.constant 0 : index
    %c0_47 = arith.constant 0 : index
    %95 = vector.load %arg13[%c0_46, %c0_47] : memref<1x32xf32, #tpu.memory_space<vmem>>, vector<1x32xf32>
    %c0_48 = arith.constant 0 : index
    %c0_49 = arith.constant 0 : index
    %96 = vector.load %arg14[%c0_48, %c0_49] : memref<1x32xf32, #tpu.memory_space<vmem>>, vector<1x32xf32>
    %cst_50 = arith.constant dense<0.000000e+00> : vector<32xf32>
    %97 = vector.multi_reduction <add>, %94, %cst_50 [0] : vector<8x32xf32> to vector<32xf32>
    %98 = vector.shape_cast %97 : vector<32xf32> to vector<1x32xf32>
    %cst_51 = arith.constant 8.000000e+00 : f32
    %99 = vector.broadcast %cst_51 : f32 to vector<1x32xf32>
    %100 = arith.divf %98, %99 : vector<1x32xf32>
    %101 = vector.broadcast %100 : vector<1x32xf32> to vector<8x32xf32>
    %102 = arith.subf %94, %101 : vector<8x32xf32>
    %103 = arith.mulf %102, %102 : vector<8x32xf32>
    %cst_52 = arith.constant dense<0.000000e+00> : vector<32xf32>
    %104 = vector.multi_reduction <add>, %103, %cst_52 [0] : vector<8x32xf32> to vector<32xf32>
    %105 = vector.shape_cast %104 : vector<32xf32> to vector<1x32xf32>
    %cst_53 = arith.constant 8.000000e+00 : f32
    %106 = vector.broadcast %cst_53 : f32 to vector<1x32xf32>
    %107 = arith.divf %105, %106 : vector<1x32xf32>
    %108 = vector.broadcast %100 : vector<1x32xf32> to vector<8x32xf32>
    %109 = arith.subf %94, %108 : vector<8x32xf32>
    %cst_54 = arith.constant 9.99999974E-6 : f32
    %110 = vector.broadcast %cst_54 : f32 to vector<1x32xf32>
    %111 = arith.addf %107, %110 : vector<1x32xf32>
    %112 = math.rsqrt %111 : vector<1x32xf32>
    %113 = vector.broadcast %112 : vector<1x32xf32> to vector<8x32xf32>
    %114 = arith.mulf %109, %113 : vector<8x32xf32>
    %115 = vector.broadcast %95 : vector<1x32xf32> to vector<8x32xf32>
    %116 = arith.mulf %114, %115 : vector<8x32xf32>
    %117 = vector.broadcast %96 : vector<1x32xf32> to vector<8x32xf32>
    %118 = arith.addf %116, %117 : vector<8x32xf32>
    %cst_55 = arith.constant 0.000000e+00 : f32
    %119 = vector.broadcast %cst_55 : f32 to vector<8x32xf32>
    %120 = arith.maximumf %118, %119 : vector<8x32xf32>
    %c0_56 = arith.constant 0 : index
    %c0_57 = arith.constant 0 : index
    %121 = vector.load %arg16[%c0_56, %c0_57] : memref<8x32xf32, #tpu.memory_space<vmem>>, vector<8x32xf32>
    tpu.vector_store %arg16[%c0_56, %c0_57], %120 {strides = array<i32>} : memref<8x32xf32, #tpu.memory_space<vmem>>, vector<8x32xf32>,
    return
  }
}

module attributes {stable_mosaic.version = 11 : i64} {
  func.func @_lstm_kernel(%arg0: i32, %arg1: i32, %arg2: memref<64x16xbf16, #tpu.memory_space<vmem>>, %arg3: memref<1x16x128xbf16, #tpu.memory_space<vmem>>, %arg4: memref<1x32x128xbf16, #tpu.memory_space<vmem>>, %arg5: memref<1x1x128xf32, #tpu.memory_space<vmem>>, %arg6: memref<1x8x32xf32, #tpu.memory_space<vmem>>, %arg7: memref<1x8x32xf32, #tpu.memory_space<vmem>>, %arg8: memref<1x8x8x32xf32, #tpu.memory_space<vmem>>, %arg9: memref<1x8x32xf32, #tpu.memory_space<vmem>>, %arg10: memref<1x8x32xf32, #tpu.memory_space<vmem>>, %arg11: memref<8x32xf32, #tpu.memory_space<vmem>>, %arg12: memref<8x32xf32, #tpu.memory_space<vmem>>) attributes {dimension_semantics = [#tpu.dimension_semantics<parallel>, #tpu.dimension_semantics<arbitrary>], iteration_bounds = array<i64: 1, 1>, scalar_prefetch = 0 : i64, scratch_operands = 2 : i64, tpu.core_type = #tpu.core_type<tc>, window_params = [{transform_indices = @transform_0, window_bounds = array<i64: 64, 16>}, {transform_indices = @transform_1, window_bounds = array<i64: 1, 16, 128>}, {transform_indices = @transform_2, window_bounds = array<i64: 1, 32, 128>}, {transform_indices = @transform_3, window_bounds = array<i64: 1, 1, 128>}, {transform_indices = @transform_4, window_bounds = array<i64: 1, 8, 32>}, {transform_indices = @transform_5, window_bounds = array<i64: 1, 8, 32>}, {transform_indices = @transform_6, window_bounds = array<i64: 1, 8, 8, 32>}, {transform_indices = @transform_7, window_bounds = array<i64: 1, 8, 32>}, {transform_indices = @transform_8, window_bounds = array<i64: 1, 8, 32>}]} {
    %c0_i32 = arith.constant 0 : i32
    %0 = arith.cmpi eq, %arg1, %c0_i32 : i32
    %1 = arith.extui %0 : i1 to i32
    %c0_i32_0 = arith.constant 0 : i32
    %2 = arith.cmpi ne, %1, %c0_i32_0 : i32
    scf.if %2 {
      %c0_62 = arith.constant 0 : index
      %c0_63 = arith.constant 0 : index
      %c0_64 = arith.constant 0 : index
      %204 = vector.load %arg6[%c0_62, %c0_63, %c0_64] : memref<1x8x32xf32, #tpu.memory_space<vmem>>, vector<1x8x32xf32>
      %205 = vector.shape_cast %204 : vector<1x8x32xf32> to vector<8x32xf32>
      %c0_65 = arith.constant 0 : index
      %c0_66 = arith.constant 0 : index
      %206 = vector.load %arg11[%c0_65, %c0_66] : memref<8x32xf32, #tpu.memory_space<vmem>>, vector<8x32xf32>
      tpu.vector_store %arg11[%c0_65, %c0_66], %205 {strides = array<i32>} : memref<8x32xf32, #tpu.memory_space<vmem>>, vector<8x32xf32>,
      %c0_67 = arith.constant 0 : index
      %c0_68 = arith.constant 0 : index
      %c0_69 = arith.constant 0 : index
      %207 = vector.load %arg7[%c0_67, %c0_68, %c0_69] : memref<1x8x32xf32, #tpu.memory_space<vmem>>, vector<1x8x32xf32>
      %208 = vector.shape_cast %207 : vector<1x8x32xf32> to vector<8x32xf32>
      %c0_70 = arith.constant 0 : index
      %c0_71 = arith.constant 0 : index
      %209 = vector.load %arg12[%c0_70, %c0_71] : memref<8x32xf32, #tpu.memory_space<vmem>>, vector<8x32xf32>
      tpu.vector_store %arg12[%c0_70, %c0_71], %208 {strides = array<i32>} : memref<8x32xf32, #tpu.memory_space<vmem>>, vector<8x32xf32>,
    } else {
    }
    %c0 = arith.constant 0 : index
    %c0_1 = arith.constant 0 : index
    %3 = vector.load %arg2[%c0, %c0_1] : memref<64x16xbf16, #tpu.memory_space<vmem>>, vector<64x16xbf16>
    %c0_2 = arith.constant 0 : index
    %c0_3 = arith.constant 0 : index
    %c0_4 = arith.constant 0 : index
    %4 = vector.load %arg3[%c0_2, %c0_3, %c0_4] : memref<1x16x128xbf16, #tpu.memory_space<vmem>>, vector<1x16x128xbf16>
    %5 = vector.shape_cast %4 : vector<1x16x128xbf16> to vector<16x128xbf16>
    %cst = arith.constant dense<0.000000e+00> : vector<64x128xf32>
    %6 = tpu.matmul %3, %5, %cst {dimension_numbers = #tpu.dot_dimension_numbers<[1], [0], [0], [1], [0, 0, 1, 1], [], []>} : vector<64x16xbf16>, vector<16x128xbf16>, vector<64x128xf32> -> vector<64x128xf32>
    %c0_5 = arith.constant 0 : index
    %c0_6 = arith.constant 0 : index
    %c0_7 = arith.constant 0 : index
    %7 = vector.load %arg5[%c0_5, %c0_6, %c0_7] : memref<1x1x128xf32, #tpu.memory_space<vmem>>, vector<1x1x128xf32>
    %8 = vector.shape_cast %7 : vector<1x1x128xf32> to vector<1x128xf32>
    %9 = vector.broadcast %8 : vector<1x128xf32> to vector<64x128xf32>
    %10 = arith.addf %6, %9 : vector<64x128xf32>
    %c0_8 = arith.constant 0 : index
    %c0_9 = arith.constant 0 : index
    %c0_10 = arith.constant 0 : index
    %11 = vector.load %arg4[%c0_8, %c0_9, %c0_10] : memref<1x32x128xbf16, #tpu.memory_space<vmem>>, vector<1x32x128xbf16>
    %12 = vector.shape_cast %11 : vector<1x32x128xbf16> to vector<32x128xbf16>
    %c0_11 = arith.constant 0 : index
    %c0_12 = arith.constant 0 : index
    %13 = vector.load %arg11[%c0_11, %c0_12] : memref<8x32xf32, #tpu.memory_space<vmem>>, vector<8x32xf32>
    %c0_13 = arith.constant 0 : index
    %c0_14 = arith.constant 0 : index
    %14 = vector.load %arg12[%c0_13, %c0_14] : memref<8x32xf32, #tpu.memory_space<vmem>>, vector<8x32xf32>
    %15 = vector.extract_strided_slice %10 {offsets = [0, 0], sizes = [8, 128], strides = [1, 1]} : vector<64x128xf32> to vector<8x128xf32>
    %16 = arith.truncf %13 : vector<8x32xf32> to vector<8x32xbf16>
    %cst_15 = arith.constant dense<0.000000e+00> : vector<8x128xf32>
    %17 = tpu.matmul %16, %12, %cst_15 {dimension_numbers = #tpu.dot_dimension_numbers<[1], [0], [0], [1], [0, 0, 1, 1], [], []>} : vector<8x32xbf16>, vector<32x128xbf16>, vector<8x128xf32> -> vector<8x128xf32>
    %18 = arith.addf %15, %17 : vector<8x128xf32>
    %19 = vector.extract_strided_slice %18 {offsets = [0, 0], sizes = [8, 96], strides = [1, 1]} : vector<8x128xf32> to vector<8x96xf32>
    %20 = arith.negf %19 : vector<8x96xf32>
    %21 = math.exp %20 : vector<8x96xf32>
    %cst_16 = arith.constant 1.000000e+00 : f32
    %22 = vector.broadcast %cst_16 : f32 to vector<8x96xf32>
    %23 = arith.addf %22, %21 : vector<8x96xf32>
    %24 = arith.divf %22, %23 : vector<8x96xf32>
    %25 = vector.extract_strided_slice %18 {offsets = [0, 96], sizes = [8, 32], strides = [1, 1]} : vector<8x128xf32> to vector<8x32xf32>
    %26 = math.tanh %25 : vector<8x32xf32>
    %27 = vector.extract_strided_slice %24 {offsets = [0, 0], sizes = [8, 32], strides = [1, 1]} : vector<8x96xf32> to vector<8x32xf32>
    %28 = vector.extract_strided_slice %24 {offsets = [0, 32], sizes = [8, 32], strides = [1, 1]} : vector<8x96xf32> to vector<8x32xf32>
    %29 = vector.extract_strided_slice %24 {offsets = [0, 64], sizes = [8, 32], strides = [1, 1]} : vector<8x96xf32> to vector<8x32xf32>
    %30 = arith.mulf %28, %14 : vector<8x32xf32>
    %31 = arith.mulf %27, %26 : vector<8x32xf32>
    %32 = arith.addf %30, %31 : vector<8x32xf32>
    %33 = math.tanh %32 : vector<8x32xf32>
    %34 = arith.mulf %29, %33 : vector<8x32xf32>
    %c0_17 = arith.constant 0 : index
    %c0_18 = arith.constant 0 : index
    %c0_19 = arith.constant 0 : index
    %c0_20 = arith.constant 0 : index
    %35 = vector.load %arg8[%c0_17, %c0_18, %c0_19, %c0_20] : memref<1x8x8x32xf32, #tpu.memory_space<vmem>>, vector<1x1x8x32xf32>
    %36 = vector.shape_cast %35 : vector<1x1x8x32xf32> to vector<8x32xf32>
    %37 = vector.shape_cast %34 : vector<8x32xf32> to vector<1x1x8x32xf32>
    tpu.vector_store %arg8[%c0_17, %c0_18, %c0_19, %c0_20], %37 {strides = array<i32>} : memref<1x8x8x32xf32, #tpu.memory_space<vmem>>, vector<1x1x8x32xf32>,
    %38 = vector.extract_strided_slice %10 {offsets = [8, 0], sizes = [8, 128], strides = [1, 1]} : vector<64x128xf32> to vector<8x128xf32>
    %39 = arith.truncf %34 : vector<8x32xf32> to vector<8x32xbf16>
    %cst_21 = arith.constant dense<0.000000e+00> : vector<8x128xf32>
    %40 = tpu.matmul %39, %12, %cst_21 {dimension_numbers = #tpu.dot_dimension_numbers<[1], [0], [0], [1], [0, 0, 1, 1], [], []>} : vector<8x32xbf16>, vector<32x128xbf16>, vector<8x128xf32> -> vector<8x128xf32>
    %41 = arith.addf %38, %40 : vector<8x128xf32>
    %42 = vector.extract_strided_slice %41 {offsets = [0, 0], sizes = [8, 96], strides = [1, 1]} : vector<8x128xf32> to vector<8x96xf32>
    %43 = arith.negf %42 : vector<8x96xf32>
    %44 = math.exp %43 : vector<8x96xf32>
    %cst_22 = arith.constant 1.000000e+00 : f32
    %45 = vector.broadcast %cst_22 : f32 to vector<8x96xf32>
    %46 = arith.addf %45, %44 : vector<8x96xf32>
    %47 = arith.divf %45, %46 : vector<8x96xf32>
    %48 = vector.extract_strided_slice %41 {offsets = [0, 96], sizes = [8, 32], strides = [1, 1]} : vector<8x128xf32> to vector<8x32xf32>
    %49 = math.tanh %48 : vector<8x32xf32>
    %50 = vector.extract_strided_slice %47 {offsets = [0, 0], sizes = [8, 32], strides = [1, 1]} : vector<8x96xf32> to vector<8x32xf32>
    %51 = vector.extract_strided_slice %47 {offsets = [0, 32], sizes = [8, 32], strides = [1, 1]} : vector<8x96xf32> to vector<8x32xf32>
    %52 = vector.extract_strided_slice %47 {offsets = [0, 64], sizes = [8, 32], strides = [1, 1]} : vector<8x96xf32> to vector<8x32xf32>
    %53 = arith.mulf %51, %32 : vector<8x32xf32>
    %54 = arith.mulf %50, %49 : vector<8x32xf32>
    %55 = arith.addf %53, %54 : vector<8x32xf32>
    %56 = math.tanh %55 : vector<8x32xf32>
    %57 = arith.mulf %52, %56 : vector<8x32xf32>
    %c0_23 = arith.constant 0 : index
    %c1 = arith.constant 1 : index
    %c0_24 = arith.constant 0 : index
    %c0_25 = arith.constant 0 : index
    %58 = vector.load %arg8[%c0_23, %c1, %c0_24, %c0_25] : memref<1x8x8x32xf32, #tpu.memory_space<vmem>>, vector<1x1x8x32xf32>
    %59 = vector.shape_cast %58 : vector<1x1x8x32xf32> to vector<8x32xf32>
    %60 = vector.shape_cast %57 : vector<8x32xf32> to vector<1x1x8x32xf32>
    tpu.vector_store %arg8[%c0_23, %c1, %c0_24, %c0_25], %60 {strides = array<i32>} : memref<1x8x8x32xf32, #tpu.memory_space<vmem>>, vector<1x1x8x32xf32>,
    %61 = vector.extract_strided_slice %10 {offsets = [16, 0], sizes = [8, 128], strides = [1, 1]} : vector<64x128xf32> to vector<8x128xf32>
    %62 = arith.truncf %57 : vector<8x32xf32> to vector<8x32xbf16>
    %cst_26 = arith.constant dense<0.000000e+00> : vector<8x128xf32>
    %63 = tpu.matmul %62, %12, %cst_26 {dimension_numbers = #tpu.dot_dimension_numbers<[1], [0], [0], [1], [0, 0, 1, 1], [], []>} : vector<8x32xbf16>, vector<32x128xbf16>, vector<8x128xf32> -> vector<8x128xf32>
    %64 = arith.addf %61, %63 : vector<8x128xf32>
    %65 = vector.extract_strided_slice %64 {offsets = [0, 0], sizes = [8, 96], strides = [1, 1]} : vector<8x128xf32> to vector<8x96xf32>
    %66 = arith.negf %65 : vector<8x96xf32>
    %67 = math.exp %66 : vector<8x96xf32>
    %cst_27 = arith.constant 1.000000e+00 : f32
    %68 = vector.broadcast %cst_27 : f32 to vector<8x96xf32>
    %69 = arith.addf %68, %67 : vector<8x96xf32>
    %70 = arith.divf %68, %69 : vector<8x96xf32>
    %71 = vector.extract_strided_slice %64 {offsets = [0, 96], sizes = [8, 32], strides = [1, 1]} : vector<8x128xf32> to vector<8x32xf32>
    %72 = math.tanh %71 : vector<8x32xf32>
    %73 = vector.extract_strided_slice %70 {offsets = [0, 0], sizes = [8, 32], strides = [1, 1]} : vector<8x96xf32> to vector<8x32xf32>
    %74 = vector.extract_strided_slice %70 {offsets = [0, 32], sizes = [8, 32], strides = [1, 1]} : vector<8x96xf32> to vector<8x32xf32>
    %75 = vector.extract_strided_slice %70 {offsets = [0, 64], sizes = [8, 32], strides = [1, 1]} : vector<8x96xf32> to vector<8x32xf32>
    %76 = arith.mulf %74, %55 : vector<8x32xf32>
    %77 = arith.mulf %73, %72 : vector<8x32xf32>
    %78 = arith.addf %76, %77 : vector<8x32xf32>
    %79 = math.tanh %78 : vector<8x32xf32>
    %80 = arith.mulf %75, %79 : vector<8x32xf32>
    %c0_28 = arith.constant 0 : index
    %c2 = arith.constant 2 : index
    %c0_29 = arith.constant 0 : index
    %c0_30 = arith.constant 0 : index
    %81 = vector.load %arg8[%c0_28, %c2, %c0_29, %c0_30] : memref<1x8x8x32xf32, #tpu.memory_space<vmem>>, vector<1x1x8x32xf32>
    %82 = vector.shape_cast %81 : vector<1x1x8x32xf32> to vector<8x32xf32>
    %83 = vector.shape_cast %80 : vector<8x32xf32> to vector<1x1x8x32xf32>
    tpu.vector_store %arg8[%c0_28, %c2, %c0_29, %c0_30], %83 {strides = array<i32>} : memref<1x8x8x32xf32, #tpu.memory_space<vmem>>, vector<1x1x8x32xf32>,
    %84 = vector.extract_strided_slice %10 {offsets = [24, 0], sizes = [8, 128], strides = [1, 1]} : vector<64x128xf32> to vector<8x128xf32>
    %85 = arith.truncf %80 : vector<8x32xf32> to vector<8x32xbf16>
    %cst_31 = arith.constant dense<0.000000e+00> : vector<8x128xf32>
    %86 = tpu.matmul %85, %12, %cst_31 {dimension_numbers = #tpu.dot_dimension_numbers<[1], [0], [0], [1], [0, 0, 1, 1], [], []>} : vector<8x32xbf16>, vector<32x128xbf16>, vector<8x128xf32> -> vector<8x128xf32>
    %87 = arith.addf %84, %86 : vector<8x128xf32>
    %88 = vector.extract_strided_slice %87 {offsets = [0, 0], sizes = [8, 96], strides = [1, 1]} : vector<8x128xf32> to vector<8x96xf32>
    %89 = arith.negf %88 : vector<8x96xf32>
    %90 = math.exp %89 : vector<8x96xf32>
    %cst_32 = arith.constant 1.000000e+00 : f32
    %91 = vector.broadcast %cst_32 : f32 to vector<8x96xf32>
    %92 = arith.addf %91, %90 : vector<8x96xf32>
    %93 = arith.divf %91, %92 : vector<8x96xf32>
    %94 = vector.extract_strided_slice %87 {offsets = [0, 96], sizes = [8, 32], strides = [1, 1]} : vector<8x128xf32> to vector<8x32xf32>
    %95 = math.tanh %94 : vector<8x32xf32>
    %96 = vector.extract_strided_slice %93 {offsets = [0, 0], sizes = [8, 32], strides = [1, 1]} : vector<8x96xf32> to vector<8x32xf32>
    %97 = vector.extract_strided_slice %93 {offsets = [0, 32], sizes = [8, 32], strides = [1, 1]} : vector<8x96xf32> to vector<8x32xf32>
    %98 = vector.extract_strided_slice %93 {offsets = [0, 64], sizes = [8, 32], strides = [1, 1]} : vector<8x96xf32> to vector<8x32xf32>
    %99 = arith.mulf %97, %78 : vector<8x32xf32>
    %100 = arith.mulf %96, %95 : vector<8x32xf32>
    %101 = arith.addf %99, %100 : vector<8x32xf32>
    %102 = math.tanh %101 : vector<8x32xf32>
    %103 = arith.mulf %98, %102 : vector<8x32xf32>
    %c0_33 = arith.constant 0 : index
    %c3 = arith.constant 3 : index
    %c0_34 = arith.constant 0 : index
    %c0_35 = arith.constant 0 : index
    %104 = vector.load %arg8[%c0_33, %c3, %c0_34, %c0_35] : memref<1x8x8x32xf32, #tpu.memory_space<vmem>>, vector<1x1x8x32xf32>
    %105 = vector.shape_cast %104 : vector<1x1x8x32xf32> to vector<8x32xf32>
    %106 = vector.shape_cast %103 : vector<8x32xf32> to vector<1x1x8x32xf32>
    tpu.vector_store %arg8[%c0_33, %c3, %c0_34, %c0_35], %106 {strides = array<i32>} : memref<1x8x8x32xf32, #tpu.memory_space<vmem>>, vector<1x1x8x32xf32>,
    %107 = vector.extract_strided_slice %10 {offsets = [32, 0], sizes = [8, 128], strides = [1, 1]} : vector<64x128xf32> to vector<8x128xf32>
    %108 = arith.truncf %103 : vector<8x32xf32> to vector<8x32xbf16>
    %cst_36 = arith.constant dense<0.000000e+00> : vector<8x128xf32>
    %109 = tpu.matmul %108, %12, %cst_36 {dimension_numbers = #tpu.dot_dimension_numbers<[1], [0], [0], [1], [0, 0, 1, 1], [], []>} : vector<8x32xbf16>, vector<32x128xbf16>, vector<8x128xf32> -> vector<8x128xf32>
    %110 = arith.addf %107, %109 : vector<8x128xf32>
    %111 = vector.extract_strided_slice %110 {offsets = [0, 0], sizes = [8, 96], strides = [1, 1]} : vector<8x128xf32> to vector<8x96xf32>
    %112 = arith.negf %111 : vector<8x96xf32>
    %113 = math.exp %112 : vector<8x96xf32>
    %cst_37 = arith.constant 1.000000e+00 : f32
    %114 = vector.broadcast %cst_37 : f32 to vector<8x96xf32>
    %115 = arith.addf %114, %113 : vector<8x96xf32>
    %116 = arith.divf %114, %115 : vector<8x96xf32>
    %117 = vector.extract_strided_slice %110 {offsets = [0, 96], sizes = [8, 32], strides = [1, 1]} : vector<8x128xf32> to vector<8x32xf32>
    %118 = math.tanh %117 : vector<8x32xf32>
    %119 = vector.extract_strided_slice %116 {offsets = [0, 0], sizes = [8, 32], strides = [1, 1]} : vector<8x96xf32> to vector<8x32xf32>
    %120 = vector.extract_strided_slice %116 {offsets = [0, 32], sizes = [8, 32], strides = [1, 1]} : vector<8x96xf32> to vector<8x32xf32>
    %121 = vector.extract_strided_slice %116 {offsets = [0, 64], sizes = [8, 32], strides = [1, 1]} : vector<8x96xf32> to vector<8x32xf32>
    %122 = arith.mulf %120, %101 : vector<8x32xf32>
    %123 = arith.mulf %119, %118 : vector<8x32xf32>
    %124 = arith.addf %122, %123 : vector<8x32xf32>
    %125 = math.tanh %124 : vector<8x32xf32>
    %126 = arith.mulf %121, %125 : vector<8x32xf32>
    %c0_38 = arith.constant 0 : index
    %c4 = arith.constant 4 : index
    %c0_39 = arith.constant 0 : index
    %c0_40 = arith.constant 0 : index
    %127 = vector.load %arg8[%c0_38, %c4, %c0_39, %c0_40] : memref<1x8x8x32xf32, #tpu.memory_space<vmem>>, vector<1x1x8x32xf32>
    %128 = vector.shape_cast %127 : vector<1x1x8x32xf32> to vector<8x32xf32>
    %129 = vector.shape_cast %126 : vector<8x32xf32> to vector<1x1x8x32xf32>
    tpu.vector_store %arg8[%c0_38, %c4, %c0_39, %c0_40], %129 {strides = array<i32>} : memref<1x8x8x32xf32, #tpu.memory_space<vmem>>, vector<1x1x8x32xf32>,
    %130 = vector.extract_strided_slice %10 {offsets = [40, 0], sizes = [8, 128], strides = [1, 1]} : vector<64x128xf32> to vector<8x128xf32>
    %131 = arith.truncf %126 : vector<8x32xf32> to vector<8x32xbf16>
    %cst_41 = arith.constant dense<0.000000e+00> : vector<8x128xf32>
    %132 = tpu.matmul %131, %12, %cst_41 {dimension_numbers = #tpu.dot_dimension_numbers<[1], [0], [0], [1], [0, 0, 1, 1], [], []>} : vector<8x32xbf16>, vector<32x128xbf16>, vector<8x128xf32> -> vector<8x128xf32>
    %133 = arith.addf %130, %132 : vector<8x128xf32>
    %134 = vector.extract_strided_slice %133 {offsets = [0, 0], sizes = [8, 96], strides = [1, 1]} : vector<8x128xf32> to vector<8x96xf32>
    %135 = arith.negf %134 : vector<8x96xf32>
    %136 = math.exp %135 : vector<8x96xf32>
    %cst_42 = arith.constant 1.000000e+00 : f32
    %137 = vector.broadcast %cst_42 : f32 to vector<8x96xf32>
    %138 = arith.addf %137, %136 : vector<8x96xf32>
    %139 = arith.divf %137, %138 : vector<8x96xf32>
    %140 = vector.extract_strided_slice %133 {offsets = [0, 96], sizes = [8, 32], strides = [1, 1]} : vector<8x128xf32> to vector<8x32xf32>
    %141 = math.tanh %140 : vector<8x32xf32>
    %142 = vector.extract_strided_slice %139 {offsets = [0, 0], sizes = [8, 32], strides = [1, 1]} : vector<8x96xf32> to vector<8x32xf32>
    %143 = vector.extract_strided_slice %139 {offsets = [0, 32], sizes = [8, 32], strides = [1, 1]} : vector<8x96xf32> to vector<8x32xf32>
    %144 = vector.extract_strided_slice %139 {offsets = [0, 64], sizes = [8, 32], strides = [1, 1]} : vector<8x96xf32> to vector<8x32xf32>
    %145 = arith.mulf %143, %124 : vector<8x32xf32>
    %146 = arith.mulf %142, %141 : vector<8x32xf32>
    %147 = arith.addf %145, %146 : vector<8x32xf32>
    %148 = math.tanh %147 : vector<8x32xf32>
    %149 = arith.mulf %144, %148 : vector<8x32xf32>
    %c0_43 = arith.constant 0 : index
    %c5 = arith.constant 5 : index
    %c0_44 = arith.constant 0 : index
    %c0_45 = arith.constant 0 : index
    %150 = vector.load %arg8[%c0_43, %c5, %c0_44, %c0_45] : memref<1x8x8x32xf32, #tpu.memory_space<vmem>>, vector<1x1x8x32xf32>
    %151 = vector.shape_cast %150 : vector<1x1x8x32xf32> to vector<8x32xf32>
    %152 = vector.shape_cast %149 : vector<8x32xf32> to vector<1x1x8x32xf32>
    tpu.vector_store %arg8[%c0_43, %c5, %c0_44, %c0_45], %152 {strides = array<i32>} : memref<1x8x8x32xf32, #tpu.memory_space<vmem>>, vector<1x1x8x32xf32>,
    %153 = vector.extract_strided_slice %10 {offsets = [48, 0], sizes = [8, 128], strides = [1, 1]} : vector<64x128xf32> to vector<8x128xf32>
    %154 = arith.truncf %149 : vector<8x32xf32> to vector<8x32xbf16>
    %cst_46 = arith.constant dense<0.000000e+00> : vector<8x128xf32>
    %155 = tpu.matmul %154, %12, %cst_46 {dimension_numbers = #tpu.dot_dimension_numbers<[1], [0], [0], [1], [0, 0, 1, 1], [], []>} : vector<8x32xbf16>, vector<32x128xbf16>, vector<8x128xf32> -> vector<8x128xf32>
    %156 = arith.addf %153, %155 : vector<8x128xf32>
    %157 = vector.extract_strided_slice %156 {offsets = [0, 0], sizes = [8, 96], strides = [1, 1]} : vector<8x128xf32> to vector<8x96xf32>
    %158 = arith.negf %157 : vector<8x96xf32>
    %159 = math.exp %158 : vector<8x96xf32>
    %cst_47 = arith.constant 1.000000e+00 : f32
    %160 = vector.broadcast %cst_47 : f32 to vector<8x96xf32>
    %161 = arith.addf %160, %159 : vector<8x96xf32>
    %162 = arith.divf %160, %161 : vector<8x96xf32>
    %163 = vector.extract_strided_slice %156 {offsets = [0, 96], sizes = [8, 32], strides = [1, 1]} : vector<8x128xf32> to vector<8x32xf32>
    %164 = math.tanh %163 : vector<8x32xf32>
    %165 = vector.extract_strided_slice %162 {offsets = [0, 0], sizes = [8, 32], strides = [1, 1]} : vector<8x96xf32> to vector<8x32xf32>
    %166 = vector.extract_strided_slice %162 {offsets = [0, 32], sizes = [8, 32], strides = [1, 1]} : vector<8x96xf32> to vector<8x32xf32>
    %167 = vector.extract_strided_slice %162 {offsets = [0, 64], sizes = [8, 32], strides = [1, 1]} : vector<8x96xf32> to vector<8x32xf32>
    %168 = arith.mulf %166, %147 : vector<8x32xf32>
    %169 = arith.mulf %165, %164 : vector<8x32xf32>
    %170 = arith.addf %168, %169 : vector<8x32xf32>
    %171 = math.tanh %170 : vector<8x32xf32>
    %172 = arith.mulf %167, %171 : vector<8x32xf32>
    %c0_48 = arith.constant 0 : index
    %c6 = arith.constant 6 : index
    %c0_49 = arith.constant 0 : index
    %c0_50 = arith.constant 0 : index
    %173 = vector.load %arg8[%c0_48, %c6, %c0_49, %c0_50] : memref<1x8x8x32xf32, #tpu.memory_space<vmem>>, vector<1x1x8x32xf32>
    %174 = vector.shape_cast %173 : vector<1x1x8x32xf32> to vector<8x32xf32>
    %175 = vector.shape_cast %172 : vector<8x32xf32> to vector<1x1x8x32xf32>
    tpu.vector_store %arg8[%c0_48, %c6, %c0_49, %c0_50], %175 {strides = array<i32>} : memref<1x8x8x32xf32, #tpu.memory_space<vmem>>, vector<1x1x8x32xf32>,
    %176 = vector.extract_strided_slice %10 {offsets = [56, 0], sizes = [8, 128], strides = [1, 1]} : vector<64x128xf32> to vector<8x128xf32>
    %177 = arith.truncf %172 : vector<8x32xf32> to vector<8x32xbf16>
    %cst_51 = arith.constant dense<0.000000e+00> : vector<8x128xf32>
    %178 = tpu.matmul %177, %12, %cst_51 {dimension_numbers = #tpu.dot_dimension_numbers<[1], [0], [0], [1], [0, 0, 1, 1], [], []>} : vector<8x32xbf16>, vector<32x128xbf16>, vector<8x128xf32> -> vector<8x128xf32>
    %179 = arith.addf %176, %178 : vector<8x128xf32>
    %180 = vector.extract_strided_slice %179 {offsets = [0, 0], sizes = [8, 96], strides = [1, 1]} : vector<8x128xf32> to vector<8x96xf32>
    %181 = arith.negf %180 : vector<8x96xf32>
    %182 = math.exp %181 : vector<8x96xf32>
    %cst_52 = arith.constant 1.000000e+00 : f32
    %183 = vector.broadcast %cst_52 : f32 to vector<8x96xf32>
    %184 = arith.addf %183, %182 : vector<8x96xf32>
    %185 = arith.divf %183, %184 : vector<8x96xf32>
    %186 = vector.extract_strided_slice %179 {offsets = [0, 96], sizes = [8, 32], strides = [1, 1]} : vector<8x128xf32> to vector<8x32xf32>
    %187 = math.tanh %186 : vector<8x32xf32>
    %188 = vector.extract_strided_slice %185 {offsets = [0, 0], sizes = [8, 32], strides = [1, 1]} : vector<8x96xf32> to vector<8x32xf32>
    %189 = vector.extract_strided_slice %185 {offsets = [0, 32], sizes = [8, 32], strides = [1, 1]} : vector<8x96xf32> to vector<8x32xf32>
    %190 = vector.extract_strided_slice %185 {offsets = [0, 64], sizes = [8, 32], strides = [1, 1]} : vector<8x96xf32> to vector<8x32xf32>
    %191 = arith.mulf %189, %170 : vector<8x32xf32>
    %192 = arith.mulf %188, %187 : vector<8x32xf32>
    %193 = arith.addf %191, %192 : vector<8x32xf32>
    %194 = math.tanh %193 : vector<8x32xf32>
    %195 = arith.mulf %190, %194 : vector<8x32xf32>
    %c0_53 = arith.constant 0 : index
    %c7 = arith.constant 7 : index
    %c0_54 = arith.constant 0 : index
    %c0_55 = arith.constant 0 : index
    %196 = vector.load %arg8[%c0_53, %c7, %c0_54, %c0_55] : memref<1x8x8x32xf32, #tpu.memory_space<vmem>>, vector<1x1x8x32xf32>
    %197 = vector.shape_cast %196 : vector<1x1x8x32xf32> to vector<8x32xf32>
    %198 = vector.shape_cast %195 : vector<8x32xf32> to vector<1x1x8x32xf32>
    tpu.vector_store %arg8[%c0_53, %c7, %c0_54, %c0_55], %198 {strides = array<i32>} : memref<1x8x8x32xf32, #tpu.memory_space<vmem>>, vector<1x1x8x32xf32>,
    %c0_56 = arith.constant 0 : index
    %c0_57 = arith.constant 0 : index
    %199 = vector.load %arg11[%c0_56, %c0_57] : memref<8x32xf32, #tpu.memory_space<vmem>>, vector<8x32xf32>
    tpu.vector_store %arg11[%c0_56, %c0_57], %195 {strides = array<i32>} : memref<8x32xf32, #tpu.memory_space<vmem>>, vector<8x32xf32>,
    %c0_58 = arith.constant 0 : index
    %c0_59 = arith.constant 0 : index
    %200 = vector.load %arg12[%c0_58, %c0_59] : memref<8x32xf32, #tpu.memory_space<vmem>>, vector<8x32xf32>
    tpu.vector_store %arg12[%c0_58, %c0_59], %193 {strides = array<i32>} : memref<8x32xf32, #tpu.memory_space<vmem>>, vector<8x32xf32>,
    %c0_i32_60 = arith.constant 0 : i32
    %201 = arith.cmpi eq, %arg1, %c0_i32_60 : i32
    %202 = arith.extui %201 : i1 to i32
    %c0_i32_61 = arith.constant 0 : i32
    %203 = arith.cmpi ne, %202, %c0_i32_61 : i32
    scf.if %203 {
      %c0_62 = arith.constant 0 : index
      %c0_63 = arith.constant 0 : index
      %204 = vector.load %arg11[%c0_62, %c0_63] : memref<8x32xf32, #tpu.memory_space<vmem>>, vector<8x32xf32>
      %c0_64 = arith.constant 0 : index
      %c0_65 = arith.constant 0 : index
      %c0_66 = arith.constant 0 : index
      %205 = vector.load %arg9[%c0_64, %c0_65, %c0_66] : memref<1x8x32xf32, #tpu.memory_space<vmem>>, vector<1x8x32xf32>
      %206 = vector.shape_cast %205 : vector<1x8x32xf32> to vector<8x32xf32>
      %207 = vector.shape_cast %204 : vector<8x32xf32> to vector<1x8x32xf32>
      tpu.vector_store %arg9[%c0_64, %c0_65, %c0_66], %207 {strides = array<i32>} : memref<1x8x32xf32, #tpu.memory_space<vmem>>, vector<1x8x32xf32>,
      %c0_67 = arith.constant 0 : index
      %c0_68 = arith.constant 0 : index
      %208 = vector.load %arg12[%c0_67, %c0_68] : memref<8x32xf32, #tpu.memory_space<vmem>>, vector<8x32xf32>
      %c0_69 = arith.constant 0 : index
      %c0_70 = arith.constant 0 : index
      %c0_71 = arith.constant 0 : index
      %209 = vector.load %arg10[%c0_69, %c0_70, %c0_71] : memref<1x8x32xf32, #tpu.memory_space<vmem>>, vector<1x8x32xf32>
      %210 = vector.shape_cast %209 : vector<1x8x32xf32> to vector<8x32xf32>
      %211 = vector.shape_cast %208 : vector<8x32xf32> to vector<1x8x32xf32>
      tpu.vector_store %arg10[%c0_69, %c0_70, %c0_71], %211 {strides = array<i32>} : memref<1x8x32xf32, #tpu.memory_space<vmem>>, vector<1x8x32xf32>,
    } else {
    }
    return
  }
  func.func @transform_0(%arg0: i32, %arg1: i32) -> (i32, i32) {
    %c0_i32 = arith.constant 0 : i32
    %c0_i32_0 = arith.constant 0 : i32
    return %arg1, %c0_i32 : i32, i32
  }
  func.func @transform_1(%arg0: i32, %arg1: i32) -> (i32, i32, i32) {
    %c0_i32 = arith.constant 0 : i32
    %c0_i32_0 = arith.constant 0 : i32
    %c0_i32_1 = arith.constant 0 : i32
    return %arg0, %c0_i32, %c0_i32_0 : i32, i32, i32
  }
  func.func @transform_2(%arg0: i32, %arg1: i32) -> (i32, i32, i32) {
    %c0_i32 = arith.constant 0 : i32
    %c0_i32_0 = arith.constant 0 : i32
    %c0_i32_1 = arith.constant 0 : i32
    return %arg0, %c0_i32, %c0_i32_0 : i32, i32, i32
  }
  func.func @transform_3(%arg0: i32, %arg1: i32) -> (i32, i32, i32) {
    %c0_i32 = arith.constant 0 : i32
    %c0_i32_0 = arith.constant 0 : i32
    %c0_i32_1 = arith.constant 0 : i32
    return %arg0, %c0_i32, %c0_i32_0 : i32, i32, i32
  }
  func.func @transform_4(%arg0: i32, %arg1: i32) -> (i32, i32, i32) {
    %c0_i32 = arith.constant 0 : i32
    %c0_i32_0 = arith.constant 0 : i32
    %c0_i32_1 = arith.constant 0 : i32
    return %arg0, %c0_i32, %c0_i32_0 : i32, i32, i32
  }
  func.func @transform_5(%arg0: i32, %arg1: i32) -> (i32, i32, i32) {
    %c0_i32 = arith.constant 0 : i32
    %c0_i32_0 = arith.constant 0 : i32
    %c0_i32_1 = arith.constant 0 : i32
    return %arg0, %c0_i32, %c0_i32_0 : i32, i32, i32
  }
  func.func @transform_6(%arg0: i32, %arg1: i32) -> (i32, i32, i32, i32) {
    %c0_i32 = arith.constant 0 : i32
    %c0_i32_0 = arith.constant 0 : i32
    %c0_i32_1 = arith.constant 0 : i32
    return %arg0, %arg1, %c0_i32, %c0_i32_0 : i32, i32, i32, i32
  }
  func.func @transform_7(%arg0: i32, %arg1: i32) -> (i32, i32, i32) {
    %c0_i32 = arith.constant 0 : i32
    %c0_i32_0 = arith.constant 0 : i32
    %c0_i32_1 = arith.constant 0 : i32
    return %arg0, %c0_i32, %c0_i32_0 : i32, i32, i32
  }
  func.func @transform_8(%arg0: i32, %arg1: i32) -> (i32, i32, i32) {
    %c0_i32 = arith.constant 0 : i32
    %c0_i32_0 = arith.constant 0 : i32
    %c0_i32_1 = arith.constant 0 : i32
    return %arg0, %c0_i32, %c0_i32_0 : i32, i32, i32
  }
}

module attributes {stable_mosaic.version = 11 : i64} {
  func.func @_decoder_tail_kernel(%arg0: memref<64x32xf32, #tpu.memory_space<vmem>>, %arg1: memref<1x32xf32, #tpu.memory_space<vmem>>, %arg2: memref<1x32xf32, #tpu.memory_space<vmem>>, %arg3: memref<32x128xbf16, #tpu.memory_space<vmem>>, %arg4: memref<1x128xf32, #tpu.memory_space<vmem>>, %arg5: memref<64x128xf32, #tpu.memory_space<vmem>>) attributes {dimension_semantics = [], scalar_prefetch = 0 : i64, scratch_operands = 0 : i64, tpu.core_type = #tpu.core_type<tc>} {
    %c0 = arith.constant 0 : index
    %c0_0 = arith.constant 0 : index
    %0 = vector.load %arg0[%c0, %c0_0] : memref<64x32xf32, #tpu.memory_space<vmem>>, vector<64x32xf32>
    %c0_1 = arith.constant 0 : index
    %c0_2 = arith.constant 0 : index
    %1 = vector.load %arg1[%c0_1, %c0_2] : memref<1x32xf32, #tpu.memory_space<vmem>>, vector<1x32xf32>
    %c0_3 = arith.constant 0 : index
    %c0_4 = arith.constant 0 : index
    %2 = vector.load %arg2[%c0_3, %c0_4] : memref<1x32xf32, #tpu.memory_space<vmem>>, vector<1x32xf32>
    %cst = arith.constant dense<0.000000e+00> : vector<32xf32>
    %3 = vector.multi_reduction <add>, %0, %cst [0] : vector<64x32xf32> to vector<32xf32>
    %4 = vector.shape_cast %3 : vector<32xf32> to vector<1x32xf32>
    %cst_5 = arith.constant 6.400000e+01 : f32
    %5 = vector.broadcast %cst_5 : f32 to vector<1x32xf32>
    %6 = arith.divf %4, %5 : vector<1x32xf32>
    %7 = vector.broadcast %6 : vector<1x32xf32> to vector<64x32xf32>
    %8 = arith.subf %0, %7 : vector<64x32xf32>
    %9 = arith.mulf %8, %8 : vector<64x32xf32>
    %cst_6 = arith.constant dense<0.000000e+00> : vector<32xf32>
    %10 = vector.multi_reduction <add>, %9, %cst_6 [0] : vector<64x32xf32> to vector<32xf32>
    %11 = vector.shape_cast %10 : vector<32xf32> to vector<1x32xf32>
    %cst_7 = arith.constant 6.400000e+01 : f32
    %12 = vector.broadcast %cst_7 : f32 to vector<1x32xf32>
    %13 = arith.divf %11, %12 : vector<1x32xf32>
    %14 = vector.broadcast %6 : vector<1x32xf32> to vector<64x32xf32>
    %15 = arith.subf %0, %14 : vector<64x32xf32>
    %cst_8 = arith.constant 9.99999974E-6 : f32
    %16 = vector.broadcast %cst_8 : f32 to vector<1x32xf32>
    %17 = arith.addf %13, %16 : vector<1x32xf32>
    %18 = math.rsqrt %17 : vector<1x32xf32>
    %19 = vector.broadcast %18 : vector<1x32xf32> to vector<64x32xf32>
    %20 = arith.mulf %15, %19 : vector<64x32xf32>
    %21 = vector.broadcast %1 : vector<1x32xf32> to vector<64x32xf32>
    %22 = arith.mulf %20, %21 : vector<64x32xf32>
    %23 = vector.broadcast %2 : vector<1x32xf32> to vector<64x32xf32>
    %24 = arith.addf %22, %23 : vector<64x32xf32>
    %25 = arith.truncf %24 : vector<64x32xf32> to vector<64x32xbf16>
    %c0_9 = arith.constant 0 : index
    %c0_10 = arith.constant 0 : index
    %26 = vector.load %arg3[%c0_9, %c0_10] : memref<32x128xbf16, #tpu.memory_space<vmem>>, vector<32x128xbf16>
    %cst_11 = arith.constant dense<0.000000e+00> : vector<64x128xf32>
    %27 = tpu.matmul %25, %26, %cst_11 {dimension_numbers = #tpu.dot_dimension_numbers<[1], [0], [0], [1], [0, 0, 1, 1], [], []>} : vector<64x32xbf16>, vector<32x128xbf16>, vector<64x128xf32> -> vector<64x128xf32>
    %c0_12 = arith.constant 0 : index
    %c0_13 = arith.constant 0 : index
    %28 = vector.load %arg4[%c0_12, %c0_13] : memref<1x128xf32, #tpu.memory_space<vmem>>, vector<1x128xf32>
    %29 = vector.broadcast %28 : vector<1x128xf32> to vector<64x128xf32>
    %30 = arith.addf %27, %29 : vector<64x128xf32>
    %cst_14 = arith.constant dense<0xFF800000> : vector<64xf32>
    %31 = vector.multi_reduction <maximumf>, %30, %cst_14 [1] : vector<64x128xf32> to vector<64xf32>
    %32 = vector.shape_cast %31 : vector<64xf32> to vector<64x1xf32>
    %33 = vector.broadcast %32 : vector<64x1xf32> to vector<64x128xf32>
    %34 = arith.subf %30, %33 : vector<64x128xf32>
    %35 = math.exp %34 : vector<64x128xf32>
    %cst_15 = arith.constant dense<0.000000e+00> : vector<64xf32>
    %36 = vector.multi_reduction <add>, %35, %cst_15 [1] : vector<64x128xf32> to vector<64xf32>
    %37 = vector.shape_cast %36 : vector<64xf32> to vector<64x1xf32>
    %38 = math.log %37 : vector<64x1xf32>
    %39 = vector.broadcast %38 : vector<64x1xf32> to vector<64x128xf32>
    %40 = arith.subf %34, %39 : vector<64x128xf32>
    %c0_16 = arith.constant 0 : index
    %c0_17 = arith.constant 0 : index
    %41 = vector.load %arg5[%c0_16, %c0_17] : memref<64x128xf32, #tpu.memory_space<vmem>>, vector<64x128xf32>
    tpu.vector_store %arg5[%c0_16, %c0_17], %40 {strides = array<i32>} : memref<64x128xf32, #tpu.memory_space<vmem>>, vector<64x128xf32>,
    return
  }
}

</mosaic_0001>

<llo_original>
// kernel: build_model_mols_forward.7
$region0: #{build_model_mols_forward.7}
  #allocation0 [shape = 'u32[]', space=smem, size = 0x4, offset = 0x4, fixed_abs, tag = 'smem constant byte address 0x4 - core index']
  #allocation1 [shape = 'u32[144,128]{1,0:T(1,128)}', space=vmem, size = 0x12000, scoped, tag = 'internal scratch']
  %s0 = inlined_call_operand.hbm [shape: f32[2,64,16], index: 0, kind: input, shape index: {}]
  %s1 = inlined_call_operand.hbm [shape: f32[1,32], index: 1, kind: input, shape index: {}]
  %s2 = inlined_call_operand.hbm [shape: f32[1,32], index: 2, kind: input, shape index: {}]
  %s3 = inlined_call_operand.hbm [shape: bf16[64,32], index: 3, kind: output, shape index: {}]
  %s4 = sld [smem:[#allocation0]]
  $region34: #{build_model_mols_forward.7} parent=0
    _
  %s6 = ssub.s32 1, %s4
  %s7 = scalar_select 0, %s6, %s4
  $region1: #{build_model_mols_forward.7} parent=0
    #allocation2 [shape = 'u8[65536]{0}', space=vmem, size = 0x10000, scoped, tag = 'input window, operand 0, single buffered']
    #allocation3 [shape = 's32[1]{0}', space=sflag, size = 0x4, scoped, tag = 'scoped memory for build_model_mols_forward.7']
    #allocation4 [shape = 's32[1]{0}', space=sflag, size = 0x4, scoped, tag = 'scoped memory for build_model_mols_forward.7']
    #allocation5 [shape = 'u8[512]{0}', space=vmem, size = 0x400, scoped, tag = 'input window, operand 1, single buffered']
    #allocation6 [shape = 's32[1]{0}', space=sflag, size = 0x4, scoped, tag = 'scoped memory for build_model_mols_forward.7']
    #allocation7 [shape = 'u8[512]{0}', space=vmem, size = 0x400, scoped, tag = 'input window, operand 2, single buffered']
    #allocation8 [shape = 'u8[16384]{0}', space=vmem, size = 0x4000, scoped, tag = 'output window, operand 0, single buffered']
    %8 = vsyncpa [#allocation3], 0
    %9 = vsyncpa [#allocation6], 0
    %10 = vsyncpa [#allocation4], 0
    // Predicated region
    $region2: #{build_model_mols_forward.7} parent=1 // pred_check
      _
    $region3: #{build_model_mols_forward.7} parent=1 // pred_check_branch
      %12 = sbr.rel (0) target = $region5
    $region4: #{build_model_mols_forward.7} parent=1 // pred_region
      %s14 = ssub.s32 2048, 2048
      %15 = vsyncadd [#allocation3], %s14
      %s16 = sshll.u32 [#allocation2], 4
      %s17 = int_to_ptr.vmem [resolvable:$true] %s16
      %22 = dma.hbm_to_vmem [thread:$0]  %s0, 2048, %s17, [#allocation3], 128, 128, 8
    $region5: #{build_model_mols_forward.7} parent=1 // pred_fallthru
      _
    // Predicated region
    $region6: #{build_model_mols_forward.7} parent=1 // pred_check
      _
    $region7: #{build_model_mols_forward.7} parent=1 // pred_check_branch
      %24 = sbr.rel (0) target = $region9
    $region8: #{build_model_mols_forward.7} parent=1 // pred_region
      %s26 = ssub.s32 16, 16
      %27 = vsyncadd [#allocation6], %s26
      %s29 = sshll.u32 [#allocation5], 4
      %s30 = int_to_ptr.vmem [resolvable:$true] %s29
      %32 = dma.hbm_to_vmem [thread:$0]  %s1, 16, %s30, [#allocation6]
    $region9: #{build_model_mols_forward.7} parent=1 // pred_fallthru
      _
    // Predicated region
    $region10: #{build_model_mols_forward.7} parent=1 // pred_check
      _
    $region11: #{build_model_mols_forward.7} parent=1 // pred_check_branch
      %34 = sbr.rel (0) target = $region13
    $region12: #{build_model_mols_forward.7} parent=1 // pred_region
      %s36 = ssub.s32 16, 16
      %37 = vsyncadd [#allocation6], %s36
      %s39 = sshll.u32 [#allocation7], 4
      %s40 = int_to_ptr.vmem [resolvable:$true] %s39
      %42 = dma.hbm_to_vmem [thread:$0]  %s2, 16, %s40, [#allocation6]
    $region13: #{build_model_mols_forward.7} parent=1 // pred_fallthru
      _
    // Predicated region
    $region14: #{build_model_mols_forward.7} parent=1 // pred_check
      _
    $region15: #{build_model_mols_forward.7} parent=1 // pred_check_branch
      %44 = sbr.rel (0) target = $region17
    $region16: #{build_model_mols_forward.7} parent=1 // pred_region
      %45 = dma.done [#allocation3], 2048
    $region17: #{build_model_mols_forward.7} parent=1 // pred_fallthru
      _
    // Predicated region
    $region18: #{build_model_mols_forward.7} parent=1 // pred_check
      _
    $region19: #{build_model_mols_forward.7} parent=1 // pred_check_branch
      %47 = sbr.rel (0) target = $region21
    $region20: #{build_model_mols_forward.7} parent=1 // pred_region
      %48 = dma.done [#allocation6], 16
    $region21: #{build_model_mols_forward.7} parent=1 // pred_fallthru
      _
    // Predicated region
    $region22: #{build_model_mols_forward.7} parent=1 // pred_check
      _
    $region23: #{build_model_mols_forward.7} parent=1 // pred_check_branch
      %50 = sbr.rel (0) target = $region25
    $region24: #{build_model_mols_forward.7} parent=1 // pred_region
      %51 = dma.done [#allocation6], 16
    $region25: #{build_model_mols_forward.7} parent=1 // pred_fallthru
      _
    %v52 = vld [vmem:[#allocation2] sm:$0xff]
    %v53 = vld [vmem:[#allocation2 + $0x8] sm:$0xff]
    %v54 = vld [vmem:[#allocation2 + $0x10] sm:$0xff]
    %v55 = vld [vmem:[#allocation2 + $0x18] sm:$0xff]
    %v56 = vld [vmem:[#allocation2 + $0x20] sm:$0xff]
    %v57 = vld [vmem:[#allocation2 + $0x28] sm:$0xff]
    %v58 = vld [vmem:[#allocation2 + $0x30] sm:$0xff]
    %v59 = vld [vmem:[#allocation2 + $0x38] sm:$0xff]
    %v60 = vld [vmem:[#allocation5] sm:$0x1]
    %v61 = vld [vmem:[#allocation7] sm:$0x1]
    %vm62 = vcmask 130048
    %v63 = vsel %vm62, %v52, 0.0
    %v64 = vsel %vm62, %v53, 0.0
    %v65 = vadd.f32 %v63, %v64
    %v66 = vsel %vm62, %v54, 0.0
    %v67 = vadd.f32 %v65, %v66
    %v68 = vsel %vm62, %v55, 0.0
    %v69 = vadd.f32 %v67, %v68
    %v70 = vsel %vm62, %v56, 0.0
    %v71 = vadd.f32 %v69, %v70
    %v72 = vsel %vm62, %v57, 0.0
    %v73 = vadd.f32 %v71, %v72
    %v74 = vsel %vm62, %v58, 0.0
    %v75 = vadd.f32 %v73, %v74
    %v76 = vsel %vm62, %v59, 0.0
    %v77 = vadd.f32 %v75, %v76
    %v78 = vrot.slane %v77, 4
    %v79 = vadd.f32 %v77, %v78
    %v80 = vrot.slane %v79, 2
    %v81 = vadd.f32 %v79, %v80
    %v82 = vrot.slane %v81, 1
    %v83 = vadd.f32 %v81, %v82
    %v84 = vrcp.pop 64.0
    %v85 = vmul.f32 %v83, %v84
    %v86 = vsub.f32 %v52, %v85
    %v87 = vsub.f32 %v53, %v85
    %v88 = vsub.f32 %v54, %v85
    %v89 = vsub.f32 %v55, %v85
    %v90 = vsub.f32 %v56, %v85
    %v91 = vsub.f32 %v57, %v85
    %v92 = vsub.f32 %v58, %v85
    %v93 = vsub.f32 %v59, %v85
    %v94 = vmul.f32 %v86, %v86
    %v95 = vmul.f32 %v87, %v87
    %v96 = vmul.f32 %v88, %v88
    %v97 = vmul.f32 %v89, %v89
    %v98 = vmul.f32 %v90, %v90
    %v99 = vmul.f32 %v91, %v91
    %v100 = vmul.f32 %v92, %v92
    %v101 = vmul.f32 %v93, %v93
    %v102 = vsel %vm62, %v94, 0.0
    %v103 = vsel %vm62, %v95, 0.0
    %v104 = vadd.f32 %v102, %v103
    %v105 = vsel %vm62, %v96, 0.0
    %v106 = vadd.f32 %v104, %v105
    %v107 = vsel %vm62, %v97, 0.0
    %v108 = vadd.f32 %v106, %v107
    %v109 = vsel %vm62, %v98, 0.0
    %v110 = vadd.f32 %v108, %v109
    %v111 = vsel %vm62, %v99, 0.0
    %v112 = vadd.f32 %v110, %v111
    %v113 = vsel %vm62, %v100, 0.0
    %v114 = vadd.f32 %v112, %v113
    %v115 = vsel %vm62, %v101, 0.0
    %v116 = vadd.f32 %v114, %v115
    %v117 = vrot.slane %v116, 4
    %v118 = vadd.f32 %v116, %v117
    %v119 = vrot.slane %v118, 2
    %v120 = vadd.f32 %v118, %v119
    %v121 = vrot.slane %v120, 1
    %v122 = vadd.f32 %v120, %v121
    %v123 = vmul.f32 %v122, %v84
    %v124 = vadd.f32 %v123, 1e-05
    %v125 = vrsqrt.pop %v124
    %v126 = vmul.f32 %v86, %v125
    %v127 = vmul.f32 %v87, %v125
    %v128 = vmul.f32 %v88, %v125
    %v129 = vmul.f32 %v89, %v125
    %v130 = vmul.f32 %v90, %v125
    %v131 = vmul.f32 %v91, %v125
    %v132 = vmul.f32 %v92, %v125
    %v133 = vmul.f32 %v93, %v125
    %v135 = vlaneseq
    %v136 = vshrl.u32 %v135, 7
    %v137 = vsub.s32 0, %v136
    %v138 = vrot.slane %v60, %v137
    %v140 = vmul.f32 %v126, %v138
    %v141 = vmul.f32 %v127, %v138
    %v142 = vmul.f32 %v128, %v138
    %v143 = vmul.f32 %v129, %v138
    %v144 = vmul.f32 %v130, %v138
    %v145 = vmul.f32 %v131, %v138
    %v146 = vmul.f32 %v132, %v138
    %v147 = vmul.f32 %v133, %v138
    %v149 = vlaneseq
    %v150 = vshrl.u32 %v149, 7
    %v151 = vsub.s32 0, %v150
    %v152 = vrot.slane %v61, %v151
    %v154 = vadd.f32 %v140, %v152
    %v155 = vadd.f32 %v141, %v152
    %v156 = vadd.f32 %v142, %v152
    %v157 = vadd.f32 %v143, %v152
    %v158 = vadd.f32 %v144, %v152
    %v159 = vadd.f32 %v145, %v152
    %v160 = vadd.f32 %v146, %v152
    %v161 = vadd.f32 %v147, %v152
    %s162 = scalar_lea.vmem [#allocation2], 64
    %v163 = vld [vmem:[%s162] sm:$0xff]
    %v164 = vld [vmem:[%s162 + $0x8] sm:$0xff]
    %v165 = vld [vmem:[%s162 + $0x10] sm:$0xff]
    %v166 = vld [vmem:[%s162 + $0x18] sm:$0xff]
    %v167 = vld [vmem:[%s162 + $0x20] sm:$0xff]
    %v168 = vld [vmem:[%s162 + $0x28] sm:$0xff]
    %v169 = vld [vmem:[%s162 + $0x30] sm:$0xff]
    %v170 = vld [vmem:[%s162 + $0x38] sm:$0xff]
    %v171 = vsel %vm62, %v163, 0.0
    %v172 = vsel %vm62, %v164, 0.0
    %v173 = vadd.f32 %v171, %v172
    %v174 = vsel %vm62, %v165, 0.0
    %v175 = vadd.f32 %v173, %v174
    %v176 = vsel %vm62, %v166, 0.0
    %v177 = vadd.f32 %v175, %v176
    %v178 = vsel %vm62, %v167, 0.0
    %v179 = vadd.f32 %v177, %v178
    %v180 = vsel %vm62, %v168, 0.0
    %v181 = vadd.f32 %v179, %v180
    %v182 = vsel %vm62, %v169, 0.0
    %v183 = vadd.f32 %v181, %v182
    %v184 = vsel %vm62, %v170, 0.0
    %v185 = vadd.f32 %v183, %v184
    %v186 = vrot.slane %v185, 4
    %v187 = vadd.f32 %v185, %v186
    %v188 = vrot.slane %v187, 2
    %v189 = vadd.f32 %v187, %v188
    %v190 = vrot.slane %v189, 1
    %v191 = vadd.f32 %v189, %v190
    %v192 = vmul.f32 %v191, %v84
    %v193 = vsub.f32 %v163, %v192
    %v194 = vsub.f32 %v164, %v192
    %v195 = vsub.f32 %v165, %v192
    %v196 = vsub.f32 %v166, %v192
    %v197 = vsub.f32 %v167, %v192
    %v198 = vsub.f32 %v168, %v192
    %v199 = vsub.f32 %v169, %v192
    %v200 = vsub.f32 %v170, %v192
    %v201 = vmul.f32 %v193, %v193
    %v202 = vmul.f32 %v194, %v194
    %v203 = vmul.f32 %v195, %v195
    %v204 = vmul.f32 %v196, %v196
    %v205 = vmul.f32 %v197, %v197
    %v206 = vmul.f32 %v198, %v198
    %v207 = vmul.f32 %v199, %v199
    %v208 = vmul.f32 %v200, %v200
    %v209 = vsel %vm62, %v201, 0.0
    %v210 = vsel %vm62, %v202, 0.0
    %v211 = vadd.f32 %v209, %v210
    %v212 = vsel %vm62, %v203, 0.0
    %v213 = vadd.f32 %v211, %v212
    %v214 = vsel %vm62, %v204, 0.0
    %v215 = vadd.f32 %v213, %v214
    %v216 = vsel %vm62, %v205, 0.0
    %v217 = vadd.f32 %v215, %v216
    %v218 = vsel %vm62, %v206, 0.0
    %v219 = vadd.f32 %v217, %v218
    %v220 = vsel %vm62, %v207, 0.0
    %v221 = vadd.f32 %v219, %v220
    %v222 = vsel %vm62, %v208, 0.0
    %v223 = vadd.f32 %v221, %v222
    %v224 = vrot.slane %v223, 4
    %v225 = vadd.f32 %v223, %v224
    %v226 = vrot.slane %v225, 2
    %v227 = vadd.f32 %v225, %v226
    %v228 = vrot.slane %v227, 1
    %v229 = vadd.f32 %v227, %v228
    %v230 = vmul.f32 %v229, %v84
    %v231 = vadd.f32 %v230, 1e-05
    %v232 = vrsqrt.pop %v231
    %v233 = vmul.f32 %v193, %v232
    %v234 = vmul.f32 %v194, %v232
    %v235 = vmul.f32 %v195, %v232
    %v236 = vmul.f32 %v196, %v232
    %v237 = vmul.f32 %v197, %v232
    %v238 = vmul.f32 %v198, %v232
    %v239 = vmul.f32 %v199, %v232
    %v240 = vmul.f32 %v200, %v232
    %241 = vrot.lane.b32.xlu0 %v138, 112
    %v242 = vpop.permute.xlu0 %241
    %v244 = vmul.f32 %v233, %v242
    %v245 = vmul.f32 %v234, %v242
    %v246 = vmul.f32 %v235, %v242
    %v247 = vmul.f32 %v236, %v242
    %v248 = vmul.f32 %v237, %v242
    %v249 = vmul.f32 %v238, %v242
    %v250 = vmul.f32 %v239, %v242
    %v251 = vmul.f32 %v240, %v242
    %252 = vrot.lane.b32.xlu0 %v152, 112
    %v253 = vpop.permute.xlu0 %252
    %v255 = vadd.f32 %v244, %v253
    %v256 = vadd.f32 %v245, %v253
    %v257 = vadd.f32 %v246, %v253
    %v258 = vadd.f32 %v247, %v253
    %v259 = vadd.f32 %v248, %v253
    %v260 = vadd.f32 %v249, %v253
    %v261 = vadd.f32 %v250, %v253
    %v262 = vadd.f32 %v251, %v253
    %271 = vrot.lane.b32.xlu0 %v255, 16
    %v272 = vpop.permute.xlu0 %271
    %273 = vrot.lane.b32.xlu0 %v256, 16
    %v274 = vpop.permute.xlu0 %273
    %275 = vrot.lane.b32.xlu0 %v257, 16
    %v276 = vpop.permute.xlu0 %275
    %277 = vrot.lane.b32.xlu0 %v258, 16
    %v278 = vpop.permute.xlu0 %277
    %279 = vrot.lane.b32.xlu0 %v259, 16
    %v280 = vpop.permute.xlu0 %279
    %281 = vrot.lane.b32.xlu0 %v260, 16
    %v282 = vpop.permute.xlu0 %281
    %283 = vrot.lane.b32.xlu0 %v261, 16
    %v284 = vpop.permute.xlu0 %283
    %285 = vrot.lane.b32.xlu0 %v262, 16
    %v286 = vpop.permute.xlu0 %285
    %v295 = vsel %vm62, %v154, %v272
    %v296 = vsel %vm62, %v155, %v274
    %v297 = vsel %vm62, %v156, %v276
    %v298 = vsel %vm62, %v157, %v278
    %v299 = vsel %vm62, %v158, %v280
    %v300 = vsel %vm62, %v159, %v282
    %v301 = vsel %vm62, %v160, %v284
    %v302 = vsel %vm62, %v161, %v286
    %v303 = vpack.c.bf16 %v296, %v295
    %v304 = vpack.c.bf16 %v298, %v297
    %v305 = vpack.c.bf16 %v300, %v299
    %v306 = vpack.c.bf16 %v302, %v301
    %v311 = vunpack.c.l.b16 %v303
    %v312 = vunpack.c.h.b16 %v303
    %v313 = vunpack.c.l.b16 %v304
    %v314 = vunpack.c.h.b16 %v304
    %v315 = vunpack.c.l.b16 %v305
    %v316 = vunpack.c.h.b16 %v305
    %v317 = vunpack.c.l.b16 %v306
    %v318 = vunpack.c.h.b16 %v306
    %v319 = vpack.c.b16 %v311, %v311
    %v320 = vpack.c.b16 %v312, %v312
    %v321 = vpack.c.b16 %v313, %v313
    %v322 = vpack.c.b16 %v314, %v314
    %v323 = vpack.c.b16 %v315, %v315
    %v324 = vpack.c.b16 %v316, %v316
    %v325 = vpack.c.b16 %v317, %v317
    %v326 = vpack.c.b16 %v318, %v318
    %vm335 = vcmask 257024
    %336 = vst.msk [vmem:[#allocation8] sm:$0xf] %vm335, %v319
    %337 = vst.msk [vmem:[#allocation8 + $0x4] sm:$0xf] %vm335, %v320
    %338 = vst.msk [vmem:[#allocation8 + $0x8] sm:$0xf] %vm335, %v321
    %339 = vst.msk [vmem:[#allocation8 + $0xc] sm:$0xf] %vm335, %v322
    %340 = vst.msk [vmem:[#allocation8 + $0x10] sm:$0xf] %vm335, %v323
    %341 = vst.msk [vmem:[#allocation8 + $0x14] sm:$0xf] %vm335, %v324
    %342 = vst.msk [vmem:[#allocation8 + $0x18] sm:$0xf] %vm335, %v325
    %343 = vst.msk [vmem:[#allocation8 + $0x1c] sm:$0xf] %vm335, %v326
    // Predicated region
    $region26: #{build_model_mols_forward.7} parent=1 // pred_check
      _
    $region27: #{build_model_mols_forward.7} parent=1 // pred_check_branch
      %345 = sbr.rel (0) target = $region29
    $region28: #{build_model_mols_forward.7} parent=1 // pred_region
      %s347 = ssub.s32 512, 512
      %348 = vsyncadd [#allocation4], %s347
      %s349 = sshll.u32 [#allocation8], 4
      %s350 = int_to_ptr.vmem [resolvable:$true] %s349
      %355 = dma.vmem_to_hbm [thread:$0]  %s350, 512, %s3, [#allocation4], 64, 64, 4
    $region29: #{build_model_mols_forward.7} parent=1 // pred_fallthru
      _
    // Predicated region
    $region30: #{build_model_mols_forward.7} parent=1 // pred_check
      _
    $region31: #{build_model_mols_forward.7} parent=1 // pred_check_branch
      %357 = sbr.rel (0) target = $region33
    $region32: #{build_model_mols_forward.7} parent=1 // pred_region
      %358 = dma.done [#allocation4], 512
    $region33: #{build_model_mols_forward.7} parent=1 // pred_fallthru
      _
    %359 = vsyncpa [#allocation3], 1
    %360 = vsyncpa [#allocation6], 1
    %361 = vsyncpa [#allocation4], 1

// kernel: build_model_mols_forward.9
$region0: #{build_model_mols_forward.9}
  #allocation0 [shape = 'u32[]', space=smem, size = 0x4, offset = 0x4, fixed_abs, tag = 'smem constant byte address 0x4 - core index']
  #allocation1 [shape = 'u32[144,128]{1,0:T(1,128)}', space=vmem, size = 0x12000, scoped, tag = 'internal scratch']
  %s0 = inlined_call_operand.vmem [shape: f32[8,128], index: 0, kind: input, shape index: {}]
  %s1 = inlined_call_operand.vmem [shape: f32[1,128], index: 1, kind: input, shape index: {}]
  %s2 = inlined_call_operand.vmem [shape: f32[1,128], index: 2, kind: input, shape index: {}]
  %s3 = inlined_call_operand.vmem [shape: bf16[128,24], index: 3, kind: input, shape index: {}]
  %s4 = inlined_call_operand.vmem [shape: f32[1,24], index: 4, kind: input, shape index: {}]
  %s5 = inlined_call_operand.vmem [shape: f32[1,24], index: 5, kind: input, shape index: {}]
  %s6 = inlined_call_operand.vmem [shape: f32[1,24], index: 6, kind: input, shape index: {}]
  %s7 = inlined_call_operand.vmem [shape: bf16[24,32], index: 7, kind: input, shape index: {}]
  %s8 = inlined_call_operand.vmem [shape: f32[1,32], index: 8, kind: input, shape index: {}]
  %s9 = inlined_call_operand.vmem [shape: f32[1,32], index: 9, kind: input, shape index: {}]
  %s10 = inlined_call_operand.vmem [shape: f32[1,32], index: 10, kind: input, shape index: {}]
  %s11 = inlined_call_operand.vmem [shape: bf16[24,32], index: 11, kind: input, shape index: {}]
  %s12 = inlined_call_operand.vmem [shape: f32[1,32], index: 12, kind: input, shape index: {}]
  %s13 = inlined_call_operand.vmem [shape: f32[1,32], index: 13, kind: input, shape index: {}]
  %s14 = inlined_call_operand.vmem [shape: f32[1,32], index: 14, kind: input, shape index: {}]
  %s15 = inlined_call_operand.hbm [shape: f32[8,32], index: 15, kind: output, shape index: {0}]
  %s16 = inlined_call_operand.hbm [shape: f32[8,32], index: 16, kind: output, shape index: {1}]
  %17 = xla_tuple %s15, %s16
  %s18 = sld [smem:[#allocation0]]
  $region78: #{build_model_mols_forward.9} parent=0
    _
  %s20 = ssub.s32 1, %s18
  %s21 = scalar_select 0, %s20, %s18
  $region1: #{build_model_mols_forward.9} parent=0
    #allocation2 [shape = 'u8[4096]{0}', space=vmem, size = 0x1000, scoped, tag = 'output window, operand 0, single buffered']
    #allocation3 [shape = 's32[1]{0}', space=sflag, size = 0x4, scoped, tag = 'scoped memory for build_model_mols_forward.9']
    #allocation4 [shape = 'u8[4096]{0}', space=vmem, size = 0x1000, scoped, tag = 'output window, operand 1, single buffered']
    #allocation5 [shape = 's32[1]{0}', space=sflag, size = 0x4, scoped, tag = 'scoped memory for build_model_mols_forward.9']
    %22 = vsyncpa [#allocation3], 0
    %23 = vsyncpa [#allocation5], 0
    // Predicated region
    $region2: #{build_model_mols_forward.9} parent=1 // pred_check
      _
    $region3: #{build_model_mols_forward.9} parent=1 // pred_check_branch
      %25 = sbr.rel (0) target = $region5
    $region4: #{build_model_mols_forward.9} parent=1 // pred_region
      _
    $region5: #{build_model_mols_forward.9} parent=1 // pred_fallthru
      _
    // Predicated region
    $region6: #{build_model_mols_forward.9} parent=1 // pred_check
      _
    $region7: #{build_model_mols_forward.9} parent=1 // pred_check_branch
      %27 = sbr.rel (0) target = $region9
    $region8: #{build_model_mols_forward.9} parent=1 // pred_region
      _
    $region9: #{build_model_mols_forward.9} parent=1 // pred_fallthru
      _
    // Predicated region
    $region10: #{build_model_mols_forward.9} parent=1 // pred_check
      _
    $region11: #{build_model_mols_forward.9} parent=1 // pred_check_branch
      %29 = sbr.rel (0) target = $region13
    $region12: #{build_model_mols_forward.9} parent=1 // pred_region
      _
    $region13: #{build_model_mols_forward.9} parent=1 // pred_fallthru
      _
    // Predicated region
    $region14: #{build_model_mols_forward.9} parent=1 // pred_check
      _
    $region15: #{build_model_mols_forward.9} parent=1 // pred_check_branch
      %31 = sbr.rel (0) target = $region17
    $region16: #{build_model_mols_forward.9} parent=1 // pred_region
      _
    $region17: #{build_model_mols_forward.9} parent=1 // pred_fallthru
      _
    // Predicated region
    $region18: #{build_model_mols_forward.9} parent=1 // pred_check
      _
    $region19: #{build_model_mols_forward.9} parent=1 // pred_check_branch
      %33 = sbr.rel (0) target = $region21
    $region20: #{build_model_mols_forward.9} parent=1 // pred_region
      _
    $region21: #{build_model_mols_forward.9} parent=1 // pred_fallthru
      _
    // Predicated region
    $region22: #{build_model_mols_forward.9} parent=1 // pred_check
      _
    $region23: #{build_model_mols_forward.9} parent=1 // pred_check_branch
      %35 = sbr.rel (0) target = $region25
    $region24: #{build_model_mols_forward.9} parent=1 // pred_region
      _
    $region25: #{build_model_mols_forward.9} parent=1 // pred_fallthru
      _
    // Predicated region
    $region26: #{build_model_mols_forward.9} parent=1 // pred_check
      _
    $region27: #{build_model_mols_forward.9} parent=1 // pred_check_branch
      %37 = sbr.rel (0) target = $region29
    $region28: #{build_model_mols_forward.9} parent=1 // pred_region
      _
    $region29: #{build_model_mols_forward.9} parent=1 // pred_fallthru
      _
    // Predicated region
    $region30: #{build_model_mols_forward.9} parent=1 // pred_check
      _
    $region31: #{build_model_mols_forward.9} parent=1 // pred_check_branch
      %39 = sbr.rel (0) target = $region33
    $region32: #{build_model_mols_forward.9} parent=1 // pred_region
      _
    $region33: #{build_model_mols_forward.9} parent=1 // pred_fallthru
      _
    // Predicated region
    $region34: #{build_model_mols_forward.9} parent=1 // pred_check
      _
    $region35: #{build_model_mols_forward.9} parent=1 // pred_check_branch
      %41 = sbr.rel (0) target = $region37
    $region36: #{build_model_mols_forward.9} parent=1 // pred_region
      _
    $region37: #{build_model_mols_forward.9} parent=1 // pred_fallthru
      _
    // Predicated region
    $region38: #{build_model_mols_forward.9} parent=1 // pred_check
      _
    $region39: #{build_model_mols_forward.9} parent=1 // pred_check_branch
      %43 = sbr.rel (0) target = $region41
    $region40: #{build_model_mols_forward.9} parent=1 // pred_region
      _
    $region41: #{build_model_mols_forward.9} parent=1 // pred_fallthru
      _
    // Predicated region
    $region42: #{build_model_mols_forward.9} parent=1 // pred_check
      _
    $region43: #{build_model_mols_forward.9} parent=1 // pred_check_branch
      %45 = sbr.rel (0) target = $region45
    $region44: #{build_model_mols_forward.9} parent=1 // pred_region
      _
    $region45: #{build_model_mols_forward.9} parent=1 // pred_fallthru
      _
    // Predicated region
    $region46: #{build_model_mols_forward.9} parent=1 // pred_check
      _
    $region47: #{build_model_mols_forward.9} parent=1 // pred_check_branch
      %47 = sbr.rel (0) target = $region49
    $region48: #{build_model_mols_forward.9} parent=1 // pred_region
      _
    $region49: #{build_model_mols_forward.9} parent=1 // pred_fallthru
      _
    // Predicated region
    $region50: #{build_model_mols_forward.9} parent=1 // pred_check
      _
    $region51: #{build_model_mols_forward.9} parent=1 // pred_check_branch
      %49 = sbr.rel (0) target = $region53
    $region52: #{build_model_mols_forward.9} parent=1 // pred_region
      _
    $region53: #{build_model_mols_forward.9} parent=1 // pred_fallthru
      _
    // Predicated region
    $region54: #{build_model_mols_forward.9} parent=1 // pred_check
      _
    $region55: #{build_model_mols_forward.9} parent=1 // pred_check_branch
      %51 = sbr.rel (0) target = $region57
    $region56: #{build_model_mols_forward.9} parent=1 // pred_region
      _
    $region57: #{build_model_mols_forward.9} parent=1 // pred_fallthru
      _
    // Predicated region
    $region58: #{build_model_mols_forward.9} parent=1 // pred_check
      _
    $region59: #{build_model_mols_forward.9} parent=1 // pred_check_branch
      %53 = sbr.rel (0) target = $region61
    $region60: #{build_model_mols_forward.9} parent=1 // pred_region
      _
    $region61: #{build_model_mols_forward.9} parent=1 // pred_fallthru
      _
    %v55 = vld [vmem:[%s0] sm:$0xff]
    %v56 = vld [vmem:[%s1] sm:$0x1]
    %v57 = vld [vmem:[%s2] sm:$0x1]
    %v58 = vrot.slane %v55, 4
    %v59 = vadd.f32 %v55, %v58
    %v60 = vrot.slane %v59, 2
    %v61 = vadd.f32 %v59, %v60
    %v62 = vrot.slane %v61, 1
    %v63 = vadd.f32 %v61, %v62
    %v64 = vrcp.pop 8.0
    %v65 = vmul.f32 %v63, %v64
    %v66 = vsub.f32 %v55, %v65
    %v67 = vmul.f32 %v66, %v66
    %v68 = vrot.slane %v67, 4
    %v69 = vadd.f32 %v67, %v68
    %v70 = vrot.slane %v69, 2
    %v71 = vadd.f32 %v69, %v70
    %v72 = vrot.slane %v71, 1
    %v73 = vadd.f32 %v71, %v72
    %v74 = vmul.f32 %v73, %v64
    %v75 = vadd.f32 %v74, 1e-05
    %v76 = vrsqrt.pop %v75
    %v77 = vmul.f32 %v66, %v76
    %v79 = vlaneseq
    %v80 = vshrl.u32 %v79, 7
    %v81 = vsub.s32 0, %v80
    %v82 = vrot.slane %v56, %v81
    %v84 = vmul.f32 %v77, %v82
    %v86 = vlaneseq
    %v87 = vshrl.u32 %v86, 7
    %v88 = vsub.s32 0, %v87
    %v89 = vrot.slane %v57, %v88
    %v91 = vadd.f32 %v84, %v89
    %v92 = vpack.c.bf16 %v91, %v91
    %v93 = vld [vmem:[%s3] sm:$0xf]
    %v94 = vld [vmem:[%s3 + $0x4] sm:$0xf]
    %v95 = vld [vmem:[%s3 + $0x8] sm:$0xf]
    %v96 = vld [vmem:[%s3 + $0xc] sm:$0xf]
    %v97 = vld [vmem:[%s3 + $0x10] sm:$0xf]
    %v98 = vld [vmem:[%s3 + $0x14] sm:$0xf]
    %v99 = vld [vmem:[%s3 + $0x18] sm:$0xf]
    %v100 = vld [vmem:[%s3 + $0x1c] sm:$0xf]
    %v101 = vld [vmem:[%s3 + $0x20] sm:$0xf]
    %v102 = vld [vmem:[%s3 + $0x24] sm:$0xf]
    %v103 = vld [vmem:[%s3 + $0x28] sm:$0xf]
    %v104 = vld [vmem:[%s3 + $0x2c] sm:$0xf]
    %v105 = vld [vmem:[%s3 + $0x30] sm:$0xf]
    %v106 = vld [vmem:[%s3 + $0x34] sm:$0xf]
    %v107 = vld [vmem:[%s3 + $0x38] sm:$0xf]
    %v108 = vld [vmem:[%s3 + $0x3c] sm:$0xf]
    %v109 = vld [vmem:[%s4] sm:$0x1]
    %v111 = vlaneseq
    %v112 = vshrl.u32 %v111, 7
    %v113 = vsub.s32 0, %v112
    %v114 = vrot.slane %v109, %v113
    %v132 = vunpack.c.l.b16 %v93
    %v133 = vunpack.c.l.b16 %v94
    %v134 = vunpack.c.l.b16 %v95
    %v135 = vunpack.c.l.b16 %v96
    %v136 = vunpack.c.l.b16 %v97
    %v137 = vunpack.c.l.b16 %v98
    %v138 = vunpack.c.l.b16 %v99
    %v139 = vunpack.c.l.b16 %v100
    %v140 = vunpack.c.l.b16 %v101
    %v141 = vunpack.c.l.b16 %v102
    %v142 = vunpack.c.l.b16 %v103
    %v143 = vunpack.c.l.b16 %v104
    %v144 = vunpack.c.l.b16 %v105
    %v145 = vunpack.c.l.b16 %v106
    %v146 = vunpack.c.l.b16 %v107
    %v147 = vunpack.c.l.b16 %v108
    %v148 = vpack.c.b16 %v133, %v132
    %v149 = vpack.c.b16 %v135, %v134
    %v150 = vpack.c.b16 %v137, %v136
    %v151 = vpack.c.b16 %v139, %v138
    %v152 = vpack.c.b16 %v141, %v140
    %v153 = vpack.c.b16 %v143, %v142
    %v154 = vpack.c.b16 %v145, %v144
    %v155 = vpack.c.b16 %v147, %v146
    %164 = vmatprep.subr.bf16.mxu0 0
    %165 = vmatpush1.bf16.msra.mxu0 %v148
    %166 = vmatprep.subr.bf16.mxu0 0
    %167 = vmatpush1.bf16.msra.mxu0 %v149
    %168 = vmatprep.subr.bf16.mxu0 0
    %169 = vmatpush1.bf16.msra.mxu0 %v150
    %170 = vmatprep.subr.bf16.mxu0 0
    %171 = vmatpush1.bf16.msra.mxu0 %v151
    %172 = vmatprep.subr.bf16.mxu0 0
    %173 = vmatpush1.bf16.msra.mxu0 %v152
    %174 = vmatprep.subr.bf16.mxu0 0
    %175 = vmatpush1.bf16.msra.mxu0 %v153
    %176 = vmatprep.subr.bf16.mxu0 0
    %177 = vmatpush1.bf16.msra.mxu0 %v154
    %178 = vmatprep.subr.bf16.mxu0 0
    %179 = vmatpush1.bf16.msra.mxu0 %v155
    %180 = vmatprep.subr.bf16.mxu0 0
    %181 = vmatpush1.bf16.msra.mxu0 0
    %182 = vmatprep.subr.bf16.mxu0 0
    %183 = vmatpush1.bf16.msra.mxu0 0
    %184 = vmatprep.subr.bf16.mxu0 0
    %185 = vmatpush1.bf16.msra.mxu0 0
    %186 = vmatprep.subr.bf16.mxu0 0
    %187 = vmatpush1.bf16.msra.mxu0 0
    %188 = vmatprep.subr.bf16.mxu0 0
    %189 = vmatpush1.bf16.msra.mxu0 0
    %190 = vmatprep.subr.bf16.mxu0 0
    %191 = vmatpush1.bf16.msra.mxu0 0
    %192 = vmatprep.subr.bf16.mxu0 0
    %193 = vmatpush1.bf16.msra.mxu0 0
    %194 = vmatprep.subr.bf16.mxu0 0
    %195 = vmatpush1.bf16.msra.mxu0 0
    %196 = vmatprep.mubr.bf16.mxu0 0
    %197 = vmatmul.mubr.bf16.gmra.mrb[0].mxu0 %v92
    %v198 = vpop.f32.mrb[0].mxu0
    %v199 = vadd.f32 %v114, %v198
    %v200 = vpop.f32.mrb[0].mxu0
    %v201 = vpop.f32.mrb[0].mxu0
    %v202 = vpop.f32.mrb[0].mxu0
    %203 = vdwg.mxu0
    %v204 = vmax.f32 %v199, 0.0
    %v205 = vld [vmem:[%s5] sm:$0x1]
    %v206 = vld [vmem:[%s6] sm:$0x1]
    %vm207 = vcmask 195584
    %v208 = vsel %vm207, %v204, 0.0
    %v209 = vrot.slane %v208, 4
    %v210 = vadd.f32 %v208, %v209
    %v211 = vrot.slane %v210, 2
    %v212 = vadd.f32 %v210, %v211
    %v213 = vrot.slane %v212, 1
    %v214 = vadd.f32 %v212, %v213
    %v215 = vmul.f32 %v214, %v64
    %v216 = vsub.f32 %v204, %v215
    %v217 = vmul.f32 %v216, %v216
    %v218 = vsel %vm207, %v217, 0.0
    %v219 = vrot.slane %v218, 4
    %v220 = vadd.f32 %v218, %v219
    %v221 = vrot.slane %v220, 2
    %v222 = vadd.f32 %v220, %v221
    %v223 = vrot.slane %v222, 1
    %v224 = vadd.f32 %v222, %v223
    %v225 = vmul.f32 %v224, %v64
    %v226 = vadd.f32 %v225, 1e-05
    %v227 = vrsqrt.pop %v226
    %v228 = vmul.f32 %v216, %v227
    %v230 = vlaneseq
    %v231 = vshrl.u32 %v230, 7
    %v232 = vsub.s32 0, %v231
    %v233 = vrot.slane %v205, %v232
    %v235 = vmul.f32 %v228, %v233
    %v237 = vlaneseq
    %v238 = vshrl.u32 %v237, 7
    %v239 = vsub.s32 0, %v238
    %v240 = vrot.slane %v206, %v239
    %v242 = vadd.f32 %v235, %v240
    %v243 = vpack.c.bf16 %v242, %v242
    %v244 = vld [vmem:[%s7] sm:$0xf]
    %v245 = vld [vmem:[%s7 + $0x4] sm:$0xf]
    %v246 = vld [vmem:[%s7 + $0x8] sm:$0xf]
    %v247 = vld [vmem:[%s8] sm:$0x1]
    %v249 = vlaneseq
    %v250 = vshrl.u32 %v249, 7
    %v251 = vsub.s32 0, %v250
    %v252 = vrot.slane %v247, %v251
    %v257 = vunpack.c.l.b16 %v244
    %v258 = vunpack.c.l.b16 %v245
    %v259 = vunpack.c.l.b16 %v246
    %v260 = vpack.c.b16 %v258, %v257
    %v261 = vpack.c.b16 %v259, %v259
    %v264 = vsel %vm207, %v243, 0
    %vm266 = vcmask 1043456
    %v268 = vsel %vm266, %v261, 0
    %270 = vmatprep.subr.bf16.mxu0 0
    %271 = vmatpush1.bf16.msra.mxu0 %v260
    %272 = vmatprep.subr.bf16.mxu0 0
    %273 = vmatpush1.bf16.msra.mxu0 %v268
    %274 = vmatprep.subr.bf16.mxu0 0
    %275 = vmatpush1.bf16.msra.mxu0 0
    %276 = vmatprep.subr.bf16.mxu0 0
    %277 = vmatpush1.bf16.msra.mxu0 0
    %278 = vmatprep.subr.bf16.mxu0 0
    %279 = vmatpush1.bf16.msra.mxu0 0
    %280 = vmatprep.subr.bf16.mxu0 0
    %281 = vmatpush1.bf16.msra.mxu0 0
    %282 = vmatprep.subr.bf16.mxu0 0
    %283 = vmatpush1.bf16.msra.mxu0 0
    %284 = vmatprep.subr.bf16.mxu0 0
    %285 = vmatpush1.bf16.msra.mxu0 0
    %286 = vmatprep.subr.bf16.mxu0 0
    %287 = vmatpush1.bf16.msra.mxu0 0
    %288 = vmatprep.subr.bf16.mxu0 0
    %289 = vmatpush1.bf16.msra.mxu0 0
    %290 = vmatprep.subr.bf16.mxu0 0
    %291 = vmatpush1.bf16.msra.mxu0 0
    %292 = vmatprep.subr.bf16.mxu0 0
    %293 = vmatpush1.bf16.msra.mxu0 0
    %294 = vmatprep.subr.bf16.mxu0 0
    %295 = vmatpush1.bf16.msra.mxu0 0
    %296 = vmatprep.subr.bf16.mxu0 0
    %297 = vmatpush1.bf16.msra.mxu0 0
    %298 = vmatprep.subr.bf16.mxu0 0
    %299 = vmatpush1.bf16.msra.mxu0 0
    %300 = vmatprep.subr.bf16.mxu0 0
    %301 = vmatpush1.bf16.msra.mxu0 0
    %302 = vmatprep.mubr.bf16.mxu0 0
    %303 = vmatmul.mubr.bf16.gmra.mrb[0].mxu0 %v264
    %v304 = vpop.f32.mrb[0].mxu0
    %v305 = vadd.f32 %v252, %v304
    %v306 = vpop.f32.mrb[0].mxu0
    %v307 = vpop.f32.mrb[0].mxu0
    %v308 = vpop.f32.mrb[0].mxu0
    %309 = vdwg.mxu0
    %v310 = vld [vmem:[%s9] sm:$0x1]
    %v311 = vld [vmem:[%s10] sm:$0x1]
    %vm312 = vcmask 261120
    %v313 = vsel %vm312, %v305, 0.0
    %v314 = vrot.slane %v313, 4
    %v315 = vadd.f32 %v313, %v314
    %v316 = vrot.slane %v315, 2
    %v317 = vadd.f32 %v315, %v316
    %v318 = vrot.slane %v317, 1
    %v319 = vadd.f32 %v317, %v318
    %v320 = vmul.f32 %v319, %v64
    %v321 = vsub.f32 %v305, %v320
    %v322 = vmul.f32 %v321, %v321
    %v323 = vsel %vm312, %v322, 0.0
    %v324 = vrot.slane %v323, 4
    %v325 = vadd.f32 %v323, %v324
    %v326 = vrot.slane %v325, 2
    %v327 = vadd.f32 %v325, %v326
    %v328 = vrot.slane %v327, 1
    %v329 = vadd.f32 %v327, %v328
    %v330 = vmul.f32 %v329, %v64
    %v331 = vadd.f32 %v330, 1e-05
    %v332 = vrsqrt.pop %v331
    %v333 = vmul.f32 %v321, %v332
    %v335 = vlaneseq
    %v336 = vshrl.u32 %v335, 7
    %v337 = vsub.s32 0, %v336
    %v338 = vrot.slane %v310, %v337
    %v340 = vmul.f32 %v333, %v338
    %v342 = vlaneseq
    %v343 = vshrl.u32 %v342, 7
    %v344 = vsub.s32 0, %v343
    %v345 = vrot.slane %v311, %v344
    %v347 = vadd.f32 %v340, %v345
    %v348 = vmax.f32 %v347, 0.0
    %349 = vst.msk [vmem:[#allocation2] sm:$0xff] %vm312, %v348
    %v350 = vld [vmem:[%s11] sm:$0xf]
    %v351 = vld [vmem:[%s11 + $0x4] sm:$0xf]
    %v352 = vld [vmem:[%s11 + $0x8] sm:$0xf]
    %v353 = vld [vmem:[%s12] sm:$0x1]
    %v355 = vlaneseq
    %v356 = vshrl.u32 %v355, 7
    %v357 = vsub.s32 0, %v356
    %v358 = vrot.slane %v353, %v357
    %v363 = vunpack.c.l.b16 %v350
    %v364 = vunpack.c.l.b16 %v351
    %v365 = vunpack.c.l.b16 %v352
    %v366 = vpack.c.b16 %v364, %v363
    %v367 = vpack.c.b16 %v365, %v365
    %v370 = vsel %vm266, %v367, 0
    %372 = vmatprep.subr.bf16.mxu0 0
    %373 = vmatpush1.bf16.msra.mxu0 %v366
    %374 = vmatprep.subr.bf16.mxu0 0
    %375 = vmatpush1.bf16.msra.mxu0 %v370
    %376 = vmatprep.subr.bf16.mxu0 0
    %377 = vmatpush1.bf16.msra.mxu0 0
    %378 = vmatprep.subr.bf16.mxu0 0
    %379 = vmatpush1.bf16.msra.mxu0 0
    %380 = vmatprep.subr.bf16.mxu0 0
    %381 = vmatpush1.bf16.msra.mxu0 0
    %382 = vmatprep.subr.bf16.mxu0 0
    %383 = vmatpush1.bf16.msra.mxu0 0
    %384 = vmatprep.subr.bf16.mxu0 0
    %385 = vmatpush1.bf16.msra.mxu0 0
    %386 = vmatprep.subr.bf16.mxu0 0
    %387 = vmatpush1.bf16.msra.mxu0 0
    %388 = vmatprep.subr.bf16.mxu0 0
    %389 = vmatpush1.bf16.msra.mxu0 0
    %390 = vmatprep.subr.bf16.mxu0 0
    %391 = vmatpush1.bf16.msra.mxu0 0
    %392 = vmatprep.subr.bf16.mxu0 0
    %393 = vmatpush1.bf16.msra.mxu0 0
    %394 = vmatprep.subr.bf16.mxu0 0
    %395 = vmatpush1.bf16.msra.mxu0 0
    %396 = vmatprep.subr.bf16.mxu0 0
    %397 = vmatpush1.bf16.msra.mxu0 0
    %398 = vmatprep.subr.bf16.mxu0 0
    %399 = vmatpush1.bf16.msra.mxu0 0
    %400 = vmatprep.subr.bf16.mxu0 0
    %401 = vmatpush1.bf16.msra.mxu0 0
    %402 = vmatprep.subr.bf16.mxu0 0
    %403 = vmatpush1.bf16.msra.mxu0 0
    %404 = vmatprep.mubr.bf16.mxu0 0
    %405 = vmatmul.mubr.bf16.gmra.mrb[0].mxu0 %v264
    %v406 = vpop.f32.mrb[0].mxu0
    %v407 = vadd.f32 %v358, %v406
    %v408 = vpop.f32.mrb[0].mxu0
    %v409 = vpop.f32.mrb[0].mxu0
    %v410 = vpop.f32.mrb[0].mxu0
    %411 = vdwg.mxu0
    %v412 = vld [vmem:[%s13] sm:$0x1]
    %v413 = vld [vmem:[%s14] sm:$0x1]
    %v414 = vsel %vm312, %v407, 0.0
    %v415 = vrot.slane %v414, 4
    %v416 = vadd.f32 %v414, %v415
    %v417 = vrot.slane %v416, 2
    %v418 = vadd.f32 %v416, %v417
    %v419 = vrot.slane %v418, 1
    %v420 = vadd.f32 %v418, %v419
    %v421 = vmul.f32 %v420, %v64
    %v422 = vsub.f32 %v407, %v421
    %v423 = vmul.f32 %v422, %v422
    %v424 = vsel %vm312, %v423, 0.0
    %v425 = vrot.slane %v424, 4
    %v426 = vadd.f32 %v424, %v425
    %v427 = vrot.slane %v426, 2
    %v428 = vadd.f32 %v426, %v427
    %v429 = vrot.slane %v428, 1
    %v430 = vadd.f32 %v428, %v429
    %v431 = vmul.f32 %v430, %v64
    %v432 = vadd.f32 %v431, 1e-05
    %v433 = vrsqrt.pop %v432
    %v434 = vmul.f32 %v422, %v433
    %v436 = vlaneseq
    %v437 = vshrl.u32 %v436, 7
    %v438 = vsub.s32 0, %v437
    %v439 = vrot.slane %v412, %v438
    %v441 = vmul.f32 %v434, %v439
    %v443 = vlaneseq
    %v444 = vshrl.u32 %v443, 7
    %v445 = vsub.s32 0, %v444
    %v446 = vrot.slane %v413, %v445
    %v448 = vadd.f32 %v441, %v446
    %v449 = vmax.f32 %v448, 0.0
    %450 = vst.msk [vmem:[#allocation4] sm:$0xff] %vm312, %v449
    // Predicated region
    $region62: #{build_model_mols_forward.9} parent=1 // pred_check
      _
    $region63: #{build_model_mols_forward.9} parent=1 // pred_check_branch
      %452 = sbr.rel (0) target = $region65
    $region64: #{build_model_mols_forward.9} parent=1 // pred_region
      %s454 = ssub.s32 128, 128
      %455 = vsyncadd [#allocation3], %s454
      %s457 = sshll.u32 [#allocation2], 4
      %s458 = int_to_ptr.vmem [resolvable:$true] %s457
      %460 = dma.vmem_to_hbm [thread:$0]  %s458, 128, %s15, [#allocation3]
    $region65: #{build_model_mols_forward.9} parent=1 // pred_fallthru
      _
    // Predicated region
    $region66: #{build_model_mols_forward.9} parent=1 // pred_check
      _
    $region67: #{build_model_mols_forward.9} parent=1 // pred_check_branch
      %462 = sbr.rel (0) target = $region69
    $region68: #{build_model_mols_forward.9} parent=1 // pred_region
      %s464 = ssub.s32 128, 128
      %465 = vsyncadd [#allocation5], %s464
      %s467 = sshll.u32 [#allocation4], 4
      %s468 = int_to_ptr.vmem [resolvable:$true] %s467
      %470 = dma.vmem_to_hbm [thread:$0]  %s468, 128, %s16, [#allocation5]
    $region69: #{build_model_mols_forward.9} parent=1 // pred_fallthru
      _
    // Predicated region
    $region70: #{build_model_mols_forward.9} parent=1 // pred_check
      _
    $region71: #{build_model_mols_forward.9} parent=1 // pred_check_branch
      %472 = sbr.rel (0) target = $region73
    $region72: #{build_model_mols_forward.9} parent=1 // pred_region
      %473 = dma.done [#allocation3], 128
    $region73: #{build_model_mols_forward.9} parent=1 // pred_fallthru
      _
    // Predicated region
    $region74: #{build_model_mols_forward.9} parent=1 // pred_check
      _
    $region75: #{build_model_mols_forward.9} parent=1 // pred_check_branch
      %475 = sbr.rel (0) target = $region77
    $region76: #{build_model_mols_forward.9} parent=1 // pred_region
      %476 = dma.done [#allocation5], 128
    $region77: #{build_model_mols_forward.9} parent=1 // pred_fallthru
      _
    %477 = vsyncpa [#allocation3], 1
    %478 = vsyncpa [#allocation5], 1

// kernel: build_model_mols_forward.6
$region0: #{build_model_mols_forward.6}
  #allocation0 [shape = 'u32[]', space=smem, size = 0x4, offset = 0x4, fixed_abs, tag = 'smem constant byte address 0x4 - core index']
  #allocation1 [shape = 'u32[144,128]{1,0:T(1,128)}', space=vmem, size = 0x12000, scoped, tag = 'internal scratch']
  #allocation2 [shape = 'f32[8,16]{1,0:T(8,128)}', space=vmem, size = 0x1000, scoped, tag = 'scratch operand']
  #allocation3 [shape = 'f32[8,16]{1,0:T(8,128)}', space=vmem, size = 0x1000, scoped, tag = 'scratch operand']
  %s0 = inlined_call_operand.hbm [shape: bf16[64,16], index: 0, kind: input, shape index: {}]
  %s1 = inlined_call_operand.hbm [shape: bf16[2,16,64], index: 1, kind: input, shape index: {}]
  %s2 = inlined_call_operand.hbm [shape: bf16[2,16,64], index: 2, kind: input, shape index: {}]
  %s3 = inlined_call_operand.hbm [shape: f32[2,1,64], index: 3, kind: input, shape index: {}]
  %s4 = inlined_call_operand.hbm [shape: f32[2,8,16], index: 4, kind: input, shape index: {}, may-alias: {4,5}]
  %s5 = inlined_call_operand.hbm [shape: f32[2,8,16], index: 5, kind: input, shape index: {}, may-alias: {4,5}]
  %s6 = inlined_call_operand.hbm [shape: f32[2,8,8,16], index: 6, kind: output, shape index: {0}]
  %s7 = inlined_call_operand.hbm [shape: f32[2,8,16], index: 7, kind: output, shape index: {1}]
  %s8 = inlined_call_operand.hbm [shape: f32[2,8,16], index: 8, kind: output, shape index: {2}]
  %9 = xla_tuple %s6, %s7, %s8
  %s10 = sld [smem:[#allocation0]]
  $region113: #{build_model_mols_forward.6} parent=0
    _
  %s12 = ssub.s32 1, %s10
  %s13 = scalar_select 0, %s12, %s10
  $region1: #{build_model_mols_forward.6} parent=0
    #allocation4 [shape = 'u8[32768]{0}', space=vmem, size = 0x8000, scoped, tag = 'input window, operand 0']
    #allocation5 [shape = 's32[2]{0}', space=sflag, size = 0x8, scoped, tag = 'scoped memory for build_model_mols_forward.6']
    #allocation6 [shape = 's32[2]{0}', space=sflag, size = 0x8, scoped, tag = 'scoped memory for build_model_mols_forward.6']
    #allocation7 [shape = 'u8[8192]{0}', space=vmem, size = 0x2000, scoped, tag = 'input window, operand 1']
    #allocation8 [shape = 's32[2]{0}', space=sflag, size = 0x8, scoped, tag = 'scoped memory for build_model_mols_forward.6']
    #allocation9 [shape = 'u8[8192]{0}', space=vmem, size = 0x2000, scoped, tag = 'input window, operand 2']
    #allocation10 [shape = 'u8[1024]{0}', space=vmem, size = 0x400, scoped, tag = 'input window, operand 3']
    #allocation11 [shape = 's32[2]{0}', space=sflag, size = 0x8, scoped, tag = 'scoped memory for build_model_mols_forward.6']
    #allocation12 [shape = 'u8[8192]{0}', space=vmem, size = 0x2000, scoped, tag = 'input window, operand 4']
    #allocation13 [shape = 'u8[8192]{0}', space=vmem, size = 0x2000, scoped, tag = 'input window, operand 5']
    #allocation14 [shape = 's32[2]{0}', space=sflag, size = 0x8, scoped, tag = 'scoped memory for build_model_mols_forward.6']
    #allocation15 [shape = 'u8[65536]{0}', space=vmem, size = 0x10000, scoped, tag = 'output window, operand 0']
    #allocation16 [shape = 'u8[8192]{0}', space=vmem, size = 0x2000, scoped, tag = 'output window, operand 1']
    #allocation17 [shape = 's32[2]{0}', space=sflag, size = 0x8, scoped, tag = 'scoped memory for build_model_mols_forward.6']
    #allocation18 [shape = 'u8[8192]{0}', space=vmem, size = 0x2000, scoped, tag = 'output window, operand 2']
    %14 = vsyncpa [#allocation5], 0
    %s15 = scalar_lea.sflag [#allocation5], 1
    %16 = vsyncpa %s15, 0
    %17 = vsyncpa [#allocation8], 0
    %s18 = scalar_lea.sflag [#allocation8], 1
    %19 = vsyncpa %s18, 0
    %20 = vsyncpa [#allocation11], 0
    %s21 = scalar_lea.sflag [#allocation11], 1
    %22 = vsyncpa %s21, 0
    %23 = vsyncpa [#allocation14], 0
    %s24 = scalar_lea.sflag [#allocation14], 1
    %25 = vsyncpa %s24, 0
    %26 = vsyncpa [#allocation6], 0
    %s27 = scalar_lea.sflag [#allocation6], 1
    %28 = vsyncpa %s27, 0
    %29 = vsyncpa [#allocation17], 0
    %s30 = scalar_lea.sflag [#allocation17], 1
    %31 = vsyncpa %s30, 0
    loop: start=0, step=1, limit=4
    $region2: #{build_model_mols_forward.6} parent=1 // loop_pre_header
      _
    $region3: #{build_model_mols_forward.6} parent=1 // loop_header
      %s33 = sphi 0, %s37
      %p34 = scmp.ge.s32.totalorder %s33, 4
      %s40 = sphi 0, %s52
      %s41 = sphi 0, %s48
      %s42 = sphi 0, %s40
      %s43 = sphi 0, %s41
      %s44 = sphi 0, %s42
      %s45 = sphi 0, %s43
      %s61 = sphi 0, %s63
      %s64 = sphi 0, %s61
      %s65 = sphi 0, %s64
      %s81 = sphi 0, %s65
      %s87 = sphi 0, %s89
      %s90 = sphi 0, %s87
      %s91 = sphi 0, %s90
      %s107 = sphi 0, %s91
      %s113 = sphi 0, %s115
      %s116 = sphi 0, %s113
      %s117 = sphi 0, %s116
      %s133 = sphi 0, %s117
      %s139 = sphi 0, %s141
      %s142 = sphi 0, %s139
      %s143 = sphi 0, %s142
      %s159 = sphi 0, %s143
      %s165 = sphi 0, %s167
      %s168 = sphi 0, %s165
      %s169 = sphi 0, %s168
      %s185 = sphi 0, %s169
      %s191 = sphi 0, %s193
      %s194 = sphi 0, %s191
      %s195 = sphi 0, %s194
      %s211 = sphi 0, %s195
      %s225 = sphi 0, %s227
      %s228 = sphi 0, %s225
      %s229 = sphi 0, %s228
      %s245 = sphi 0, %s229
      %s251 = sphi 0, %s253
      %s254 = sphi 0, %s251
      %s255 = sphi 0, %s254
      %s271 = sphi 0, %s255
      %s277 = sphi 0, %s279
      %s280 = sphi 0, %s277
      %s281 = sphi 0, %s280
      %s297 = sphi 0, %s281
    $region4: #{build_model_mols_forward.6} parent=1 // loop_header_branch
      %36 = sbr.rel (%p34) target = $region8
    $region5: #{build_model_mols_forward.6} parent=1 // loop_body
      %s38 = ssub.s32 %s33, 1
      %s39 = ssub.s32 %s33, 2
      %s46 = sadd.s32 1, %s41
      %p47 = scmp.ge.s32.totalorder %s46, 1
      %s48 = scalar_select %p47, 0, %s46
      %s49 = sadd.s32 1, %s40
      %s50 = scalar_select %p47, %s49, %s40
      %p51 = scmp.ge.s32.totalorder %s50, 2
      %s52 = scalar_select %p51, 0, %s50
      %p53 = scmp.eq.s32.totalorder %s40, 1
      %s54 = ssub.s32 0, %s41
      %s55 = scalar_select %p53, %s54, %s41
      %p56 = scmp.eq.s32.totalorder %s52, 1
      %s57 = ssub.s32 0, %s48
      %s58 = scalar_select %p56, %s57, %s48
      %s59 = ssub.s32 %s55, %s58
      %p60 = scmp.eq.s32.totalorder %s59, 0
      %s62 = sadd.s32 %s61, 1
      %s63 = scalar_select %p60, %s61, %s62
      %p66 = pneg %p60
      %p67 = scmp.eq.s32.totalorder %s33, 1
      %p68 = por %p66, %p67
      %p69 = scmp.ne.s32.totalorder %s61, %s64
      %p70 = scmp.eq.s32.totalorder %s33, 0
      %p71 = por %p69, %p70
      %p72 = scmp.ne.s32.totalorder %s61, %s64
      %p73 = scmp.eq.s32.totalorder %s38, 1
      %p74 = por %p72, %p73
      %p75 = scmp.ne.s32.totalorder %s64, %s65
      %p76 = scmp.eq.s32.totalorder %s38, 0
      %p77 = por %p75, %p76
      %p78 = scmp.ne.s32.totalorder %s64, %s65
      %p79 = scmp.eq.s32.totalorder %s39, 1
      %p80 = por %p78, %p79
      %p82 = scmp.ne.s32.totalorder %s65, %s81
      %p83 = scmp.eq.s32.totalorder %s39, 0
      %p84 = por %p82, %p83
      %s85 = ssub.s32 %s40, %s52
      %p86 = scmp.eq.s32.totalorder %s85, 0
      %s88 = sadd.s32 %s87, 1
      %s89 = scalar_select %p86, %s87, %s88
      %p92 = pneg %p86
      %p93 = scmp.eq.s32.totalorder %s33, 1
      %p94 = por %p92, %p93
      %p95 = scmp.ne.s32.totalorder %s87, %s90
      %p96 = scmp.eq.s32.totalorder %s33, 0
      %p97 = por %p95, %p96
      %p98 = scmp.ne.s32.totalorder %s87, %s90
      %p99 = scmp.eq.s32.totalorder %s38, 1
      %p100 = por %p98, %p99
      %p101 = scmp.ne.s32.totalorder %s90, %s91
      %p102 = scmp.eq.s32.totalorder %s38, 0
      %p103 = por %p101, %p102
      %p104 = scmp.ne.s32.totalorder %s90, %s91
      %p105 = scmp.eq.s32.totalorder %s39, 1
      %p106 = por %p104, %p105
      %p108 = scmp.ne.s32.totalorder %s91, %s107
      %p109 = scmp.eq.s32.totalorder %s39, 0
      %p110 = por %p108, %p109
      %s111 = ssub.s32 %s40, %s52
      %p112 = scmp.eq.s32.totalorder %s111, 0
      %s114 = sadd.s32 %s113, 1
      %s115 = scalar_select %p112, %s113, %s114
      %p118 = pneg %p112
      %p119 = scmp.eq.s32.totalorder %s33, 1
      %p120 = por %p118, %p119
      %p121 = scmp.ne.s32.totalorder %s113, %s116
      %p122 = scmp.eq.s32.totalorder %s33, 0
      %p123 = por %p121, %p122
      %p124 = scmp.ne.s32.totalorder %s113, %s116
      %p125 = scmp.eq.s32.totalorder %s38, 1
      %p126 = por %p124, %p125
      %p127 = scmp.ne.s32.totalorder %s116, %s117
      %p128 = scmp.eq.s32.totalorder %s38, 0
      %p129 = por %p127, %p128
      %p130 = scmp.ne.s32.totalorder %s116, %s117
      %p131 = scmp.eq.s32.totalorder %s39, 1
      %p132 = por %p130, %p131
      %p134 = scmp.ne.s32.totalorder %s117, %s133
      %p135 = scmp.eq.s32.totalorder %s39, 0
      %p136 = por %p134, %p135
      %s137 = ssub.s32 %s40, %s52
      %p138 = scmp.eq.s32.totalorder %s137, 0
      %s140 = sadd.s32 %s139, 1
      %s141 = scalar_select %p138, %s139, %s140
      %p144 = pneg %p138
      %p145 = scmp.eq.s32.totalorder %s33, 1
      %p146 = por %p144, %p145
      %p147 = scmp.ne.s32.totalorder %s139, %s142
      %p148 = scmp.eq.s32.totalorder %s33, 0
      %p149 = por %p147, %p148
      %p150 = scmp.ne.s32.totalorder %s139, %s142
      %p151 = scmp.eq.s32.totalorder %s38, 1
      %p152 = por %p150, %p151
      %p153 = scmp.ne.s32.totalorder %s142, %s143
      %p154 = scmp.eq.s32.totalorder %s38, 0
      %p155 = por %p153, %p154
      %p156 = scmp.ne.s32.totalorder %s142, %s143
      %p157 = scmp.eq.s32.totalorder %s39, 1
      %p158 = por %p156, %p157
      %p160 = scmp.ne.s32.totalorder %s143, %s159
      %p161 = scmp.eq.s32.totalorder %s39, 0
      %p162 = por %p160, %p161
      %s163 = ssub.s32 %s40, %s52
      %p164 = scmp.eq.s32.totalorder %s163, 0
      %s166 = sadd.s32 %s165, 1
      %s167 = scalar_select %p164, %s165, %s166
      %p170 = pneg %p164
      %p171 = scmp.eq.s32.totalorder %s33, 1
      %p172 = por %p170, %p171
      %p173 = scmp.ne.s32.totalorder %s165, %s168
      %p174 = scmp.eq.s32.totalorder %s33, 0
      %p175 = por %p173, %p174
      %p176 = scmp.ne.s32.totalorder %s165, %s168
      %p177 = scmp.eq.s32.totalorder %s38, 1
      %p178 = por %p176, %p177
      %p179 = scmp.ne.s32.totalorder %s168, %s169
      %p180 = scmp.eq.s32.totalorder %s38, 0
      %p181 = por %p179, %p180
      %p182 = scmp.ne.s32.totalorder %s168, %s169
      %p183 = scmp.eq.s32.totalorder %s39, 1
      %p184 = por %p182, %p183
      %p186 = scmp.ne.s32.totalorder %s169, %s185
      %p187 = scmp.eq.s32.totalorder %s39, 0
      %p188 = por %p186, %p187
      %s189 = ssub.s32 %s40, %s52
      %p190 = scmp.eq.s32.totalorder %s189, 0
      %s192 = sadd.s32 %s191, 1
      %s193 = scalar_select %p190, %s191, %s192
      %p196 = pneg %p190
      %p197 = scmp.eq.s32.totalorder %s33, 1
      %p198 = por %p196, %p197
      %p199 = scmp.ne.s32.totalorder %s191, %s194
      %p200 = scmp.eq.s32.totalorder %s33, 0
      %p201 = por %p199, %p200
      %p202 = scmp.ne.s32.totalorder %s191, %s194
      %p203 = scmp.eq.s32.totalorder %s38, 1
      %p204 = por %p202, %p203
      %p205 = scmp.ne.s32.totalorder %s194, %s195
      %p206 = scmp.eq.s32.totalorder %s38, 0
      %p207 = por %p205, %p206
      %p208 = scmp.ne.s32.totalorder %s194, %s195
      %p209 = scmp.eq.s32.totalorder %s39, 1
      %p210 = por %p208, %p209
      %p212 = scmp.ne.s32.totalorder %s195, %s211
      %p213 = scmp.eq.s32.totalorder %s39, 0
      %p214 = por %p212, %p213
      %p215 = scmp.eq.s32.totalorder %s40, 1
      %s216 = ssub.s32 0, %s41
      %s217 = scalar_select %p215, %s216, %s41
      %p218 = scmp.eq.s32.totalorder %s52, 1
      %s219 = ssub.s32 0, %s48
      %s220 = scalar_select %p218, %s219, %s48
      %s221 = ssub.s32 %s40, %s52
      %s222 = ssub.s32 %s217, %s220
      %s223 = sor.u32 %s221, %s222
      %p224 = scmp.eq.s32.totalorder %s223, 0
      %s226 = sadd.s32 %s225, 1
      %s227 = scalar_select %p224, %s225, %s226
      %p230 = pneg %p224
      %p231 = scmp.eq.s32.totalorder %s33, 1
      %p232 = por %p230, %p231
      %p233 = scmp.ne.s32.totalorder %s225, %s228
      %p234 = scmp.eq.s32.totalorder %s33, 0
      %p235 = por %p233, %p234
      %p236 = scmp.ne.s32.totalorder %s225, %s228
      %p237 = scmp.eq.s32.totalorder %s38, 1
      %p238 = por %p236, %p237
      %p239 = scmp.ne.s32.totalorder %s228, %s229
      %p240 = scmp.eq.s32.totalorder %s38, 0
      %p241 = por %p239, %p240
      %p242 = scmp.ne.s32.totalorder %s228, %s229
      %p243 = scmp.eq.s32.totalorder %s39, 1
      %p244 = por %p242, %p243
      %p246 = scmp.ne.s32.totalorder %s229, %s245
      %p247 = scmp.eq.s32.totalorder %s39, 0
      %p248 = por %p246, %p247
      %s249 = ssub.s32 %s40, %s52
      %p250 = scmp.eq.s32.totalorder %s249, 0
      %s252 = sadd.s32 %s251, 1
      %s253 = scalar_select %p250, %s251, %s252
      %p256 = pneg %p250
      %p257 = scmp.eq.s32.totalorder %s33, 1
      %p258 = por %p256, %p257
      %p259 = scmp.ne.s32.totalorder %s251, %s254
      %p260 = scmp.eq.s32.totalorder %s33, 0
      %p261 = por %p259, %p260
      %p262 = scmp.ne.s32.totalorder %s251, %s254
      %p263 = scmp.eq.s32.totalorder %s38, 1
      %p264 = por %p262, %p263
      %p265 = scmp.ne.s32.totalorder %s254, %s255
      %p266 = scmp.eq.s32.totalorder %s38, 0
      %p267 = por %p265, %p266
      %p268 = scmp.ne.s32.totalorder %s254, %s255
      %p269 = scmp.eq.s32.totalorder %s39, 1
      %p270 = por %p268, %p269
      %p272 = scmp.ne.s32.totalorder %s255, %s271
      %p273 = scmp.eq.s32.totalorder %s39, 0
      %p274 = por %p272, %p273
      %s275 = ssub.s32 %s40, %s52
      %p276 = scmp.eq.s32.totalorder %s275, 0
      %s278 = sadd.s32 %s277, 1
      %s279 = scalar_select %p276, %s277, %s278
      %p282 = pneg %p276
      %p283 = scmp.eq.s32.totalorder %s33, 1
      %p284 = por %p282, %p283
      %p285 = scmp.ne.s32.totalorder %s277, %s280
      %p286 = scmp.eq.s32.totalorder %s33, 0
      %p287 = por %p285, %p286
      %p288 = scmp.ne.s32.totalorder %s277, %s280
      %p289 = scmp.eq.s32.totalorder %s38, 1
      %p290 = por %p288, %p289
      %p291 = scmp.ne.s32.totalorder %s280, %s281
      %p292 = scmp.eq.s32.totalorder %s38, 0
      %p293 = por %p291, %p292
      %p294 = scmp.ne.s32.totalorder %s280, %s281
      %p295 = scmp.eq.s32.totalorder %s39, 1
      %p296 = por %p294, %p295
      %p298 = scmp.ne.s32.totalorder %s281, %s297
      %p299 = scmp.eq.s32.totalorder %s39, 0
      %p300 = por %p298, %p299
      %p301 = scmp.le.s32.totalorder 1, %s33
      %p302 = scmp.lt.s32.totalorder %s33, 3
      %p303 = pnand %p301, %p302
      %p304 = pneg %p303
      // Predicated region
      $region9: #{build_model_mols_forward.6} parent=5 // pred_check
        _
      $region10: #{build_model_mols_forward.6} parent=5 // pred_check_branch
        %306 = sbr.rel (%p303) target = $region12
      $region11: #{build_model_mols_forward.6} parent=5 // pred_region
        %s307 = ssub.s32 %s33, 1
      $region12: #{build_model_mols_forward.6} parent=5 // pred_fallthru
        _
      %p308 = scmp.lt.s32.totalorder %s33, 2
      // Predicated region
      $region13: #{build_model_mols_forward.6} parent=5 // pred_check
        %p309 = pneg %p308
      $region14: #{build_model_mols_forward.6} parent=5 // pred_check_branch
        %311 = sbr.rel (%p309) target = $region16
      $region15: #{build_model_mols_forward.6} parent=5 // pred_region
        // Predicated region
        $region17: #{build_model_mols_forward.6} parent=15 // pred_check
          %p312 = pneg %p71
        $region18: #{build_model_mols_forward.6} parent=15 // pred_check_branch
          %314 = sbr.rel (%p312) target = $region20
        $region19: #{build_model_mols_forward.6} parent=15 // pred_region
          %s315 = sand.u32 %s61, 1
          %s316 = scalar_lea.sflag [#allocation5], %s315
          %s317 = sand.u32 %s61, 1
          %s318 = smul.addr %s317, 32
          %s319 = scalar_lea.vmem [#allocation4], %s318
          %p320 = scmp.eq.s32.totalorder %s40, 1
          %s321 = ssub.s32 0, %s41
          %s322 = scalar_select %p320, %s321, %s41
          %s323 = smul.u32 8, %s322
          %s325 = ssub.s32 512, 512
          %326 = vsyncadd %s316, %s325
          %s327 = smul.addr %s323, 64
          %s328 = scalar_lea.hbm %s0, %s327
          %s329 = sshll.u32 %s319, 4
          %s330 = int_to_ptr.vmem [resolvable:$true] %s329
          %335 = dma.hbm_to_vmem [thread:$0]  %s328, 512, %s330, %s316, 64, 64, 4
        $region20: #{build_model_mols_forward.6} parent=15 // pred_fallthru
          _
        // Predicated region
        $region21: #{build_model_mols_forward.6} parent=15 // pred_check
          %p336 = pneg %p97
        $region22: #{build_model_mols_forward.6} parent=15 // pred_check_branch
          %338 = sbr.rel (%p336) target = $region24
        $region23: #{build_model_mols_forward.6} parent=15 // pred_region
          %s339 = sand.u32 %s33, 1
          %s340 = scalar_lea.sflag [#allocation8], %s339
          %s341 = sand.u32 %s87, 1
          %s342 = smul.addr %s341, 8
          %s343 = scalar_lea.vmem [#allocation7], %s342
          %s345 = ssub.s32 128, 128
          %346 = vsyncadd %s340, %s345
          %s347 = smul.addr %s40, 2
          %s348 = smul.addr %s347, 64
          %s349 = scalar_lea.hbm %s1, %s348
          %s350 = sshll.u32 %s343, 4
          %s351 = int_to_ptr.vmem [resolvable:$true] %s350
          %356 = dma.hbm_to_vmem [thread:$0]  %s349, 128, %s351, %s340, 64, 64, 4
        $region24: #{build_model_mols_forward.6} parent=15 // pred_fallthru
          _
        // Predicated region
        $region25: #{build_model_mols_forward.6} parent=15 // pred_check
          %p357 = pneg %p123
        $region26: #{build_model_mols_forward.6} parent=15 // pred_check_branch
          %359 = sbr.rel (%p357) target = $region28
        $region27: #{build_model_mols_forward.6} parent=15 // pred_region
          %s360 = sand.u32 %s33, 1
          %s361 = scalar_lea.sflag [#allocation8], %s360
          %s362 = sand.u32 %s113, 1
          %s363 = smul.addr %s362, 8
          %s364 = scalar_lea.vmem [#allocation9], %s363
          %s366 = ssub.s32 128, 128
          %367 = vsyncadd %s361, %s366
          %s368 = smul.addr %s40, 2
          %s369 = smul.addr %s368, 64
          %s370 = scalar_lea.hbm %s2, %s369
          %s371 = sshll.u32 %s364, 4
          %s372 = int_to_ptr.vmem [resolvable:$true] %s371
          %377 = dma.hbm_to_vmem [thread:$0]  %s370, 128, %s372, %s361, 64, 64, 4
        $region28: #{build_model_mols_forward.6} parent=15 // pred_fallthru
          _
        // Predicated region
        $region29: #{build_model_mols_forward.6} parent=15 // pred_check
          %p378 = pneg %p149
        $region30: #{build_model_mols_forward.6} parent=15 // pred_check_branch
          %380 = sbr.rel (%p378) target = $region32
        $region31: #{build_model_mols_forward.6} parent=15 // pred_region
          %s381 = sand.u32 %s33, 1
          %s382 = scalar_lea.sflag [#allocation11], %s381
          %s383 = sand.u32 %s139, 1
          %s384 = scalar_lea.vmem [#allocation10], %s383
          %s386 = ssub.s32 16, 16
          %387 = vsyncadd %s382, %s386
          %s388 = smul.addr %s40, 16
          %s389 = scalar_lea.hbm %s3, %s388
          %s391 = sshll.u32 %s384, 4
          %s392 = int_to_ptr.vmem [resolvable:$true] %s391
          %394 = dma.hbm_to_vmem [thread:$0]  %s389, 16, %s392, %s382
        $region32: #{build_model_mols_forward.6} parent=15 // pred_fallthru
          _
        // Predicated region
        $region33: #{build_model_mols_forward.6} parent=15 // pred_check
          %p395 = pneg %p175
        $region34: #{build_model_mols_forward.6} parent=15 // pred_check_branch
          %397 = sbr.rel (%p395) target = $region36
        $region35: #{build_model_mols_forward.6} parent=15 // pred_region
          %s398 = sand.u32 %s33, 1
          %s399 = scalar_lea.sflag [#allocation11], %s398
          %s400 = sand.u32 %s165, 1
          %s401 = smul.addr %s400, 8
          %s402 = scalar_lea.vmem [#allocation12], %s401
          %s404 = ssub.s32 128, 128
          %405 = vsyncadd %s399, %s404
          %s406 = smul.addr %s40, 128
          %s407 = scalar_lea.hbm %s4, %s406
          %s409 = sshll.u32 %s402, 4
          %s410 = int_to_ptr.vmem [resolvable:$true] %s409
          %412 = dma.hbm_to_vmem [thread:$0]  %s407, 128, %s410, %s399
        $region36: #{build_model_mols_forward.6} parent=15 // pred_fallthru
          _
        // Predicated region
        $region37: #{build_model_mols_forward.6} parent=15 // pred_check
          %p413 = pneg %p201
        $region38: #{build_model_mols_forward.6} parent=15 // pred_check_branch
          %415 = sbr.rel (%p413) target = $region40
        $region39: #{build_model_mols_forward.6} parent=15 // pred_region
          %s416 = sand.u32 %s191, 1
          %s417 = scalar_lea.sflag [#allocation14], %s416
          %s418 = sand.u32 %s191, 1
          %s419 = smul.addr %s418, 8
          %s420 = scalar_lea.vmem [#allocation13], %s419
          %s422 = ssub.s32 128, 128
          %423 = vsyncadd %s417, %s422
          %s424 = smul.addr %s40, 128
          %s425 = scalar_lea.hbm %s5, %s424
          %s427 = sshll.u32 %s420, 4
          %s428 = int_to_ptr.vmem [resolvable:$true] %s427
          %430 = dma.hbm_to_vmem [thread:$0]  %s425, 128, %s428, %s417
        $region40: #{build_model_mols_forward.6} parent=15 // pred_fallthru
          _
      $region16: #{build_model_mols_forward.6} parent=5 // pred_fallthru
        _
      %p431 = scmp.le.s32.totalorder 1, %s33
      %p432 = scmp.lt.s32.totalorder %s33, 3
      %p433 = pnand %p431, %p432
      %p434 = pneg %p433
      // Predicated region
      $region41: #{build_model_mols_forward.6} parent=5 // pred_check
        _
      $region42: #{build_model_mols_forward.6} parent=5 // pred_check_branch
        %436 = sbr.rel (%p433) target = $region44
      $region43: #{build_model_mols_forward.6} parent=5 // pred_region
        %s437 = ssub.s32 %s33, 1
        %s438 = sand.u32 %s64, 1
        %s439 = scalar_lea.sflag [#allocation5], %s438
        %s440 = sand.u32 %s64, 1
        %s441 = smul.addr %s440, 32
        %s442 = scalar_lea.vmem [#allocation4], %s441
        // Predicated region
        $region45: #{build_model_mols_forward.6} parent=43 // pred_check
          %p443 = pneg %p77
        $region46: #{build_model_mols_forward.6} parent=43 // pred_check_branch
          %445 = sbr.rel (%p443) target = $region48
        $region47: #{build_model_mols_forward.6} parent=43 // pred_region
          %446 = dma.done %s439, 512
        $region48: #{build_model_mols_forward.6} parent=43 // pred_fallthru
          _
        %s447 = sand.u32 %s38, 1
        %s448 = scalar_lea.sflag [#allocation8], %s447
        %s449 = sand.u32 %s90, 1
        %s450 = smul.addr %s449, 8
        %s451 = scalar_lea.vmem [#allocation7], %s450
        // Predicated region
        $region49: #{build_model_mols_forward.6} parent=43 // pred_check
          %p452 = pneg %p103
        $region50: #{build_model_mols_forward.6} parent=43 // pred_check_branch
          %454 = sbr.rel (%p452) target = $region52
        $region51: #{build_model_mols_forward.6} parent=43 // pred_region
          %455 = dma.done %s448, 128
        $region52: #{build_model_mols_forward.6} parent=43 // pred_fallthru
          _
        %s456 = sand.u32 %s38, 1
        %s457 = scalar_lea.sflag [#allocation8], %s456
        %s458 = sand.u32 %s116, 1
        %s459 = smul.addr %s458, 8
        %s460 = scalar_lea.vmem [#allocation9], %s459
        // Predicated region
        $region53: #{build_model_mols_forward.6} parent=43 // pred_check
          %p461 = pneg %p129
        $region54: #{build_model_mols_forward.6} parent=43 // pred_check_branch
          %463 = sbr.rel (%p461) target = $region56
        $region55: #{build_model_mols_forward.6} parent=43 // pred_region
          %464 = dma.done %s457, 128
        $region56: #{build_model_mols_forward.6} parent=43 // pred_fallthru
          _
        %s465 = sand.u32 %s38, 1
        %s466 = scalar_lea.sflag [#allocation11], %s465
        %s467 = sand.u32 %s142, 1
        %s468 = scalar_lea.vmem [#allocation10], %s467
        // Predicated region
        $region57: #{build_model_mols_forward.6} parent=43 // pred_check
          %p469 = pneg %p155
        $region58: #{build_model_mols_forward.6} parent=43 // pred_check_branch
          %471 = sbr.rel (%p469) target = $region60
        $region59: #{build_model_mols_forward.6} parent=43 // pred_region
          %472 = dma.done %s466, 16
        $region60: #{build_model_mols_forward.6} parent=43 // pred_fallthru
          _
        %s473 = sand.u32 %s38, 1
        %s474 = scalar_lea.sflag [#allocation11], %s473
        %s475 = sand.u32 %s168, 1
        %s476 = smul.addr %s475, 8
        %s477 = scalar_lea.vmem [#allocation12], %s476
        // Predicated region
        $region61: #{build_model_mols_forward.6} parent=43 // pred_check
          %p478 = pneg %p181
        $region62: #{build_model_mols_forward.6} parent=43 // pred_check_branch
          %480 = sbr.rel (%p478) target = $region64
        $region63: #{build_model_mols_forward.6} parent=43 // pred_region
          %481 = dma.done %s474, 128
        $region64: #{build_model_mols_forward.6} parent=43 // pred_fallthru
          _
        %s482 = sand.u32 %s194, 1
        %s483 = scalar_lea.sflag [#allocation14], %s482
        %s484 = sand.u32 %s194, 1
        %s485 = smul.addr %s484, 8
        %s486 = scalar_lea.vmem [#allocation13], %s485
        // Predicated region
        $region65: #{build_model_mols_forward.6} parent=43 // pred_check
          %p487 = pneg %p207
        $region66: #{build_model_mols_forward.6} parent=43 // pred_check_branch
          %489 = sbr.rel (%p487) target = $region68
        $region67: #{build_model_mols_forward.6} parent=43 // pred_region
          %490 = dma.done %s483, 128
        $region68: #{build_model_mols_forward.6} parent=43 // pred_fallthru
          _
        %s491 = sand.u32 %s64, 1
        %s492 = scalar_lea.sflag [#allocation5], %s491
        %s493 = sand.u32 %s64, 1
        %s494 = smul.addr %s493, 32
        %s495 = scalar_lea.vmem [#allocation4], %s494
        %p496 = pneg %p77
        %p497 = pneg %p74
        %s498 = sand.u32 %s38, 1
        %s499 = scalar_lea.sflag [#allocation8], %s498
        %s500 = sand.u32 %s90, 1
        %s501 = smul.addr %s500, 8
        %s502 = scalar_lea.vmem [#allocation7], %s501
        %p503 = pneg %p103
        %p504 = pneg %p100
        %s505 = sand.u32 %s38, 1
        %s506 = scalar_lea.sflag [#allocation8], %s505
        %s507 = sand.u32 %s116, 1
        %s508 = smul.addr %s507, 8
        %s509 = scalar_lea.vmem [#allocation9], %s508
        %p510 = pneg %p129
        %p511 = pneg %p126
        %s512 = sand.u32 %s38, 1
        %s513 = scalar_lea.sflag [#allocation11], %s512
        %s514 = sand.u32 %s142, 1
        %s515 = scalar_lea.vmem [#allocation10], %s514
        %p516 = pneg %p155
        %p517 = pneg %p152
        %s518 = sand.u32 %s38, 1
        %s519 = scalar_lea.sflag [#allocation11], %s518
        %s520 = sand.u32 %s168, 1
        %s521 = smul.addr %s520, 8
        %s522 = scalar_lea.vmem [#allocation12], %s521
        %p523 = pneg %p181
        %p524 = pneg %p178
        %s525 = sand.u32 %s194, 1
        %s526 = scalar_lea.sflag [#allocation14], %s525
        %s527 = sand.u32 %s194, 1
        %s528 = smul.addr %s527, 8
        %s529 = scalar_lea.vmem [#allocation13], %s528
        %p530 = pneg %p207
        %p531 = pneg %p204
        %p532 = pneg %p241
        %p533 = pneg %p238
        %s534 = sand.u32 %s228, 1
        %s535 = scalar_lea.sflag [#allocation6], %s534
        %s536 = sand.u32 %s228, 1
        %s537 = smul.addr %s536, 64
        %s538 = scalar_lea.vmem [#allocation15], %s537
        %p539 = pneg %p267
        %p540 = pneg %p264
        %s541 = sand.u32 %s38, 1
        %s542 = scalar_lea.sflag [#allocation17], %s541
        %s543 = sand.u32 %s254, 1
        %s544 = smul.addr %s543, 8
        %s545 = scalar_lea.vmem [#allocation16], %s544
        %p546 = pneg %p293
        %p547 = pneg %p290
        %s548 = sand.u32 %s38, 1
        %s549 = scalar_lea.sflag [#allocation17], %s548
        %s550 = sand.u32 %s280, 1
        %s551 = smul.addr %s550, 8
        %s552 = scalar_lea.vmem [#allocation18], %s551
        %p553 = scmp.eq.s32.totalorder %s42, 1
        %s554 = ssub.s32 0, %s43
        %s555 = scalar_select %p553, %s554, %s43
        %s556 = smul.u32 8, %s555
        %p557 = scmp.eq.s32.totalorder %s42, 1
        %s558 = ssub.s32 0, %s43
        %s559 = scalar_select %p557, %s558, %s43
        %s560 = smul.u32 8, %s559
        %p562 = scmp.eq.s32.totalorder %s43, 0
        // Predicated region
        $region69: #{build_model_mols_forward.6} parent=43 // pred_check
          %p563 = pneg %p562
        $region70: #{build_model_mols_forward.6} parent=43 // pred_check_branch
          %565 = sbr.rel (%p563) target = $region72
        $region71: #{build_model_mols_forward.6} parent=43 // pred_region
          %v566 = vld [vmem:[%s477] sm:$0xff]
          %vm567 = vcmask 130048
          %568 = vst.msk [vmem:[#allocation2] sm:$0xff] %vm567, %v566
          %v569 = vld [vmem:[%s486] sm:$0xff]
          %570 = vst.msk [vmem:[#allocation3] sm:$0xff] %vm567, %v569
        $region72: #{build_model_mols_forward.6} parent=43 // pred_fallthru
          _
        %v571 = vld [vmem:[%s442] sm:$0xf]
        %v572 = vld [vmem:[%s442 + $0x4] sm:$0xf]
        %v573 = vld [vmem:[%s442 + $0x8] sm:$0xf]
        %v574 = vld [vmem:[%s442 + $0xc] sm:$0xf]
        %v575 = vld [vmem:[%s442 + $0x10] sm:$0xf]
        %v576 = vld [vmem:[%s442 + $0x14] sm:$0xf]
        %v577 = vld [vmem:[%s442 + $0x18] sm:$0xf]
        %v578 = vld [vmem:[%s442 + $0x1c] sm:$0xf]
        %v579 = vld [vmem:[%s451] sm:$0xf]
        %v580 = vld [vmem:[%s451 + $0x4] sm:$0xf]
        %v581 = vld [vmem:[%s468] sm:$0x1]
        %v583 = vlaneseq
        %v584 = vshrl.u32 %v583, 7
        %v585 = vsub.s32 0, %v584
        %v586 = vrot.slane %v581, %v585
        %v596 = vunpack.c.l.b16 %v571
        %v597 = vunpack.c.l.b16 %v572
        %v598 = vunpack.c.l.b16 %v573
        %v599 = vunpack.c.l.b16 %v574
        %v600 = vunpack.c.l.b16 %v575
        %v601 = vunpack.c.l.b16 %v576
        %v602 = vunpack.c.l.b16 %v577
        %v603 = vunpack.c.l.b16 %v578
        %v604 = vpack.c.b16 %v597, %v596
        %v605 = vpack.c.b16 %v599, %v598
        %v606 = vpack.c.b16 %v601, %v600
        %v607 = vpack.c.b16 %v603, %v602
        %v610 = vunpack.c.l.b16 %v579
        %v611 = vunpack.c.l.b16 %v580
        %v612 = vpack.c.b16 %v611, %v610
        %vm614 = vcmask 130048
        %v616 = vsel %vm614, %v604, 0
        %v619 = vsel %vm614, %v605, 0
        %v622 = vsel %vm614, %v606, 0
        %v625 = vsel %vm614, %v607, 0
        %627 = vmatprep.subr.bf16.mxu0 0
        %628 = vmatpush1.bf16.msra.mxu0 %v612
        %629 = vmatprep.subr.bf16.mxu0 0
        %630 = vmatpush1.bf16.msra.mxu0 0
        %631 = vmatprep.subr.bf16.mxu0 0
        %632 = vmatpush1.bf16.msra.mxu0 0
        %633 = vmatprep.subr.bf16.mxu0 0
        %634 = vmatpush1.bf16.msra.mxu0 0
        %635 = vmatprep.subr.bf16.mxu0 0
        %636 = vmatpush1.bf16.msra.mxu0 0
        %637 = vmatprep.subr.bf16.mxu0 0
        %638 = vmatpush1.bf16.msra.mxu0 0
        %639 = vmatprep.subr.bf16.mxu0 0
        %640 = vmatpush1.bf16.msra.mxu0 0
        %641 = vmatprep.subr.bf16.mxu0 0
        %642 = vmatpush1.bf16.msra.mxu0 0
        %643 = vmatprep.subr.bf16.mxu0 0
        %644 = vmatpush1.bf16.msra.mxu0 0
        %645 = vmatprep.subr.bf16.mxu0 0
        %646 = vmatpush1.bf16.msra.mxu0 0
        %647 = vmatprep.subr.bf16.mxu0 0
        %648 = vmatpush1.bf16.msra.mxu0 0
        %649 = vmatprep.subr.bf16.mxu0 0
        %650 = vmatpush1.bf16.msra.mxu0 0
        %651 = vmatprep.subr.bf16.mxu0 0
        %652 = vmatpush1.bf16.msra.mxu0 0
        %653 = vmatprep.subr.bf16.mxu0 0
        %654 = vmatpush1.bf16.msra.mxu0 0
        %655 = vmatprep.subr.bf16.mxu0 0
        %656 = vmatpush1.bf16.msra.mxu0 0
        %657 = vmatprep.subr.bf16.mxu0 0
        %658 = vmatpush1.bf16.msra.mxu0 0
        %659 = vmatprep.mubr.bf16.mxu0 0
        %660 = vmatmul.mubr.bf16.gmra.mrb[0].mxu0 %v616
        %v661 = vpop.f32.mrb[0].mxu0
        %v662 = vadd.f32 %v586, %v661
        %v663 = vpop.f32.mrb[0].mxu0
        %v664 = vpop.f32.mrb[0].mxu0
        %v665 = vadd.f32 %v586, %v664
        %v666 = vpop.f32.mrb[0].mxu0
        %667 = vmatprep.mubr.bf16.mxu0 0
        %668 = vmatmul.mubr.bf16.gmra.mrb[0].mxu0 %v619
        %v669 = vpop.f32.mrb[0].mxu0
        %v670 = vadd.f32 %v586, %v669
        %v671 = vpop.f32.mrb[0].mxu0
        %v672 = vpop.f32.mrb[0].mxu0
        %v673 = vadd.f32 %v586, %v672
        %v674 = vpop.f32.mrb[0].mxu0
        %675 = vmatprep.mubr.bf16.mxu0 0
        %676 = vmatmul.mubr.bf16.gmra.mrb[0].mxu0 %v622
        %v677 = vpop.f32.mrb[0].mxu0
        %v678 = vadd.f32 %v586, %v677
        %v679 = vpop.f32.mrb[0].mxu0
        %v680 = vpop.f32.mrb[0].mxu0
        %v681 = vadd.f32 %v586, %v680
        %v682 = vpop.f32.mrb[0].mxu0
        %683 = vmatprep.mubr.bf16.mxu0 0
        %684 = vmatmul.mubr.bf16.gmra.mrb[0].mxu0 %v625
        %v685 = vpop.f32.mrb[0].mxu0
        %v686 = vadd.f32 %v586, %v685
        %v687 = vpop.f32.mrb[0].mxu0
        %v688 = vpop.f32.mrb[0].mxu0
        %v689 = vadd.f32 %v586, %v688
        %v690 = vpop.f32.mrb[0].mxu0
        %691 = vdwg.mxu0
        %v692 = vld [vmem:[%s460] sm:$0xf]
        %v693 = vld [vmem:[%s460 + $0x4] sm:$0xf]
        %p694 = scmp.eq.s32.totalorder %s42, 0
        // Predicated region
        $region73: #{build_model_mols_forward.6} parent=43 // pred_check
          %p695 = pneg %p694
        $region74: #{build_model_mols_forward.6} parent=43 // pred_check_branch
          %697 = sbr.rel (%p695) target = $region76
        $region75: #{build_model_mols_forward.6} parent=43 // pred_region
          %v698 = vld [vmem:[#allocation2] sm:$0xff]
          %v699 = vld [vmem:[#allocation3] sm:$0xff]
          %v700 = vpack.c.bf16 %v698, %v698
          %v703 = vunpack.c.l.b16 %v692
          %v704 = vunpack.c.l.b16 %v693
          %v705 = vpack.c.b16 %v704, %v703
          %v708 = vsel %vm614, %v700, 0
          %710 = vmatprep.subr.bf16.mxu0 0
          %711 = vmatpush1.bf16.msra.mxu0 %v705
          %712 = vmatprep.subr.bf16.mxu0 0
          %713 = vmatpush1.bf16.msra.mxu0 0
          %714 = vmatprep.subr.bf16.mxu0 0
          %715 = vmatpush1.bf16.msra.mxu0 0
          %716 = vmatprep.subr.bf16.mxu0 0
          %717 = vmatpush1.bf16.msra.mxu0 0
          %718 = vmatprep.subr.bf16.mxu0 0
          %719 = vmatpush1.bf16.msra.mxu0 0
          %720 = vmatprep.subr.bf16.mxu0 0
          %721 = vmatpush1.bf16.msra.mxu0 0
          %722 = vmatprep.subr.bf16.mxu0 0
          %723 = vmatpush1.bf16.msra.mxu0 0
          %724 = vmatprep.subr.bf16.mxu0 0
          %725 = vmatpush1.bf16.msra.mxu0 0
          %726 = vmatprep.subr.bf16.mxu0 0
          %727 = vmatpush1.bf16.msra.mxu0 0
          %728 = vmatprep.subr.bf16.mxu0 0
          %729 = vmatpush1.bf16.msra.mxu0 0
          %730 = vmatprep.subr.bf16.mxu0 0
          %731 = vmatpush1.bf16.msra.mxu0 0
          %732 = vmatprep.subr.bf16.mxu0 0
          %733 = vmatpush1.bf16.msra.mxu0 0
          %734 = vmatprep.subr.bf16.mxu0 0
          %735 = vmatpush1.bf16.msra.mxu0 0
          %736 = vmatprep.subr.bf16.mxu0 0
          %737 = vmatpush1.bf16.msra.mxu0 0
          %738 = vmatprep.subr.bf16.mxu0 0
          %739 = vmatpush1.bf16.msra.mxu0 0
          %740 = vmatprep.subr.bf16.mxu0 0
          %741 = vmatpush1.bf16.msra.mxu0 0
          %742 = vmatprep.mubr.bf16.mxu0 0
          %743 = vmatmul.mubr.bf16.gmra.mrb[0].mxu0 %v708
          %v744 = vpop.f32.mrb[0].mxu0
          %v745 = vadd.f32 0.0, %v744
          %v746 = vpop.f32.mrb[0].mxu0
          %v747 = vpop.f32.mrb[0].mxu0
          %v748 = vpop.f32.mrb[0].mxu0
          %749 = vdwg.mxu0
          %v750 = vadd.f32 %v662, %v745
          %v751 = vxor.u32 %v750, 2147483648
          %v752 = vmul.f32 %v751, 1.442695
          %v753 = vpow.pop %v752
          %v754 = vadd.f32 %v753, 1.0
          %v755 = vrcp.pop %v754
          %v756 = vmul.f32 1.0, %v755
          %v757 = vtanh.pop %v750
          %759 = vrot.lane.b32.xlu0 %v699, 16
          %v760 = vpop.permute.xlu0 %759
          %v762 = vmul.f32 %v756, %v760
          %764 = vrot.lane.b32.xlu0 %v757, 80
          %v765 = vpop.permute.xlu0 %764
          %v767 = vmul.f32 %v756, %v765
          %769 = vrot.lane.b32.xlu0 %v767, 16
          %v770 = vpop.permute.xlu0 %769
          %v772 = vadd.f32 %v762, %v770
          %v773 = vtanh.pop %v772
          %775 = vrot.lane.b32.xlu0 %v773, 16
          %v776 = vpop.permute.xlu0 %775
          %v778 = vmul.f32 %v756, %v776
          %780 = vrot.lane.b32.xlu0 %v778, 96
          %v781 = vpop.permute.xlu0 %780
          %783 = vst.msk [vmem:[%s538] sm:$0xff] %vm614, %v781
          %v784 = vpack.c.bf16 %v778, %v778
          %786 = vrot.lane.b32.xlu0 %v784, 96
          %v787 = vpop.permute.xlu0 %786
          %v789 = vsel %vm614, %v787, 0
          %791 = vmatprep.subr.bf16.mxu0 0
          %792 = vmatpush1.bf16.msra.mxu0 %v705
          %793 = vmatprep.subr.bf16.mxu0 0
          %794 = vmatpush1.bf16.msra.mxu0 0
          %795 = vmatprep.subr.bf16.mxu0 0
          %796 = vmatpush1.bf16.msra.mxu0 0
          %797 = vmatprep.subr.bf16.mxu0 0
          %798 = vmatpush1.bf16.msra.mxu0 0
          %799 = vmatprep.subr.bf16.mxu0 0
          %800 = vmatpush1.bf16.msra.mxu0 0
          %801 = vmatprep.subr.bf16.mxu0 0
          %802 = vmatpush1.bf16.msra.mxu0 0
          %803 = vmatprep.subr.bf16.mxu0 0
          %804 = vmatpush1.bf16.msra.mxu0 0
          %805 = vmatprep.subr.bf16.mxu0 0
          %806 = vmatpush1.bf16.msra.mxu0 0
          %807 = vmatprep.subr.bf16.mxu0 0
          %808 = vmatpush1.bf16.msra.mxu0 0
          %809 = vmatprep.subr.bf16.mxu0 0
          %810 = vmatpush1.bf16.msra.mxu0 0
          %811 = vmatprep.subr.bf16.mxu0 0
          %812 = vmatpush1.bf16.msra.mxu0 0
          %813 = vmatprep.subr.bf16.mxu0 0
          %814 = vmatpush1.bf16.msra.mxu0 0
          %815 = vmatprep.subr.bf16.mxu0 0
          %816 = vmatpush1.bf16.msra.mxu0 0
          %817 = vmatprep.subr.bf16.mxu0 0
          %818 = vmatpush1.bf16.msra.mxu0 0
          %819 = vmatprep.subr.bf16.mxu0 0
          %820 = vmatpush1.bf16.msra.mxu0 0
          %821 = vmatprep.subr.bf16.mxu0 0
          %822 = vmatpush1.bf16.msra.mxu0 0
          %823 = vmatprep.mubr.bf16.mxu0 0
          %824 = vmatmul.mubr.bf16.gmra.mrb[0].mxu0 %v789
          %v825 = vpop.f32.mrb[0].mxu0
          %v826 = vadd.f32 0.0, %v825
          %v827 = vpop.f32.mrb[0].mxu0
          %v828 = vpop.f32.mrb[0].mxu0
          %v829 = vpop.f32.mrb[0].mxu0
          %830 = vdwg.mxu0
          %v831 = vadd.f32 %v665, %v826
          %v832 = vxor.u32 %v831, 2147483648
          %v833 = vmul.f32 %v832, 1.442695
          %v834 = vpow.pop %v833
          %v835 = vadd.f32 %v834, 1.0
          %v836 = vrcp.pop %v835
          %v837 = vmul.f32 1.0, %v836
          %v838 = vtanh.pop %v831
          %v839 = vmul.f32 %v837, %v772
          %841 = vrot.lane.b32.xlu0 %v838, 80
          %v842 = vpop.permute.xlu0 %841
          %v844 = vmul.f32 %v837, %v842
          %846 = vrot.lane.b32.xlu0 %v844, 16
          %v847 = vpop.permute.xlu0 %846
          %v849 = vadd.f32 %v839, %v847
          %v850 = vtanh.pop %v849
          %852 = vrot.lane.b32.xlu0 %v850, 16
          %v853 = vpop.permute.xlu0 %852
          %v855 = vmul.f32 %v837, %v853
          %857 = vrot.lane.b32.xlu0 %v855, 96
          %v858 = vpop.permute.xlu0 %857
          %s860 = scalar_lea.vmem %s538, 8 [#allocation15]
          %861 = vst.msk [vmem:[%s860] sm:$0xff] %vm614, %v858
          %v862 = vpack.c.bf16 %v855, %v855
          %864 = vrot.lane.b32.xlu0 %v862, 96
          %v865 = vpop.permute.xlu0 %864
          %v867 = vsel %vm614, %v865, 0
          %869 = vmatprep.subr.bf16.mxu0 0
          %870 = vmatpush1.bf16.msra.mxu0 %v705
          %871 = vmatprep.subr.bf16.mxu0 0
          %872 = vmatpush1.bf16.msra.mxu0 0
          %873 = vmatprep.subr.bf16.mxu0 0
          %874 = vmatpush1.bf16.msra.mxu0 0
          %875 = vmatprep.subr.bf16.mxu0 0
          %876 = vmatpush1.bf16.msra.mxu0 0
          %877 = vmatprep.subr.bf16.mxu0 0
          %878 = vmatpush1.bf16.msra.mxu0 0
          %879 = vmatprep.subr.bf16.mxu0 0
          %880 = vmatpush1.bf16.msra.mxu0 0
          %881 = vmatprep.subr.bf16.mxu0 0
          %882 = vmatpush1.bf16.msra.mxu0 0
          %883 = vmatprep.subr.bf16.mxu0 0
          %884 = vmatpush1.bf16.msra.mxu0 0
          %885 = vmatprep.subr.bf16.mxu0 0
          %886 = vmatpush1.bf16.msra.mxu0 0
          %887 = vmatprep.subr.bf16.mxu0 0
          %888 = vmatpush1.bf16.msra.mxu0 0
          %889 = vmatprep.subr.bf16.mxu0 0
          %890 = vmatpush1.bf16.msra.mxu0 0
          %891 = vmatprep.subr.bf16.mxu0 0
          %892 = vmatpush1.bf16.msra.mxu0 0
          %893 = vmatprep.subr.bf16.mxu0 0
          %894 = vmatpush1.bf16.msra.mxu0 0
          %895 = vmatprep.subr.bf16.mxu0 0
          %896 = vmatpush1.bf16.msra.mxu0 0
          %897 = vmatprep.subr.bf16.mxu0 0
          %898 = vmatpush1.bf16.msra.mxu0 0
          %899 = vmatprep.subr.bf16.mxu0 0
          %900 = vmatpush1.bf16.msra.mxu0 0
          %901 = vmatprep.mubr.bf16.mxu0 0
          %902 = vmatmul.mubr.bf16.gmra.mrb[0].mxu0 %v867
          %v903 = vpop.f32.mrb[0].mxu0
          %v904 = vadd.f32 0.0, %v903
          %v905 = vpop.f32.mrb[0].mxu0
          %v906 = vpop.f32.mrb[0].mxu0
          %v907 = vpop.f32.mrb[0].mxu0
          %908 = vdwg.mxu0
          %v909 = vadd.f32 %v670, %v904
          %v910 = vxor.u32 %v909, 2147483648
          %v911 = vmul.f32 %v910, 1.442695
          %v912 = vpow.pop %v911
          %v913 = vadd.f32 %v912, 1.0
          %v914 = vrcp.pop %v913
          %v915 = vmul.f32 1.0, %v914
          %v916 = vtanh.pop %v909
          %v917 = vmul.f32 %v915, %v849
          %919 = vrot.lane.b32.xlu0 %v916, 80
          %v920 = vpop.permute.xlu0 %919
          %v922 = vmul.f32 %v915, %v920
          %924 = vrot.lane.b32.xlu0 %v922, 16
          %v925 = vpop.permute.xlu0 %924
          %v927 = vadd.f32 %v917, %v925
          %v928 = vtanh.pop %v927
          %930 = vrot.lane.b32.xlu0 %v928, 16
          %v931 = vpop.permute.xlu0 %930
          %v933 = vmul.f32 %v915, %v931
          %935 = vrot.lane.b32.xlu0 %v933, 96
          %v936 = vpop.permute.xlu0 %935
          %s938 = scalar_lea.vmem %s538, 16 [#allocation15]
          %939 = vst.msk [vmem:[%s938] sm:$0xff] %vm614, %v936
          %v940 = vpack.c.bf16 %v933, %v933
          %942 = vrot.lane.b32.xlu0 %v940, 96
          %v943 = vpop.permute.xlu0 %942
          %v945 = vsel %vm614, %v943, 0
          %947 = vmatprep.subr.bf16.mxu0 0
          %948 = vmatpush1.bf16.msra.mxu0 %v705
          %949 = vmatprep.subr.bf16.mxu0 0
          %950 = vmatpush1.bf16.msra.mxu0 0
          %951 = vmatprep.subr.bf16.mxu0 0
          %952 = vmatpush1.bf16.msra.mxu0 0
          %953 = vmatprep.subr.bf16.mxu0 0
          %954 = vmatpush1.bf16.msra.mxu0 0
          %955 = vmatprep.subr.bf16.mxu0 0
          %956 = vmatpush1.bf16.msra.mxu0 0
          %957 = vmatprep.subr.bf16.mxu0 0
          %958 = vmatpush1.bf16.msra.mxu0 0
          %959 = vmatprep.subr.bf16.mxu0 0
          %960 = vmatpush1.bf16.msra.mxu0 0
          %961 = vmatprep.subr.bf16.mxu0 0
          %962 = vmatpush1.bf16.msra.mxu0 0
          %963 = vmatprep.subr.bf16.mxu0 0
          %964 = vmatpush1.bf16.msra.mxu0 0
          %965 = vmatprep.subr.bf16.mxu0 0
          %966 = vmatpush1.bf16.msra.mxu0 0
          %967 = vmatprep.subr.bf16.mxu0 0
          %968 = vmatpush1.bf16.msra.mxu0 0
          %969 = vmatprep.subr.bf16.mxu0 0
          %970 = vmatpush1.bf16.msra.mxu0 0
          %971 = vmatprep.subr.bf16.mxu0 0
          %972 = vmatpush1.bf16.msra.mxu0 0
          %973 = vmatprep.subr.bf16.mxu0 0
          %974 = vmatpush1.bf16.msra.mxu0 0
          %975 = vmatprep.subr.bf16.mxu0 0
          %976 = vmatpush1.bf16.msra.mxu0 0
          %977 = vmatprep.subr.bf16.mxu0 0
          %978 = vmatpush1.bf16.msra.mxu0 0
          %979 = vmatprep.mubr.bf16.mxu0 0
          %980 = vmatmul.mubr.bf16.gmra.mrb[0].mxu0 %v945
          %v981 = vpop.f32.mrb[0].mxu0
          %v982 = vadd.f32 0.0, %v981
          %v983 = vpop.f32.mrb[0].mxu0
          %v984 = vpop.f32.mrb[0].mxu0
          %v985 = vpop.f32.mrb[0].mxu0
          %986 = vdwg.mxu0
          %v987 = vadd.f32 %v673, %v982
          %v988 = vxor.u32 %v987, 2147483648
          %v989 = vmul.f32 %v988, 1.442695
          %v990 = vpow.pop %v989
          %v991 = vadd.f32 %v990, 1.0
          %v992 = vrcp.pop %v991
          %v993 = vmul.f32 1.0, %v992
          %v994 = vtanh.pop %v987
          %v995 = vmul.f32 %v993, %v927
          %997 = vrot.lane.b32.xlu0 %v994, 80
          %v998 = vpop.permute.xlu0 %997
          %v1000 = vmul.f32 %v993, %v998
          %1002 = vrot.lane.b32.xlu0 %v1000, 16
          %v1003 = vpop.permute.xlu0 %1002
          %v1005 = vadd.f32 %v995, %v1003
          %v1006 = vtanh.pop %v1005
          %1008 = vrot.lane.b32.xlu0 %v1006, 16
          %v1009 = vpop.permute.xlu0 %1008
          %v1011 = vmul.f32 %v993, %v1009
          %1013 = vrot.lane.b32.xlu0 %v1011, 96
          %v1014 = vpop.permute.xlu0 %1013
          %s1016 = scalar_lea.vmem %s538, 24 [#allocation15]
          %1017 = vst.msk [vmem:[%s1016] sm:$0xff] %vm614, %v1014
          %v1018 = vpack.c.bf16 %v1011, %v1011
          %1020 = vrot.lane.b32.xlu0 %v1018, 96
          %v1021 = vpop.permute.xlu0 %1020
          %v1023 = vsel %vm614, %v1021, 0
          %1025 = vmatprep.subr.bf16.mxu0 0
          %1026 = vmatpush1.bf16.msra.mxu0 %v705
          %1027 = vmatprep.subr.bf16.mxu0 0
          %1028 = vmatpush1.bf16.msra.mxu0 0
          %1029 = vmatprep.subr.bf16.mxu0 0
          %1030 = vmatpush1.bf16.msra.mxu0 0
          %1031 = vmatprep.subr.bf16.mxu0 0
          %1032 = vmatpush1.bf16.msra.mxu0 0
          %1033 = vmatprep.subr.bf16.mxu0 0
          %1034 = vmatpush1.bf16.msra.mxu0 0
          %1035 = vmatprep.subr.bf16.mxu0 0
          %1036 = vmatpush1.bf16.msra.mxu0 0
          %1037 = vmatprep.subr.bf16.mxu0 0
          %1038 = vmatpush1.bf16.msra.mxu0 0
          %1039 = vmatprep.subr.bf16.mxu0 0
          %1040 = vmatpush1.bf16.msra.mxu0 0
          %1041 = vmatprep.subr.bf16.mxu0 0
          %1042 = vmatpush1.bf16.msra.mxu0 0
          %1043 = vmatprep.subr.bf16.mxu0 0
          %1044 = vmatpush1.bf16.msra.mxu0 0
          %1045 = vmatprep.subr.bf16.mxu0 0
          %1046 = vmatpush1.bf16.msra.mxu0 0
          %1047 = vmatprep.subr.bf16.mxu0 0
          %1048 = vmatpush1.bf16.msra.mxu0 0
          %1049 = vmatprep.subr.bf16.mxu0 0
          %1050 = vmatpush1.bf16.msra.mxu0 0
          %1051 = vmatprep.subr.bf16.mxu0 0
          %1052 = vmatpush1.bf16.msra.mxu0 0
          %1053 = vmatprep.subr.bf16.mxu0 0
          %1054 = vmatpush1.bf16.msra.mxu0 0
          %1055 = vmatprep.subr.bf16.mxu0 0
          %1056 = vmatpush1.bf16.msra.mxu0 0
          %1057 = vmatprep.mubr.bf16.mxu0 0
          %1058 = vmatmul.mubr.bf16.gmra.mrb[0].mxu0 %v1023
          %v1059 = vpop.f32.mrb[0].mxu0
          %v1060 = vadd.f32 0.0, %v1059
          %v1061 = vpop.f32.mrb[0].mxu0
          %v1062 = vpop.f32.mrb[0].mxu0
          %v1063 = vpop.f32.mrb[0].mxu0
          %1064 = vdwg.mxu0
          %v1065 = vadd.f32 %v678, %v1060
          %v1066 = vxor.u32 %v1065, 2147483648
          %v1067 = vmul.f32 %v1066, 1.442695
          %v1068 = vpow.pop %v1067
          %v1069 = vadd.f32 %v1068, 1.0
          %v1070 = vrcp.pop %v1069
          %v1071 = vmul.f32 1.0, %v1070
          %v1072 = vtanh.pop %v1065
          %v1073 = vmul.f32 %v1071, %v1005
          %1075 = vrot.lane.b32.xlu0 %v1072, 80
          %v1076 = vpop.permute.xlu0 %1075
          %v1078 = vmul.f32 %v1071, %v1076
          %1080 = vrot.lane.b32.xlu0 %v1078, 16
          %v1081 = vpop.permute.xlu0 %1080
          %v1083 = vadd.f32 %v1073, %v1081
          %v1084 = vtanh.pop %v1083
          %1086 = vrot.lane.b32.xlu0 %v1084, 16
          %v1087 = vpop.permute.xlu0 %1086
          %v1089 = vmul.f32 %v1071, %v1087
          %1091 = vrot.lane.b32.xlu0 %v1089, 96
          %v1092 = vpop.permute.xlu0 %1091
          %s1094 = scalar_lea.vmem %s538, 32 [#allocation15]
          %1095 = vst.msk [vmem:[%s1094] sm:$0xff] %vm614, %v1092
          %v1096 = vpack.c.bf16 %v1089, %v1089
          %1098 = vrot.lane.b32.xlu0 %v1096, 96
          %v1099 = vpop.permute.xlu0 %1098
          %v1101 = vsel %vm614, %v1099, 0
          %1103 = vmatprep.subr.bf16.mxu0 0
          %1104 = vmatpush1.bf16.msra.mxu0 %v705
          %1105 = vmatprep.subr.bf16.mxu0 0
          %1106 = vmatpush1.bf16.msra.mxu0 0
          %1107 = vmatprep.subr.bf16.mxu0 0
          %1108 = vmatpush1.bf16.msra.mxu0 0
          %1109 = vmatprep.subr.bf16.mxu0 0
          %1110 = vmatpush1.bf16.msra.mxu0 0
          %1111 = vmatprep.subr.bf16.mxu0 0
          %1112 = vmatpush1.bf16.msra.mxu0 0
          %1113 = vmatprep.subr.bf16.mxu0 0
          %1114 = vmatpush1.bf16.msra.mxu0 0
          %1115 = vmatprep.subr.bf16.mxu0 0
          %1116 = vmatpush1.bf16.msra.mxu0 0
          %1117 = vmatprep.subr.bf16.mxu0 0
          %1118 = vmatpush1.bf16.msra.mxu0 0
          %1119 = vmatprep.subr.bf16.mxu0 0
          %1120 = vmatpush1.bf16.msra.mxu0 0
          %1121 = vmatprep.subr.bf16.mxu0 0
          %1122 = vmatpush1.bf16.msra.mxu0 0
          %1123 = vmatprep.subr.bf16.mxu0 0
          %1124 = vmatpush1.bf16.msra.mxu0 0
          %1125 = vmatprep.subr.bf16.mxu0 0
          %1126 = vmatpush1.bf16.msra.mxu0 0
          %1127 = vmatprep.subr.bf16.mxu0 0
          %1128 = vmatpush1.bf16.msra.mxu0 0
          %1129 = vmatprep.subr.bf16.mxu0 0
          %1130 = vmatpush1.bf16.msra.mxu0 0
          %1131 = vmatprep.subr.bf16.mxu0 0
          %1132 = vmatpush1.bf16.msra.mxu0 0
          %1133 = vmatprep.subr.bf16.mxu0 0
          %1134 = vmatpush1.bf16.msra.mxu0 0
          %1135 = vmatprep.mubr.bf16.mxu0 0
          %1136 = vmatmul.mubr.bf16.gmra.mrb[0].mxu0 %v1101
          %v1137 = vpop.f32.mrb[0].mxu0
          %v1138 = vadd.f32 0.0, %v1137
          %v1139 = vpop.f32.mrb[0].mxu0
          %v1140 = vpop.f32.mrb[0].mxu0
          %v1141 = vpop.f32.mrb[0].mxu0
          %1142 = vdwg.mxu0
          %v1143 = vadd.f32 %v681, %v1138
          %v1144 = vxor.u32 %v1143, 2147483648
          %v1145 = vmul.f32 %v1144, 1.442695
          %v1146 = vpow.pop %v1145
          %v1147 = vadd.f32 %v1146, 1.0
          %v1148 = vrcp.pop %v1147
          %v1149 = vmul.f32 1.0, %v1148
          %v1150 = vtanh.pop %v1143
          %v1151 = vmul.f32 %v1149, %v1083
          %1153 = vrot.lane.b32.xlu0 %v1150, 80
          %v1154 = vpop.permute.xlu0 %1153
          %v1156 = vmul.f32 %v1149, %v1154
          %1158 = vrot.lane.b32.xlu0 %v1156, 16
          %v1159 = vpop.permute.xlu0 %1158
          %v1161 = vadd.f32 %v1151, %v1159
          %v1162 = vtanh.pop %v1161
          %1164 = vrot.lane.b32.xlu0 %v1162, 16
          %v1165 = vpop.permute.xlu0 %1164
          %v1167 = vmul.f32 %v1149, %v1165
          %1169 = vrot.lane.b32.xlu0 %v1167, 96
          %v1170 = vpop.permute.xlu0 %1169
          %s1172 = scalar_lea.vmem %s538, 40 [#allocation15]
          %1173 = vst.msk [vmem:[%s1172] sm:$0xff] %vm614, %v1170
          %v1174 = vpack.c.bf16 %v1167, %v1167
          %1176 = vrot.lane.b32.xlu0 %v1174, 96
          %v1177 = vpop.permute.xlu0 %1176
          %v1179 = vsel %vm614, %v1177, 0
          %1181 = vmatprep.subr.bf16.mxu0 0
          %1182 = vmatpush1.bf16.msra.mxu0 %v705
          %1183 = vmatprep.subr.bf16.mxu0 0
          %1184 = vmatpush1.bf16.msra.mxu0 0
          %1185 = vmatprep.subr.bf16.mxu0 0
          %1186 = vmatpush1.bf16.msra.mxu0 0
          %1187 = vmatprep.subr.bf16.mxu0 0
          %1188 = vmatpush1.bf16.msra.mxu0 0
          %1189 = vmatprep.subr.bf16.mxu0 0
          %1190 = vmatpush1.bf16.msra.mxu0 0
          %1191 = vmatprep.subr.bf16.mxu0 0
          %1192 = vmatpush1.bf16.msra.mxu0 0
          %1193 = vmatprep.subr.bf16.mxu0 0
          %1194 = vmatpush1.bf16.msra.mxu0 0
          %1195 = vmatprep.subr.bf16.mxu0 0
          %1196 = vmatpush1.bf16.msra.mxu0 0
          %1197 = vmatprep.subr.bf16.mxu0 0
          %1198 = vmatpush1.bf16.msra.mxu0 0
          %1199 = vmatprep.subr.bf16.mxu0 0
          %1200 = vmatpush1.bf16.msra.mxu0 0
          %1201 = vmatprep.subr.bf16.mxu0 0
          %1202 = vmatpush1.bf16.msra.mxu0 0
          %1203 = vmatprep.subr.bf16.mxu0 0
          %1204 = vmatpush1.bf16.msra.mxu0 0
          %1205 = vmatprep.subr.bf16.mxu0 0
          %1206 = vmatpush1.bf16.msra.mxu0 0
          %1207 = vmatprep.subr.bf16.mxu0 0
          %1208 = vmatpush1.bf16.msra.mxu0 0
          %1209 = vmatprep.subr.bf16.mxu0 0
          %1210 = vmatpush1.bf16.msra.mxu0 0
          %1211 = vmatprep.subr.bf16.mxu0 0
          %1212 = vmatpush1.bf16.msra.mxu0 0
          %1213 = vmatprep.mubr.bf16.mxu0 0
          %1214 = vmatmul.mubr.bf16.gmra.mrb[0].mxu0 %v1179
          %v1215 = vpop.f32.mrb[0].mxu0
          %v1216 = vadd.f32 0.0, %v1215
          %v1217 = vpop.f32.mrb[0].mxu0
          %v1218 = vpop.f32.mrb[0].mxu0
          %v1219 = vpop.f32.mrb[0].mxu0
          %1220 = vdwg.mxu0
          %v1221 = vadd.f32 %v686, %v1216
          %v1222 = vxor.u32 %v1221, 2147483648
          %v1223 = vmul.f32 %v1222, 1.442695
          %v1224 = vpow.pop %v1223
          %v1225 = vadd.f32 %v1224, 1.0
          %v1226 = vrcp.pop %v1225
          %v1227 = vmul.f32 1.0, %v1226
          %v1228 = vtanh.pop %v1221
          %v1229 = vmul.f32 %v1227, %v1161
          %1231 = vrot.lane.b32.xlu0 %v1228, 80
          %v1232 = vpop.permute.xlu0 %1231
          %v1234 = vmul.f32 %v1227, %v1232
          %1236 = vrot.lane.b32.xlu0 %v1234, 16
          %v1237 = vpop.permute.xlu0 %1236
          %v1239 = vadd.f32 %v1229, %v1237
          %v1240 = vtanh.pop %v1239
          %1242 = vrot.lane.b32.xlu0 %v1240, 16
          %v1243 = vpop.permute.xlu0 %1242
          %v1245 = vmul.f32 %v1227, %v1243
          %1247 = vrot.lane.b32.xlu0 %v1245, 96
          %v1248 = vpop.permute.xlu0 %1247
          %s1250 = scalar_lea.vmem %s538, 48 [#allocation15]
          %1251 = vst.msk [vmem:[%s1250] sm:$0xff] %vm614, %v1248
          %v1252 = vpack.c.bf16 %v1245, %v1245
          %1254 = vrot.lane.b32.xlu0 %v1252, 96
          %v1255 = vpop.permute.xlu0 %1254
          %v1257 = vsel %vm614, %v1255, 0
          %1259 = vmatprep.subr.bf16.mxu0 0
          %1260 = vmatpush1.bf16.msra.mxu0 %v705
          %1261 = vmatprep.subr.bf16.mxu0 0
          %1262 = vmatpush1.bf16.msra.mxu0 0
          %1263 = vmatprep.subr.bf16.mxu0 0
          %1264 = vmatpush1.bf16.msra.mxu0 0
          %1265 = vmatprep.subr.bf16.mxu0 0
          %1266 = vmatpush1.bf16.msra.mxu0 0
          %1267 = vmatprep.subr.bf16.mxu0 0
          %1268 = vmatpush1.bf16.msra.mxu0 0
          %1269 = vmatprep.subr.bf16.mxu0 0
          %1270 = vmatpush1.bf16.msra.mxu0 0
          %1271 = vmatprep.subr.bf16.mxu0 0
          %1272 = vmatpush1.bf16.msra.mxu0 0
          %1273 = vmatprep.subr.bf16.mxu0 0
          %1274 = vmatpush1.bf16.msra.mxu0 0
          %1275 = vmatprep.subr.bf16.mxu0 0
          %1276 = vmatpush1.bf16.msra.mxu0 0
          %1277 = vmatprep.subr.bf16.mxu0 0
          %1278 = vmatpush1.bf16.msra.mxu0 0
          %1279 = vmatprep.subr.bf16.mxu0 0
          %1280 = vmatpush1.bf16.msra.mxu0 0
          %1281 = vmatprep.subr.bf16.mxu0 0
          %1282 = vmatpush1.bf16.msra.mxu0 0
          %1283 = vmatprep.subr.bf16.mxu0 0
          %1284 = vmatpush1.bf16.msra.mxu0 0
          %1285 = vmatprep.subr.bf16.mxu0 0
          %1286 = vmatpush1.bf16.msra.mxu0 0
          %1287 = vmatprep.subr.bf16.mxu0 0
          %1288 = vmatpush1.bf16.msra.mxu0 0
          %1289 = vmatprep.subr.bf16.mxu0 0
          %1290 = vmatpush1.bf16.msra.mxu0 0
          %1291 = vmatprep.mubr.bf16.mxu0 0
          %1292 = vmatmul.mubr.bf16.gmra.mrb[0].mxu0 %v1257
          %v1293 = vpop.f32.mrb[0].mxu0
          %v1294 = vadd.f32 0.0, %v1293
          %v1295 = vpop.f32.mrb[0].mxu0
          %v1296 = vpop.f32.mrb[0].mxu0
          %v1297 = vpop.f32.mrb[0].mxu0
          %1298 = vdwg.mxu0
          %v1299 = vadd.f32 %v689, %v1294
          %v1300 = vxor.u32 %v1299, 2147483648
          %v1301 = vmul.f32 %v1300, 1.442695
          %v1302 = vpow.pop %v1301
          %v1303 = vadd.f32 %v1302, 1.0
          %v1304 = vrcp.pop %v1303
          %v1305 = vmul.f32 1.0, %v1304
          %v1306 = vtanh.pop %v1299
          %v1307 = vmul.f32 %v1305, %v1239
          %1309 = vrot.lane.b32.xlu0 %v1306, 80
          %v1310 = vpop.permute.xlu0 %1309
          %v1312 = vmul.f32 %v1305, %v1310
          %1314 = vrot.lane.b32.xlu0 %v1312, 16
          %v1315 = vpop.permute.xlu0 %1314
          %v1317 = vadd.f32 %v1307, %v1315
          %v1318 = vtanh.pop %v1317
          %1320 = vrot.lane.b32.xlu0 %v1318, 16
          %v1321 = vpop.permute.xlu0 %1320
          %v1323 = vmul.f32 %v1305, %v1321
          %1325 = vrot.lane.b32.xlu0 %v1323, 96
          %v1326 = vpop.permute.xlu0 %1325
          %s1328 = scalar_lea.vmem %s538, 56 [#allocation15]
          %1329 = vst.msk [vmem:[%s1328] sm:$0xff] %vm614, %v1326
          %1330 = vst.msk [vmem:[#allocation2] sm:$0xff] %vm614, %v1326
          %1332 = vrot.lane.b32.xlu0 %v1317, 112
          %v1333 = vpop.permute.xlu0 %1332
          %1335 = vst.msk [vmem:[#allocation3] sm:$0xff] %vm614, %v1333
        $region76: #{build_model_mols_forward.6} parent=43 // pred_fallthru
          _
        %p1336 = scmp.eq.s32.totalorder %s42, 1
        // Predicated region
        $region77: #{build_model_mols_forward.6} parent=43 // pred_check
          %p1337 = pneg %p1336
        $region78: #{build_model_mols_forward.6} parent=43 // pred_check_branch
          %1339 = sbr.rel (%p1337) target = $region80
        $region79: #{build_model_mols_forward.6} parent=43 // pred_region
          %v1340 = vld [vmem:[#allocation2] sm:$0xff]
          %v1341 = vld [vmem:[#allocation3] sm:$0xff]
          %v1342 = vpack.c.bf16 %v1340, %v1340
          %v1345 = vunpack.c.l.b16 %v692
          %v1346 = vunpack.c.l.b16 %v693
          %v1347 = vpack.c.b16 %v1346, %v1345
          %v1350 = vsel %vm614, %v1342, 0
          %1352 = vmatprep.subr.bf16.mxu0 0
          %1353 = vmatpush1.bf16.msra.mxu0 %v1347
          %1354 = vmatprep.subr.bf16.mxu0 0
          %1355 = vmatpush1.bf16.msra.mxu0 0
          %1356 = vmatprep.subr.bf16.mxu0 0
          %1357 = vmatpush1.bf16.msra.mxu0 0
          %1358 = vmatprep.subr.bf16.mxu0 0
          %1359 = vmatpush1.bf16.msra.mxu0 0
          %1360 = vmatprep.subr.bf16.mxu0 0
          %1361 = vmatpush1.bf16.msra.mxu0 0
          %1362 = vmatprep.subr.bf16.mxu0 0
          %1363 = vmatpush1.bf16.msra.mxu0 0
          %1364 = vmatprep.subr.bf16.mxu0 0
          %1365 = vmatpush1.bf16.msra.mxu0 0
          %1366 = vmatprep.subr.bf16.mxu0 0
          %1367 = vmatpush1.bf16.msra.mxu0 0
          %1368 = vmatprep.subr.bf16.mxu0 0
          %1369 = vmatpush1.bf16.msra.mxu0 0
          %1370 = vmatprep.subr.bf16.mxu0 0
          %1371 = vmatpush1.bf16.msra.mxu0 0
          %1372 = vmatprep.subr.bf16.mxu0 0
          %1373 = vmatpush1.bf16.msra.mxu0 0
          %1374 = vmatprep.subr.bf16.mxu0 0
          %1375 = vmatpush1.bf16.msra.mxu0 0
          %1376 = vmatprep.subr.bf16.mxu0 0
          %1377 = vmatpush1.bf16.msra.mxu0 0
          %1378 = vmatprep.subr.bf16.mxu0 0
          %1379 = vmatpush1.bf16.msra.mxu0 0
          %1380 = vmatprep.subr.bf16.mxu0 0
          %1381 = vmatpush1.bf16.msra.mxu0 0
          %1382 = vmatprep.subr.bf16.mxu0 0
          %1383 = vmatpush1.bf16.msra.mxu0 0
          %1384 = vmatprep.mubr.bf16.mxu0 0
          %1385 = vmatmul.mubr.bf16.gmra.mrb[0].mxu0 %v1350
          %v1386 = vpop.f32.mrb[0].mxu0
          %v1387 = vadd.f32 0.0, %v1386
          %v1388 = vpop.f32.mrb[0].mxu0
          %v1389 = vpop.f32.mrb[0].mxu0
          %v1390 = vpop.f32.mrb[0].mxu0
          %1391 = vdwg.mxu0
          %v1392 = vadd.f32 %v689, %v1387
          %v1393 = vxor.u32 %v1392, 2147483648
          %v1394 = vmul.f32 %v1393, 1.442695
          %v1395 = vpow.pop %v1394
          %v1396 = vadd.f32 %v1395, 1.0
          %v1397 = vrcp.pop %v1396
          %v1398 = vmul.f32 1.0, %v1397
          %v1399 = vtanh.pop %v1392
          %1401 = vrot.lane.b32.xlu0 %v1341, 16
          %v1402 = vpop.permute.xlu0 %1401
          %v1404 = vmul.f32 %v1398, %v1402
          %1406 = vrot.lane.b32.xlu0 %v1399, 80
          %v1407 = vpop.permute.xlu0 %1406
          %v1409 = vmul.f32 %v1398, %v1407
          %1411 = vrot.lane.b32.xlu0 %v1409, 16
          %v1412 = vpop.permute.xlu0 %1411
          %v1414 = vadd.f32 %v1404, %v1412
          %v1415 = vtanh.pop %v1414
          %1417 = vrot.lane.b32.xlu0 %v1415, 16
          %v1418 = vpop.permute.xlu0 %1417
          %v1420 = vmul.f32 %v1398, %v1418
          %1422 = vrot.lane.b32.xlu0 %v1420, 96
          %v1423 = vpop.permute.xlu0 %1422
          %s1425 = scalar_lea.vmem %s538, 56 [#allocation15]
          %1426 = vst.msk [vmem:[%s1425] sm:$0xff] %vm614, %v1423
          %v1427 = vpack.c.bf16 %v1420, %v1420
          %1429 = vrot.lane.b32.xlu0 %v1427, 96
          %v1430 = vpop.permute.xlu0 %1429
          %v1432 = vsel %vm614, %v1430, 0
          %1434 = vmatprep.subr.bf16.mxu0 0
          %1435 = vmatpush1.bf16.msra.mxu0 %v1347
          %1436 = vmatprep.subr.bf16.mxu0 0
          %1437 = vmatpush1.bf16.msra.mxu0 0
          %1438 = vmatprep.subr.bf16.mxu0 0
          %1439 = vmatpush1.bf16.msra.mxu0 0
          %1440 = vmatprep.subr.bf16.mxu0 0
          %1441 = vmatpush1.bf16.msra.mxu0 0
          %1442 = vmatprep.subr.bf16.mxu0 0
          %1443 = vmatpush1.bf16.msra.mxu0 0
          %1444 = vmatprep.subr.bf16.mxu0 0
          %1445 = vmatpush1.bf16.msra.mxu0 0
          %1446 = vmatprep.subr.bf16.mxu0 0
          %1447 = vmatpush1.bf16.msra.mxu0 0
          %1448 = vmatprep.subr.bf16.mxu0 0
          %1449 = vmatpush1.bf16.msra.mxu0 0
          %1450 = vmatprep.subr.bf16.mxu0 0
          %1451 = vmatpush1.bf16.msra.mxu0 0
          %1452 = vmatprep.subr.bf16.mxu0 0
          %1453 = vmatpush1.bf16.msra.mxu0 0
          %1454 = vmatprep.subr.bf16.mxu0 0
          %1455 = vmatpush1.bf16.msra.mxu0 0
          %1456 = vmatprep.subr.bf16.mxu0 0
          %1457 = vmatpush1.bf16.msra.mxu0 0
          %1458 = vmatprep.subr.bf16.mxu0 0
          %1459 = vmatpush1.bf16.msra.mxu0 0
          %1460 = vmatprep.subr.bf16.mxu0 0
          %1461 = vmatpush1.bf16.msra.mxu0 0
          %1462 = vmatprep.subr.bf16.mxu0 0
          %1463 = vmatpush1.bf16.msra.mxu0 0
          %1464 = vmatprep.subr.bf16.mxu0 0
          %1465 = vmatpush1.bf16.msra.mxu0 0
          %1466 = vmatprep.mubr.bf16.mxu0 0
          %1467 = vmatmul.mubr.bf16.gmra.mrb[0].mxu0 %v1432
          %v1468 = vpop.f32.mrb[0].mxu0
          %v1469 = vadd.f32 0.0, %v1468
          %v1470 = vpop.f32.mrb[0].mxu0
          %v1471 = vpop.f32.mrb[0].mxu0
          %v1472 = vpop.f32.mrb[0].mxu0
          %1473 = vdwg.mxu0
          %v1474 = vadd.f32 %v686, %v1469
          %v1475 = vxor.u32 %v1474, 2147483648
          %v1476 = vmul.f32 %v1475, 1.442695
          %v1477 = vpow.pop %v1476
          %v1478 = vadd.f32 %v1477, 1.0
          %v1479 = vrcp.pop %v1478
          %v1480 = vmul.f32 1.0, %v1479
          %v1481 = vtanh.pop %v1474
          %v1482 = vmul.f32 %v1480, %v1414
          %1484 = vrot.lane.b32.xlu0 %v1481, 80
          %v1485 = vpop.permute.xlu0 %1484
          %v1487 = vmul.f32 %v1480, %v1485
          %1489 = vrot.lane.b32.xlu0 %v1487, 16
          %v1490 = vpop.permute.xlu0 %1489
          %v1492 = vadd.f32 %v1482, %v1490
          %v1493 = vtanh.pop %v1492
          %1495 = vrot.lane.b32.xlu0 %v1493, 16
          %v1496 = vpop.permute.xlu0 %1495
          %v1498 = vmul.f32 %v1480, %v1496
          %1500 = vrot.lane.b32.xlu0 %v1498, 96
          %v1501 = vpop.permute.xlu0 %1500
          %s1503 = scalar_lea.vmem %s538, 48 [#allocation15]
          %1504 = vst.msk [vmem:[%s1503] sm:$0xff] %vm614, %v1501
          %v1505 = vpack.c.bf16 %v1498, %v1498
          %1507 = vrot.lane.b32.xlu0 %v1505, 96
          %v1508 = vpop.permute.xlu0 %1507
          %v1510 = vsel %vm614, %v1508, 0
          %1512 = vmatprep.subr.bf16.mxu0 0
          %1513 = vmatpush1.bf16.msra.mxu0 %v1347
          %1514 = vmatprep.subr.bf16.mxu0 0
          %1515 = vmatpush1.bf16.msra.mxu0 0
          %1516 = vmatprep.subr.bf16.mxu0 0
          %1517 = vmatpush1.bf16.msra.mxu0 0
          %1518 = vmatprep.subr.bf16.mxu0 0
          %1519 = vmatpush1.bf16.msra.mxu0 0
          %1520 = vmatprep.subr.bf16.mxu0 0
          %1521 = vmatpush1.bf16.msra.mxu0 0
          %1522 = vmatprep.subr.bf16.mxu0 0
          %1523 = vmatpush1.bf16.msra.mxu0 0
          %1524 = vmatprep.subr.bf16.mxu0 0
          %1525 = vmatpush1.bf16.msra.mxu0 0
          %1526 = vmatprep.subr.bf16.mxu0 0
          %1527 = vmatpush1.bf16.msra.mxu0 0
          %1528 = vmatprep.subr.bf16.mxu0 0
          %1529 = vmatpush1.bf16.msra.mxu0 0
          %1530 = vmatprep.subr.bf16.mxu0 0
          %1531 = vmatpush1.bf16.msra.mxu0 0
          %1532 = vmatprep.subr.bf16.mxu0 0
          %1533 = vmatpush1.bf16.msra.mxu0 0
          %1534 = vmatprep.subr.bf16.mxu0 0
          %1535 = vmatpush1.bf16.msra.mxu0 0
          %1536 = vmatprep.subr.bf16.mxu0 0
          %1537 = vmatpush1.bf16.msra.mxu0 0
          %1538 = vmatprep.subr.bf16.mxu0 0
          %1539 = vmatpush1.bf16.msra.mxu0 0
          %1540 = vmatprep.subr.bf16.mxu0 0
          %1541 = vmatpush1.bf16.msra.mxu0 0
          %1542 = vmatprep.subr.bf16.mxu0 0
          %1543 = vmatpush1.bf16.msra.mxu0 0
          %1544 = vmatprep.mubr.bf16.mxu0 0
          %1545 = vmatmul.mubr.bf16.gmra.mrb[0].mxu0 %v1510
          %v1546 = vpop.f32.mrb[0].mxu0
          %v1547 = vadd.f32 0.0, %v1546
          %v1548 = vpop.f32.mrb[0].mxu0
          %v1549 = vpop.f32.mrb[0].mxu0
          %v1550 = vpop.f32.mrb[0].mxu0
          %1551 = vdwg.mxu0
          %v1552 = vadd.f32 %v681, %v1547
          %v1553 = vxor.u32 %v1552, 2147483648
          %v1554 = vmul.f32 %v1553, 1.442695
          %v1555 = vpow.pop %v1554
          %v1556 = vadd.f32 %v1555, 1.0
          %v1557 = vrcp.pop %v1556
          %v1558 = vmul.f32 1.0, %v1557
          %v1559 = vtanh.pop %v1552
          %v1560 = vmul.f32 %v1558, %v1492
          %1562 = vrot.lane.b32.xlu0 %v1559, 80
          %v1563 = vpop.permute.xlu0 %1562
          %v1565 = vmul.f32 %v1558, %v1563
          %1567 = vrot.lane.b32.xlu0 %v1565, 16
          %v1568 = vpop.permute.xlu0 %1567
          %v1570 = vadd.f32 %v1560, %v1568
          %v1571 = vtanh.pop %v1570
          %1573 = vrot.lane.b32.xlu0 %v1571, 16
          %v1574 = vpop.permute.xlu0 %1573
          %v1576 = vmul.f32 %v1558, %v1574
          %1578 = vrot.lane.b32.xlu0 %v1576, 96
          %v1579 = vpop.permute.xlu0 %1578
          %s1581 = scalar_lea.vmem %s538, 40 [#allocation15]
          %1582 = vst.msk [vmem:[%s1581] sm:$0xff] %vm614, %v1579
          %v1583 = vpack.c.bf16 %v1576, %v1576
          %1585 = vrot.lane.b32.xlu0 %v1583, 96
          %v1586 = vpop.permute.xlu0 %1585
          %v1588 = vsel %vm614, %v1586, 0
          %1590 = vmatprep.subr.bf16.mxu0 0
          %1591 = vmatpush1.bf16.msra.mxu0 %v1347
          %1592 = vmatprep.subr.bf16.mxu0 0
          %1593 = vmatpush1.bf16.msra.mxu0 0
          %1594 = vmatprep.subr.bf16.mxu0 0
          %1595 = vmatpush1.bf16.msra.mxu0 0
          %1596 = vmatprep.subr.bf16.mxu0 0
          %1597 = vmatpush1.bf16.msra.mxu0 0
          %1598 = vmatprep.subr.bf16.mxu0 0
          %1599 = vmatpush1.bf16.msra.mxu0 0
          %1600 = vmatprep.subr.bf16.mxu0 0
          %1601 = vmatpush1.bf16.msra.mxu0 0
          %1602 = vmatprep.subr.bf16.mxu0 0
          %1603 = vmatpush1.bf16.msra.mxu0 0
          %1604 = vmatprep.subr.bf16.mxu0 0
          %1605 = vmatpush1.bf16.msra.mxu0 0
          %1606 = vmatprep.subr.bf16.mxu0 0
          %1607 = vmatpush1.bf16.msra.mxu0 0
          %1608 = vmatprep.subr.bf16.mxu0 0
          %1609 = vmatpush1.bf16.msra.mxu0 0
          %1610 = vmatprep.subr.bf16.mxu0 0
          %1611 = vmatpush1.bf16.msra.mxu0 0
          %1612 = vmatprep.subr.bf16.mxu0 0
          %1613 = vmatpush1.bf16.msra.mxu0 0
          %1614 = vmatprep.subr.bf16.mxu0 0
          %1615 = vmatpush1.bf16.msra.mxu0 0
          %1616 = vmatprep.subr.bf16.mxu0 0
          %1617 = vmatpush1.bf16.msra.mxu0 0
          %1618 = vmatprep.subr.bf16.mxu0 0
          %1619 = vmatpush1.bf16.msra.mxu0 0
          %1620 = vmatprep.subr.bf16.mxu0 0
          %1621 = vmatpush1.bf16.msra.mxu0 0
          %1622 = vmatprep.mubr.bf16.mxu0 0
          %1623 = vmatmul.mubr.bf16.gmra.mrb[0].mxu0 %v1588
          %v1624 = vpop.f32.mrb[0].mxu0
          %v1625 = vadd.f32 0.0, %v1624
          %v1626 = vpop.f32.mrb[0].mxu0
          %v1627 = vpop.f32.mrb[0].mxu0
          %v1628 = vpop.f32.mrb[0].mxu0
          %1629 = vdwg.mxu0
          %v1630 = vadd.f32 %v678, %v1625
          %v1631 = vxor.u32 %v1630, 2147483648
          %v1632 = vmul.f32 %v1631, 1.442695
          %v1633 = vpow.pop %v1632
          %v1634 = vadd.f32 %v1633, 1.0
          %v1635 = vrcp.pop %v1634
          %v1636 = vmul.f32 1.0, %v1635
          %v1637 = vtanh.pop %v1630
          %v1638 = vmul.f32 %v1636, %v1570
          %1640 = vrot.lane.b32.xlu0 %v1637, 80
          %v1641 = vpop.permute.xlu0 %1640
          %v1643 = vmul.f32 %v1636, %v1641
          %1645 = vrot.lane.b32.xlu0 %v1643, 16
          %v1646 = vpop.permute.xlu0 %1645
          %v1648 = vadd.f32 %v1638, %v1646
          %v1649 = vtanh.pop %v1648
          %1651 = vrot.lane.b32.xlu0 %v1649, 16
          %v1652 = vpop.permute.xlu0 %1651
          %v1654 = vmul.f32 %v1636, %v1652
          %1656 = vrot.lane.b32.xlu0 %v1654, 96
          %v1657 = vpop.permute.xlu0 %1656
          %s1659 = scalar_lea.vmem %s538, 32 [#allocation15]
          %1660 = vst.msk [vmem:[%s1659] sm:$0xff] %vm614, %v1657
          %v1661 = vpack.c.bf16 %v1654, %v1654
          %1663 = vrot.lane.b32.xlu0 %v1661, 96
          %v1664 = vpop.permute.xlu0 %1663
          %v1666 = vsel %vm614, %v1664, 0
          %1668 = vmatprep.subr.bf16.mxu0 0
          %1669 = vmatpush1.bf16.msra.mxu0 %v1347
          %1670 = vmatprep.subr.bf16.mxu0 0
          %1671 = vmatpush1.bf16.msra.mxu0 0
          %1672 = vmatprep.subr.bf16.mxu0 0
          %1673 = vmatpush1.bf16.msra.mxu0 0
          %1674 = vmatprep.subr.bf16.mxu0 0
          %1675 = vmatpush1.bf16.msra.mxu0 0
          %1676 = vmatprep.subr.bf16.mxu0 0
          %1677 = vmatpush1.bf16.msra.mxu0 0
          %1678 = vmatprep.subr.bf16.mxu0 0
          %1679 = vmatpush1.bf16.msra.mxu0 0
          %1680 = vmatprep.subr.bf16.mxu0 0
          %1681 = vmatpush1.bf16.msra.mxu0 0
          %1682 = vmatprep.subr.bf16.mxu0 0
          %1683 = vmatpush1.bf16.msra.mxu0 0
          %1684 = vmatprep.subr.bf16.mxu0 0
          %1685 = vmatpush1.bf16.msra.mxu0 0
          %1686 = vmatprep.subr.bf16.mxu0 0
          %1687 = vmatpush1.bf16.msra.mxu0 0
          %1688 = vmatprep.subr.bf16.mxu0 0
          %1689 = vmatpush1.bf16.msra.mxu0 0
          %1690 = vmatprep.subr.bf16.mxu0 0
          %1691 = vmatpush1.bf16.msra.mxu0 0
          %1692 = vmatprep.subr.bf16.mxu0 0
          %1693 = vmatpush1.bf16.msra.mxu0 0
          %1694 = vmatprep.subr.bf16.mxu0 0
          %1695 = vmatpush1.bf16.msra.mxu0 0
          %1696 = vmatprep.subr.bf16.mxu0 0
          %1697 = vmatpush1.bf16.msra.mxu0 0
          %1698 = vmatprep.subr.bf16.mxu0 0
          %1699 = vmatpush1.bf16.msra.mxu0 0
          %1700 = vmatprep.mubr.bf16.mxu0 0
          %1701 = vmatmul.mubr.bf16.gmra.mrb[0].mxu0 %v1666
          %v1702 = vpop.f32.mrb[0].mxu0
          %v1703 = vadd.f32 0.0, %v1702
          %v1704 = vpop.f32.mrb[0].mxu0
          %v1705 = vpop.f32.mrb[0].mxu0
          %v1706 = vpop.f32.mrb[0].mxu0
          %1707 = vdwg.mxu0
          %v1708 = vadd.f32 %v673, %v1703
          %v1709 = vxor.u32 %v1708, 2147483648
          %v1710 = vmul.f32 %v1709, 1.442695
          %v1711 = vpow.pop %v1710
          %v1712 = vadd.f32 %v1711, 1.0
          %v1713 = vrcp.pop %v1712
          %v1714 = vmul.f32 1.0, %v1713
          %v1715 = vtanh.pop %v1708
          %v1716 = vmul.f32 %v1714, %v1648
          %1718 = vrot.lane.b32.xlu0 %v1715, 80
          %v1719 = vpop.permute.xlu0 %1718
          %v1721 = vmul.f32 %v1714, %v1719
          %1723 = vrot.lane.b32.xlu0 %v1721, 16
          %v1724 = vpop.permute.xlu0 %1723
          %v1726 = vadd.f32 %v1716, %v1724
          %v1727 = vtanh.pop %v1726
          %1729 = vrot.lane.b32.xlu0 %v1727, 16
          %v1730 = vpop.permute.xlu0 %1729
          %v1732 = vmul.f32 %v1714, %v1730
          %1734 = vrot.lane.b32.xlu0 %v1732, 96
          %v1735 = vpop.permute.xlu0 %1734
          %s1737 = scalar_lea.vmem %s538, 24 [#allocation15]
          %1738 = vst.msk [vmem:[%s1737] sm:$0xff] %vm614, %v1735
          %v1739 = vpack.c.bf16 %v1732, %v1732
          %1741 = vrot.lane.b32.xlu0 %v1739, 96
          %v1742 = vpop.permute.xlu0 %1741
          %v1744 = vsel %vm614, %v1742, 0
          %1746 = vmatprep.subr.bf16.mxu0 0
          %1747 = vmatpush1.bf16.msra.mxu0 %v1347
          %1748 = vmatprep.subr.bf16.mxu0 0
          %1749 = vmatpush1.bf16.msra.mxu0 0
          %1750 = vmatprep.subr.bf16.mxu0 0
          %1751 = vmatpush1.bf16.msra.mxu0 0
          %1752 = vmatprep.subr.bf16.mxu0 0
          %1753 = vmatpush1.bf16.msra.mxu0 0
          %1754 = vmatprep.subr.bf16.mxu0 0
          %1755 = vmatpush1.bf16.msra.mxu0 0
          %1756 = vmatprep.subr.bf16.mxu0 0
          %1757 = vmatpush1.bf16.msra.mxu0 0
          %1758 = vmatprep.subr.bf16.mxu0 0
          %1759 = vmatpush1.bf16.msra.mxu0 0
          %1760 = vmatprep.subr.bf16.mxu0 0
          %1761 = vmatpush1.bf16.msra.mxu0 0
          %1762 = vmatprep.subr.bf16.mxu0 0
          %1763 = vmatpush1.bf16.msra.mxu0 0
          %1764 = vmatprep.subr.bf16.mxu0 0
          %1765 = vmatpush1.bf16.msra.mxu0 0
          %1766 = vmatprep.subr.bf16.mxu0 0
          %1767 = vmatpush1.bf16.msra.mxu0 0
          %1768 = vmatprep.subr.bf16.mxu0 0
          %1769 = vmatpush1.bf16.msra.mxu0 0
          %1770 = vmatprep.subr.bf16.mxu0 0
          %1771 = vmatpush1.bf16.msra.mxu0 0
          %1772 = vmatprep.subr.bf16.mxu0 0
          %1773 = vmatpush1.bf16.msra.mxu0 0
          %1774 = vmatprep.subr.bf16.mxu0 0
          %1775 = vmatpush1.bf16.msra.mxu0 0
          %1776 = vmatprep.subr.bf16.mxu0 0
          %1777 = vmatpush1.bf16.msra.mxu0 0
          %1778 = vmatprep.mubr.bf16.mxu0 0
          %1779 = vmatmul.mubr.bf16.gmra.mrb[0].mxu0 %v1744
          %v1780 = vpop.f32.mrb[0].mxu0
          %v1781 = vadd.f32 0.0, %v1780
          %v1782 = vpop.f32.mrb[0].mxu0
          %v1783 = vpop.f32.mrb[0].mxu0
          %v1784 = vpop.f32.mrb[0].mxu0
          %1785 = vdwg.mxu0
          %v1786 = vadd.f32 %v670, %v1781
          %v1787 = vxor.u32 %v1786, 2147483648
          %v1788 = vmul.f32 %v1787, 1.442695
          %v1789 = vpow.pop %v1788
          %v1790 = vadd.f32 %v1789, 1.0
          %v1791 = vrcp.pop %v1790
          %v1792 = vmul.f32 1.0, %v1791
          %v1793 = vtanh.pop %v1786
          %v1794 = vmul.f32 %v1792, %v1726
          %1796 = vrot.lane.b32.xlu0 %v1793, 80
          %v1797 = vpop.permute.xlu0 %1796
          %v1799 = vmul.f32 %v1792, %v1797
          %1801 = vrot.lane.b32.xlu0 %v1799, 16
          %v1802 = vpop.permute.xlu0 %1801
          %v1804 = vadd.f32 %v1794, %v1802
          %v1805 = vtanh.pop %v1804
          %1807 = vrot.lane.b32.xlu0 %v1805, 16
          %v1808 = vpop.permute.xlu0 %1807
          %v1810 = vmul.f32 %v1792, %v1808
          %1812 = vrot.lane.b32.xlu0 %v1810, 96
          %v1813 = vpop.permute.xlu0 %1812
          %s1815 = scalar_lea.vmem %s538, 16 [#allocation15]
          %1816 = vst.msk [vmem:[%s1815] sm:$0xff] %vm614, %v1813
          %v1817 = vpack.c.bf16 %v1810, %v1810
          %1819 = vrot.lane.b32.xlu0 %v1817, 96
          %v1820 = vpop.permute.xlu0 %1819
          %v1822 = vsel %vm614, %v1820, 0
          %1824 = vmatprep.subr.bf16.mxu0 0
          %1825 = vmatpush1.bf16.msra.mxu0 %v1347
          %1826 = vmatprep.subr.bf16.mxu0 0
          %1827 = vmatpush1.bf16.msra.mxu0 0
          %1828 = vmatprep.subr.bf16.mxu0 0
          %1829 = vmatpush1.bf16.msra.mxu0 0
          %1830 = vmatprep.subr.bf16.mxu0 0
          %1831 = vmatpush1.bf16.msra.mxu0 0
          %1832 = vmatprep.subr.bf16.mxu0 0
          %1833 = vmatpush1.bf16.msra.mxu0 0
          %1834 = vmatprep.subr.bf16.mxu0 0
          %1835 = vmatpush1.bf16.msra.mxu0 0
          %1836 = vmatprep.subr.bf16.mxu0 0
          %1837 = vmatpush1.bf16.msra.mxu0 0
          %1838 = vmatprep.subr.bf16.mxu0 0
          %1839 = vmatpush1.bf16.msra.mxu0 0
          %1840 = vmatprep.subr.bf16.mxu0 0
          %1841 = vmatpush1.bf16.msra.mxu0 0
          %1842 = vmatprep.subr.bf16.mxu0 0
          %1843 = vmatpush1.bf16.msra.mxu0 0
          %1844 = vmatprep.subr.bf16.mxu0 0
          %1845 = vmatpush1.bf16.msra.mxu0 0
          %1846 = vmatprep.subr.bf16.mxu0 0
          %1847 = vmatpush1.bf16.msra.mxu0 0
          %1848 = vmatprep.subr.bf16.mxu0 0
          %1849 = vmatpush1.bf16.msra.mxu0 0
          %1850 = vmatprep.subr.bf16.mxu0 0
          %1851 = vmatpush1.bf16.msra.mxu0 0
          %1852 = vmatprep.subr.bf16.mxu0 0
          %1853 = vmatpush1.bf16.msra.mxu0 0
          %1854 = vmatprep.subr.bf16.mxu0 0
          %1855 = vmatpush1.bf16.msra.mxu0 0
          %1856 = vmatprep.mubr.bf16.mxu0 0
          %1857 = vmatmul.mubr.bf16.gmra.mrb[0].mxu0 %v1822
          %v1858 = vpop.f32.mrb[0].mxu0
          %v1859 = vadd.f32 0.0, %v1858
          %v1860 = vpop.f32.mrb[0].mxu0
          %v1861 = vpop.f32.mrb[0].mxu0
          %v1862 = vpop.f32.mrb[0].mxu0
          %1863 = vdwg.mxu0
          %v1864 = vadd.f32 %v665, %v1859
          %v1865 = vxor.u32 %v1864, 2147483648
          %v1866 = vmul.f32 %v1865, 1.442695
          %v1867 = vpow.pop %v1866
          %v1868 = vadd.f32 %v1867, 1.0
          %v1869 = vrcp.pop %v1868
          %v1870 = vmul.f32 1.0, %v1869
          %v1871 = vtanh.pop %v1864
          %v1872 = vmul.f32 %v1870, %v1804
          %1874 = vrot.lane.b32.xlu0 %v1871, 80
          %v1875 = vpop.permute.xlu0 %1874
          %v1877 = vmul.f32 %v1870, %v1875
          %1879 = vrot.lane.b32.xlu0 %v1877, 16
          %v1880 = vpop.permute.xlu0 %1879
          %v1882 = vadd.f32 %v1872, %v1880
          %v1883 = vtanh.pop %v1882
          %1885 = vrot.lane.b32.xlu0 %v1883, 16
          %v1886 = vpop.permute.xlu0 %1885
          %v1888 = vmul.f32 %v1870, %v1886
          %1890 = vrot.lane.b32.xlu0 %v1888, 96
          %v1891 = vpop.permute.xlu0 %1890
          %s1893 = scalar_lea.vmem %s538, 8 [#allocation15]
          %1894 = vst.msk [vmem:[%s1893] sm:$0xff] %vm614, %v1891
          %v1895 = vpack.c.bf16 %v1888, %v1888
          %1897 = vrot.lane.b32.xlu0 %v1895, 96
          %v1898 = vpop.permute.xlu0 %1897
          %v1900 = vsel %vm614, %v1898, 0
          %1902 = vmatprep.subr.bf16.mxu0 0
          %1903 = vmatpush1.bf16.msra.mxu0 %v1347
          %1904 = vmatprep.subr.bf16.mxu0 0
          %1905 = vmatpush1.bf16.msra.mxu0 0
          %1906 = vmatprep.subr.bf16.mxu0 0
          %1907 = vmatpush1.bf16.msra.mxu0 0
          %1908 = vmatprep.subr.bf16.mxu0 0
          %1909 = vmatpush1.bf16.msra.mxu0 0
          %1910 = vmatprep.subr.bf16.mxu0 0
          %1911 = vmatpush1.bf16.msra.mxu0 0
          %1912 = vmatprep.subr.bf16.mxu0 0
          %1913 = vmatpush1.bf16.msra.mxu0 0
          %1914 = vmatprep.subr.bf16.mxu0 0
          %1915 = vmatpush1.bf16.msra.mxu0 0
          %1916 = vmatprep.subr.bf16.mxu0 0
          %1917 = vmatpush1.bf16.msra.mxu0 0
          %1918 = vmatprep.subr.bf16.mxu0 0
          %1919 = vmatpush1.bf16.msra.mxu0 0
          %1920 = vmatprep.subr.bf16.mxu0 0
          %1921 = vmatpush1.bf16.msra.mxu0 0
          %1922 = vmatprep.subr.bf16.mxu0 0
          %1923 = vmatpush1.bf16.msra.mxu0 0
          %1924 = vmatprep.subr.bf16.mxu0 0
          %1925 = vmatpush1.bf16.msra.mxu0 0
          %1926 = vmatprep.subr.bf16.mxu0 0
          %1927 = vmatpush1.bf16.msra.mxu0 0
          %1928 = vmatprep.subr.bf16.mxu0 0
          %1929 = vmatpush1.bf16.msra.mxu0 0
          %1930 = vmatprep.subr.bf16.mxu0 0
          %1931 = vmatpush1.bf16.msra.mxu0 0
          %1932 = vmatprep.subr.bf16.mxu0 0
          %1933 = vmatpush1.bf16.msra.mxu0 0
          %1934 = vmatprep.mubr.bf16.mxu0 0
          %1935 = vmatmul.mubr.bf16.gmra.mrb[0].mxu0 %v1900
          %v1936 = vpop.f32.mrb[0].mxu0
          %v1937 = vadd.f32 0.0, %v1936
          %v1938 = vpop.f32.mrb[0].mxu0
          %v1939 = vpop.f32.mrb[0].mxu0
          %v1940 = vpop.f32.mrb[0].mxu0
          %1941 = vdwg.mxu0
          %v1942 = vadd.f32 %v662, %v1937
          %v1943 = vxor.u32 %v1942, 2147483648
          %v1944 = vmul.f32 %v1943, 1.442695
          %v1945 = vpow.pop %v1944
          %v1946 = vadd.f32 %v1945, 1.0
          %v1947 = vrcp.pop %v1946
          %v1948 = vmul.f32 1.0, %v1947
          %v1949 = vtanh.pop %v1942
          %v1950 = vmul.f32 %v1948, %v1882
          %1952 = vrot.lane.b32.xlu0 %v1949, 80
          %v1953 = vpop.permute.xlu0 %1952
          %v1955 = vmul.f32 %v1948, %v1953
          %1957 = vrot.lane.b32.xlu0 %v1955, 16
          %v1958 = vpop.permute.xlu0 %1957
          %v1960 = vadd.f32 %v1950, %v1958
          %v1961 = vtanh.pop %v1960
          %1963 = vrot.lane.b32.xlu0 %v1961, 16
          %v1964 = vpop.permute.xlu0 %1963
          %v1966 = vmul.f32 %v1948, %v1964
          %1968 = vrot.lane.b32.xlu0 %v1966, 96
          %v1969 = vpop.permute.xlu0 %1968
          %1971 = vst.msk [vmem:[%s538] sm:$0xff] %vm614, %v1969
          %1972 = vst.msk [vmem:[#allocation2] sm:$0xff] %vm614, %v1969
          %1974 = vrot.lane.b32.xlu0 %v1960, 112
          %v1975 = vpop.permute.xlu0 %1974
          %1977 = vst.msk [vmem:[#allocation3] sm:$0xff] %vm614, %v1975
        $region80: #{build_model_mols_forward.6} parent=43 // pred_fallthru
          _
        // Predicated region
        $region81: #{build_model_mols_forward.6} parent=43 // pred_check
          %p1978 = pneg %p562
        $region82: #{build_model_mols_forward.6} parent=43 // pred_check_branch
          %1980 = sbr.rel (%p1978) target = $region84
        $region83: #{build_model_mols_forward.6} parent=43 // pred_region
          %v1981 = vld [vmem:[#allocation2] sm:$0xff]
          %1982 = vst.msk [vmem:[%s545] sm:$0xff] %vm614, %v1981
          %v1983 = vld [vmem:[#allocation3] sm:$0xff]
          %1984 = vst.msk [vmem:[%s552] sm:$0xff] %vm614, %v1983
        $region84: #{build_model_mols_forward.6} parent=43 // pred_fallthru
          _
        %s1985 = sand.u32 %s228, 1
        %s1986 = scalar_lea.sflag [#allocation6], %s1985
        %s1987 = sand.u32 %s228, 1
        %s1988 = smul.addr %s1987, 64
        %s1989 = scalar_lea.vmem [#allocation15], %s1988
        %s1990 = sand.u32 %s38, 1
        %s1991 = scalar_lea.sflag [#allocation17], %s1990
        %s1992 = sand.u32 %s254, 1
        %s1993 = smul.addr %s1992, 8
        %s1994 = scalar_lea.vmem [#allocation16], %s1993
        %s1995 = sand.u32 %s38, 1
        %s1996 = scalar_lea.sflag [#allocation17], %s1995
        %s1997 = sand.u32 %s280, 1
        %s1998 = smul.addr %s1997, 8
        %s1999 = scalar_lea.vmem [#allocation18], %s1998
        // Predicated region
        $region85: #{build_model_mols_forward.6} parent=43 // pred_check
          %p2000 = pneg %p238
        $region86: #{build_model_mols_forward.6} parent=43 // pred_check_branch
          %2002 = sbr.rel (%p2000) target = $region88
        $region87: #{build_model_mols_forward.6} parent=43 // pred_region
          %p2003 = scmp.eq.s32.totalorder %s42, 1
          %s2004 = ssub.s32 0, %s43
          %s2005 = scalar_select %p2003, %s2004, %s43
          %s2006 = smul.u32 8, %s2005
          %s2008 = ssub.s32 1024, 1024
          %2009 = vsyncadd %s1986, %s2008
          %s2010 = smul.addr %s42, 8
          %s2011 = sadd.s32 %s2006, %s2010
          %s2012 = smul.addr %s2011, 128
          %s2013 = scalar_lea.hbm %s6, %s2012
          %s2014 = sshll.u32 %s1989, 4
          %s2015 = int_to_ptr.vmem [resolvable:$true] %s2014
          %2020 = dma.vmem_to_hbm [thread:$0]  %s2015, 1024, %s2013, %s1986, 128, 128, 8
        $region88: #{build_model_mols_forward.6} parent=43 // pred_fallthru
          _
        // Predicated region
        $region89: #{build_model_mols_forward.6} parent=43 // pred_check
          %p2021 = pneg %p264
        $region90: #{build_model_mols_forward.6} parent=43 // pred_check_branch
          %2023 = sbr.rel (%p2021) target = $region92
        $region91: #{build_model_mols_forward.6} parent=43 // pred_region
          %s2025 = ssub.s32 128, 128
          %2026 = vsyncadd %s1991, %s2025
          %s2027 = smul.addr %s42, 128
          %s2028 = scalar_lea.hbm %s7, %s2027
          %s2030 = sshll.u32 %s1994, 4
          %s2031 = int_to_ptr.vmem [resolvable:$true] %s2030
          %2033 = dma.vmem_to_hbm [thread:$0]  %s2031, 128, %s2028, %s1991
        $region92: #{build_model_mols_forward.6} parent=43 // pred_fallthru
          _
        // Predicated region
        $region93: #{build_model_mols_forward.6} parent=43 // pred_check
          %p2034 = pneg %p290
        $region94: #{build_model_mols_forward.6} parent=43 // pred_check_branch
          %2036 = sbr.rel (%p2034) target = $region96
        $region95: #{build_model_mols_forward.6} parent=43 // pred_region
          %s2038 = ssub.s32 128, 128
          %2039 = vsyncadd %s1996, %s2038
          %s2040 = smul.addr %s42, 128
          %s2041 = scalar_lea.hbm %s8, %s2040
          %s2043 = sshll.u32 %s1999, 4
          %s2044 = int_to_ptr.vmem [resolvable:$true] %s2043
          %2046 = dma.vmem_to_hbm [thread:$0]  %s2044, 128, %s2041, %s1996
        $region96: #{build_model_mols_forward.6} parent=43 // pred_fallthru
          _
      $region44: #{build_model_mols_forward.6} parent=5 // pred_fallthru
        _
      %p2047 = scmp.le.s32.totalorder 2, %s33
      // Predicated region
      $region97: #{build_model_mols_forward.6} parent=5 // pred_check
        %p2048 = pneg %p2047
      $region98: #{build_model_mols_forward.6} parent=5 // pred_check_branch
        %2050 = sbr.rel (%p2048) target = $region100
      $region99: #{build_model_mols_forward.6} parent=5 // pred_region
        %s2051 = ssub.s32 %s33, 2
        // Predicated region
        $region101: #{build_model_mols_forward.6} parent=99 // pred_check
          %p2052 = pneg %p244
        $region102: #{build_model_mols_forward.6} parent=99 // pred_check_branch
          %2054 = sbr.rel (%p2052) target = $region104
        $region103: #{build_model_mols_forward.6} parent=99 // pred_region
          %s2055 = sand.u32 %s229, 1
          %s2056 = scalar_lea.sflag [#allocation6], %s2055
          %s2057 = sand.u32 %s229, 1
          %s2058 = smul.addr %s2057, 64
          %s2059 = scalar_lea.vmem [#allocation15], %s2058
          %2060 = dma.done %s2056, 1024
        $region104: #{build_model_mols_forward.6} parent=99 // pred_fallthru
          _
        // Predicated region
        $region105: #{build_model_mols_forward.6} parent=99 // pred_check
          %p2061 = pneg %p270
        $region106: #{build_model_mols_forward.6} parent=99 // pred_check_branch
          %2063 = sbr.rel (%p2061) target = $region108
        $region107: #{build_model_mols_forward.6} parent=99 // pred_region
          %s2064 = sand.u32 %s39, 1
          %s2065 = scalar_lea.sflag [#allocation17], %s2064
          %s2066 = sand.u32 %s255, 1
          %s2067 = smul.addr %s2066, 8
          %s2068 = scalar_lea.vmem [#allocation16], %s2067
          %2069 = dma.done %s2065, 128
        $region108: #{build_model_mols_forward.6} parent=99 // pred_fallthru
          _
        // Predicated region
        $region109: #{build_model_mols_forward.6} parent=99 // pred_check
          %p2070 = pneg %p296
        $region110: #{build_model_mols_forward.6} parent=99 // pred_check_branch
          %2072 = sbr.rel (%p2070) target = $region112
        $region111: #{build_model_mols_forward.6} parent=99 // pred_region
          %s2073 = sand.u32 %s39, 1
          %s2074 = scalar_lea.sflag [#allocation17], %s2073
          %s2075 = sand.u32 %s281, 1
          %s2076 = smul.addr %s2075, 8
          %s2077 = scalar_lea.vmem [#allocation18], %s2076
          %2078 = dma.done %s2074, 128
        $region112: #{build_model_mols_forward.6} parent=99 // pred_fallthru
          _
      $region100: #{build_model_mols_forward.6} parent=5 // pred_fallthru
        _
    $region6: #{build_model_mols_forward.6} parent=1 // loop_footer
      %s37 = sadd.s32 1, %s33
    $region7: #{build_model_mols_forward.6} parent=1 // loop_footer_branch
      %32 = sbr.rel target = $region3
    $region8: #{build_model_mols_forward.6} parent=1 // loop_exit
      _
    %2079 = vsyncpa [#allocation5], 1
    %s2080 = scalar_lea.sflag [#allocation5], 1
    %2081 = vsyncpa %s2080, 1
    %2082 = vsyncpa [#allocation8], 1
    %s2083 = scalar_lea.sflag [#allocation8], 1
    %2084 = vsyncpa %s2083, 1
    %2085 = vsyncpa [#allocation11], 1
    %s2086 = scalar_lea.sflag [#allocation11], 1
    %2087 = vsyncpa %s2086, 1
    %2088 = vsyncpa [#allocation14], 1
    %s2089 = scalar_lea.sflag [#allocation14], 1
    %2090 = vsyncpa %s2089, 1
    %2091 = vsyncpa [#allocation6], 1
    %s2092 = scalar_lea.sflag [#allocation6], 1
    %2093 = vsyncpa %s2092, 1
    %2094 = vsyncpa [#allocation17], 1
    %s2095 = scalar_lea.sflag [#allocation17], 1
    %2096 = vsyncpa %s2095, 1

// kernel: build_model_mols_forward.8
$region0: #{build_model_mols_forward.8}
  #allocation0 [shape = 'u32[]', space=smem, size = 0x4, offset = 0x4, fixed_abs, tag = 'smem constant byte address 0x4 - core index']
  #allocation1 [shape = 'u32[144,128]{1,0:T(1,128)}', space=vmem, size = 0x12000, scoped, tag = 'internal scratch']
  #allocation2 [shape = 'f32[8,16]{1,0:T(8,128)}', space=vmem, size = 0x1000, scoped, tag = 'scratch operand']
  #allocation3 [shape = 'f32[8,16]{1,0:T(8,128)}', space=vmem, size = 0x1000, scoped, tag = 'scratch operand']
  %s0 = inlined_call_operand.hbm [shape: bf16[64,32], index: 0, kind: input, shape index: {}]
  %s1 = inlined_call_operand.hbm [shape: bf16[2,32,64], index: 1, kind: input, shape index: {}]
  %s2 = inlined_call_operand.hbm [shape: bf16[2,16,64], index: 2, kind: input, shape index: {}]
  %s3 = inlined_call_operand.hbm [shape: f32[2,1,64], index: 3, kind: input, shape index: {}]
  %s4 = inlined_call_operand.hbm [shape: f32[2,8,16], index: 4, kind: input, shape index: {}, may-alias: {4,5}]
  %s5 = inlined_call_operand.hbm [shape: f32[2,8,16], index: 5, kind: input, shape index: {}, may-alias: {4,5}]
  %s6 = inlined_call_operand.hbm [shape: f32[2,8,16], index: 6, kind: output, shape index: {0}]
  %s7 = inlined_call_operand.hbm [shape: f32[2,8,16], index: 7, kind: output, shape index: {1}]
  %8 = xla_tuple %s6, %s7
  %s9 = sld [smem:[#allocation0]]
  $region105: #{build_model_mols_forward.8} parent=0
    _
  %s11 = ssub.s32 1, %s9
  %s12 = scalar_select 0, %s11, %s9
  $region1: #{build_model_mols_forward.8} parent=0
    #allocation4 [shape = 'u8[32768]{0}', space=vmem, size = 0x8000, scoped, tag = 'input window, operand 0']
    #allocation5 [shape = 's32[2]{0}', space=sflag, size = 0x8, scoped, tag = 'scoped memory for build_model_mols_forward.8']
    #allocation6 [shape = 's32[2]{0}', space=sflag, size = 0x8, scoped, tag = 'scoped memory for build_model_mols_forward.8']
    #allocation7 [shape = 'u8[16384]{0}', space=vmem, size = 0x4000, scoped, tag = 'input window, operand 1']
    #allocation8 [shape = 's32[2]{0}', space=sflag, size = 0x8, scoped, tag = 'scoped memory for build_model_mols_forward.8']
    #allocation9 [shape = 'u8[8192]{0}', space=vmem, size = 0x2000, scoped, tag = 'input window, operand 2']
    #allocation10 [shape = 'u8[1024]{0}', space=vmem, size = 0x400, scoped, tag = 'input window, operand 3']
    #allocation11 [shape = 's32[2]{0}', space=sflag, size = 0x8, scoped, tag = 'scoped memory for build_model_mols_forward.8']
    #allocation12 [shape = 'u8[8192]{0}', space=vmem, size = 0x2000, scoped, tag = 'input window, operand 4']
    #allocation13 [shape = 'u8[8192]{0}', space=vmem, size = 0x2000, scoped, tag = 'input window, operand 5']
    #allocation14 [shape = 's32[2]{0}', space=sflag, size = 0x8, scoped, tag = 'scoped memory for build_model_mols_forward.8']
    #allocation15 [shape = 'u8[8192]{0}', space=vmem, size = 0x2000, scoped, tag = 'output window, operand 0']
    #allocation16 [shape = 'u8[8192]{0}', space=vmem, size = 0x2000, scoped, tag = 'output window, operand 1']
    #allocation17 [shape = 's32[2]{0}', space=sflag, size = 0x8, scoped, tag = 'scoped memory for build_model_mols_forward.8']
    %13 = vsyncpa [#allocation5], 0
    %s14 = scalar_lea.sflag [#allocation5], 1
    %15 = vsyncpa %s14, 0
    %16 = vsyncpa [#allocation8], 0
    %s17 = scalar_lea.sflag [#allocation8], 1
    %18 = vsyncpa %s17, 0
    %19 = vsyncpa [#allocation11], 0
    %s20 = scalar_lea.sflag [#allocation11], 1
    %21 = vsyncpa %s20, 0
    %22 = vsyncpa [#allocation14], 0
    %s23 = scalar_lea.sflag [#allocation14], 1
    %24 = vsyncpa %s23, 0
    %25 = vsyncpa [#allocation6], 0
    %s26 = scalar_lea.sflag [#allocation6], 1
    %27 = vsyncpa %s26, 0
    %28 = vsyncpa [#allocation17], 0
    %s29 = scalar_lea.sflag [#allocation17], 1
    %30 = vsyncpa %s29, 0
    loop: start=0, step=1, limit=4
    $region2: #{build_model_mols_forward.8} parent=1 // loop_pre_header
      _
    $region3: #{build_model_mols_forward.8} parent=1 // loop_header
      %s32 = sphi 0, %s36
      %p33 = scmp.ge.s32.totalorder %s32, 4
      %s39 = sphi 0, %s51
      %s40 = sphi 0, %s47
      %s41 = sphi 0, %s39
      %s42 = sphi 0, %s40
      %s43 = sphi 0, %s41
      %s44 = sphi 0, %s42
      %s60 = sphi 0, %s62
      %s63 = sphi 0, %s60
      %s64 = sphi 0, %s63
      %s80 = sphi 0, %s64
      %s86 = sphi 0, %s88
      %s89 = sphi 0, %s86
      %s90 = sphi 0, %s89
      %s106 = sphi 0, %s90
      %s112 = sphi 0, %s114
      %s115 = sphi 0, %s112
      %s116 = sphi 0, %s115
      %s132 = sphi 0, %s116
      %s138 = sphi 0, %s140
      %s141 = sphi 0, %s138
      %s142 = sphi 0, %s141
      %s158 = sphi 0, %s142
      %s164 = sphi 0, %s166
      %s167 = sphi 0, %s164
      %s168 = sphi 0, %s167
      %s184 = sphi 0, %s168
      %s190 = sphi 0, %s192
      %s193 = sphi 0, %s190
      %s194 = sphi 0, %s193
      %s210 = sphi 0, %s194
      %s216 = sphi 0, %s218
      %s219 = sphi 0, %s216
      %s220 = sphi 0, %s219
      %s236 = sphi 0, %s220
      %s242 = sphi 0, %s244
      %s245 = sphi 0, %s242
      %s246 = sphi 0, %s245
      %s262 = sphi 0, %s246
    $region4: #{build_model_mols_forward.8} parent=1 // loop_header_branch
      %35 = sbr.rel (%p33) target = $region8
    $region5: #{build_model_mols_forward.8} parent=1 // loop_body
      %s37 = ssub.s32 %s32, 1
      %s38 = ssub.s32 %s32, 2
      %s45 = sadd.s32 1, %s40
      %p46 = scmp.ge.s32.totalorder %s45, 1
      %s47 = scalar_select %p46, 0, %s45
      %s48 = sadd.s32 1, %s39
      %s49 = scalar_select %p46, %s48, %s39
      %p50 = scmp.ge.s32.totalorder %s49, 2
      %s51 = scalar_select %p50, 0, %s49
      %p52 = scmp.eq.s32.totalorder %s39, 1
      %s53 = ssub.s32 0, %s40
      %s54 = scalar_select %p52, %s53, %s40
      %p55 = scmp.eq.s32.totalorder %s51, 1
      %s56 = ssub.s32 0, %s47
      %s57 = scalar_select %p55, %s56, %s47
      %s58 = ssub.s32 %s54, %s57
      %p59 = scmp.eq.s32.totalorder %s58, 0
      %s61 = sadd.s32 %s60, 1
      %s62 = scalar_select %p59, %s60, %s61
      %p65 = pneg %p59
      %p66 = scmp.eq.s32.totalorder %s32, 1
      %p67 = por %p65, %p66
      %p68 = scmp.ne.s32.totalorder %s60, %s63
      %p69 = scmp.eq.s32.totalorder %s32, 0
      %p70 = por %p68, %p69
      %p71 = scmp.ne.s32.totalorder %s60, %s63
      %p72 = scmp.eq.s32.totalorder %s37, 1
      %p73 = por %p71, %p72
      %p74 = scmp.ne.s32.totalorder %s63, %s64
      %p75 = scmp.eq.s32.totalorder %s37, 0
      %p76 = por %p74, %p75
      %p77 = scmp.ne.s32.totalorder %s63, %s64
      %p78 = scmp.eq.s32.totalorder %s38, 1
      %p79 = por %p77, %p78
      %p81 = scmp.ne.s32.totalorder %s64, %s80
      %p82 = scmp.eq.s32.totalorder %s38, 0
      %p83 = por %p81, %p82
      %s84 = ssub.s32 %s39, %s51
      %p85 = scmp.eq.s32.totalorder %s84, 0
      %s87 = sadd.s32 %s86, 1
      %s88 = scalar_select %p85, %s86, %s87
      %p91 = pneg %p85
      %p92 = scmp.eq.s32.totalorder %s32, 1
      %p93 = por %p91, %p92
      %p94 = scmp.ne.s32.totalorder %s86, %s89
      %p95 = scmp.eq.s32.totalorder %s32, 0
      %p96 = por %p94, %p95
      %p97 = scmp.ne.s32.totalorder %s86, %s89
      %p98 = scmp.eq.s32.totalorder %s37, 1
      %p99 = por %p97, %p98
      %p100 = scmp.ne.s32.totalorder %s89, %s90
      %p101 = scmp.eq.s32.totalorder %s37, 0
      %p102 = por %p100, %p101
      %p103 = scmp.ne.s32.totalorder %s89, %s90
      %p104 = scmp.eq.s32.totalorder %s38, 1
      %p105 = por %p103, %p104
      %p107 = scmp.ne.s32.totalorder %s90, %s106
      %p108 = scmp.eq.s32.totalorder %s38, 0
      %p109 = por %p107, %p108
      %s110 = ssub.s32 %s39, %s51
      %p111 = scmp.eq.s32.totalorder %s110, 0
      %s113 = sadd.s32 %s112, 1
      %s114 = scalar_select %p111, %s112, %s113
      %p117 = pneg %p111
      %p118 = scmp.eq.s32.totalorder %s32, 1
      %p119 = por %p117, %p118
      %p120 = scmp.ne.s32.totalorder %s112, %s115
      %p121 = scmp.eq.s32.totalorder %s32, 0
      %p122 = por %p120, %p121
      %p123 = scmp.ne.s32.totalorder %s112, %s115
      %p124 = scmp.eq.s32.totalorder %s37, 1
      %p125 = por %p123, %p124
      %p126 = scmp.ne.s32.totalorder %s115, %s116
      %p127 = scmp.eq.s32.totalorder %s37, 0
      %p128 = por %p126, %p127
      %p129 = scmp.ne.s32.totalorder %s115, %s116
      %p130 = scmp.eq.s32.totalorder %s38, 1
      %p131 = por %p129, %p130
      %p133 = scmp.ne.s32.totalorder %s116, %s132
      %p134 = scmp.eq.s32.totalorder %s38, 0
      %p135 = por %p133, %p134
      %s136 = ssub.s32 %s39, %s51
      %p137 = scmp.eq.s32.totalorder %s136, 0
      %s139 = sadd.s32 %s138, 1
      %s140 = scalar_select %p137, %s138, %s139
      %p143 = pneg %p137
      %p144 = scmp.eq.s32.totalorder %s32, 1
      %p145 = por %p143, %p144
      %p146 = scmp.ne.s32.totalorder %s138, %s141
      %p147 = scmp.eq.s32.totalorder %s32, 0
      %p148 = por %p146, %p147
      %p149 = scmp.ne.s32.totalorder %s138, %s141
      %p150 = scmp.eq.s32.totalorder %s37, 1
      %p151 = por %p149, %p150
      %p152 = scmp.ne.s32.totalorder %s141, %s142
      %p153 = scmp.eq.s32.totalorder %s37, 0
      %p154 = por %p152, %p153
      %p155 = scmp.ne.s32.totalorder %s141, %s142
      %p156 = scmp.eq.s32.totalorder %s38, 1
      %p157 = por %p155, %p156
      %p159 = scmp.ne.s32.totalorder %s142, %s158
      %p160 = scmp.eq.s32.totalorder %s38, 0
      %p161 = por %p159, %p160
      %s162 = ssub.s32 %s39, %s51
      %p163 = scmp.eq.s32.totalorder %s162, 0
      %s165 = sadd.s32 %s164, 1
      %s166 = scalar_select %p163, %s164, %s165
      %p169 = pneg %p163
      %p170 = scmp.eq.s32.totalorder %s32, 1
      %p171 = por %p169, %p170
      %p172 = scmp.ne.s32.totalorder %s164, %s167
      %p173 = scmp.eq.s32.totalorder %s32, 0
      %p174 = por %p172, %p173
      %p175 = scmp.ne.s32.totalorder %s164, %s167
      %p176 = scmp.eq.s32.totalorder %s37, 1
      %p177 = por %p175, %p176
      %p178 = scmp.ne.s32.totalorder %s167, %s168
      %p179 = scmp.eq.s32.totalorder %s37, 0
      %p180 = por %p178, %p179
      %p181 = scmp.ne.s32.totalorder %s167, %s168
      %p182 = scmp.eq.s32.totalorder %s38, 1
      %p183 = por %p181, %p182
      %p185 = scmp.ne.s32.totalorder %s168, %s184
      %p186 = scmp.eq.s32.totalorder %s38, 0
      %p187 = por %p185, %p186
      %s188 = ssub.s32 %s39, %s51
      %p189 = scmp.eq.s32.totalorder %s188, 0
      %s191 = sadd.s32 %s190, 1
      %s192 = scalar_select %p189, %s190, %s191
      %p195 = pneg %p189
      %p196 = scmp.eq.s32.totalorder %s32, 1
      %p197 = por %p195, %p196
      %p198 = scmp.ne.s32.totalorder %s190, %s193
      %p199 = scmp.eq.s32.totalorder %s32, 0
      %p200 = por %p198, %p199
      %p201 = scmp.ne.s32.totalorder %s190, %s193
      %p202 = scmp.eq.s32.totalorder %s37, 1
      %p203 = por %p201, %p202
      %p204 = scmp.ne.s32.totalorder %s193, %s194
      %p205 = scmp.eq.s32.totalorder %s37, 0
      %p206 = por %p204, %p205
      %p207 = scmp.ne.s32.totalorder %s193, %s194
      %p208 = scmp.eq.s32.totalorder %s38, 1
      %p209 = por %p207, %p208
      %p211 = scmp.ne.s32.totalorder %s194, %s210
      %p212 = scmp.eq.s32.totalorder %s38, 0
      %p213 = por %p211, %p212
      %s214 = ssub.s32 %s39, %s51
      %p215 = scmp.eq.s32.totalorder %s214, 0
      %s217 = sadd.s32 %s216, 1
      %s218 = scalar_select %p215, %s216, %s217
      %p221 = pneg %p215
      %p222 = scmp.eq.s32.totalorder %s32, 1
      %p223 = por %p221, %p222
      %p224 = scmp.ne.s32.totalorder %s216, %s219
      %p225 = scmp.eq.s32.totalorder %s32, 0
      %p226 = por %p224, %p225
      %p227 = scmp.ne.s32.totalorder %s216, %s219
      %p228 = scmp.eq.s32.totalorder %s37, 1
      %p229 = por %p227, %p228
      %p230 = scmp.ne.s32.totalorder %s219, %s220
      %p231 = scmp.eq.s32.totalorder %s37, 0
      %p232 = por %p230, %p231
      %p233 = scmp.ne.s32.totalorder %s219, %s220
      %p234 = scmp.eq.s32.totalorder %s38, 1
      %p235 = por %p233, %p234
      %p237 = scmp.ne.s32.totalorder %s220, %s236
      %p238 = scmp.eq.s32.totalorder %s38, 0
      %p239 = por %p237, %p238
      %s240 = ssub.s32 %s39, %s51
      %p241 = scmp.eq.s32.totalorder %s240, 0
      %s243 = sadd.s32 %s242, 1
      %s244 = scalar_select %p241, %s242, %s243
      %p247 = pneg %p241
      %p248 = scmp.eq.s32.totalorder %s32, 1
      %p249 = por %p247, %p248
      %p250 = scmp.ne.s32.totalorder %s242, %s245
      %p251 = scmp.eq.s32.totalorder %s32, 0
      %p252 = por %p250, %p251
      %p253 = scmp.ne.s32.totalorder %s242, %s245
      %p254 = scmp.eq.s32.totalorder %s37, 1
      %p255 = por %p253, %p254
      %p256 = scmp.ne.s32.totalorder %s245, %s246
      %p257 = scmp.eq.s32.totalorder %s37, 0
      %p258 = por %p256, %p257
      %p259 = scmp.ne.s32.totalorder %s245, %s246
      %p260 = scmp.eq.s32.totalorder %s38, 1
      %p261 = por %p259, %p260
      %p263 = scmp.ne.s32.totalorder %s246, %s262
      %p264 = scmp.eq.s32.totalorder %s38, 0
      %p265 = por %p263, %p264
      %p266 = scmp.le.s32.totalorder 1, %s32
      %p267 = scmp.lt.s32.totalorder %s32, 3
      %p268 = pnand %p266, %p267
      %p269 = pneg %p268
      // Predicated region
      $region9: #{build_model_mols_forward.8} parent=5 // pred_check
        _
      $region10: #{build_model_mols_forward.8} parent=5 // pred_check_branch
        %271 = sbr.rel (%p268) target = $region12
      $region11: #{build_model_mols_forward.8} parent=5 // pred_region
        %s272 = ssub.s32 %s32, 1
      $region12: #{build_model_mols_forward.8} parent=5 // pred_fallthru
        _
      %p273 = scmp.lt.s32.totalorder %s32, 2
      // Predicated region
      $region13: #{build_model_mols_forward.8} parent=5 // pred_check
        %p274 = pneg %p273
      $region14: #{build_model_mols_forward.8} parent=5 // pred_check_branch
        %276 = sbr.rel (%p274) target = $region16
      $region15: #{build_model_mols_forward.8} parent=5 // pred_region
        // Predicated region
        $region17: #{build_model_mols_forward.8} parent=15 // pred_check
          %p277 = pneg %p70
        $region18: #{build_model_mols_forward.8} parent=15 // pred_check_branch
          %279 = sbr.rel (%p277) target = $region20
        $region19: #{build_model_mols_forward.8} parent=15 // pred_region
          %s280 = sand.u32 %s60, 1
          %s281 = scalar_lea.sflag [#allocation5], %s280
          %s282 = sand.u32 %s60, 1
          %s283 = smul.addr %s282, 32
          %s284 = scalar_lea.vmem [#allocation4], %s283
          %p285 = scmp.eq.s32.totalorder %s39, 1
          %s286 = ssub.s32 0, %s40
          %s287 = scalar_select %p285, %s286, %s40
          %s288 = smul.u32 8, %s287
          %s290 = ssub.s32 512, 512
          %291 = vsyncadd %s281, %s290
          %s292 = smul.addr %s288, 64
          %s293 = scalar_lea.hbm %s0, %s292
          %s294 = sshll.u32 %s284, 4
          %s295 = int_to_ptr.vmem [resolvable:$true] %s294
          %300 = dma.hbm_to_vmem [thread:$0]  %s293, 512, %s295, %s281, 64, 64, 4
        $region20: #{build_model_mols_forward.8} parent=15 // pred_fallthru
          _
        // Predicated region
        $region21: #{build_model_mols_forward.8} parent=15 // pred_check
          %p301 = pneg %p96
        $region22: #{build_model_mols_forward.8} parent=15 // pred_check_branch
          %303 = sbr.rel (%p301) target = $region24
        $region23: #{build_model_mols_forward.8} parent=15 // pred_region
          %s304 = sand.u32 %s32, 1
          %s305 = scalar_lea.sflag [#allocation8], %s304
          %s306 = sand.u32 %s86, 1
          %s307 = smul.addr %s306, 16
          %s308 = scalar_lea.vmem [#allocation7], %s307
          %s310 = ssub.s32 256, 256
          %311 = vsyncadd %s305, %s310
          %s312 = smul.addr %s39, 4
          %s313 = smul.addr %s312, 64
          %s314 = scalar_lea.hbm %s1, %s313
          %s315 = sshll.u32 %s308, 4
          %s316 = int_to_ptr.vmem [resolvable:$true] %s315
          %321 = dma.hbm_to_vmem [thread:$0]  %s314, 256, %s316, %s305, 64, 64, 4
        $region24: #{build_model_mols_forward.8} parent=15 // pred_fallthru
          _
        // Predicated region
        $region25: #{build_model_mols_forward.8} parent=15 // pred_check
          %p322 = pneg %p122
        $region26: #{build_model_mols_forward.8} parent=15 // pred_check_branch
          %324 = sbr.rel (%p322) target = $region28
        $region27: #{build_model_mols_forward.8} parent=15 // pred_region
          %s325 = sand.u32 %s32, 1
          %s326 = scalar_lea.sflag [#allocation8], %s325
          %s327 = sand.u32 %s112, 1
          %s328 = smul.addr %s327, 8
          %s329 = scalar_lea.vmem [#allocation9], %s328
          %s331 = ssub.s32 128, 128
          %332 = vsyncadd %s326, %s331
          %s333 = smul.addr %s39, 2
          %s334 = smul.addr %s333, 64
          %s335 = scalar_lea.hbm %s2, %s334
          %s336 = sshll.u32 %s329, 4
          %s337 = int_to_ptr.vmem [resolvable:$true] %s336
          %342 = dma.hbm_to_vmem [thread:$0]  %s335, 128, %s337, %s326, 64, 64, 4
        $region28: #{build_model_mols_forward.8} parent=15 // pred_fallthru
          _
        // Predicated region
        $region29: #{build_model_mols_forward.8} parent=15 // pred_check
          %p343 = pneg %p148
        $region30: #{build_model_mols_forward.8} parent=15 // pred_check_branch
          %345 = sbr.rel (%p343) target = $region32
        $region31: #{build_model_mols_forward.8} parent=15 // pred_region
          %s346 = sand.u32 %s32, 1
          %s347 = scalar_lea.sflag [#allocation11], %s346
          %s348 = sand.u32 %s138, 1
          %s349 = scalar_lea.vmem [#allocation10], %s348
          %s351 = ssub.s32 16, 16
          %352 = vsyncadd %s347, %s351
          %s353 = smul.addr %s39, 16
          %s354 = scalar_lea.hbm %s3, %s353
          %s356 = sshll.u32 %s349, 4
          %s357 = int_to_ptr.vmem [resolvable:$true] %s356
          %359 = dma.hbm_to_vmem [thread:$0]  %s354, 16, %s357, %s347
        $region32: #{build_model_mols_forward.8} parent=15 // pred_fallthru
          _
        // Predicated region
        $region33: #{build_model_mols_forward.8} parent=15 // pred_check
          %p360 = pneg %p174
        $region34: #{build_model_mols_forward.8} parent=15 // pred_check_branch
          %362 = sbr.rel (%p360) target = $region36
        $region35: #{build_model_mols_forward.8} parent=15 // pred_region
          %s363 = sand.u32 %s32, 1
          %s364 = scalar_lea.sflag [#allocation11], %s363
          %s365 = sand.u32 %s164, 1
          %s366 = smul.addr %s365, 8
          %s367 = scalar_lea.vmem [#allocation12], %s366
          %s369 = ssub.s32 128, 128
          %370 = vsyncadd %s364, %s369
          %s371 = smul.addr %s39, 128
          %s372 = scalar_lea.hbm %s4, %s371
          %s374 = sshll.u32 %s367, 4
          %s375 = int_to_ptr.vmem [resolvable:$true] %s374
          %377 = dma.hbm_to_vmem [thread:$0]  %s372, 128, %s375, %s364
        $region36: #{build_model_mols_forward.8} parent=15 // pred_fallthru
          _
        // Predicated region
        $region37: #{build_model_mols_forward.8} parent=15 // pred_check
          %p378 = pneg %p200
        $region38: #{build_model_mols_forward.8} parent=15 // pred_check_branch
          %380 = sbr.rel (%p378) target = $region40
        $region39: #{build_model_mols_forward.8} parent=15 // pred_region
          %s381 = sand.u32 %s190, 1
          %s382 = scalar_lea.sflag [#allocation14], %s381
          %s383 = sand.u32 %s190, 1
          %s384 = smul.addr %s383, 8
          %s385 = scalar_lea.vmem [#allocation13], %s384
          %s387 = ssub.s32 128, 128
          %388 = vsyncadd %s382, %s387
          %s389 = smul.addr %s39, 128
          %s390 = scalar_lea.hbm %s5, %s389
          %s392 = sshll.u32 %s385, 4
          %s393 = int_to_ptr.vmem [resolvable:$true] %s392
          %395 = dma.hbm_to_vmem [thread:$0]  %s390, 128, %s393, %s382
        $region40: #{build_model_mols_forward.8} parent=15 // pred_fallthru
          _
      $region16: #{build_model_mols_forward.8} parent=5 // pred_fallthru
        _
      %p396 = scmp.le.s32.totalorder 1, %s32
      %p397 = scmp.lt.s32.totalorder %s32, 3
      %p398 = pnand %p396, %p397
      %p399 = pneg %p398
      // Predicated region
      $region41: #{build_model_mols_forward.8} parent=5 // pred_check
        _
      $region42: #{build_model_mols_forward.8} parent=5 // pred_check_branch
        %401 = sbr.rel (%p398) target = $region44
      $region43: #{build_model_mols_forward.8} parent=5 // pred_region
        %s402 = ssub.s32 %s32, 1
        %s403 = sand.u32 %s63, 1
        %s404 = scalar_lea.sflag [#allocation5], %s403
        %s405 = sand.u32 %s63, 1
        %s406 = smul.addr %s405, 32
        %s407 = scalar_lea.vmem [#allocation4], %s406
        // Predicated region
        $region45: #{build_model_mols_forward.8} parent=43 // pred_check
          %p408 = pneg %p76
        $region46: #{build_model_mols_forward.8} parent=43 // pred_check_branch
          %410 = sbr.rel (%p408) target = $region48
        $region47: #{build_model_mols_forward.8} parent=43 // pred_region
          %411 = dma.done %s404, 512
        $region48: #{build_model_mols_forward.8} parent=43 // pred_fallthru
          _
        %s412 = sand.u32 %s37, 1
        %s413 = scalar_lea.sflag [#allocation8], %s412
        %s414 = sand.u32 %s89, 1
        %s415 = smul.addr %s414, 16
        %s416 = scalar_lea.vmem [#allocation7], %s415
        // Predicated region
        $region49: #{build_model_mols_forward.8} parent=43 // pred_check
          %p417 = pneg %p102
        $region50: #{build_model_mols_forward.8} parent=43 // pred_check_branch
          %419 = sbr.rel (%p417) target = $region52
        $region51: #{build_model_mols_forward.8} parent=43 // pred_region
          %420 = dma.done %s413, 256
        $region52: #{build_model_mols_forward.8} parent=43 // pred_fallthru
          _
        %s421 = sand.u32 %s37, 1
        %s422 = scalar_lea.sflag [#allocation8], %s421
        %s423 = sand.u32 %s115, 1
        %s424 = smul.addr %s423, 8
        %s425 = scalar_lea.vmem [#allocation9], %s424
        // Predicated region
        $region53: #{build_model_mols_forward.8} parent=43 // pred_check
          %p426 = pneg %p128
        $region54: #{build_model_mols_forward.8} parent=43 // pred_check_branch
          %428 = sbr.rel (%p426) target = $region56
        $region55: #{build_model_mols_forward.8} parent=43 // pred_region
          %429 = dma.done %s422, 128
        $region56: #{build_model_mols_forward.8} parent=43 // pred_fallthru
          _
        %s430 = sand.u32 %s37, 1
        %s431 = scalar_lea.sflag [#allocation11], %s430
        %s432 = sand.u32 %s141, 1
        %s433 = scalar_lea.vmem [#allocation10], %s432
        // Predicated region
        $region57: #{build_model_mols_forward.8} parent=43 // pred_check
          %p434 = pneg %p154
        $region58: #{build_model_mols_forward.8} parent=43 // pred_check_branch
          %436 = sbr.rel (%p434) target = $region60
        $region59: #{build_model_mols_forward.8} parent=43 // pred_region
          %437 = dma.done %s431, 16
        $region60: #{build_model_mols_forward.8} parent=43 // pred_fallthru
          _
        %s438 = sand.u32 %s37, 1
        %s439 = scalar_lea.sflag [#allocation11], %s438
        %s440 = sand.u32 %s167, 1
        %s441 = smul.addr %s440, 8
        %s442 = scalar_lea.vmem [#allocation12], %s441
        // Predicated region
        $region61: #{build_model_mols_forward.8} parent=43 // pred_check
          %p443 = pneg %p180
        $region62: #{build_model_mols_forward.8} parent=43 // pred_check_branch
          %445 = sbr.rel (%p443) target = $region64
        $region63: #{build_model_mols_forward.8} parent=43 // pred_region
          %446 = dma.done %s439, 128
        $region64: #{build_model_mols_forward.8} parent=43 // pred_fallthru
          _
        %s447 = sand.u32 %s193, 1
        %s448 = scalar_lea.sflag [#allocation14], %s447
        %s449 = sand.u32 %s193, 1
        %s450 = smul.addr %s449, 8
        %s451 = scalar_lea.vmem [#allocation13], %s450
        // Predicated region
        $region65: #{build_model_mols_forward.8} parent=43 // pred_check
          %p452 = pneg %p206
        $region66: #{build_model_mols_forward.8} parent=43 // pred_check_branch
          %454 = sbr.rel (%p452) target = $region68
        $region67: #{build_model_mols_forward.8} parent=43 // pred_region
          %455 = dma.done %s448, 128
        $region68: #{build_model_mols_forward.8} parent=43 // pred_fallthru
          _
        %s456 = sand.u32 %s63, 1
        %s457 = scalar_lea.sflag [#allocation5], %s456
        %s458 = sand.u32 %s63, 1
        %s459 = smul.addr %s458, 32
        %s460 = scalar_lea.vmem [#allocation4], %s459
        %p461 = pneg %p76
        %p462 = pneg %p73
        %s463 = sand.u32 %s37, 1
        %s464 = scalar_lea.sflag [#allocation8], %s463
        %s465 = sand.u32 %s89, 1
        %s466 = smul.addr %s465, 16
        %s467 = scalar_lea.vmem [#allocation7], %s466
        %p468 = pneg %p102
        %p469 = pneg %p99
        %s470 = sand.u32 %s37, 1
        %s471 = scalar_lea.sflag [#allocation8], %s470
        %s472 = sand.u32 %s115, 1
        %s473 = smul.addr %s472, 8
        %s474 = scalar_lea.vmem [#allocation9], %s473
        %p475 = pneg %p128
        %p476 = pneg %p125
        %s477 = sand.u32 %s37, 1
        %s478 = scalar_lea.sflag [#allocation11], %s477
        %s479 = sand.u32 %s141, 1
        %s480 = scalar_lea.vmem [#allocation10], %s479
        %p481 = pneg %p154
        %p482 = pneg %p151
        %s483 = sand.u32 %s37, 1
        %s484 = scalar_lea.sflag [#allocation11], %s483
        %s485 = sand.u32 %s167, 1
        %s486 = smul.addr %s485, 8
        %s487 = scalar_lea.vmem [#allocation12], %s486
        %p488 = pneg %p180
        %p489 = pneg %p177
        %s490 = sand.u32 %s193, 1
        %s491 = scalar_lea.sflag [#allocation14], %s490
        %s492 = sand.u32 %s193, 1
        %s493 = smul.addr %s492, 8
        %s494 = scalar_lea.vmem [#allocation13], %s493
        %p495 = pneg %p206
        %p496 = pneg %p203
        %p497 = pneg %p232
        %p498 = pneg %p229
        %s499 = sand.u32 %s219, 1
        %s500 = scalar_lea.sflag [#allocation6], %s499
        %s501 = sand.u32 %s219, 1
        %s502 = smul.addr %s501, 8
        %s503 = scalar_lea.vmem [#allocation15], %s502
        %p504 = pneg %p258
        %p505 = pneg %p255
        %s506 = sand.u32 %s245, 1
        %s507 = scalar_lea.sflag [#allocation17], %s506
        %s508 = sand.u32 %s245, 1
        %s509 = smul.addr %s508, 8
        %s510 = scalar_lea.vmem [#allocation16], %s509
        %p511 = scmp.eq.s32.totalorder %s41, 1
        %s512 = ssub.s32 0, %s42
        %s513 = scalar_select %p511, %s512, %s42
        %s514 = smul.u32 8, %s513
        %p516 = scmp.eq.s32.totalorder %s42, 0
        // Predicated region
        $region69: #{build_model_mols_forward.8} parent=43 // pred_check
          %p517 = pneg %p516
        $region70: #{build_model_mols_forward.8} parent=43 // pred_check_branch
          %519 = sbr.rel (%p517) target = $region72
        $region71: #{build_model_mols_forward.8} parent=43 // pred_region
          %v520 = vld [vmem:[%s442] sm:$0xff]
          %vm521 = vcmask 130048
          %522 = vst.msk [vmem:[#allocation2] sm:$0xff] %vm521, %v520
          %v523 = vld [vmem:[%s451] sm:$0xff]
          %524 = vst.msk [vmem:[#allocation3] sm:$0xff] %vm521, %v523
        $region72: #{build_model_mols_forward.8} parent=43 // pred_fallthru
          _
        %v525 = vld [vmem:[%s407] sm:$0xf]
        %v526 = vld [vmem:[%s407 + $0x4] sm:$0xf]
        %v527 = vld [vmem:[%s407 + $0x8] sm:$0xf]
        %v528 = vld [vmem:[%s407 + $0xc] sm:$0xf]
        %v529 = vld [vmem:[%s407 + $0x10] sm:$0xf]
        %v530 = vld [vmem:[%s407 + $0x14] sm:$0xf]
        %v531 = vld [vmem:[%s407 + $0x18] sm:$0xf]
        %v532 = vld [vmem:[%s407 + $0x1c] sm:$0xf]
        %v533 = vld [vmem:[%s416] sm:$0xf]
        %v534 = vld [vmem:[%s416 + $0x4] sm:$0xf]
        %v535 = vld [vmem:[%s416 + $0x8] sm:$0xf]
        %v536 = vld [vmem:[%s416 + $0xc] sm:$0xf]
        %v537 = vld [vmem:[%s433] sm:$0x1]
        %v539 = vlaneseq
        %v540 = vshrl.u32 %v539, 7
        %v541 = vsub.s32 0, %v540
        %v542 = vrot.slane %v537, %v541
        %v552 = vunpack.c.l.b16 %v525
        %v553 = vunpack.c.l.b16 %v526
        %v554 = vunpack.c.l.b16 %v527
        %v555 = vunpack.c.l.b16 %v528
        %v556 = vunpack.c.l.b16 %v529
        %v557 = vunpack.c.l.b16 %v530
        %v558 = vunpack.c.l.b16 %v531
        %v559 = vunpack.c.l.b16 %v532
        %v560 = vpack.c.b16 %v553, %v552
        %v561 = vpack.c.b16 %v555, %v554
        %v562 = vpack.c.b16 %v557, %v556
        %v563 = vpack.c.b16 %v559, %v558
        %v568 = vunpack.c.l.b16 %v533
        %v569 = vunpack.c.l.b16 %v534
        %v570 = vunpack.c.l.b16 %v535
        %v571 = vunpack.c.l.b16 %v536
        %v572 = vpack.c.b16 %v569, %v568
        %v573 = vpack.c.b16 %v571, %v570
        %vm576 = vcmask 261120
        %v578 = vsel %vm576, %v560, 0
        %v581 = vsel %vm576, %v561, 0
        %v584 = vsel %vm576, %v562, 0
        %v587 = vsel %vm576, %v563, 0
        %589 = vmatprep.subr.bf16.mxu0 0
        %590 = vmatpush1.bf16.msra.mxu0 %v572
        %591 = vmatprep.subr.bf16.mxu0 0
        %592 = vmatpush1.bf16.msra.mxu0 %v573
        %593 = vmatprep.subr.bf16.mxu0 0
        %594 = vmatpush1.bf16.msra.mxu0 0
        %595 = vmatprep.subr.bf16.mxu0 0
        %596 = vmatpush1.bf16.msra.mxu0 0
        %597 = vmatprep.subr.bf16.mxu0 0
        %598 = vmatpush1.bf16.msra.mxu0 0
        %599 = vmatprep.subr.bf16.mxu0 0
        %600 = vmatpush1.bf16.msra.mxu0 0
        %601 = vmatprep.subr.bf16.mxu0 0
        %602 = vmatpush1.bf16.msra.mxu0 0
        %603 = vmatprep.subr.bf16.mxu0 0
        %604 = vmatpush1.bf16.msra.mxu0 0
        %605 = vmatprep.subr.bf16.mxu0 0
        %606 = vmatpush1.bf16.msra.mxu0 0
        %607 = vmatprep.subr.bf16.mxu0 0
        %608 = vmatpush1.bf16.msra.mxu0 0
        %609 = vmatprep.subr.bf16.mxu0 0
        %610 = vmatpush1.bf16.msra.mxu0 0
        %611 = vmatprep.subr.bf16.mxu0 0
        %612 = vmatpush1.bf16.msra.mxu0 0
        %613 = vmatprep.subr.bf16.mxu0 0
        %614 = vmatpush1.bf16.msra.mxu0 0
        %615 = vmatprep.subr.bf16.mxu0 0
        %616 = vmatpush1.bf16.msra.mxu0 0
        %617 = vmatprep.subr.bf16.mxu0 0
        %618 = vmatpush1.bf16.msra.mxu0 0
        %619 = vmatprep.subr.bf16.mxu0 0
        %620 = vmatpush1.bf16.msra.mxu0 0
        %621 = vmatprep.mubr.bf16.mxu0 0
        %622 = vmatmul.mubr.bf16.gmra.mrb[0].mxu0 %v578
        %v623 = vpop.f32.mrb[0].mxu0
        %v624 = vadd.f32 %v542, %v623
        %v625 = vpop.f32.mrb[0].mxu0
        %v626 = vpop.f32.mrb[0].mxu0
        %v627 = vadd.f32 %v542, %v626
        %v628 = vpop.f32.mrb[0].mxu0
        %629 = vmatprep.mubr.bf16.mxu0 0
        %630 = vmatmul.mubr.bf16.gmra.mrb[0].mxu0 %v581
        %v631 = vpop.f32.mrb[0].mxu0
        %v632 = vadd.f32 %v542, %v631
        %v633 = vpop.f32.mrb[0].mxu0
        %v634 = vpop.f32.mrb[0].mxu0
        %v635 = vadd.f32 %v542, %v634
        %v636 = vpop.f32.mrb[0].mxu0
        %637 = vmatprep.mubr.bf16.mxu0 0
        %638 = vmatmul.mubr.bf16.gmra.mrb[0].mxu0 %v584
        %v639 = vpop.f32.mrb[0].mxu0
        %v640 = vadd.f32 %v542, %v639
        %v641 = vpop.f32.mrb[0].mxu0
        %v642 = vpop.f32.mrb[0].mxu0
        %v643 = vadd.f32 %v542, %v642
        %v644 = vpop.f32.mrb[0].mxu0
        %645 = vmatprep.mubr.bf16.mxu0 0
        %646 = vmatmul.mubr.bf16.gmra.mrb[0].mxu0 %v587
        %v647 = vpop.f32.mrb[0].mxu0
        %v648 = vadd.f32 %v542, %v647
        %v649 = vpop.f32.mrb[0].mxu0
        %v650 = vpop.f32.mrb[0].mxu0
        %v651 = vadd.f32 %v542, %v650
        %v652 = vpop.f32.mrb[0].mxu0
        %653 = vdwg.mxu0
        %v654 = vld [vmem:[%s425] sm:$0xf]
        %v655 = vld [vmem:[%s425 + $0x4] sm:$0xf]
        %p656 = scmp.eq.s32.totalorder %s41, 0
        // Predicated region
        $region73: #{build_model_mols_forward.8} parent=43 // pred_check
          %p657 = pneg %p656
        $region74: #{build_model_mols_forward.8} parent=43 // pred_check_branch
          %659 = sbr.rel (%p657) target = $region76
        $region75: #{build_model_mols_forward.8} parent=43 // pred_region
          %v660 = vld [vmem:[#allocation2] sm:$0xff]
          %v661 = vld [vmem:[#allocation3] sm:$0xff]
          %v662 = vpack.c.bf16 %v660, %v660
          %v665 = vunpack.c.l.b16 %v654
          %v666 = vunpack.c.l.b16 %v655
          %v667 = vpack.c.b16 %v666, %v665
          %vm669 = vcmask 130048
          %v671 = vsel %vm669, %v662, 0
          %673 = vmatprep.subr.bf16.mxu0 0
          %674 = vmatpush1.bf16.msra.mxu0 %v667
          %675 = vmatprep.subr.bf16.mxu0 0
          %676 = vmatpush1.bf16.msra.mxu0 0
          %677 = vmatprep.subr.bf16.mxu0 0
          %678 = vmatpush1.bf16.msra.mxu0 0
          %679 = vmatprep.subr.bf16.mxu0 0
          %680 = vmatpush1.bf16.msra.mxu0 0
          %681 = vmatprep.subr.bf16.mxu0 0
          %682 = vmatpush1.bf16.msra.mxu0 0
          %683 = vmatprep.subr.bf16.mxu0 0
          %684 = vmatpush1.bf16.msra.mxu0 0
          %685 = vmatprep.subr.bf16.mxu0 0
          %686 = vmatpush1.bf16.msra.mxu0 0
          %687 = vmatprep.subr.bf16.mxu0 0
          %688 = vmatpush1.bf16.msra.mxu0 0
          %689 = vmatprep.subr.bf16.mxu0 0
          %690 = vmatpush1.bf16.msra.mxu0 0
          %691 = vmatprep.subr.bf16.mxu0 0
          %692 = vmatpush1.bf16.msra.mxu0 0
          %693 = vmatprep.subr.bf16.mxu0 0
          %694 = vmatpush1.bf16.msra.mxu0 0
          %695 = vmatprep.subr.bf16.mxu0 0
          %696 = vmatpush1.bf16.msra.mxu0 0
          %697 = vmatprep.subr.bf16.mxu0 0
          %698 = vmatpush1.bf16.msra.mxu0 0
          %699 = vmatprep.subr.bf16.mxu0 0
          %700 = vmatpush1.bf16.msra.mxu0 0
          %701 = vmatprep.subr.bf16.mxu0 0
          %702 = vmatpush1.bf16.msra.mxu0 0
          %703 = vmatprep.subr.bf16.mxu0 0
          %704 = vmatpush1.bf16.msra.mxu0 0
          %705 = vmatprep.mubr.bf16.mxu0 0
          %706 = vmatmul.mubr.bf16.gmra.mrb[0].mxu0 %v671
          %v707 = vpop.f32.mrb[0].mxu0
          %v708 = vadd.f32 0.0, %v707
          %v709 = vpop.f32.mrb[0].mxu0
          %v710 = vpop.f32.mrb[0].mxu0
          %v711 = vpop.f32.mrb[0].mxu0
          %712 = vdwg.mxu0
          %v713 = vadd.f32 %v624, %v708
          %v714 = vxor.u32 %v713, 2147483648
          %v715 = vmul.f32 %v714, 1.442695
          %v716 = vpow.pop %v715
          %v717 = vadd.f32 %v716, 1.0
          %v718 = vrcp.pop %v717
          %v719 = vmul.f32 1.0, %v718
          %v720 = vtanh.pop %v713
          %722 = vrot.lane.b32.xlu0 %v661, 16
          %v723 = vpop.permute.xlu0 %722
          %v725 = vmul.f32 %v719, %v723
          %727 = vrot.lane.b32.xlu0 %v720, 80
          %v728 = vpop.permute.xlu0 %727
          %v730 = vmul.f32 %v719, %v728
          %732 = vrot.lane.b32.xlu0 %v730, 16
          %v733 = vpop.permute.xlu0 %732
          %v735 = vadd.f32 %v725, %v733
          %v736 = vtanh.pop %v735
          %738 = vrot.lane.b32.xlu0 %v736, 16
          %v739 = vpop.permute.xlu0 %738
          %v741 = vmul.f32 %v719, %v739
          %v742 = vpack.c.bf16 %v741, %v741
          %744 = vrot.lane.b32.xlu0 %v742, 96
          %v745 = vpop.permute.xlu0 %744
          %v747 = vsel %vm669, %v745, 0
          %749 = vmatprep.subr.bf16.mxu0 0
          %750 = vmatpush1.bf16.msra.mxu0 %v667
          %751 = vmatprep.subr.bf16.mxu0 0
          %752 = vmatpush1.bf16.msra.mxu0 0
          %753 = vmatprep.subr.bf16.mxu0 0
          %754 = vmatpush1.bf16.msra.mxu0 0
          %755 = vmatprep.subr.bf16.mxu0 0
          %756 = vmatpush1.bf16.msra.mxu0 0
          %757 = vmatprep.subr.bf16.mxu0 0
          %758 = vmatpush1.bf16.msra.mxu0 0
          %759 = vmatprep.subr.bf16.mxu0 0
          %760 = vmatpush1.bf16.msra.mxu0 0
          %761 = vmatprep.subr.bf16.mxu0 0
          %762 = vmatpush1.bf16.msra.mxu0 0
          %763 = vmatprep.subr.bf16.mxu0 0
          %764 = vmatpush1.bf16.msra.mxu0 0
          %765 = vmatprep.subr.bf16.mxu0 0
          %766 = vmatpush1.bf16.msra.mxu0 0
          %767 = vmatprep.subr.bf16.mxu0 0
          %768 = vmatpush1.bf16.msra.mxu0 0
          %769 = vmatprep.subr.bf16.mxu0 0
          %770 = vmatpush1.bf16.msra.mxu0 0
          %771 = vmatprep.subr.bf16.mxu0 0
          %772 = vmatpush1.bf16.msra.mxu0 0
          %773 = vmatprep.subr.bf16.mxu0 0
          %774 = vmatpush1.bf16.msra.mxu0 0
          %775 = vmatprep.subr.bf16.mxu0 0
          %776 = vmatpush1.bf16.msra.mxu0 0
          %777 = vmatprep.subr.bf16.mxu0 0
          %778 = vmatpush1.bf16.msra.mxu0 0
          %779 = vmatprep.subr.bf16.mxu0 0
          %780 = vmatpush1.bf16.msra.mxu0 0
          %781 = vmatprep.mubr.bf16.mxu0 0
          %782 = vmatmul.mubr.bf16.gmra.mrb[0].mxu0 %v747
          %v783 = vpop.f32.mrb[0].mxu0
          %v784 = vadd.f32 0.0, %v783
          %v785 = vpop.f32.mrb[0].mxu0
          %v786 = vpop.f32.mrb[0].mxu0
          %v787 = vpop.f32.mrb[0].mxu0
          %788 = vdwg.mxu0
          %v789 = vadd.f32 %v627, %v784
          %v790 = vxor.u32 %v789, 2147483648
          %v791 = vmul.f32 %v790, 1.442695
          %v792 = vpow.pop %v791
          %v793 = vadd.f32 %v792, 1.0
          %v794 = vrcp.pop %v793
          %v795 = vmul.f32 1.0, %v794
          %v796 = vtanh.pop %v789
          %v797 = vmul.f32 %v795, %v735
          %799 = vrot.lane.b32.xlu0 %v796, 80
          %v800 = vpop.permute.xlu0 %799
          %v802 = vmul.f32 %v795, %v800
          %804 = vrot.lane.b32.xlu0 %v802, 16
          %v805 = vpop.permute.xlu0 %804
          %v807 = vadd.f32 %v797, %v805
          %v808 = vtanh.pop %v807
          %810 = vrot.lane.b32.xlu0 %v808, 16
          %v811 = vpop.permute.xlu0 %810
          %v813 = vmul.f32 %v795, %v811
          %v814 = vpack.c.bf16 %v813, %v813
          %816 = vrot.lane.b32.xlu0 %v814, 96
          %v817 = vpop.permute.xlu0 %816
          %v819 = vsel %vm669, %v817, 0
          %821 = vmatprep.subr.bf16.mxu0 0
          %822 = vmatpush1.bf16.msra.mxu0 %v667
          %823 = vmatprep.subr.bf16.mxu0 0
          %824 = vmatpush1.bf16.msra.mxu0 0
          %825 = vmatprep.subr.bf16.mxu0 0
          %826 = vmatpush1.bf16.msra.mxu0 0
          %827 = vmatprep.subr.bf16.mxu0 0
          %828 = vmatpush1.bf16.msra.mxu0 0
          %829 = vmatprep.subr.bf16.mxu0 0
          %830 = vmatpush1.bf16.msra.mxu0 0
          %831 = vmatprep.subr.bf16.mxu0 0
          %832 = vmatpush1.bf16.msra.mxu0 0
          %833 = vmatprep.subr.bf16.mxu0 0
          %834 = vmatpush1.bf16.msra.mxu0 0
          %835 = vmatprep.subr.bf16.mxu0 0
          %836 = vmatpush1.bf16.msra.mxu0 0
          %837 = vmatprep.subr.bf16.mxu0 0
          %838 = vmatpush1.bf16.msra.mxu0 0
          %839 = vmatprep.subr.bf16.mxu0 0
          %840 = vmatpush1.bf16.msra.mxu0 0
          %841 = vmatprep.subr.bf16.mxu0 0
          %842 = vmatpush1.bf16.msra.mxu0 0
          %843 = vmatprep.subr.bf16.mxu0 0
          %844 = vmatpush1.bf16.msra.mxu0 0
          %845 = vmatprep.subr.bf16.mxu0 0
          %846 = vmatpush1.bf16.msra.mxu0 0
          %847 = vmatprep.subr.bf16.mxu0 0
          %848 = vmatpush1.bf16.msra.mxu0 0
          %849 = vmatprep.subr.bf16.mxu0 0
          %850 = vmatpush1.bf16.msra.mxu0 0
          %851 = vmatprep.subr.bf16.mxu0 0
          %852 = vmatpush1.bf16.msra.mxu0 0
          %853 = vmatprep.mubr.bf16.mxu0 0
          %854 = vmatmul.mubr.bf16.gmra.mrb[0].mxu0 %v819
          %v855 = vpop.f32.mrb[0].mxu0
          %v856 = vadd.f32 0.0, %v855
          %v857 = vpop.f32.mrb[0].mxu0
          %v858 = vpop.f32.mrb[0].mxu0
          %v859 = vpop.f32.mrb[0].mxu0
          %860 = vdwg.mxu0
          %v861 = vadd.f32 %v632, %v856
          %v862 = vxor.u32 %v861, 2147483648
          %v863 = vmul.f32 %v862, 1.442695
          %v864 = vpow.pop %v863
          %v865 = vadd.f32 %v864, 1.0
          %v866 = vrcp.pop %v865
          %v867 = vmul.f32 1.0, %v866
          %v868 = vtanh.pop %v861
          %v869 = vmul.f32 %v867, %v807
          %871 = vrot.lane.b32.xlu0 %v868, 80
          %v872 = vpop.permute.xlu0 %871
          %v874 = vmul.f32 %v867, %v872
          %876 = vrot.lane.b32.xlu0 %v874, 16
          %v877 = vpop.permute.xlu0 %876
          %v879 = vadd.f32 %v869, %v877
          %v880 = vtanh.pop %v879
          %882 = vrot.lane.b32.xlu0 %v880, 16
          %v883 = vpop.permute.xlu0 %882
          %v885 = vmul.f32 %v867, %v883
          %v886 = vpack.c.bf16 %v885, %v885
          %888 = vrot.lane.b32.xlu0 %v886, 96
          %v889 = vpop.permute.xlu0 %888
          %v891 = vsel %vm669, %v889, 0
          %893 = vmatprep.subr.bf16.mxu0 0
          %894 = vmatpush1.bf16.msra.mxu0 %v667
          %895 = vmatprep.subr.bf16.mxu0 0
          %896 = vmatpush1.bf16.msra.mxu0 0
          %897 = vmatprep.subr.bf16.mxu0 0
          %898 = vmatpush1.bf16.msra.mxu0 0
          %899 = vmatprep.subr.bf16.mxu0 0
          %900 = vmatpush1.bf16.msra.mxu0 0
          %901 = vmatprep.subr.bf16.mxu0 0
          %902 = vmatpush1.bf16.msra.mxu0 0
          %903 = vmatprep.subr.bf16.mxu0 0
          %904 = vmatpush1.bf16.msra.mxu0 0
          %905 = vmatprep.subr.bf16.mxu0 0
          %906 = vmatpush1.bf16.msra.mxu0 0
          %907 = vmatprep.subr.bf16.mxu0 0
          %908 = vmatpush1.bf16.msra.mxu0 0
          %909 = vmatprep.subr.bf16.mxu0 0
          %910 = vmatpush1.bf16.msra.mxu0 0
          %911 = vmatprep.subr.bf16.mxu0 0
          %912 = vmatpush1.bf16.msra.mxu0 0
          %913 = vmatprep.subr.bf16.mxu0 0
          %914 = vmatpush1.bf16.msra.mxu0 0
          %915 = vmatprep.subr.bf16.mxu0 0
          %916 = vmatpush1.bf16.msra.mxu0 0
          %917 = vmatprep.subr.bf16.mxu0 0
          %918 = vmatpush1.bf16.msra.mxu0 0
          %919 = vmatprep.subr.bf16.mxu0 0
          %920 = vmatpush1.bf16.msra.mxu0 0
          %921 = vmatprep.subr.bf16.mxu0 0
          %922 = vmatpush1.bf16.msra.mxu0 0
          %923 = vmatprep.subr.bf16.mxu0 0
          %924 = vmatpush1.bf16.msra.mxu0 0
          %925 = vmatprep.mubr.bf16.mxu0 0
          %926 = vmatmul.mubr.bf16.gmra.mrb[0].mxu0 %v891
          %v927 = vpop.f32.mrb[0].mxu0
          %v928 = vadd.f32 0.0, %v927
          %v929 = vpop.f32.mrb[0].mxu0
          %v930 = vpop.f32.mrb[0].mxu0
          %v931 = vpop.f32.mrb[0].mxu0
          %932 = vdwg.mxu0
          %v933 = vadd.f32 %v635, %v928
          %v934 = vxor.u32 %v933, 2147483648
          %v935 = vmul.f32 %v934, 1.442695
          %v936 = vpow.pop %v935
          %v937 = vadd.f32 %v936, 1.0
          %v938 = vrcp.pop %v937
          %v939 = vmul.f32 1.0, %v938
          %v940 = vtanh.pop %v933
          %v941 = vmul.f32 %v939, %v879
          %943 = vrot.lane.b32.xlu0 %v940, 80
          %v944 = vpop.permute.xlu0 %943
          %v946 = vmul.f32 %v939, %v944
          %948 = vrot.lane.b32.xlu0 %v946, 16
          %v949 = vpop.permute.xlu0 %948
          %v951 = vadd.f32 %v941, %v949
          %v952 = vtanh.pop %v951
          %954 = vrot.lane.b32.xlu0 %v952, 16
          %v955 = vpop.permute.xlu0 %954
          %v957 = vmul.f32 %v939, %v955
          %v958 = vpack.c.bf16 %v957, %v957
          %960 = vrot.lane.b32.xlu0 %v958, 96
          %v961 = vpop.permute.xlu0 %960
          %v963 = vsel %vm669, %v961, 0
          %965 = vmatprep.subr.bf16.mxu0 0
          %966 = vmatpush1.bf16.msra.mxu0 %v667
          %967 = vmatprep.subr.bf16.mxu0 0
          %968 = vmatpush1.bf16.msra.mxu0 0
          %969 = vmatprep.subr.bf16.mxu0 0
          %970 = vmatpush1.bf16.msra.mxu0 0
          %971 = vmatprep.subr.bf16.mxu0 0
          %972 = vmatpush1.bf16.msra.mxu0 0
          %973 = vmatprep.subr.bf16.mxu0 0
          %974 = vmatpush1.bf16.msra.mxu0 0
          %975 = vmatprep.subr.bf16.mxu0 0
          %976 = vmatpush1.bf16.msra.mxu0 0
          %977 = vmatprep.subr.bf16.mxu0 0
          %978 = vmatpush1.bf16.msra.mxu0 0
          %979 = vmatprep.subr.bf16.mxu0 0
          %980 = vmatpush1.bf16.msra.mxu0 0
          %981 = vmatprep.subr.bf16.mxu0 0
          %982 = vmatpush1.bf16.msra.mxu0 0
          %983 = vmatprep.subr.bf16.mxu0 0
          %984 = vmatpush1.bf16.msra.mxu0 0
          %985 = vmatprep.subr.bf16.mxu0 0
          %986 = vmatpush1.bf16.msra.mxu0 0
          %987 = vmatprep.subr.bf16.mxu0 0
          %988 = vmatpush1.bf16.msra.mxu0 0
          %989 = vmatprep.subr.bf16.mxu0 0
          %990 = vmatpush1.bf16.msra.mxu0 0
          %991 = vmatprep.subr.bf16.mxu0 0
          %992 = vmatpush1.bf16.msra.mxu0 0
          %993 = vmatprep.subr.bf16.mxu0 0
          %994 = vmatpush1.bf16.msra.mxu0 0
          %995 = vmatprep.subr.bf16.mxu0 0
          %996 = vmatpush1.bf16.msra.mxu0 0
          %997 = vmatprep.mubr.bf16.mxu0 0
          %998 = vmatmul.mubr.bf16.gmra.mrb[0].mxu0 %v963
          %v999 = vpop.f32.mrb[0].mxu0
          %v1000 = vadd.f32 0.0, %v999
          %v1001 = vpop.f32.mrb[0].mxu0
          %v1002 = vpop.f32.mrb[0].mxu0
          %v1003 = vpop.f32.mrb[0].mxu0
          %1004 = vdwg.mxu0
          %v1005 = vadd.f32 %v640, %v1000
          %v1006 = vxor.u32 %v1005, 2147483648
          %v1007 = vmul.f32 %v1006, 1.442695
          %v1008 = vpow.pop %v1007
          %v1009 = vadd.f32 %v1008, 1.0
          %v1010 = vrcp.pop %v1009
          %v1011 = vmul.f32 1.0, %v1010
          %v1012 = vtanh.pop %v1005
          %v1013 = vmul.f32 %v1011, %v951
          %1015 = vrot.lane.b32.xlu0 %v1012, 80
          %v1016 = vpop.permute.xlu0 %1015
          %v1018 = vmul.f32 %v1011, %v1016
          %1020 = vrot.lane.b32.xlu0 %v1018, 16
          %v1021 = vpop.permute.xlu0 %1020
          %v1023 = vadd.f32 %v1013, %v1021
          %v1024 = vtanh.pop %v1023
          %1026 = vrot.lane.b32.xlu0 %v1024, 16
          %v1027 = vpop.permute.xlu0 %1026
          %v1029 = vmul.f32 %v1011, %v1027
          %v1030 = vpack.c.bf16 %v1029, %v1029
          %1032 = vrot.lane.b32.xlu0 %v1030, 96
          %v1033 = vpop.permute.xlu0 %1032
          %v1035 = vsel %vm669, %v1033, 0
          %1037 = vmatprep.subr.bf16.mxu0 0
          %1038 = vmatpush1.bf16.msra.mxu0 %v667
          %1039 = vmatprep.subr.bf16.mxu0 0
          %1040 = vmatpush1.bf16.msra.mxu0 0
          %1041 = vmatprep.subr.bf16.mxu0 0
          %1042 = vmatpush1.bf16.msra.mxu0 0
          %1043 = vmatprep.subr.bf16.mxu0 0
          %1044 = vmatpush1.bf16.msra.mxu0 0
          %1045 = vmatprep.subr.bf16.mxu0 0
          %1046 = vmatpush1.bf16.msra.mxu0 0
          %1047 = vmatprep.subr.bf16.mxu0 0
          %1048 = vmatpush1.bf16.msra.mxu0 0
          %1049 = vmatprep.subr.bf16.mxu0 0
          %1050 = vmatpush1.bf16.msra.mxu0 0
          %1051 = vmatprep.subr.bf16.mxu0 0
          %1052 = vmatpush1.bf16.msra.mxu0 0
          %1053 = vmatprep.subr.bf16.mxu0 0
          %1054 = vmatpush1.bf16.msra.mxu0 0
          %1055 = vmatprep.subr.bf16.mxu0 0
          %1056 = vmatpush1.bf16.msra.mxu0 0
          %1057 = vmatprep.subr.bf16.mxu0 0
          %1058 = vmatpush1.bf16.msra.mxu0 0
          %1059 = vmatprep.subr.bf16.mxu0 0
          %1060 = vmatpush1.bf16.msra.mxu0 0
          %1061 = vmatprep.subr.bf16.mxu0 0
          %1062 = vmatpush1.bf16.msra.mxu0 0
          %1063 = vmatprep.subr.bf16.mxu0 0
          %1064 = vmatpush1.bf16.msra.mxu0 0
          %1065 = vmatprep.subr.bf16.mxu0 0
          %1066 = vmatpush1.bf16.msra.mxu0 0
          %1067 = vmatprep.subr.bf16.mxu0 0
          %1068 = vmatpush1.bf16.msra.mxu0 0
          %1069 = vmatprep.mubr.bf16.mxu0 0
          %1070 = vmatmul.mubr.bf16.gmra.mrb[0].mxu0 %v1035
          %v1071 = vpop.f32.mrb[0].mxu0
          %v1072 = vadd.f32 0.0, %v1071
          %v1073 = vpop.f32.mrb[0].mxu0
          %v1074 = vpop.f32.mrb[0].mxu0
          %v1075 = vpop.f32.mrb[0].mxu0
          %1076 = vdwg.mxu0
          %v1077 = vadd.f32 %v643, %v1072
          %v1078 = vxor.u32 %v1077, 2147483648
          %v1079 = vmul.f32 %v1078, 1.442695
          %v1080 = vpow.pop %v1079
          %v1081 = vadd.f32 %v1080, 1.0
          %v1082 = vrcp.pop %v1081
          %v1083 = vmul.f32 1.0, %v1082
          %v1084 = vtanh.pop %v1077
          %v1085 = vmul.f32 %v1083, %v1023
          %1087 = vrot.lane.b32.xlu0 %v1084, 80
          %v1088 = vpop.permute.xlu0 %1087
          %v1090 = vmul.f32 %v1083, %v1088
          %1092 = vrot.lane.b32.xlu0 %v1090, 16
          %v1093 = vpop.permute.xlu0 %1092
          %v1095 = vadd.f32 %v1085, %v1093
          %v1096 = vtanh.pop %v1095
          %1098 = vrot.lane.b32.xlu0 %v1096, 16
          %v1099 = vpop.permute.xlu0 %1098
          %v1101 = vmul.f32 %v1083, %v1099
          %v1102 = vpack.c.bf16 %v1101, %v1101
          %1104 = vrot.lane.b32.xlu0 %v1102, 96
          %v1105 = vpop.permute.xlu0 %1104
          %v1107 = vsel %vm669, %v1105, 0
          %1109 = vmatprep.subr.bf16.mxu0 0
          %1110 = vmatpush1.bf16.msra.mxu0 %v667
          %1111 = vmatprep.subr.bf16.mxu0 0
          %1112 = vmatpush1.bf16.msra.mxu0 0
          %1113 = vmatprep.subr.bf16.mxu0 0
          %1114 = vmatpush1.bf16.msra.mxu0 0
          %1115 = vmatprep.subr.bf16.mxu0 0
          %1116 = vmatpush1.bf16.msra.mxu0 0
          %1117 = vmatprep.subr.bf16.mxu0 0
          %1118 = vmatpush1.bf16.msra.mxu0 0
          %1119 = vmatprep.subr.bf16.mxu0 0
          %1120 = vmatpush1.bf16.msra.mxu0 0
          %1121 = vmatprep.subr.bf16.mxu0 0
          %1122 = vmatpush1.bf16.msra.mxu0 0
          %1123 = vmatprep.subr.bf16.mxu0 0
          %1124 = vmatpush1.bf16.msra.mxu0 0
          %1125 = vmatprep.subr.bf16.mxu0 0
          %1126 = vmatpush1.bf16.msra.mxu0 0
          %1127 = vmatprep.subr.bf16.mxu0 0
          %1128 = vmatpush1.bf16.msra.mxu0 0
          %1129 = vmatprep.subr.bf16.mxu0 0
          %1130 = vmatpush1.bf16.msra.mxu0 0
          %1131 = vmatprep.subr.bf16.mxu0 0
          %1132 = vmatpush1.bf16.msra.mxu0 0
          %1133 = vmatprep.subr.bf16.mxu0 0
          %1134 = vmatpush1.bf16.msra.mxu0 0
          %1135 = vmatprep.subr.bf16.mxu0 0
          %1136 = vmatpush1.bf16.msra.mxu0 0
          %1137 = vmatprep.subr.bf16.mxu0 0
          %1138 = vmatpush1.bf16.msra.mxu0 0
          %1139 = vmatprep.subr.bf16.mxu0 0
          %1140 = vmatpush1.bf16.msra.mxu0 0
          %1141 = vmatprep.mubr.bf16.mxu0 0
          %1142 = vmatmul.mubr.bf16.gmra.mrb[0].mxu0 %v1107
          %v1143 = vpop.f32.mrb[0].mxu0
          %v1144 = vadd.f32 0.0, %v1143
          %v1145 = vpop.f32.mrb[0].mxu0
          %v1146 = vpop.f32.mrb[0].mxu0
          %v1147 = vpop.f32.mrb[0].mxu0
          %1148 = vdwg.mxu0
          %v1149 = vadd.f32 %v648, %v1144
          %v1150 = vxor.u32 %v1149, 2147483648
          %v1151 = vmul.f32 %v1150, 1.442695
          %v1152 = vpow.pop %v1151
          %v1153 = vadd.f32 %v1152, 1.0
          %v1154 = vrcp.pop %v1153
          %v1155 = vmul.f32 1.0, %v1154
          %v1156 = vtanh.pop %v1149
          %v1157 = vmul.f32 %v1155, %v1095
          %1159 = vrot.lane.b32.xlu0 %v1156, 80
          %v1160 = vpop.permute.xlu0 %1159
          %v1162 = vmul.f32 %v1155, %v1160
          %1164 = vrot.lane.b32.xlu0 %v1162, 16
          %v1165 = vpop.permute.xlu0 %1164
          %v1167 = vadd.f32 %v1157, %v1165
          %v1168 = vtanh.pop %v1167
          %1170 = vrot.lane.b32.xlu0 %v1168, 16
          %v1171 = vpop.permute.xlu0 %1170
          %v1173 = vmul.f32 %v1155, %v1171
          %v1174 = vpack.c.bf16 %v1173, %v1173
          %1176 = vrot.lane.b32.xlu0 %v1174, 96
          %v1177 = vpop.permute.xlu0 %1176
          %v1179 = vsel %vm669, %v1177, 0
          %1181 = vmatprep.subr.bf16.mxu0 0
          %1182 = vmatpush1.bf16.msra.mxu0 %v667
          %1183 = vmatprep.subr.bf16.mxu0 0
          %1184 = vmatpush1.bf16.msra.mxu0 0
          %1185 = vmatprep.subr.bf16.mxu0 0
          %1186 = vmatpush1.bf16.msra.mxu0 0
          %1187 = vmatprep.subr.bf16.mxu0 0
          %1188 = vmatpush1.bf16.msra.mxu0 0
          %1189 = vmatprep.subr.bf16.mxu0 0
          %1190 = vmatpush1.bf16.msra.mxu0 0
          %1191 = vmatprep.subr.bf16.mxu0 0
          %1192 = vmatpush1.bf16.msra.mxu0 0
          %1193 = vmatprep.subr.bf16.mxu0 0
          %1194 = vmatpush1.bf16.msra.mxu0 0
          %1195 = vmatprep.subr.bf16.mxu0 0
          %1196 = vmatpush1.bf16.msra.mxu0 0
          %1197 = vmatprep.subr.bf16.mxu0 0
          %1198 = vmatpush1.bf16.msra.mxu0 0
          %1199 = vmatprep.subr.bf16.mxu0 0
          %1200 = vmatpush1.bf16.msra.mxu0 0
          %1201 = vmatprep.subr.bf16.mxu0 0
          %1202 = vmatpush1.bf16.msra.mxu0 0
          %1203 = vmatprep.subr.bf16.mxu0 0
          %1204 = vmatpush1.bf16.msra.mxu0 0
          %1205 = vmatprep.subr.bf16.mxu0 0
          %1206 = vmatpush1.bf16.msra.mxu0 0
          %1207 = vmatprep.subr.bf16.mxu0 0
          %1208 = vmatpush1.bf16.msra.mxu0 0
          %1209 = vmatprep.subr.bf16.mxu0 0
          %1210 = vmatpush1.bf16.msra.mxu0 0
          %1211 = vmatprep.subr.bf16.mxu0 0
          %1212 = vmatpush1.bf16.msra.mxu0 0
          %1213 = vmatprep.mubr.bf16.mxu0 0
          %1214 = vmatmul.mubr.bf16.gmra.mrb[0].mxu0 %v1179
          %v1215 = vpop.f32.mrb[0].mxu0
          %v1216 = vadd.f32 0.0, %v1215
          %v1217 = vpop.f32.mrb[0].mxu0
          %v1218 = vpop.f32.mrb[0].mxu0
          %v1219 = vpop.f32.mrb[0].mxu0
          %1220 = vdwg.mxu0
          %v1221 = vadd.f32 %v651, %v1216
          %v1222 = vxor.u32 %v1221, 2147483648
          %v1223 = vmul.f32 %v1222, 1.442695
          %v1224 = vpow.pop %v1223
          %v1225 = vadd.f32 %v1224, 1.0
          %v1226 = vrcp.pop %v1225
          %v1227 = vmul.f32 1.0, %v1226
          %v1228 = vtanh.pop %v1221
          %v1229 = vmul.f32 %v1227, %v1167
          %1231 = vrot.lane.b32.xlu0 %v1228, 80
          %v1232 = vpop.permute.xlu0 %1231
          %v1234 = vmul.f32 %v1227, %v1232
          %1236 = vrot.lane.b32.xlu0 %v1234, 16
          %v1237 = vpop.permute.xlu0 %1236
          %v1239 = vadd.f32 %v1229, %v1237
          %v1240 = vtanh.pop %v1239
          %1242 = vrot.lane.b32.xlu0 %v1240, 16
          %v1243 = vpop.permute.xlu0 %1242
          %v1245 = vmul.f32 %v1227, %v1243
          %1247 = vrot.lane.b32.xlu0 %v1245, 96
          %v1248 = vpop.permute.xlu0 %1247
          %1250 = vst.msk [vmem:[#allocation2] sm:$0xff] %vm669, %v1248
          %1252 = vrot.lane.b32.xlu0 %v1239, 112
          %v1253 = vpop.permute.xlu0 %1252
          %1255 = vst.msk [vmem:[#allocation3] sm:$0xff] %vm669, %v1253
        $region76: #{build_model_mols_forward.8} parent=43 // pred_fallthru
          _
        %p1256 = scmp.eq.s32.totalorder %s41, 1
        // Predicated region
        $region77: #{build_model_mols_forward.8} parent=43 // pred_check
          %p1257 = pneg %p1256
        $region78: #{build_model_mols_forward.8} parent=43 // pred_check_branch
          %1259 = sbr.rel (%p1257) target = $region80
        $region79: #{build_model_mols_forward.8} parent=43 // pred_region
          %v1260 = vld [vmem:[#allocation2] sm:$0xff]
          %v1261 = vld [vmem:[#allocation3] sm:$0xff]
          %v1262 = vpack.c.bf16 %v1260, %v1260
          %v1265 = vunpack.c.l.b16 %v654
          %v1266 = vunpack.c.l.b16 %v655
          %v1267 = vpack.c.b16 %v1266, %v1265
          %vm1269 = vcmask 130048
          %v1271 = vsel %vm1269, %v1262, 0
          %1273 = vmatprep.subr.bf16.mxu0 0
          %1274 = vmatpush1.bf16.msra.mxu0 %v1267
          %1275 = vmatprep.subr.bf16.mxu0 0
          %1276 = vmatpush1.bf16.msra.mxu0 0
          %1277 = vmatprep.subr.bf16.mxu0 0
          %1278 = vmatpush1.bf16.msra.mxu0 0
          %1279 = vmatprep.subr.bf16.mxu0 0
          %1280 = vmatpush1.bf16.msra.mxu0 0
          %1281 = vmatprep.subr.bf16.mxu0 0
          %1282 = vmatpush1.bf16.msra.mxu0 0
          %1283 = vmatprep.subr.bf16.mxu0 0
          %1284 = vmatpush1.bf16.msra.mxu0 0
          %1285 = vmatprep.subr.bf16.mxu0 0
          %1286 = vmatpush1.bf16.msra.mxu0 0
          %1287 = vmatprep.subr.bf16.mxu0 0
          %1288 = vmatpush1.bf16.msra.mxu0 0
          %1289 = vmatprep.subr.bf16.mxu0 0
          %1290 = vmatpush1.bf16.msra.mxu0 0
          %1291 = vmatprep.subr.bf16.mxu0 0
          %1292 = vmatpush1.bf16.msra.mxu0 0
          %1293 = vmatprep.subr.bf16.mxu0 0
          %1294 = vmatpush1.bf16.msra.mxu0 0
          %1295 = vmatprep.subr.bf16.mxu0 0
          %1296 = vmatpush1.bf16.msra.mxu0 0
          %1297 = vmatprep.subr.bf16.mxu0 0
          %1298 = vmatpush1.bf16.msra.mxu0 0
          %1299 = vmatprep.subr.bf16.mxu0 0
          %1300 = vmatpush1.bf16.msra.mxu0 0
          %1301 = vmatprep.subr.bf16.mxu0 0
          %1302 = vmatpush1.bf16.msra.mxu0 0
          %1303 = vmatprep.subr.bf16.mxu0 0
          %1304 = vmatpush1.bf16.msra.mxu0 0
          %1305 = vmatprep.mubr.bf16.mxu0 0
          %1306 = vmatmul.mubr.bf16.gmra.mrb[0].mxu0 %v1271
          %v1307 = vpop.f32.mrb[0].mxu0
          %v1308 = vadd.f32 0.0, %v1307
          %v1309 = vpop.f32.mrb[0].mxu0
          %v1310 = vpop.f32.mrb[0].mxu0
          %v1311 = vpop.f32.mrb[0].mxu0
          %1312 = vdwg.mxu0
          %v1313 = vadd.f32 %v651, %v1308
          %v1314 = vxor.u32 %v1313, 2147483648
          %v1315 = vmul.f32 %v1314, 1.442695
          %v1316 = vpow.pop %v1315
          %v1317 = vadd.f32 %v1316, 1.0
          %v1318 = vrcp.pop %v1317
          %v1319 = vmul.f32 1.0, %v1318
          %v1320 = vtanh.pop %v1313
          %1322 = vrot.lane.b32.xlu0 %v1261, 16
          %v1323 = vpop.permute.xlu0 %1322
          %v1325 = vmul.f32 %v1319, %v1323
          %1327 = vrot.lane.b32.xlu0 %v1320, 80
          %v1328 = vpop.permute.xlu0 %1327
          %v1330 = vmul.f32 %v1319, %v1328
          %1332 = vrot.lane.b32.xlu0 %v1330, 16
          %v1333 = vpop.permute.xlu0 %1332
          %v1335 = vadd.f32 %v1325, %v1333
          %v1336 = vtanh.pop %v1335
          %1338 = vrot.lane.b32.xlu0 %v1336, 16
          %v1339 = vpop.permute.xlu0 %1338
          %v1341 = vmul.f32 %v1319, %v1339
          %v1342 = vpack.c.bf16 %v1341, %v1341
          %1344 = vrot.lane.b32.xlu0 %v1342, 96
          %v1345 = vpop.permute.xlu0 %1344
          %v1347 = vsel %vm1269, %v1345, 0
          %1349 = vmatprep.subr.bf16.mxu0 0
          %1350 = vmatpush1.bf16.msra.mxu0 %v1267
          %1351 = vmatprep.subr.bf16.mxu0 0
          %1352 = vmatpush1.bf16.msra.mxu0 0
          %1353 = vmatprep.subr.bf16.mxu0 0
          %1354 = vmatpush1.bf16.msra.mxu0 0
          %1355 = vmatprep.subr.bf16.mxu0 0
          %1356 = vmatpush1.bf16.msra.mxu0 0
          %1357 = vmatprep.subr.bf16.mxu0 0
          %1358 = vmatpush1.bf16.msra.mxu0 0
          %1359 = vmatprep.subr.bf16.mxu0 0
          %1360 = vmatpush1.bf16.msra.mxu0 0
          %1361 = vmatprep.subr.bf16.mxu0 0
          %1362 = vmatpush1.bf16.msra.mxu0 0
          %1363 = vmatprep.subr.bf16.mxu0 0
          %1364 = vmatpush1.bf16.msra.mxu0 0
          %1365 = vmatprep.subr.bf16.mxu0 0
          %1366 = vmatpush1.bf16.msra.mxu0 0
          %1367 = vmatprep.subr.bf16.mxu0 0
          %1368 = vmatpush1.bf16.msra.mxu0 0
          %1369 = vmatprep.subr.bf16.mxu0 0
          %1370 = vmatpush1.bf16.msra.mxu0 0
          %1371 = vmatprep.subr.bf16.mxu0 0
          %1372 = vmatpush1.bf16.msra.mxu0 0
          %1373 = vmatprep.subr.bf16.mxu0 0
          %1374 = vmatpush1.bf16.msra.mxu0 0
          %1375 = vmatprep.subr.bf16.mxu0 0
          %1376 = vmatpush1.bf16.msra.mxu0 0
          %1377 = vmatprep.subr.bf16.mxu0 0
          %1378 = vmatpush1.bf16.msra.mxu0 0
          %1379 = vmatprep.subr.bf16.mxu0 0
          %1380 = vmatpush1.bf16.msra.mxu0 0
          %1381 = vmatprep.mubr.bf16.mxu0 0
          %1382 = vmatmul.mubr.bf16.gmra.mrb[0].mxu0 %v1347
          %v1383 = vpop.f32.mrb[0].mxu0
          %v1384 = vadd.f32 0.0, %v1383
          %v1385 = vpop.f32.mrb[0].mxu0
          %v1386 = vpop.f32.mrb[0].mxu0
          %v1387 = vpop.f32.mrb[0].mxu0
          %1388 = vdwg.mxu0
          %v1389 = vadd.f32 %v648, %v1384
          %v1390 = vxor.u32 %v1389, 2147483648
          %v1391 = vmul.f32 %v1390, 1.442695
          %v1392 = vpow.pop %v1391
          %v1393 = vadd.f32 %v1392, 1.0
          %v1394 = vrcp.pop %v1393
          %v1395 = vmul.f32 1.0, %v1394
          %v1396 = vtanh.pop %v1389
          %v1397 = vmul.f32 %v1395, %v1335
          %1399 = vrot.lane.b32.xlu0 %v1396, 80
          %v1400 = vpop.permute.xlu0 %1399
          %v1402 = vmul.f32 %v1395, %v1400
          %1404 = vrot.lane.b32.xlu0 %v1402, 16
          %v1405 = vpop.permute.xlu0 %1404
          %v1407 = vadd.f32 %v1397, %v1405
          %v1408 = vtanh.pop %v1407
          %1410 = vrot.lane.b32.xlu0 %v1408, 16
          %v1411 = vpop.permute.xlu0 %1410
          %v1413 = vmul.f32 %v1395, %v1411
          %v1414 = vpack.c.bf16 %v1413, %v1413
          %1416 = vrot.lane.b32.xlu0 %v1414, 96
          %v1417 = vpop.permute.xlu0 %1416
          %v1419 = vsel %vm1269, %v1417, 0
          %1421 = vmatprep.subr.bf16.mxu0 0
          %1422 = vmatpush1.bf16.msra.mxu0 %v1267
          %1423 = vmatprep.subr.bf16.mxu0 0
          %1424 = vmatpush1.bf16.msra.mxu0 0
          %1425 = vmatprep.subr.bf16.mxu0 0
          %1426 = vmatpush1.bf16.msra.mxu0 0
          %1427 = vmatprep.subr.bf16.mxu0 0
          %1428 = vmatpush1.bf16.msra.mxu0 0
          %1429 = vmatprep.subr.bf16.mxu0 0
          %1430 = vmatpush1.bf16.msra.mxu0 0
          %1431 = vmatprep.subr.bf16.mxu0 0
          %1432 = vmatpush1.bf16.msra.mxu0 0
          %1433 = vmatprep.subr.bf16.mxu0 0
          %1434 = vmatpush1.bf16.msra.mxu0 0
          %1435 = vmatprep.subr.bf16.mxu0 0
          %1436 = vmatpush1.bf16.msra.mxu0 0
          %1437 = vmatprep.subr.bf16.mxu0 0
          %1438 = vmatpush1.bf16.msra.mxu0 0
          %1439 = vmatprep.subr.bf16.mxu0 0
          %1440 = vmatpush1.bf16.msra.mxu0 0
          %1441 = vmatprep.subr.bf16.mxu0 0
          %1442 = vmatpush1.bf16.msra.mxu0 0
          %1443 = vmatprep.subr.bf16.mxu0 0
          %1444 = vmatpush1.bf16.msra.mxu0 0
          %1445 = vmatprep.subr.bf16.mxu0 0
          %1446 = vmatpush1.bf16.msra.mxu0 0
          %1447 = vmatprep.subr.bf16.mxu0 0
          %1448 = vmatpush1.bf16.msra.mxu0 0
          %1449 = vmatprep.subr.bf16.mxu0 0
          %1450 = vmatpush1.bf16.msra.mxu0 0
          %1451 = vmatprep.subr.bf16.mxu0 0
          %1452 = vmatpush1.bf16.msra.mxu0 0
          %1453 = vmatprep.mubr.bf16.mxu0 0
          %1454 = vmatmul.mubr.bf16.gmra.mrb[0].mxu0 %v1419
          %v1455 = vpop.f32.mrb[0].mxu0
          %v1456 = vadd.f32 0.0, %v1455
          %v1457 = vpop.f32.mrb[0].mxu0
          %v1458 = vpop.f32.mrb[0].mxu0
          %v1459 = vpop.f32.mrb[0].mxu0
          %1460 = vdwg.mxu0
          %v1461 = vadd.f32 %v643, %v1456
          %v1462 = vxor.u32 %v1461, 2147483648
          %v1463 = vmul.f32 %v1462, 1.442695
          %v1464 = vpow.pop %v1463
          %v1465 = vadd.f32 %v1464, 1.0
          %v1466 = vrcp.pop %v1465
          %v1467 = vmul.f32 1.0, %v1466
          %v1468 = vtanh.pop %v1461
          %v1469 = vmul.f32 %v1467, %v1407
          %1471 = vrot.lane.b32.xlu0 %v1468, 80
          %v1472 = vpop.permute.xlu0 %1471
          %v1474 = vmul.f32 %v1467, %v1472
          %1476 = vrot.lane.b32.xlu0 %v1474, 16
          %v1477 = vpop.permute.xlu0 %1476
          %v1479 = vadd.f32 %v1469, %v1477
          %v1480 = vtanh.pop %v1479
          %1482 = vrot.lane.b32.xlu0 %v1480, 16
          %v1483 = vpop.permute.xlu0 %1482
          %v1485 = vmul.f32 %v1467, %v1483
          %v1486 = vpack.c.bf16 %v1485, %v1485
          %1488 = vrot.lane.b32.xlu0 %v1486, 96
          %v1489 = vpop.permute.xlu0 %1488
          %v1491 = vsel %vm1269, %v1489, 0
          %1493 = vmatprep.subr.bf16.mxu0 0
          %1494 = vmatpush1.bf16.msra.mxu0 %v1267
          %1495 = vmatprep.subr.bf16.mxu0 0
          %1496 = vmatpush1.bf16.msra.mxu0 0
          %1497 = vmatprep.subr.bf16.mxu0 0
          %1498 = vmatpush1.bf16.msra.mxu0 0
          %1499 = vmatprep.subr.bf16.mxu0 0
          %1500 = vmatpush1.bf16.msra.mxu0 0
          %1501 = vmatprep.subr.bf16.mxu0 0
          %1502 = vmatpush1.bf16.msra.mxu0 0
          %1503 = vmatprep.subr.bf16.mxu0 0
          %1504 = vmatpush1.bf16.msra.mxu0 0
          %1505 = vmatprep.subr.bf16.mxu0 0
          %1506 = vmatpush1.bf16.msra.mxu0 0
          %1507 = vmatprep.subr.bf16.mxu0 0
          %1508 = vmatpush1.bf16.msra.mxu0 0
          %1509 = vmatprep.subr.bf16.mxu0 0
          %1510 = vmatpush1.bf16.msra.mxu0 0
          %1511 = vmatprep.subr.bf16.mxu0 0
          %1512 = vmatpush1.bf16.msra.mxu0 0
          %1513 = vmatprep.subr.bf16.mxu0 0
          %1514 = vmatpush1.bf16.msra.mxu0 0
          %1515 = vmatprep.subr.bf16.mxu0 0
          %1516 = vmatpush1.bf16.msra.mxu0 0
          %1517 = vmatprep.subr.bf16.mxu0 0
          %1518 = vmatpush1.bf16.msra.mxu0 0
          %1519 = vmatprep.subr.bf16.mxu0 0
          %1520 = vmatpush1.bf16.msra.mxu0 0
          %1521 = vmatprep.subr.bf16.mxu0 0
          %1522 = vmatpush1.bf16.msra.mxu0 0
          %1523 = vmatprep.subr.bf16.mxu0 0
          %1524 = vmatpush1.bf16.msra.mxu0 0
          %1525 = vmatprep.mubr.bf16.mxu0 0
          %1526 = vmatmul.mubr.bf16.gmra.mrb[0].mxu0 %v1491
          %v1527 = vpop.f32.mrb[0].mxu0
          %v1528 = vadd.f32 0.0, %v1527
          %v1529 = vpop.f32.mrb[0].mxu0
          %v1530 = vpop.f32.mrb[0].mxu0
          %v1531 = vpop.f32.mrb[0].mxu0
          %1532 = vdwg.mxu0
          %v1533 = vadd.f32 %v640, %v1528
          %v1534 = vxor.u32 %v1533, 2147483648
          %v1535 = vmul.f32 %v1534, 1.442695
          %v1536 = vpow.pop %v1535
          %v1537 = vadd.f32 %v1536, 1.0
          %v1538 = vrcp.pop %v1537
          %v1539 = vmul.f32 1.0, %v1538
          %v1540 = vtanh.pop %v1533
          %v1541 = vmul.f32 %v1539, %v1479
          %1543 = vrot.lane.b32.xlu0 %v1540, 80
          %v1544 = vpop.permute.xlu0 %1543
          %v1546 = vmul.f32 %v1539, %v1544
          %1548 = vrot.lane.b32.xlu0 %v1546, 16
          %v1549 = vpop.permute.xlu0 %1548
          %v1551 = vadd.f32 %v1541, %v1549
          %v1552 = vtanh.pop %v1551
          %1554 = vrot.lane.b32.xlu0 %v1552, 16
          %v1555 = vpop.permute.xlu0 %1554
          %v1557 = vmul.f32 %v1539, %v1555
          %v1558 = vpack.c.bf16 %v1557, %v1557
          %1560 = vrot.lane.b32.xlu0 %v1558, 96
          %v1561 = vpop.permute.xlu0 %1560
          %v1563 = vsel %vm1269, %v1561, 0
          %1565 = vmatprep.subr.bf16.mxu0 0
          %1566 = vmatpush1.bf16.msra.mxu0 %v1267
          %1567 = vmatprep.subr.bf16.mxu0 0
          %1568 = vmatpush1.bf16.msra.mxu0 0
          %1569 = vmatprep.subr.bf16.mxu0 0
          %1570 = vmatpush1.bf16.msra.mxu0 0
          %1571 = vmatprep.subr.bf16.mxu0 0
          %1572 = vmatpush1.bf16.msra.mxu0 0
          %1573 = vmatprep.subr.bf16.mxu0 0
          %1574 = vmatpush1.bf16.msra.mxu0 0
          %1575 = vmatprep.subr.bf16.mxu0 0
          %1576 = vmatpush1.bf16.msra.mxu0 0
          %1577 = vmatprep.subr.bf16.mxu0 0
          %1578 = vmatpush1.bf16.msra.mxu0 0
          %1579 = vmatprep.subr.bf16.mxu0 0
          %1580 = vmatpush1.bf16.msra.mxu0 0
          %1581 = vmatprep.subr.bf16.mxu0 0
          %1582 = vmatpush1.bf16.msra.mxu0 0
          %1583 = vmatprep.subr.bf16.mxu0 0
          %1584 = vmatpush1.bf16.msra.mxu0 0
          %1585 = vmatprep.subr.bf16.mxu0 0
          %1586 = vmatpush1.bf16.msra.mxu0 0
          %1587 = vmatprep.subr.bf16.mxu0 0
          %1588 = vmatpush1.bf16.msra.mxu0 0
          %1589 = vmatprep.subr.bf16.mxu0 0
          %1590 = vmatpush1.bf16.msra.mxu0 0
          %1591 = vmatprep.subr.bf16.mxu0 0
          %1592 = vmatpush1.bf16.msra.mxu0 0
          %1593 = vmatprep.subr.bf16.mxu0 0
          %1594 = vmatpush1.bf16.msra.mxu0 0
          %1595 = vmatprep.subr.bf16.mxu0 0
          %1596 = vmatpush1.bf16.msra.mxu0 0
          %1597 = vmatprep.mubr.bf16.mxu0 0
          %1598 = vmatmul.mubr.bf16.gmra.mrb[0].mxu0 %v1563
          %v1599 = vpop.f32.mrb[0].mxu0
          %v1600 = vadd.f32 0.0, %v1599
          %v1601 = vpop.f32.mrb[0].mxu0
          %v1602 = vpop.f32.mrb[0].mxu0
          %v1603 = vpop.f32.mrb[0].mxu0
          %1604 = vdwg.mxu0
          %v1605 = vadd.f32 %v635, %v1600
          %v1606 = vxor.u32 %v1605, 2147483648
          %v1607 = vmul.f32 %v1606, 1.442695
          %v1608 = vpow.pop %v1607
          %v1609 = vadd.f32 %v1608, 1.0
          %v1610 = vrcp.pop %v1609
          %v1611 = vmul.f32 1.0, %v1610
          %v1612 = vtanh.pop %v1605
          %v1613 = vmul.f32 %v1611, %v1551
          %1615 = vrot.lane.b32.xlu0 %v1612, 80
          %v1616 = vpop.permute.xlu0 %1615
          %v1618 = vmul.f32 %v1611, %v1616
          %1620 = vrot.lane.b32.xlu0 %v1618, 16
          %v1621 = vpop.permute.xlu0 %1620
          %v1623 = vadd.f32 %v1613, %v1621
          %v1624 = vtanh.pop %v1623
          %1626 = vrot.lane.b32.xlu0 %v1624, 16
          %v1627 = vpop.permute.xlu0 %1626
          %v1629 = vmul.f32 %v1611, %v1627
          %v1630 = vpack.c.bf16 %v1629, %v1629
          %1632 = vrot.lane.b32.xlu0 %v1630, 96
          %v1633 = vpop.permute.xlu0 %1632
          %v1635 = vsel %vm1269, %v1633, 0
          %1637 = vmatprep.subr.bf16.mxu0 0
          %1638 = vmatpush1.bf16.msra.mxu0 %v1267
          %1639 = vmatprep.subr.bf16.mxu0 0
          %1640 = vmatpush1.bf16.msra.mxu0 0
          %1641 = vmatprep.subr.bf16.mxu0 0
          %1642 = vmatpush1.bf16.msra.mxu0 0
          %1643 = vmatprep.subr.bf16.mxu0 0
          %1644 = vmatpush1.bf16.msra.mxu0 0
          %1645 = vmatprep.subr.bf16.mxu0 0
          %1646 = vmatpush1.bf16.msra.mxu0 0
          %1647 = vmatprep.subr.bf16.mxu0 0
          %1648 = vmatpush1.bf16.msra.mxu0 0
          %1649 = vmatprep.subr.bf16.mxu0 0
          %1650 = vmatpush1.bf16.msra.mxu0 0
          %1651 = vmatprep.subr.bf16.mxu0 0
          %1652 = vmatpush1.bf16.msra.mxu0 0
          %1653 = vmatprep.subr.bf16.mxu0 0
          %1654 = vmatpush1.bf16.msra.mxu0 0
          %1655 = vmatprep.subr.bf16.mxu0 0
          %1656 = vmatpush1.bf16.msra.mxu0 0
          %1657 = vmatprep.subr.bf16.mxu0 0
          %1658 = vmatpush1.bf16.msra.mxu0 0
          %1659 = vmatprep.subr.bf16.mxu0 0
          %1660 = vmatpush1.bf16.msra.mxu0 0
          %1661 = vmatprep.subr.bf16.mxu0 0
          %1662 = vmatpush1.bf16.msra.mxu0 0
          %1663 = vmatprep.subr.bf16.mxu0 0
          %1664 = vmatpush1.bf16.msra.mxu0 0
          %1665 = vmatprep.subr.bf16.mxu0 0
          %1666 = vmatpush1.bf16.msra.mxu0 0
          %1667 = vmatprep.subr.bf16.mxu0 0
          %1668 = vmatpush1.bf16.msra.mxu0 0
          %1669 = vmatprep.mubr.bf16.mxu0 0
          %1670 = vmatmul.mubr.bf16.gmra.mrb[0].mxu0 %v1635
          %v1671 = vpop.f32.mrb[0].mxu0
          %v1672 = vadd.f32 0.0, %v1671
          %v1673 = vpop.f32.mrb[0].mxu0
          %v1674 = vpop.f32.mrb[0].mxu0
          %v1675 = vpop.f32.mrb[0].mxu0
          %1676 = vdwg.mxu0
          %v1677 = vadd.f32 %v632, %v1672
          %v1678 = vxor.u32 %v1677, 2147483648
          %v1679 = vmul.f32 %v1678, 1.442695
          %v1680 = vpow.pop %v1679
          %v1681 = vadd.f32 %v1680, 1.0
          %v1682 = vrcp.pop %v1681
          %v1683 = vmul.f32 1.0, %v1682
          %v1684 = vtanh.pop %v1677
          %v1685 = vmul.f32 %v1683, %v1623
          %1687 = vrot.lane.b32.xlu0 %v1684, 80
          %v1688 = vpop.permute.xlu0 %1687
          %v1690 = vmul.f32 %v1683, %v1688
          %1692 = vrot.lane.b32.xlu0 %v1690, 16
          %v1693 = vpop.permute.xlu0 %1692
          %v1695 = vadd.f32 %v1685, %v1693
          %v1696 = vtanh.pop %v1695
          %1698 = vrot.lane.b32.xlu0 %v1696, 16
          %v1699 = vpop.permute.xlu0 %1698
          %v1701 = vmul.f32 %v1683, %v1699
          %v1702 = vpack.c.bf16 %v1701, %v1701
          %1704 = vrot.lane.b32.xlu0 %v1702, 96
          %v1705 = vpop.permute.xlu0 %1704
          %v1707 = vsel %vm1269, %v1705, 0
          %1709 = vmatprep.subr.bf16.mxu0 0
          %1710 = vmatpush1.bf16.msra.mxu0 %v1267
          %1711 = vmatprep.subr.bf16.mxu0 0
          %1712 = vmatpush1.bf16.msra.mxu0 0
          %1713 = vmatprep.subr.bf16.mxu0 0
          %1714 = vmatpush1.bf16.msra.mxu0 0
          %1715 = vmatprep.subr.bf16.mxu0 0
          %1716 = vmatpush1.bf16.msra.mxu0 0
          %1717 = vmatprep.subr.bf16.mxu0 0
          %1718 = vmatpush1.bf16.msra.mxu0 0
          %1719 = vmatprep.subr.bf16.mxu0 0
          %1720 = vmatpush1.bf16.msra.mxu0 0
          %1721 = vmatprep.subr.bf16.mxu0 0
          %1722 = vmatpush1.bf16.msra.mxu0 0
          %1723 = vmatprep.subr.bf16.mxu0 0
          %1724 = vmatpush1.bf16.msra.mxu0 0
          %1725 = vmatprep.subr.bf16.mxu0 0
          %1726 = vmatpush1.bf16.msra.mxu0 0
          %1727 = vmatprep.subr.bf16.mxu0 0
          %1728 = vmatpush1.bf16.msra.mxu0 0
          %1729 = vmatprep.subr.bf16.mxu0 0
          %1730 = vmatpush1.bf16.msra.mxu0 0
          %1731 = vmatprep.subr.bf16.mxu0 0
          %1732 = vmatpush1.bf16.msra.mxu0 0
          %1733 = vmatprep.subr.bf16.mxu0 0
          %1734 = vmatpush1.bf16.msra.mxu0 0
          %1735 = vmatprep.subr.bf16.mxu0 0
          %1736 = vmatpush1.bf16.msra.mxu0 0
          %1737 = vmatprep.subr.bf16.mxu0 0
          %1738 = vmatpush1.bf16.msra.mxu0 0
          %1739 = vmatprep.subr.bf16.mxu0 0
          %1740 = vmatpush1.bf16.msra.mxu0 0
          %1741 = vmatprep.mubr.bf16.mxu0 0
          %1742 = vmatmul.mubr.bf16.gmra.mrb[0].mxu0 %v1707
          %v1743 = vpop.f32.mrb[0].mxu0
          %v1744 = vadd.f32 0.0, %v1743
          %v1745 = vpop.f32.mrb[0].mxu0
          %v1746 = vpop.f32.mrb[0].mxu0
          %v1747 = vpop.f32.mrb[0].mxu0
          %1748 = vdwg.mxu0
          %v1749 = vadd.f32 %v627, %v1744
          %v1750 = vxor.u32 %v1749, 2147483648
          %v1751 = vmul.f32 %v1750, 1.442695
          %v1752 = vpow.pop %v1751
          %v1753 = vadd.f32 %v1752, 1.0
          %v1754 = vrcp.pop %v1753
          %v1755 = vmul.f32 1.0, %v1754
          %v1756 = vtanh.pop %v1749
          %v1757 = vmul.f32 %v1755, %v1695
          %1759 = vrot.lane.b32.xlu0 %v1756, 80
          %v1760 = vpop.permute.xlu0 %1759
          %v1762 = vmul.f32 %v1755, %v1760
          %1764 = vrot.lane.b32.xlu0 %v1762, 16
          %v1765 = vpop.permute.xlu0 %1764
          %v1767 = vadd.f32 %v1757, %v1765
          %v1768 = vtanh.pop %v1767
          %1770 = vrot.lane.b32.xlu0 %v1768, 16
          %v1771 = vpop.permute.xlu0 %1770
          %v1773 = vmul.f32 %v1755, %v1771
          %v1774 = vpack.c.bf16 %v1773, %v1773
          %1776 = vrot.lane.b32.xlu0 %v1774, 96
          %v1777 = vpop.permute.xlu0 %1776
          %v1779 = vsel %vm1269, %v1777, 0
          %1781 = vmatprep.subr.bf16.mxu0 0
          %1782 = vmatpush1.bf16.msra.mxu0 %v1267
          %1783 = vmatprep.subr.bf16.mxu0 0
          %1784 = vmatpush1.bf16.msra.mxu0 0
          %1785 = vmatprep.subr.bf16.mxu0 0
          %1786 = vmatpush1.bf16.msra.mxu0 0
          %1787 = vmatprep.subr.bf16.mxu0 0
          %1788 = vmatpush1.bf16.msra.mxu0 0
          %1789 = vmatprep.subr.bf16.mxu0 0
          %1790 = vmatpush1.bf16.msra.mxu0 0
          %1791 = vmatprep.subr.bf16.mxu0 0
          %1792 = vmatpush1.bf16.msra.mxu0 0
          %1793 = vmatprep.subr.bf16.mxu0 0
          %1794 = vmatpush1.bf16.msra.mxu0 0
          %1795 = vmatprep.subr.bf16.mxu0 0
          %1796 = vmatpush1.bf16.msra.mxu0 0
          %1797 = vmatprep.subr.bf16.mxu0 0
          %1798 = vmatpush1.bf16.msra.mxu0 0
          %1799 = vmatprep.subr.bf16.mxu0 0
          %1800 = vmatpush1.bf16.msra.mxu0 0
          %1801 = vmatprep.subr.bf16.mxu0 0
          %1802 = vmatpush1.bf16.msra.mxu0 0
          %1803 = vmatprep.subr.bf16.mxu0 0
          %1804 = vmatpush1.bf16.msra.mxu0 0
          %1805 = vmatprep.subr.bf16.mxu0 0
          %1806 = vmatpush1.bf16.msra.mxu0 0
          %1807 = vmatprep.subr.bf16.mxu0 0
          %1808 = vmatpush1.bf16.msra.mxu0 0
          %1809 = vmatprep.subr.bf16.mxu0 0
          %1810 = vmatpush1.bf16.msra.mxu0 0
          %1811 = vmatprep.subr.bf16.mxu0 0
          %1812 = vmatpush1.bf16.msra.mxu0 0
          %1813 = vmatprep.mubr.bf16.mxu0 0
          %1814 = vmatmul.mubr.bf16.gmra.mrb[0].mxu0 %v1779
          %v1815 = vpop.f32.mrb[0].mxu0
          %v1816 = vadd.f32 0.0, %v1815
          %v1817 = vpop.f32.mrb[0].mxu0
          %v1818 = vpop.f32.mrb[0].mxu0
          %v1819 = vpop.f32.mrb[0].mxu0
          %1820 = vdwg.mxu0
          %v1821 = vadd.f32 %v624, %v1816
          %v1822 = vxor.u32 %v1821, 2147483648
          %v1823 = vmul.f32 %v1822, 1.442695
          %v1824 = vpow.pop %v1823
          %v1825 = vadd.f32 %v1824, 1.0
          %v1826 = vrcp.pop %v1825
          %v1827 = vmul.f32 1.0, %v1826
          %v1828 = vtanh.pop %v1821
          %v1829 = vmul.f32 %v1827, %v1767
          %1831 = vrot.lane.b32.xlu0 %v1828, 80
          %v1832 = vpop.permute.xlu0 %1831
          %v1834 = vmul.f32 %v1827, %v1832
          %1836 = vrot.lane.b32.xlu0 %v1834, 16
          %v1837 = vpop.permute.xlu0 %1836
          %v1839 = vadd.f32 %v1829, %v1837
          %v1840 = vtanh.pop %v1839
          %1842 = vrot.lane.b32.xlu0 %v1840, 16
          %v1843 = vpop.permute.xlu0 %1842
          %v1845 = vmul.f32 %v1827, %v1843
          %1847 = vrot.lane.b32.xlu0 %v1845, 96
          %v1848 = vpop.permute.xlu0 %1847
          %1850 = vst.msk [vmem:[#allocation2] sm:$0xff] %vm1269, %v1848
          %1852 = vrot.lane.b32.xlu0 %v1839, 112
          %v1853 = vpop.permute.xlu0 %1852
          %1855 = vst.msk [vmem:[#allocation3] sm:$0xff] %vm1269, %v1853
        $region80: #{build_model_mols_forward.8} parent=43 // pred_fallthru
          _
        // Predicated region
        $region81: #{build_model_mols_forward.8} parent=43 // pred_check
          %p1856 = pneg %p516
        $region82: #{build_model_mols_forward.8} parent=43 // pred_check_branch
          %1858 = sbr.rel (%p1856) target = $region84
        $region83: #{build_model_mols_forward.8} parent=43 // pred_region
          %v1859 = vld [vmem:[#allocation2] sm:$0xff]
          %vm1860 = vcmask 130048
          %1861 = vst.msk [vmem:[%s503] sm:$0xff] %vm1860, %v1859
          %v1862 = vld [vmem:[#allocation3] sm:$0xff]
          %1863 = vst.msk [vmem:[%s510] sm:$0xff] %vm1860, %v1862
        $region84: #{build_model_mols_forward.8} parent=43 // pred_fallthru
          _
        %s1864 = sand.u32 %s219, 1
        %s1865 = scalar_lea.sflag [#allocation6], %s1864
        %s1866 = sand.u32 %s219, 1
        %s1867 = smul.addr %s1866, 8
        %s1868 = scalar_lea.vmem [#allocation15], %s1867
        %s1869 = sand.u32 %s245, 1
        %s1870 = scalar_lea.sflag [#allocation17], %s1869
        %s1871 = sand.u32 %s245, 1
        %s1872 = smul.addr %s1871, 8
        %s1873 = scalar_lea.vmem [#allocation16], %s1872
        // Predicated region
        $region85: #{build_model_mols_forward.8} parent=43 // pred_check
          %p1874 = pneg %p229
        $region86: #{build_model_mols_forward.8} parent=43 // pred_check_branch
          %1876 = sbr.rel (%p1874) target = $region88
        $region87: #{build_model_mols_forward.8} parent=43 // pred_region
          %s1878 = ssub.s32 128, 128
          %1879 = vsyncadd %s1865, %s1878
          %s1880 = smul.addr %s41, 128
          %s1881 = scalar_lea.hbm %s6, %s1880
          %s1883 = sshll.u32 %s1868, 4
          %s1884 = int_to_ptr.vmem [resolvable:$true] %s1883
          %1886 = dma.vmem_to_hbm [thread:$0]  %s1884, 128, %s1881, %s1865
        $region88: #{build_model_mols_forward.8} parent=43 // pred_fallthru
          _
        // Predicated region
        $region89: #{build_model_mols_forward.8} parent=43 // pred_check
          %p1887 = pneg %p255
        $region90: #{build_model_mols_forward.8} parent=43 // pred_check_branch
          %1889 = sbr.rel (%p1887) target = $region92
        $region91: #{build_model_mols_forward.8} parent=43 // pred_region
          %s1891 = ssub.s32 128, 128
          %1892 = vsyncadd %s1870, %s1891
          %s1893 = smul.addr %s41, 128
          %s1894 = scalar_lea.hbm %s7, %s1893
          %s1896 = sshll.u32 %s1873, 4
          %s1897 = int_to_ptr.vmem [resolvable:$true] %s1896
          %1899 = dma.vmem_to_hbm [thread:$0]  %s1897, 128, %s1894, %s1870
        $region92: #{build_model_mols_forward.8} parent=43 // pred_fallthru
          _
      $region44: #{build_model_mols_forward.8} parent=5 // pred_fallthru
        _
      %p1900 = scmp.le.s32.totalorder 2, %s32
      // Predicated region
      $region93: #{build_model_mols_forward.8} parent=5 // pred_check
        %p1901 = pneg %p1900
      $region94: #{build_model_mols_forward.8} parent=5 // pred_check_branch
        %1903 = sbr.rel (%p1901) target = $region96
      $region95: #{build_model_mols_forward.8} parent=5 // pred_region
        %s1904 = ssub.s32 %s32, 2
        // Predicated region
        $region97: #{build_model_mols_forward.8} parent=95 // pred_check
          %p1905 = pneg %p235
        $region98: #{build_model_mols_forward.8} parent=95 // pred_check_branch
          %1907 = sbr.rel (%p1905) target = $region100
        $region99: #{build_model_mols_forward.8} parent=95 // pred_region
          %s1908 = sand.u32 %s220, 1
          %s1909 = scalar_lea.sflag [#allocation6], %s1908
          %s1910 = sand.u32 %s220, 1
          %s1911 = smul.addr %s1910, 8
          %s1912 = scalar_lea.vmem [#allocation15], %s1911
          %1913 = dma.done %s1909, 128
        $region100: #{build_model_mols_forward.8} parent=95 // pred_fallthru
          _
        // Predicated region
        $region101: #{build_model_mols_forward.8} parent=95 // pred_check
          %p1914 = pneg %p261
        $region102: #{build_model_mols_forward.8} parent=95 // pred_check_branch
          %1916 = sbr.rel (%p1914) target = $region104
        $region103: #{build_model_mols_forward.8} parent=95 // pred_region
          %s1917 = sand.u32 %s246, 1
          %s1918 = scalar_lea.sflag [#allocation17], %s1917
          %s1919 = sand.u32 %s246, 1
          %s1920 = smul.addr %s1919, 8
          %s1921 = scalar_lea.vmem [#allocation16], %s1920
          %1922 = dma.done %s1918, 128
        $region104: #{build_model_mols_forward.8} parent=95 // pred_fallthru
          _
      $region96: #{build_model_mols_forward.8} parent=5 // pred_fallthru
        _
    $region6: #{build_model_mols_forward.8} parent=1 // loop_footer
      %s36 = sadd.s32 1, %s32
    $region7: #{build_model_mols_forward.8} parent=1 // loop_footer_branch
      %31 = sbr.rel target = $region3
    $region8: #{build_model_mols_forward.8} parent=1 // loop_exit
      _
    %1923 = vsyncpa [#allocation5], 1
    %s1924 = scalar_lea.sflag [#allocation5], 1
    %1925 = vsyncpa %s1924, 1
    %1926 = vsyncpa [#allocation8], 1
    %s1927 = scalar_lea.sflag [#allocation8], 1
    %1928 = vsyncpa %s1927, 1
    %1929 = vsyncpa [#allocation11], 1
    %s1930 = scalar_lea.sflag [#allocation11], 1
    %1931 = vsyncpa %s1930, 1
    %1932 = vsyncpa [#allocation14], 1
    %s1933 = scalar_lea.sflag [#allocation14], 1
    %1934 = vsyncpa %s1933, 1
    %1935 = vsyncpa [#allocation6], 1
    %s1936 = scalar_lea.sflag [#allocation6], 1
    %1937 = vsyncpa %s1936, 1
    %1938 = vsyncpa [#allocation17], 1
    %s1939 = scalar_lea.sflag [#allocation17], 1
    %1940 = vsyncpa %s1939, 1

// kernel: build_model_mols_forward.10
$region0: #{build_model_mols_forward.10}
  #allocation0 [shape = 'u32[]', space=smem, size = 0x4, offset = 0x4, fixed_abs, tag = 'smem constant byte address 0x4 - core index']
  #allocation1 [shape = 'u32[144,128]{1,0:T(1,128)}', space=vmem, size = 0x12000, scoped, tag = 'internal scratch']
  #allocation2 [shape = 'f32[8,32]{1,0:T(8,128)}', space=vmem, size = 0x1000, scoped, tag = 'scratch operand']
  #allocation3 [shape = 'f32[8,32]{1,0:T(8,128)}', space=vmem, size = 0x1000, scoped, tag = 'scratch operand']
  %s0 = inlined_call_operand.hbm [shape: bf16[64,16], index: 0, kind: input, shape index: {}]
  %s1 = inlined_call_operand.hbm [shape: bf16[1,16,128], index: 1, kind: input, shape index: {}]
  %s2 = inlined_call_operand.hbm [shape: bf16[1,32,128], index: 2, kind: input, shape index: {}]
  %s3 = inlined_call_operand.hbm [shape: f32[1,1,128], index: 3, kind: input, shape index: {}]
  %s4 = inlined_call_operand.hbm [shape: f32[1,8,32], index: 4, kind: input, shape index: {}]
  %s5 = inlined_call_operand.hbm [shape: f32[1,8,32], index: 5, kind: input, shape index: {}]
  %s6 = inlined_call_operand.hbm [shape: f32[1,8,8,32], index: 6, kind: output, shape index: {0}]
  %s7 = inlined_call_operand.hbm [shape: f32[1,8,32], index: 7, kind: output, shape index: {1}]
  %s8 = inlined_call_operand.hbm [shape: f32[1,8,32], index: 8, kind: output, shape index: {2}]
  %9 = xla_tuple %s6, %s7, %s8
  %s10 = sld [smem:[#allocation0]]
  $region82: #{build_model_mols_forward.10} parent=0
    _
  %s12 = ssub.s32 1, %s10
  %s13 = scalar_select 0, %s12, %s10
  $region1: #{build_model_mols_forward.10} parent=0
    #allocation4 [shape = 'u8[16384]{0}', space=vmem, size = 0x4000, scoped, tag = 'input window, operand 0, single buffered']
    #allocation5 [shape = 's32[1]{0}', space=sflag, size = 0x4, scoped, tag = 'scoped memory for build_model_mols_forward.10']
    #allocation6 [shape = 's32[1]{0}', space=sflag, size = 0x4, scoped, tag = 'scoped memory for build_model_mols_forward.10']
    #allocation7 [shape = 'u8[4096]{0}', space=vmem, size = 0x1000, scoped, tag = 'input window, operand 1, single buffered']
    #allocation8 [shape = 's32[1]{0}', space=sflag, size = 0x4, scoped, tag = 'scoped memory for build_model_mols_forward.10']
    #allocation9 [shape = 'u8[8192]{0}', space=vmem, size = 0x2000, scoped, tag = 'input window, operand 2, single buffered']
    #allocation10 [shape = 'u8[512]{0}', space=vmem, size = 0x400, scoped, tag = 'input window, operand 3, single buffered']
    #allocation11 [shape = 's32[1]{0}', space=sflag, size = 0x4, scoped, tag = 'scoped memory for build_model_mols_forward.10']
    #allocation12 [shape = 'u8[4096]{0}', space=vmem, size = 0x1000, scoped, tag = 'input window, operand 4, single buffered']
    #allocation13 [shape = 'u8[4096]{0}', space=vmem, size = 0x1000, scoped, tag = 'input window, operand 5, single buffered']
    #allocation14 [shape = 's32[1]{0}', space=sflag, size = 0x4, scoped, tag = 'scoped memory for build_model_mols_forward.10']
    #allocation15 [shape = 'u8[32768]{0}', space=vmem, size = 0x8000, scoped, tag = 'output window, operand 0, single buffered']
    #allocation16 [shape = 'u8[4096]{0}', space=vmem, size = 0x1000, scoped, tag = 'output window, operand 1, single buffered']
    #allocation17 [shape = 's32[1]{0}', space=sflag, size = 0x4, scoped, tag = 'scoped memory for build_model_mols_forward.10']
    #allocation18 [shape = 'u8[4096]{0}', space=vmem, size = 0x1000, scoped, tag = 'output window, operand 2, single buffered']
    %14 = vsyncpa [#allocation5], 0
    %15 = vsyncpa [#allocation8], 0
    %16 = vsyncpa [#allocation11], 0
    %17 = vsyncpa [#allocation14], 0
    %18 = vsyncpa [#allocation6], 0
    %19 = vsyncpa [#allocation17], 0
    // Predicated region
    $region2: #{build_model_mols_forward.10} parent=1 // pred_check
      _
    $region3: #{build_model_mols_forward.10} parent=1 // pred_check_branch
      %21 = sbr.rel (0) target = $region5
    $region4: #{build_model_mols_forward.10} parent=1 // pred_region
      %s23 = ssub.s32 512, 512
      %24 = vsyncadd [#allocation5], %s23
      %s25 = sshll.u32 [#allocation4], 4
      %s26 = int_to_ptr.vmem [resolvable:$true] %s25
      %31 = dma.hbm_to_vmem [thread:$0]  %s0, 512, %s26, [#allocation5], 64, 64, 4
    $region5: #{build_model_mols_forward.10} parent=1 // pred_fallthru
      _
    // Predicated region
    $region6: #{build_model_mols_forward.10} parent=1 // pred_check
      _
    $region7: #{build_model_mols_forward.10} parent=1 // pred_check_branch
      %33 = sbr.rel (0) target = $region9
    $region8: #{build_model_mols_forward.10} parent=1 // pred_region
      %s35 = ssub.s32 128, 128
      %36 = vsyncadd [#allocation8], %s35
      %s37 = sshll.u32 [#allocation7], 4
      %s38 = int_to_ptr.vmem [resolvable:$true] %s37
      %43 = dma.hbm_to_vmem [thread:$0]  %s1, 128, %s38, [#allocation8], 64, 64, 4
    $region9: #{build_model_mols_forward.10} parent=1 // pred_fallthru
      _
    // Predicated region
    $region10: #{build_model_mols_forward.10} parent=1 // pred_check
      _
    $region11: #{build_model_mols_forward.10} parent=1 // pred_check_branch
      %45 = sbr.rel (0) target = $region13
    $region12: #{build_model_mols_forward.10} parent=1 // pred_region
      %s47 = ssub.s32 256, 256
      %48 = vsyncadd [#allocation8], %s47
      %s49 = sshll.u32 [#allocation9], 4
      %s50 = int_to_ptr.vmem [resolvable:$true] %s49
      %55 = dma.hbm_to_vmem [thread:$0]  %s2, 256, %s50, [#allocation8], 64, 64, 4
    $region13: #{build_model_mols_forward.10} parent=1 // pred_fallthru
      _
    // Predicated region
    $region14: #{build_model_mols_forward.10} parent=1 // pred_check
      _
    $region15: #{build_model_mols_forward.10} parent=1 // pred_check_branch
      %57 = sbr.rel (0) target = $region17
    $region16: #{build_model_mols_forward.10} parent=1 // pred_region
      %s59 = ssub.s32 16, 16
      %60 = vsyncadd [#allocation11], %s59
      %s62 = sshll.u32 [#allocation10], 4
      %s63 = int_to_ptr.vmem [resolvable:$true] %s62
      %65 = dma.hbm_to_vmem [thread:$0]  %s3, 16, %s63, [#allocation11]
    $region17: #{build_model_mols_forward.10} parent=1 // pred_fallthru
      _
    // Predicated region
    $region18: #{build_model_mols_forward.10} parent=1 // pred_check
      _
    $region19: #{build_model_mols_forward.10} parent=1 // pred_check_branch
      %67 = sbr.rel (0) target = $region21
    $region20: #{build_model_mols_forward.10} parent=1 // pred_region
      %s69 = ssub.s32 128, 128
      %70 = vsyncadd [#allocation11], %s69
      %s72 = sshll.u32 [#allocation12], 4
      %s73 = int_to_ptr.vmem [resolvable:$true] %s72
      %75 = dma.hbm_to_vmem [thread:$0]  %s4, 128, %s73, [#allocation11]
    $region21: #{build_model_mols_forward.10} parent=1 // pred_fallthru
      _
    // Predicated region
    $region22: #{build_model_mols_forward.10} parent=1 // pred_check
      _
    $region23: #{build_model_mols_forward.10} parent=1 // pred_check_branch
      %77 = sbr.rel (0) target = $region25
    $region24: #{build_model_mols_forward.10} parent=1 // pred_region
      %s79 = ssub.s32 128, 128
      %80 = vsyncadd [#allocation14], %s79
      %s82 = sshll.u32 [#allocation13], 4
      %s83 = int_to_ptr.vmem [resolvable:$true] %s82
      %85 = dma.hbm_to_vmem [thread:$0]  %s5, 128, %s83, [#allocation14]
    $region25: #{build_model_mols_forward.10} parent=1 // pred_fallthru
      _
    // Predicated region
    $region26: #{build_model_mols_forward.10} parent=1 // pred_check
      _
    $region27: #{build_model_mols_forward.10} parent=1 // pred_check_branch
      %87 = sbr.rel (0) target = $region29
    $region28: #{build_model_mols_forward.10} parent=1 // pred_region
      %88 = dma.done [#allocation5], 512
    $region29: #{build_model_mols_forward.10} parent=1 // pred_fallthru
      _
    // Predicated region
    $region30: #{build_model_mols_forward.10} parent=1 // pred_check
      _
    $region31: #{build_model_mols_forward.10} parent=1 // pred_check_branch
      %90 = sbr.rel (0) target = $region33
    $region32: #{build_model_mols_forward.10} parent=1 // pred_region
      %91 = dma.done [#allocation8], 128
    $region33: #{build_model_mols_forward.10} parent=1 // pred_fallthru
      _
    // Predicated region
    $region34: #{build_model_mols_forward.10} parent=1 // pred_check
      _
    $region35: #{build_model_mols_forward.10} parent=1 // pred_check_branch
      %93 = sbr.rel (0) target = $region37
    $region36: #{build_model_mols_forward.10} parent=1 // pred_region
      %94 = dma.done [#allocation8], 256
    $region37: #{build_model_mols_forward.10} parent=1 // pred_fallthru
      _
    // Predicated region
    $region38: #{build_model_mols_forward.10} parent=1 // pred_check
      _
    $region39: #{build_model_mols_forward.10} parent=1 // pred_check_branch
      %96 = sbr.rel (0) target = $region41
    $region40: #{build_model_mols_forward.10} parent=1 // pred_region
      %97 = dma.done [#allocation11], 16
    $region41: #{build_model_mols_forward.10} parent=1 // pred_fallthru
      _
    // Predicated region
    $region42: #{build_model_mols_forward.10} parent=1 // pred_check
      _
    $region43: #{build_model_mols_forward.10} parent=1 // pred_check_branch
      %99 = sbr.rel (0) target = $region45
    $region44: #{build_model_mols_forward.10} parent=1 // pred_region
      %100 = dma.done [#allocation11], 128
    $region45: #{build_model_mols_forward.10} parent=1 // pred_fallthru
      _
    // Predicated region
    $region46: #{build_model_mols_forward.10} parent=1 // pred_check
      _
    $region47: #{build_model_mols_forward.10} parent=1 // pred_check_branch
      %102 = sbr.rel (0) target = $region49
    $region48: #{build_model_mols_forward.10} parent=1 // pred_region
      %103 = dma.done [#allocation14], 128
    $region49: #{build_model_mols_forward.10} parent=1 // pred_fallthru
      _
    %p105 = scmp.eq.s32.totalorder 0, 0
    // Predicated region
    $region50: #{build_model_mols_forward.10} parent=1 // pred_check
      %p106 = pneg %p105
    $region51: #{build_model_mols_forward.10} parent=1 // pred_check_branch
      %108 = sbr.rel (%p106) target = $region53
    $region52: #{build_model_mols_forward.10} parent=1 // pred_region
      %v109 = vld [vmem:[#allocation12] sm:$0xff]
      %vm110 = vcmask 261120
      %111 = vst.msk [vmem:[#allocation2] sm:$0xff] %vm110, %v109
      %v112 = vld [vmem:[#allocation13] sm:$0xff]
      %113 = vst.msk [vmem:[#allocation3] sm:$0xff] %vm110, %v112
    $region53: #{build_model_mols_forward.10} parent=1 // pred_fallthru
      _
    %v114 = vld [vmem:[#allocation4] sm:$0xf]
    %v115 = vld [vmem:[#allocation4 + $0x4] sm:$0xf]
    %v116 = vld [vmem:[#allocation4 + $0x8] sm:$0xf]
    %v117 = vld [vmem:[#allocation4 + $0xc] sm:$0xf]
    %v118 = vld [vmem:[#allocation4 + $0x10] sm:$0xf]
    %v119 = vld [vmem:[#allocation4 + $0x14] sm:$0xf]
    %v120 = vld [vmem:[#allocation4 + $0x18] sm:$0xf]
    %v121 = vld [vmem:[#allocation4 + $0x1c] sm:$0xf]
    %v122 = vld [vmem:[#allocation7] sm:$0xf]
    %v123 = vld [vmem:[#allocation7 + $0x4] sm:$0xf]
    %v124 = vld [vmem:[#allocation10] sm:$0x1]
    %v126 = vlaneseq
    %v127 = vshrl.u32 %v126, 7
    %v128 = vsub.s32 0, %v127
    %v129 = vrot.slane %v124, %v128
    %v139 = vunpack.c.l.b16 %v114
    %v140 = vunpack.c.l.b16 %v115
    %v141 = vunpack.c.l.b16 %v116
    %v142 = vunpack.c.l.b16 %v117
    %v143 = vunpack.c.l.b16 %v118
    %v144 = vunpack.c.l.b16 %v119
    %v145 = vunpack.c.l.b16 %v120
    %v146 = vunpack.c.l.b16 %v121
    %v147 = vpack.c.b16 %v140, %v139
    %v148 = vpack.c.b16 %v142, %v141
    %v149 = vpack.c.b16 %v144, %v143
    %v150 = vpack.c.b16 %v146, %v145
    %v153 = vunpack.c.l.b16 %v122
    %v154 = vunpack.c.l.b16 %v123
    %v155 = vpack.c.b16 %v154, %v153
    %vm157 = vcmask 130048
    %v159 = vsel %vm157, %v147, 0
    %v162 = vsel %vm157, %v148, 0
    %v165 = vsel %vm157, %v149, 0
    %v168 = vsel %vm157, %v150, 0
    %170 = vmatprep.subr.bf16.mxu0 0
    %171 = vmatpush1.bf16.msra.mxu0 %v155
    %172 = vmatprep.subr.bf16.mxu0 0
    %173 = vmatpush1.bf16.msra.mxu0 0
    %174 = vmatprep.subr.bf16.mxu0 0
    %175 = vmatpush1.bf16.msra.mxu0 0
    %176 = vmatprep.subr.bf16.mxu0 0
    %177 = vmatpush1.bf16.msra.mxu0 0
    %178 = vmatprep.subr.bf16.mxu0 0
    %179 = vmatpush1.bf16.msra.mxu0 0
    %180 = vmatprep.subr.bf16.mxu0 0
    %181 = vmatpush1.bf16.msra.mxu0 0
    %182 = vmatprep.subr.bf16.mxu0 0
    %183 = vmatpush1.bf16.msra.mxu0 0
    %184 = vmatprep.subr.bf16.mxu0 0
    %185 = vmatpush1.bf16.msra.mxu0 0
    %186 = vmatprep.subr.bf16.mxu0 0
    %187 = vmatpush1.bf16.msra.mxu0 0
    %188 = vmatprep.subr.bf16.mxu0 0
    %189 = vmatpush1.bf16.msra.mxu0 0
    %190 = vmatprep.subr.bf16.mxu0 0
    %191 = vmatpush1.bf16.msra.mxu0 0
    %192 = vmatprep.subr.bf16.mxu0 0
    %193 = vmatpush1.bf16.msra.mxu0 0
    %194 = vmatprep.subr.bf16.mxu0 0
    %195 = vmatpush1.bf16.msra.mxu0 0
    %196 = vmatprep.subr.bf16.mxu0 0
    %197 = vmatpush1.bf16.msra.mxu0 0
    %198 = vmatprep.subr.bf16.mxu0 0
    %199 = vmatpush1.bf16.msra.mxu0 0
    %200 = vmatprep.subr.bf16.mxu0 0
    %201 = vmatpush1.bf16.msra.mxu0 0
    %202 = vmatprep.mubr.bf16.mxu0 0
    %203 = vmatmul.mubr.bf16.gmra.mrb[0].mxu0 %v159
    %v204 = vpop.f32.mrb[0].mxu0
    %v205 = vadd.f32 %v129, %v204
    %v206 = vpop.f32.mrb[0].mxu0
    %v207 = vpop.f32.mrb[0].mxu0
    %v208 = vadd.f32 %v129, %v207
    %v209 = vpop.f32.mrb[0].mxu0
    %210 = vmatprep.mubr.bf16.mxu0 0
    %211 = vmatmul.mubr.bf16.gmra.mrb[0].mxu0 %v162
    %v212 = vpop.f32.mrb[0].mxu0
    %v213 = vadd.f32 %v129, %v212
    %v214 = vpop.f32.mrb[0].mxu0
    %v215 = vpop.f32.mrb[0].mxu0
    %v216 = vadd.f32 %v129, %v215
    %v217 = vpop.f32.mrb[0].mxu0
    %218 = vmatprep.mubr.bf16.mxu0 0
    %219 = vmatmul.mubr.bf16.gmra.mrb[0].mxu0 %v165
    %v220 = vpop.f32.mrb[0].mxu0
    %v221 = vadd.f32 %v129, %v220
    %v222 = vpop.f32.mrb[0].mxu0
    %v223 = vpop.f32.mrb[0].mxu0
    %v224 = vadd.f32 %v129, %v223
    %v225 = vpop.f32.mrb[0].mxu0
    %226 = vmatprep.mubr.bf16.mxu0 0
    %227 = vmatmul.mubr.bf16.gmra.mrb[0].mxu0 %v168
    %v228 = vpop.f32.mrb[0].mxu0
    %v229 = vadd.f32 %v129, %v228
    %v230 = vpop.f32.mrb[0].mxu0
    %v231 = vpop.f32.mrb[0].mxu0
    %v232 = vadd.f32 %v129, %v231
    %v233 = vpop.f32.mrb[0].mxu0
    %234 = vdwg.mxu0
    %v235 = vld [vmem:[#allocation9] sm:$0xf]
    %v236 = vld [vmem:[#allocation9 + $0x4] sm:$0xf]
    %v237 = vld [vmem:[#allocation9 + $0x8] sm:$0xf]
    %v238 = vld [vmem:[#allocation9 + $0xc] sm:$0xf]
    %v239 = vld [vmem:[#allocation2] sm:$0xff]
    %v240 = vld [vmem:[#allocation3] sm:$0xff]
    %v241 = vpack.c.bf16 %v239, %v239
    %v246 = vunpack.c.l.b16 %v235
    %v247 = vunpack.c.l.b16 %v236
    %v248 = vunpack.c.l.b16 %v237
    %v249 = vunpack.c.l.b16 %v238
    %v250 = vpack.c.b16 %v247, %v246
    %v251 = vpack.c.b16 %v249, %v248
    %vm254 = vcmask 261120
    %v256 = vsel %vm254, %v241, 0
    %258 = vmatprep.subr.bf16.mxu0 0
    %259 = vmatpush1.bf16.msra.mxu0 %v250
    %260 = vmatprep.subr.bf16.mxu0 0
    %261 = vmatpush1.bf16.msra.mxu0 %v251
    %262 = vmatprep.subr.bf16.mxu0 0
    %263 = vmatpush1.bf16.msra.mxu0 0
    %264 = vmatprep.subr.bf16.mxu0 0
    %265 = vmatpush1.bf16.msra.mxu0 0
    %266 = vmatprep.subr.bf16.mxu0 0
    %267 = vmatpush1.bf16.msra.mxu0 0
    %268 = vmatprep.subr.bf16.mxu0 0
    %269 = vmatpush1.bf16.msra.mxu0 0
    %270 = vmatprep.subr.bf16.mxu0 0
    %271 = vmatpush1.bf16.msra.mxu0 0
    %272 = vmatprep.subr.bf16.mxu0 0
    %273 = vmatpush1.bf16.msra.mxu0 0
    %274 = vmatprep.subr.bf16.mxu0 0
    %275 = vmatpush1.bf16.msra.mxu0 0
    %276 = vmatprep.subr.bf16.mxu0 0
    %277 = vmatpush1.bf16.msra.mxu0 0
    %278 = vmatprep.subr.bf16.mxu0 0
    %279 = vmatpush1.bf16.msra.mxu0 0
    %280 = vmatprep.subr.bf16.mxu0 0
    %281 = vmatpush1.bf16.msra.mxu0 0
    %282 = vmatprep.subr.bf16.mxu0 0
    %283 = vmatpush1.bf16.msra.mxu0 0
    %284 = vmatprep.subr.bf16.mxu0 0
    %285 = vmatpush1.bf16.msra.mxu0 0
    %286 = vmatprep.subr.bf16.mxu0 0
    %287 = vmatpush1.bf16.msra.mxu0 0
    %288 = vmatprep.subr.bf16.mxu0 0
    %289 = vmatpush1.bf16.msra.mxu0 0
    %290 = vmatprep.mubr.bf16.mxu0 0
    %291 = vmatmul.mubr.bf16.gmra.mrb[0].mxu0 %v256
    %v292 = vpop.f32.mrb[0].mxu0
    %v293 = vadd.f32 0.0, %v292
    %v294 = vpop.f32.mrb[0].mxu0
    %v295 = vpop.f32.mrb[0].mxu0
    %v296 = vpop.f32.mrb[0].mxu0
    %297 = vdwg.mxu0
    %v298 = vadd.f32 %v205, %v293
    %v299 = vxor.u32 %v298, 2147483648
    %v300 = vmul.f32 %v299, 1.442695
    %v301 = vpow.pop %v300
    %v302 = vadd.f32 %v301, 1.0
    %v303 = vrcp.pop %v302
    %v304 = vmul.f32 1.0, %v303
    %v305 = vtanh.pop %v298
    %307 = vrot.lane.b32.xlu0 %v240, 32
    %v308 = vpop.permute.xlu0 %307
    %v310 = vmul.f32 %v304, %v308
    %312 = vrot.lane.b32.xlu0 %v305, 32
    %v313 = vpop.permute.xlu0 %312
    %v315 = vmul.f32 %v304, %v313
    %317 = vrot.lane.b32.xlu0 %v315, 32
    %v318 = vpop.permute.xlu0 %317
    %v320 = vadd.f32 %v310, %v318
    %v321 = vtanh.pop %v320
    %323 = vrot.lane.b32.xlu0 %v321, 32
    %v324 = vpop.permute.xlu0 %323
    %v326 = vmul.f32 %v304, %v324
    %328 = vrot.lane.b32.xlu0 %v326, 64
    %v329 = vpop.permute.xlu0 %328
    %331 = vst.msk [vmem:[#allocation15] sm:$0xff] %vm254, %v329
    %v332 = vpack.c.bf16 %v326, %v326
    %334 = vrot.lane.b32.xlu0 %v332, 64
    %v335 = vpop.permute.xlu0 %334
    %v337 = vsel %vm254, %v335, 0
    %339 = vmatprep.subr.bf16.mxu0 0
    %340 = vmatpush1.bf16.msra.mxu0 %v250
    %341 = vmatprep.subr.bf16.mxu0 0
    %342 = vmatpush1.bf16.msra.mxu0 %v251
    %343 = vmatprep.subr.bf16.mxu0 0
    %344 = vmatpush1.bf16.msra.mxu0 0
    %345 = vmatprep.subr.bf16.mxu0 0
    %346 = vmatpush1.bf16.msra.mxu0 0
    %347 = vmatprep.subr.bf16.mxu0 0
    %348 = vmatpush1.bf16.msra.mxu0 0
    %349 = vmatprep.subr.bf16.mxu0 0
    %350 = vmatpush1.bf16.msra.mxu0 0
    %351 = vmatprep.subr.bf16.mxu0 0
    %352 = vmatpush1.bf16.msra.mxu0 0
    %353 = vmatprep.subr.bf16.mxu0 0
    %354 = vmatpush1.bf16.msra.mxu0 0
    %355 = vmatprep.subr.bf16.mxu0 0
    %356 = vmatpush1.bf16.msra.mxu0 0
    %357 = vmatprep.subr.bf16.mxu0 0
    %358 = vmatpush1.bf16.msra.mxu0 0
    %359 = vmatprep.subr.bf16.mxu0 0
    %360 = vmatpush1.bf16.msra.mxu0 0
    %361 = vmatprep.subr.bf16.mxu0 0
    %362 = vmatpush1.bf16.msra.mxu0 0
    %363 = vmatprep.subr.bf16.mxu0 0
    %364 = vmatpush1.bf16.msra.mxu0 0
    %365 = vmatprep.subr.bf16.mxu0 0
    %366 = vmatpush1.bf16.msra.mxu0 0
    %367 = vmatprep.subr.bf16.mxu0 0
    %368 = vmatpush1.bf16.msra.mxu0 0
    %369 = vmatprep.subr.bf16.mxu0 0
    %370 = vmatpush1.bf16.msra.mxu0 0
    %371 = vmatprep.mubr.bf16.mxu0 0
    %372 = vmatmul.mubr.bf16.gmra.mrb[0].mxu0 %v337
    %v373 = vpop.f32.mrb[0].mxu0
    %v374 = vadd.f32 0.0, %v373
    %v375 = vpop.f32.mrb[0].mxu0
    %v376 = vpop.f32.mrb[0].mxu0
    %v377 = vpop.f32.mrb[0].mxu0
    %378 = vdwg.mxu0
    %v379 = vadd.f32 %v208, %v374
    %v380 = vxor.u32 %v379, 2147483648
    %v381 = vmul.f32 %v380, 1.442695
    %v382 = vpow.pop %v381
    %v383 = vadd.f32 %v382, 1.0
    %v384 = vrcp.pop %v383
    %v385 = vmul.f32 1.0, %v384
    %v386 = vtanh.pop %v379
    %v387 = vmul.f32 %v385, %v320
    %389 = vrot.lane.b32.xlu0 %v386, 32
    %v390 = vpop.permute.xlu0 %389
    %v392 = vmul.f32 %v385, %v390
    %394 = vrot.lane.b32.xlu0 %v392, 32
    %v395 = vpop.permute.xlu0 %394
    %v397 = vadd.f32 %v387, %v395
    %v398 = vtanh.pop %v397
    %400 = vrot.lane.b32.xlu0 %v398, 32
    %v401 = vpop.permute.xlu0 %400
    %v403 = vmul.f32 %v385, %v401
    %405 = vrot.lane.b32.xlu0 %v403, 64
    %v406 = vpop.permute.xlu0 %405
    %s408 = scalar_lea.vmem [#allocation15], 8
    %409 = vst.msk [vmem:[%s408] sm:$0xff] %vm254, %v406
    %v410 = vpack.c.bf16 %v403, %v403
    %412 = vrot.lane.b32.xlu0 %v410, 64
    %v413 = vpop.permute.xlu0 %412
    %v415 = vsel %vm254, %v413, 0
    %417 = vmatprep.subr.bf16.mxu0 0
    %418 = vmatpush1.bf16.msra.mxu0 %v250
    %419 = vmatprep.subr.bf16.mxu0 0
    %420 = vmatpush1.bf16.msra.mxu0 %v251
    %421 = vmatprep.subr.bf16.mxu0 0
    %422 = vmatpush1.bf16.msra.mxu0 0
    %423 = vmatprep.subr.bf16.mxu0 0
    %424 = vmatpush1.bf16.msra.mxu0 0
    %425 = vmatprep.subr.bf16.mxu0 0
    %426 = vmatpush1.bf16.msra.mxu0 0
    %427 = vmatprep.subr.bf16.mxu0 0
    %428 = vmatpush1.bf16.msra.mxu0 0
    %429 = vmatprep.subr.bf16.mxu0 0
    %430 = vmatpush1.bf16.msra.mxu0 0
    %431 = vmatprep.subr.bf16.mxu0 0
    %432 = vmatpush1.bf16.msra.mxu0 0
    %433 = vmatprep.subr.bf16.mxu0 0
    %434 = vmatpush1.bf16.msra.mxu0 0
    %435 = vmatprep.subr.bf16.mxu0 0
    %436 = vmatpush1.bf16.msra.mxu0 0
    %437 = vmatprep.subr.bf16.mxu0 0
    %438 = vmatpush1.bf16.msra.mxu0 0
    %439 = vmatprep.subr.bf16.mxu0 0
    %440 = vmatpush1.bf16.msra.mxu0 0
    %441 = vmatprep.subr.bf16.mxu0 0
    %442 = vmatpush1.bf16.msra.mxu0 0
    %443 = vmatprep.subr.bf16.mxu0 0
    %444 = vmatpush1.bf16.msra.mxu0 0
    %445 = vmatprep.subr.bf16.mxu0 0
    %446 = vmatpush1.bf16.msra.mxu0 0
    %447 = vmatprep.subr.bf16.mxu0 0
    %448 = vmatpush1.bf16.msra.mxu0 0
    %449 = vmatprep.mubr.bf16.mxu0 0
    %450 = vmatmul.mubr.bf16.gmra.mrb[0].mxu0 %v415
    %v451 = vpop.f32.mrb[0].mxu0
    %v452 = vadd.f32 0.0, %v451
    %v453 = vpop.f32.mrb[0].mxu0
    %v454 = vpop.f32.mrb[0].mxu0
    %v455 = vpop.f32.mrb[0].mxu0
    %456 = vdwg.mxu0
    %v457 = vadd.f32 %v213, %v452
    %v458 = vxor.u32 %v457, 2147483648
    %v459 = vmul.f32 %v458, 1.442695
    %v460 = vpow.pop %v459
    %v461 = vadd.f32 %v460, 1.0
    %v462 = vrcp.pop %v461
    %v463 = vmul.f32 1.0, %v462
    %v464 = vtanh.pop %v457
    %v465 = vmul.f32 %v463, %v397
    %467 = vrot.lane.b32.xlu0 %v464, 32
    %v468 = vpop.permute.xlu0 %467
    %v470 = vmul.f32 %v463, %v468
    %472 = vrot.lane.b32.xlu0 %v470, 32
    %v473 = vpop.permute.xlu0 %472
    %v475 = vadd.f32 %v465, %v473
    %v476 = vtanh.pop %v475
    %478 = vrot.lane.b32.xlu0 %v476, 32
    %v479 = vpop.permute.xlu0 %478
    %v481 = vmul.f32 %v463, %v479
    %483 = vrot.lane.b32.xlu0 %v481, 64
    %v484 = vpop.permute.xlu0 %483
    %s486 = scalar_lea.vmem [#allocation15], 16
    %487 = vst.msk [vmem:[%s486] sm:$0xff] %vm254, %v484
    %v488 = vpack.c.bf16 %v481, %v481
    %490 = vrot.lane.b32.xlu0 %v488, 64
    %v491 = vpop.permute.xlu0 %490
    %v493 = vsel %vm254, %v491, 0
    %495 = vmatprep.subr.bf16.mxu0 0
    %496 = vmatpush1.bf16.msra.mxu0 %v250
    %497 = vmatprep.subr.bf16.mxu0 0
    %498 = vmatpush1.bf16.msra.mxu0 %v251
    %499 = vmatprep.subr.bf16.mxu0 0
    %500 = vmatpush1.bf16.msra.mxu0 0
    %501 = vmatprep.subr.bf16.mxu0 0
    %502 = vmatpush1.bf16.msra.mxu0 0
    %503 = vmatprep.subr.bf16.mxu0 0
    %504 = vmatpush1.bf16.msra.mxu0 0
    %505 = vmatprep.subr.bf16.mxu0 0
    %506 = vmatpush1.bf16.msra.mxu0 0
    %507 = vmatprep.subr.bf16.mxu0 0
    %508 = vmatpush1.bf16.msra.mxu0 0
    %509 = vmatprep.subr.bf16.mxu0 0
    %510 = vmatpush1.bf16.msra.mxu0 0
    %511 = vmatprep.subr.bf16.mxu0 0
    %512 = vmatpush1.bf16.msra.mxu0 0
    %513 = vmatprep.subr.bf16.mxu0 0
    %514 = vmatpush1.bf16.msra.mxu0 0
    %515 = vmatprep.subr.bf16.mxu0 0
    %516 = vmatpush1.bf16.msra.mxu0 0
    %517 = vmatprep.subr.bf16.mxu0 0
    %518 = vmatpush1.bf16.msra.mxu0 0
    %519 = vmatprep.subr.bf16.mxu0 0
    %520 = vmatpush1.bf16.msra.mxu0 0
    %521 = vmatprep.subr.bf16.mxu0 0
    %522 = vmatpush1.bf16.msra.mxu0 0
    %523 = vmatprep.subr.bf16.mxu0 0
    %524 = vmatpush1.bf16.msra.mxu0 0
    %525 = vmatprep.subr.bf16.mxu0 0
    %526 = vmatpush1.bf16.msra.mxu0 0
    %527 = vmatprep.mubr.bf16.mxu0 0
    %528 = vmatmul.mubr.bf16.gmra.mrb[0].mxu0 %v493
    %v529 = vpop.f32.mrb[0].mxu0
    %v530 = vadd.f32 0.0, %v529
    %v531 = vpop.f32.mrb[0].mxu0
    %v532 = vpop.f32.mrb[0].mxu0
    %v533 = vpop.f32.mrb[0].mxu0
    %534 = vdwg.mxu0
    %v535 = vadd.f32 %v216, %v530
    %v536 = vxor.u32 %v535, 2147483648
    %v537 = vmul.f32 %v536, 1.442695
    %v538 = vpow.pop %v537
    %v539 = vadd.f32 %v538, 1.0
    %v540 = vrcp.pop %v539
    %v541 = vmul.f32 1.0, %v540
    %v542 = vtanh.pop %v535
    %v543 = vmul.f32 %v541, %v475
    %545 = vrot.lane.b32.xlu0 %v542, 32
    %v546 = vpop.permute.xlu0 %545
    %v548 = vmul.f32 %v541, %v546
    %550 = vrot.lane.b32.xlu0 %v548, 32
    %v551 = vpop.permute.xlu0 %550
    %v553 = vadd.f32 %v543, %v551
    %v554 = vtanh.pop %v553
    %556 = vrot.lane.b32.xlu0 %v554, 32
    %v557 = vpop.permute.xlu0 %556
    %v559 = vmul.f32 %v541, %v557
    %561 = vrot.lane.b32.xlu0 %v559, 64
    %v562 = vpop.permute.xlu0 %561
    %s564 = scalar_lea.vmem [#allocation15], 24
    %565 = vst.msk [vmem:[%s564] sm:$0xff] %vm254, %v562
    %v566 = vpack.c.bf16 %v559, %v559
    %568 = vrot.lane.b32.xlu0 %v566, 64
    %v569 = vpop.permute.xlu0 %568
    %v571 = vsel %vm254, %v569, 0
    %573 = vmatprep.subr.bf16.mxu0 0
    %574 = vmatpush1.bf16.msra.mxu0 %v250
    %575 = vmatprep.subr.bf16.mxu0 0
    %576 = vmatpush1.bf16.msra.mxu0 %v251
    %577 = vmatprep.subr.bf16.mxu0 0
    %578 = vmatpush1.bf16.msra.mxu0 0
    %579 = vmatprep.subr.bf16.mxu0 0
    %580 = vmatpush1.bf16.msra.mxu0 0
    %581 = vmatprep.subr.bf16.mxu0 0
    %582 = vmatpush1.bf16.msra.mxu0 0
    %583 = vmatprep.subr.bf16.mxu0 0
    %584 = vmatpush1.bf16.msra.mxu0 0
    %585 = vmatprep.subr.bf16.mxu0 0
    %586 = vmatpush1.bf16.msra.mxu0 0
    %587 = vmatprep.subr.bf16.mxu0 0
    %588 = vmatpush1.bf16.msra.mxu0 0
    %589 = vmatprep.subr.bf16.mxu0 0
    %590 = vmatpush1.bf16.msra.mxu0 0
    %591 = vmatprep.subr.bf16.mxu0 0
    %592 = vmatpush1.bf16.msra.mxu0 0
    %593 = vmatprep.subr.bf16.mxu0 0
    %594 = vmatpush1.bf16.msra.mxu0 0
    %595 = vmatprep.subr.bf16.mxu0 0
    %596 = vmatpush1.bf16.msra.mxu0 0
    %597 = vmatprep.subr.bf16.mxu0 0
    %598 = vmatpush1.bf16.msra.mxu0 0
    %599 = vmatprep.subr.bf16.mxu0 0
    %600 = vmatpush1.bf16.msra.mxu0 0
    %601 = vmatprep.subr.bf16.mxu0 0
    %602 = vmatpush1.bf16.msra.mxu0 0
    %603 = vmatprep.subr.bf16.mxu0 0
    %604 = vmatpush1.bf16.msra.mxu0 0
    %605 = vmatprep.mubr.bf16.mxu0 0
    %606 = vmatmul.mubr.bf16.gmra.mrb[0].mxu0 %v571
    %v607 = vpop.f32.mrb[0].mxu0
    %v608 = vadd.f32 0.0, %v607
    %v609 = vpop.f32.mrb[0].mxu0
    %v610 = vpop.f32.mrb[0].mxu0
    %v611 = vpop.f32.mrb[0].mxu0
    %612 = vdwg.mxu0
    %v613 = vadd.f32 %v221, %v608
    %v614 = vxor.u32 %v613, 2147483648
    %v615 = vmul.f32 %v614, 1.442695
    %v616 = vpow.pop %v615
    %v617 = vadd.f32 %v616, 1.0
    %v618 = vrcp.pop %v617
    %v619 = vmul.f32 1.0, %v618
    %v620 = vtanh.pop %v613
    %v621 = vmul.f32 %v619, %v553
    %623 = vrot.lane.b32.xlu0 %v620, 32
    %v624 = vpop.permute.xlu0 %623
    %v626 = vmul.f32 %v619, %v624
    %628 = vrot.lane.b32.xlu0 %v626, 32
    %v629 = vpop.permute.xlu0 %628
    %v631 = vadd.f32 %v621, %v629
    %v632 = vtanh.pop %v631
    %634 = vrot.lane.b32.xlu0 %v632, 32
    %v635 = vpop.permute.xlu0 %634
    %v637 = vmul.f32 %v619, %v635
    %639 = vrot.lane.b32.xlu0 %v637, 64
    %v640 = vpop.permute.xlu0 %639
    %s642 = scalar_lea.vmem [#allocation15], 32
    %643 = vst.msk [vmem:[%s642] sm:$0xff] %vm254, %v640
    %v644 = vpack.c.bf16 %v637, %v637
    %646 = vrot.lane.b32.xlu0 %v644, 64
    %v647 = vpop.permute.xlu0 %646
    %v649 = vsel %vm254, %v647, 0
    %651 = vmatprep.subr.bf16.mxu0 0
    %652 = vmatpush1.bf16.msra.mxu0 %v250
    %653 = vmatprep.subr.bf16.mxu0 0
    %654 = vmatpush1.bf16.msra.mxu0 %v251
    %655 = vmatprep.subr.bf16.mxu0 0
    %656 = vmatpush1.bf16.msra.mxu0 0
    %657 = vmatprep.subr.bf16.mxu0 0
    %658 = vmatpush1.bf16.msra.mxu0 0
    %659 = vmatprep.subr.bf16.mxu0 0
    %660 = vmatpush1.bf16.msra.mxu0 0
    %661 = vmatprep.subr.bf16.mxu0 0
    %662 = vmatpush1.bf16.msra.mxu0 0
    %663 = vmatprep.subr.bf16.mxu0 0
    %664 = vmatpush1.bf16.msra.mxu0 0
    %665 = vmatprep.subr.bf16.mxu0 0
    %666 = vmatpush1.bf16.msra.mxu0 0
    %667 = vmatprep.subr.bf16.mxu0 0
    %668 = vmatpush1.bf16.msra.mxu0 0
    %669 = vmatprep.subr.bf16.mxu0 0
    %670 = vmatpush1.bf16.msra.mxu0 0
    %671 = vmatprep.subr.bf16.mxu0 0
    %672 = vmatpush1.bf16.msra.mxu0 0
    %673 = vmatprep.subr.bf16.mxu0 0
    %674 = vmatpush1.bf16.msra.mxu0 0
    %675 = vmatprep.subr.bf16.mxu0 0
    %676 = vmatpush1.bf16.msra.mxu0 0
    %677 = vmatprep.subr.bf16.mxu0 0
    %678 = vmatpush1.bf16.msra.mxu0 0
    %679 = vmatprep.subr.bf16.mxu0 0
    %680 = vmatpush1.bf16.msra.mxu0 0
    %681 = vmatprep.subr.bf16.mxu0 0
    %682 = vmatpush1.bf16.msra.mxu0 0
    %683 = vmatprep.mubr.bf16.mxu0 0
    %684 = vmatmul.mubr.bf16.gmra.mrb[0].mxu0 %v649
    %v685 = vpop.f32.mrb[0].mxu0
    %v686 = vadd.f32 0.0, %v685
    %v687 = vpop.f32.mrb[0].mxu0
    %v688 = vpop.f32.mrb[0].mxu0
    %v689 = vpop.f32.mrb[0].mxu0
    %690 = vdwg.mxu0
    %v691 = vadd.f32 %v224, %v686
    %v692 = vxor.u32 %v691, 2147483648
    %v693 = vmul.f32 %v692, 1.442695
    %v694 = vpow.pop %v693
    %v695 = vadd.f32 %v694, 1.0
    %v696 = vrcp.pop %v695
    %v697 = vmul.f32 1.0, %v696
    %v698 = vtanh.pop %v691
    %v699 = vmul.f32 %v697, %v631
    %701 = vrot.lane.b32.xlu0 %v698, 32
    %v702 = vpop.permute.xlu0 %701
    %v704 = vmul.f32 %v697, %v702
    %706 = vrot.lane.b32.xlu0 %v704, 32
    %v707 = vpop.permute.xlu0 %706
    %v709 = vadd.f32 %v699, %v707
    %v710 = vtanh.pop %v709
    %712 = vrot.lane.b32.xlu0 %v710, 32
    %v713 = vpop.permute.xlu0 %712
    %v715 = vmul.f32 %v697, %v713
    %717 = vrot.lane.b32.xlu0 %v715, 64
    %v718 = vpop.permute.xlu0 %717
    %s720 = scalar_lea.vmem [#allocation15], 40
    %721 = vst.msk [vmem:[%s720] sm:$0xff] %vm254, %v718
    %v722 = vpack.c.bf16 %v715, %v715
    %724 = vrot.lane.b32.xlu0 %v722, 64
    %v725 = vpop.permute.xlu0 %724
    %v727 = vsel %vm254, %v725, 0
    %729 = vmatprep.subr.bf16.mxu0 0
    %730 = vmatpush1.bf16.msra.mxu0 %v250
    %731 = vmatprep.subr.bf16.mxu0 0
    %732 = vmatpush1.bf16.msra.mxu0 %v251
    %733 = vmatprep.subr.bf16.mxu0 0
    %734 = vmatpush1.bf16.msra.mxu0 0
    %735 = vmatprep.subr.bf16.mxu0 0
    %736 = vmatpush1.bf16.msra.mxu0 0
    %737 = vmatprep.subr.bf16.mxu0 0
    %738 = vmatpush1.bf16.msra.mxu0 0
    %739 = vmatprep.subr.bf16.mxu0 0
    %740 = vmatpush1.bf16.msra.mxu0 0
    %741 = vmatprep.subr.bf16.mxu0 0
    %742 = vmatpush1.bf16.msra.mxu0 0
    %743 = vmatprep.subr.bf16.mxu0 0
    %744 = vmatpush1.bf16.msra.mxu0 0
    %745 = vmatprep.subr.bf16.mxu0 0
    %746 = vmatpush1.bf16.msra.mxu0 0
    %747 = vmatprep.subr.bf16.mxu0 0
    %748 = vmatpush1.bf16.msra.mxu0 0
    %749 = vmatprep.subr.bf16.mxu0 0
    %750 = vmatpush1.bf16.msra.mxu0 0
    %751 = vmatprep.subr.bf16.mxu0 0
    %752 = vmatpush1.bf16.msra.mxu0 0
    %753 = vmatprep.subr.bf16.mxu0 0
    %754 = vmatpush1.bf16.msra.mxu0 0
    %755 = vmatprep.subr.bf16.mxu0 0
    %756 = vmatpush1.bf16.msra.mxu0 0
    %757 = vmatprep.subr.bf16.mxu0 0
    %758 = vmatpush1.bf16.msra.mxu0 0
    %759 = vmatprep.subr.bf16.mxu0 0
    %760 = vmatpush1.bf16.msra.mxu0 0
    %761 = vmatprep.mubr.bf16.mxu0 0
    %762 = vmatmul.mubr.bf16.gmra.mrb[0].mxu0 %v727
    %v763 = vpop.f32.mrb[0].mxu0
    %v764 = vadd.f32 0.0, %v763
    %v765 = vpop.f32.mrb[0].mxu0
    %v766 = vpop.f32.mrb[0].mxu0
    %v767 = vpop.f32.mrb[0].mxu0
    %768 = vdwg.mxu0
    %v769 = vadd.f32 %v229, %v764
    %v770 = vxor.u32 %v769, 2147483648
    %v771 = vmul.f32 %v770, 1.442695
    %v772 = vpow.pop %v771
    %v773 = vadd.f32 %v772, 1.0
    %v774 = vrcp.pop %v773
    %v775 = vmul.f32 1.0, %v774
    %v776 = vtanh.pop %v769
    %v777 = vmul.f32 %v775, %v709
    %779 = vrot.lane.b32.xlu0 %v776, 32
    %v780 = vpop.permute.xlu0 %779
    %v782 = vmul.f32 %v775, %v780
    %784 = vrot.lane.b32.xlu0 %v782, 32
    %v785 = vpop.permute.xlu0 %784
    %v787 = vadd.f32 %v777, %v785
    %v788 = vtanh.pop %v787
    %790 = vrot.lane.b32.xlu0 %v788, 32
    %v791 = vpop.permute.xlu0 %790
    %v793 = vmul.f32 %v775, %v791
    %795 = vrot.lane.b32.xlu0 %v793, 64
    %v796 = vpop.permute.xlu0 %795
    %s798 = scalar_lea.vmem [#allocation15], 48
    %799 = vst.msk [vmem:[%s798] sm:$0xff] %vm254, %v796
    %v800 = vpack.c.bf16 %v793, %v793
    %802 = vrot.lane.b32.xlu0 %v800, 64
    %v803 = vpop.permute.xlu0 %802
    %v805 = vsel %vm254, %v803, 0
    %807 = vmatprep.subr.bf16.mxu0 0
    %808 = vmatpush1.bf16.msra.mxu0 %v250
    %809 = vmatprep.subr.bf16.mxu0 0
    %810 = vmatpush1.bf16.msra.mxu0 %v251
    %811 = vmatprep.subr.bf16.mxu0 0
    %812 = vmatpush1.bf16.msra.mxu0 0
    %813 = vmatprep.subr.bf16.mxu0 0
    %814 = vmatpush1.bf16.msra.mxu0 0
    %815 = vmatprep.subr.bf16.mxu0 0
    %816 = vmatpush1.bf16.msra.mxu0 0
    %817 = vmatprep.subr.bf16.mxu0 0
    %818 = vmatpush1.bf16.msra.mxu0 0
    %819 = vmatprep.subr.bf16.mxu0 0
    %820 = vmatpush1.bf16.msra.mxu0 0
    %821 = vmatprep.subr.bf16.mxu0 0
    %822 = vmatpush1.bf16.msra.mxu0 0
    %823 = vmatprep.subr.bf16.mxu0 0
    %824 = vmatpush1.bf16.msra.mxu0 0
    %825 = vmatprep.subr.bf16.mxu0 0
    %826 = vmatpush1.bf16.msra.mxu0 0
    %827 = vmatprep.subr.bf16.mxu0 0
    %828 = vmatpush1.bf16.msra.mxu0 0
    %829 = vmatprep.subr.bf16.mxu0 0
    %830 = vmatpush1.bf16.msra.mxu0 0
    %831 = vmatprep.subr.bf16.mxu0 0
    %832 = vmatpush1.bf16.msra.mxu0 0
    %833 = vmatprep.subr.bf16.mxu0 0
    %834 = vmatpush1.bf16.msra.mxu0 0
    %835 = vmatprep.subr.bf16.mxu0 0
    %836 = vmatpush1.bf16.msra.mxu0 0
    %837 = vmatprep.subr.bf16.mxu0 0
    %838 = vmatpush1.bf16.msra.mxu0 0
    %839 = vmatprep.mubr.bf16.mxu0 0
    %840 = vmatmul.mubr.bf16.gmra.mrb[0].mxu0 %v805
    %v841 = vpop.f32.mrb[0].mxu0
    %v842 = vadd.f32 0.0, %v841
    %v843 = vpop.f32.mrb[0].mxu0
    %v844 = vpop.f32.mrb[0].mxu0
    %v845 = vpop.f32.mrb[0].mxu0
    %846 = vdwg.mxu0
    %v847 = vadd.f32 %v232, %v842
    %v848 = vxor.u32 %v847, 2147483648
    %v849 = vmul.f32 %v848, 1.442695
    %v850 = vpow.pop %v849
    %v851 = vadd.f32 %v850, 1.0
    %v852 = vrcp.pop %v851
    %v853 = vmul.f32 1.0, %v852
    %v854 = vtanh.pop %v847
    %v855 = vmul.f32 %v853, %v787
    %857 = vrot.lane.b32.xlu0 %v854, 32
    %v858 = vpop.permute.xlu0 %857
    %v860 = vmul.f32 %v853, %v858
    %862 = vrot.lane.b32.xlu0 %v860, 32
    %v863 = vpop.permute.xlu0 %862
    %v865 = vadd.f32 %v855, %v863
    %v866 = vtanh.pop %v865
    %868 = vrot.lane.b32.xlu0 %v866, 32
    %v869 = vpop.permute.xlu0 %868
    %v871 = vmul.f32 %v853, %v869
    %873 = vrot.lane.b32.xlu0 %v871, 64
    %v874 = vpop.permute.xlu0 %873
    %s876 = scalar_lea.vmem [#allocation15], 56
    %877 = vst.msk [vmem:[%s876] sm:$0xff] %vm254, %v874
    %878 = vst.msk [vmem:[#allocation2] sm:$0xff] %vm254, %v874
    %880 = vrot.lane.b32.xlu0 %v865, 96
    %v881 = vpop.permute.xlu0 %880
    %883 = vst.msk [vmem:[#allocation3] sm:$0xff] %vm254, %v881
    // Predicated region
    $region54: #{build_model_mols_forward.10} parent=1 // pred_check
      %p884 = pneg %p105
    $region55: #{build_model_mols_forward.10} parent=1 // pred_check_branch
      %886 = sbr.rel (%p884) target = $region57
    $region56: #{build_model_mols_forward.10} parent=1 // pred_region
      %v887 = vld [vmem:[#allocation2] sm:$0xff]
      %888 = vst.msk [vmem:[#allocation16] sm:$0xff] %vm254, %v887
      %v889 = vld [vmem:[#allocation3] sm:$0xff]
      %890 = vst.msk [vmem:[#allocation18] sm:$0xff] %vm254, %v889
    $region57: #{build_model_mols_forward.10} parent=1 // pred_fallthru
      _
    // Predicated region
    $region58: #{build_model_mols_forward.10} parent=1 // pred_check
      _
    $region59: #{build_model_mols_forward.10} parent=1 // pred_check_branch
      %892 = sbr.rel (0) target = $region61
    $region60: #{build_model_mols_forward.10} parent=1 // pred_region
      %s894 = ssub.s32 1024, 1024
      %895 = vsyncadd [#allocation6], %s894
      %s896 = sshll.u32 [#allocation15], 4
      %s897 = int_to_ptr.vmem [resolvable:$true] %s896
      %902 = dma.vmem_to_hbm [thread:$0]  %s897, 1024, %s6, [#allocation6], 128, 128, 8
    $region61: #{build_model_mols_forward.10} parent=1 // pred_fallthru
      _
    // Predicated region
    $region62: #{build_model_mols_forward.10} parent=1 // pred_check
      _
    $region63: #{build_model_mols_forward.10} parent=1 // pred_check_branch
      %904 = sbr.rel (0) target = $region65
    $region64: #{build_model_mols_forward.10} parent=1 // pred_region
      %s906 = ssub.s32 128, 128
      %907 = vsyncadd [#allocation17], %s906
      %s909 = sshll.u32 [#allocation16], 4
      %s910 = int_to_ptr.vmem [resolvable:$true] %s909
      %912 = dma.vmem_to_hbm [thread:$0]  %s910, 128, %s7, [#allocation17]
    $region65: #{build_model_mols_forward.10} parent=1 // pred_fallthru
      _
    // Predicated region
    $region66: #{build_model_mols_forward.10} parent=1 // pred_check
      _
    $region67: #{build_model_mols_forward.10} parent=1 // pred_check_branch
      %914 = sbr.rel (0) target = $region69
    $region68: #{build_model_mols_forward.10} parent=1 // pred_region
      %s916 = ssub.s32 128, 128
      %917 = vsyncadd [#allocation17], %s916
      %s919 = sshll.u32 [#allocation18], 4
      %s920 = int_to_ptr.vmem [resolvable:$true] %s919
      %922 = dma.vmem_to_hbm [thread:$0]  %s920, 128, %s8, [#allocation17]
    $region69: #{build_model_mols_forward.10} parent=1 // pred_fallthru
      _
    // Predicated region
    $region70: #{build_model_mols_forward.10} parent=1 // pred_check
      _
    $region71: #{build_model_mols_forward.10} parent=1 // pred_check_branch
      %924 = sbr.rel (0) target = $region73
    $region72: #{build_model_mols_forward.10} parent=1 // pred_region
      %925 = dma.done [#allocation6], 1024
    $region73: #{build_model_mols_forward.10} parent=1 // pred_fallthru
      _
    // Predicated region
    $region74: #{build_model_mols_forward.10} parent=1 // pred_check
      _
    $region75: #{build_model_mols_forward.10} parent=1 // pred_check_branch
      %927 = sbr.rel (0) target = $region77
    $region76: #{build_model_mols_forward.10} parent=1 // pred_region
      %928 = dma.done [#allocation17], 128
    $region77: #{build_model_mols_forward.10} parent=1 // pred_fallthru
      _
    // Predicated region
    $region78: #{build_model_mols_forward.10} parent=1 // pred_check
      _
    $region79: #{build_model_mols_forward.10} parent=1 // pred_check_branch
      %930 = sbr.rel (0) target = $region81
    $region80: #{build_model_mols_forward.10} parent=1 // pred_region
      %931 = dma.done [#allocation17], 128
    $region81: #{build_model_mols_forward.10} parent=1 // pred_fallthru
      _
    %932 = vsyncpa [#allocation5], 1
    %933 = vsyncpa [#allocation8], 1
    %934 = vsyncpa [#allocation11], 1
    %935 = vsyncpa [#allocation14], 1
    %936 = vsyncpa [#allocation6], 1
    %937 = vsyncpa [#allocation17], 1

// kernel: build_model_mols_forward.11
$region0: #{build_model_mols_forward.11}
  #allocation0 [shape = 'u32[]', space=smem, size = 0x4, offset = 0x4, fixed_abs, tag = 'smem constant byte address 0x4 - core index']
  #allocation1 [shape = 'u32[144,128]{1,0:T(1,128)}', space=vmem, size = 0x12000, scoped, tag = 'internal scratch']
  %s0 = inlined_call_operand.hbm [shape: f32[64,32], index: 0, kind: input, shape index: {}]
  %s1 = inlined_call_operand.hbm [shape: f32[1,32], index: 1, kind: input, shape index: {}]
  %s2 = inlined_call_operand.hbm [shape: f32[1,32], index: 2, kind: input, shape index: {}]
  %s3 = inlined_call_operand.hbm [shape: bf16[32,128], index: 3, kind: input, shape index: {}]
  %s4 = inlined_call_operand.hbm [shape: f32[1,128], index: 4, kind: input, shape index: {}]
  %s5 = inlined_call_operand.hbm [shape: f32[64,128], index: 5, kind: output, shape index: {}]
  %s6 = sld [smem:[#allocation0]]
  $region50: #{build_model_mols_forward.11} parent=0
    _
  %s8 = ssub.s32 1, %s6
  %s9 = scalar_select 0, %s8, %s6
  $region1: #{build_model_mols_forward.11} parent=0
    #allocation2 [shape = 'u8[32768]{0}', space=vmem, size = 0x8000, scoped, tag = 'input window, operand 0, single buffered']
    #allocation3 [shape = 's32[1]{0}', space=sflag, size = 0x4, scoped, tag = 'scoped memory for build_model_mols_forward.11']
    #allocation4 [shape = 's32[1]{0}', space=sflag, size = 0x4, scoped, tag = 'scoped memory for build_model_mols_forward.11']
    #allocation5 [shape = 'u8[512]{0}', space=vmem, size = 0x400, scoped, tag = 'input window, operand 1, single buffered']
    #allocation6 [shape = 's32[1]{0}', space=sflag, size = 0x4, scoped, tag = 'scoped memory for build_model_mols_forward.11']
    #allocation7 [shape = 'u8[512]{0}', space=vmem, size = 0x400, scoped, tag = 'input window, operand 2, single buffered']
    #allocation8 [shape = 'u8[8192]{0}', space=vmem, size = 0x2000, scoped, tag = 'input window, operand 3, single buffered']
    #allocation9 [shape = 's32[1]{0}', space=sflag, size = 0x4, scoped, tag = 'scoped memory for build_model_mols_forward.11']
    #allocation10 [shape = 'u8[512]{0}', space=vmem, size = 0x400, scoped, tag = 'input window, operand 4, single buffered']
    #allocation11 [shape = 'u8[32768]{0}', space=vmem, size = 0x8000, scoped, tag = 'output window, operand 0, single buffered']
    %10 = vsyncpa [#allocation3], 0
    %11 = vsyncpa [#allocation6], 0
    %12 = vsyncpa [#allocation9], 0
    %13 = vsyncpa [#allocation4], 0
    // Predicated region
    $region2: #{build_model_mols_forward.11} parent=1 // pred_check
      _
    $region3: #{build_model_mols_forward.11} parent=1 // pred_check_branch
      %15 = sbr.rel (0) target = $region5
    $region4: #{build_model_mols_forward.11} parent=1 // pred_region
      %s17 = ssub.s32 1024, 1024
      %18 = vsyncadd [#allocation3], %s17
      %s19 = sshll.u32 [#allocation2], 4
      %s20 = int_to_ptr.vmem [resolvable:$true] %s19
      %25 = dma.hbm_to_vmem [thread:$0]  %s0, 1024, %s20, [#allocation3], 128, 128, 8
    $region5: #{build_model_mols_forward.11} parent=1 // pred_fallthru
      _
    // Predicated region
    $region6: #{build_model_mols_forward.11} parent=1 // pred_check
      _
    $region7: #{build_model_mols_forward.11} parent=1 // pred_check_branch
      %27 = sbr.rel (0) target = $region9
    $region8: #{build_model_mols_forward.11} parent=1 // pred_region
      %s29 = ssub.s32 16, 16
      %30 = vsyncadd [#allocation6], %s29
      %s32 = sshll.u32 [#allocation5], 4
      %s33 = int_to_ptr.vmem [resolvable:$true] %s32
      %35 = dma.hbm_to_vmem [thread:$0]  %s1, 16, %s33, [#allocation6]
    $region9: #{build_model_mols_forward.11} parent=1 // pred_fallthru
      _
    // Predicated region
    $region10: #{build_model_mols_forward.11} parent=1 // pred_check
      _
    $region11: #{build_model_mols_forward.11} parent=1 // pred_check_branch
      %37 = sbr.rel (0) target = $region13
    $region12: #{build_model_mols_forward.11} parent=1 // pred_region
      %s39 = ssub.s32 16, 16
      %40 = vsyncadd [#allocation6], %s39
      %s42 = sshll.u32 [#allocation7], 4
      %s43 = int_to_ptr.vmem [resolvable:$true] %s42
      %45 = dma.hbm_to_vmem [thread:$0]  %s2, 16, %s43, [#allocation6]
    $region13: #{build_model_mols_forward.11} parent=1 // pred_fallthru
      _
    // Predicated region
    $region14: #{build_model_mols_forward.11} parent=1 // pred_check
      _
    $region15: #{build_model_mols_forward.11} parent=1 // pred_check_branch
      %47 = sbr.rel (0) target = $region17
    $region16: #{build_model_mols_forward.11} parent=1 // pred_region
      %s49 = ssub.s32 256, 256
      %50 = vsyncadd [#allocation9], %s49
      %s51 = sshll.u32 [#allocation8], 4
      %s52 = int_to_ptr.vmem [resolvable:$true] %s51
      %57 = dma.hbm_to_vmem [thread:$0]  %s3, 256, %s52, [#allocation9], 64, 64, 4
    $region17: #{build_model_mols_forward.11} parent=1 // pred_fallthru
      _
    // Predicated region
    $region18: #{build_model_mols_forward.11} parent=1 // pred_check
      _
    $region19: #{build_model_mols_forward.11} parent=1 // pred_check_branch
      %59 = sbr.rel (0) target = $region21
    $region20: #{build_model_mols_forward.11} parent=1 // pred_region
      %s61 = ssub.s32 16, 16
      %62 = vsyncadd [#allocation9], %s61
      %s64 = sshll.u32 [#allocation10], 4
      %s65 = int_to_ptr.vmem [resolvable:$true] %s64
      %67 = dma.hbm_to_vmem [thread:$0]  %s4, 16, %s65, [#allocation9]
    $region21: #{build_model_mols_forward.11} parent=1 // pred_fallthru
      _
    // Predicated region
    $region22: #{build_model_mols_forward.11} parent=1 // pred_check
      _
    $region23: #{build_model_mols_forward.11} parent=1 // pred_check_branch
      %69 = sbr.rel (0) target = $region25
    $region24: #{build_model_mols_forward.11} parent=1 // pred_region
      %70 = dma.done [#allocation3], 1024
    $region25: #{build_model_mols_forward.11} parent=1 // pred_fallthru
      _
    // Predicated region
    $region26: #{build_model_mols_forward.11} parent=1 // pred_check
      _
    $region27: #{build_model_mols_forward.11} parent=1 // pred_check_branch
      %72 = sbr.rel (0) target = $region29
    $region28: #{build_model_mols_forward.11} parent=1 // pred_region
      %73 = dma.done [#allocation6], 16
    $region29: #{build_model_mols_forward.11} parent=1 // pred_fallthru
      _
    // Predicated region
    $region30: #{build_model_mols_forward.11} parent=1 // pred_check
      _
    $region31: #{build_model_mols_forward.11} parent=1 // pred_check_branch
      %75 = sbr.rel (0) target = $region33
    $region32: #{build_model_mols_forward.11} parent=1 // pred_region
      %76 = dma.done [#allocation6], 16
    $region33: #{build_model_mols_forward.11} parent=1 // pred_fallthru
      _
    // Predicated region
    $region34: #{build_model_mols_forward.11} parent=1 // pred_check
      _
    $region35: #{build_model_mols_forward.11} parent=1 // pred_check_branch
      %78 = sbr.rel (0) target = $region37
    $region36: #{build_model_mols_forward.11} parent=1 // pred_region
      %79 = dma.done [#allocation9], 256
    $region37: #{build_model_mols_forward.11} parent=1 // pred_fallthru
      _
    // Predicated region
    $region38: #{build_model_mols_forward.11} parent=1 // pred_check
      _
    $region39: #{build_model_mols_forward.11} parent=1 // pred_check_branch
      %81 = sbr.rel (0) target = $region41
    $region40: #{build_model_mols_forward.11} parent=1 // pred_region
      %82 = dma.done [#allocation9], 16
    $region41: #{build_model_mols_forward.11} parent=1 // pred_fallthru
      _
    %v84 = vld [vmem:[#allocation2] sm:$0xff]
    %v85 = vld [vmem:[#allocation2 + $0x8] sm:$0xff]
    %v86 = vld [vmem:[#allocation2 + $0x10] sm:$0xff]
    %v87 = vld [vmem:[#allocation2 + $0x18] sm:$0xff]
    %v88 = vld [vmem:[#allocation2 + $0x20] sm:$0xff]
    %v89 = vld [vmem:[#allocation2 + $0x28] sm:$0xff]
    %v90 = vld [vmem:[#allocation2 + $0x30] sm:$0xff]
    %v91 = vld [vmem:[#allocation2 + $0x38] sm:$0xff]
    %v92 = vld [vmem:[#allocation5] sm:$0x1]
    %v93 = vld [vmem:[#allocation7] sm:$0x1]
    %vm94 = vcmask 261120
    %v95 = vsel %vm94, %v84, 0.0
    %v96 = vsel %vm94, %v85, 0.0
    %v97 = vadd.f32 %v95, %v96
    %v98 = vsel %vm94, %v86, 0.0
    %v99 = vadd.f32 %v97, %v98
    %v100 = vsel %vm94, %v87, 0.0
    %v101 = vadd.f32 %v99, %v100
    %v102 = vsel %vm94, %v88, 0.0
    %v103 = vadd.f32 %v101, %v102
    %v104 = vsel %vm94, %v89, 0.0
    %v105 = vadd.f32 %v103, %v104
    %v106 = vsel %vm94, %v90, 0.0
    %v107 = vadd.f32 %v105, %v106
    %v108 = vsel %vm94, %v91, 0.0
    %v109 = vadd.f32 %v107, %v108
    %v110 = vrot.slane %v109, 4
    %v111 = vadd.f32 %v109, %v110
    %v112 = vrot.slane %v111, 2
    %v113 = vadd.f32 %v111, %v112
    %v114 = vrot.slane %v113, 1
    %v115 = vadd.f32 %v113, %v114
    %v116 = vrcp.pop 64.0
    %v117 = vmul.f32 %v115, %v116
    %v118 = vsub.f32 %v84, %v117
    %v119 = vsub.f32 %v85, %v117
    %v120 = vsub.f32 %v86, %v117
    %v121 = vsub.f32 %v87, %v117
    %v122 = vsub.f32 %v88, %v117
    %v123 = vsub.f32 %v89, %v117
    %v124 = vsub.f32 %v90, %v117
    %v125 = vsub.f32 %v91, %v117
    %v126 = vmul.f32 %v118, %v118
    %v127 = vmul.f32 %v119, %v119
    %v128 = vmul.f32 %v120, %v120
    %v129 = vmul.f32 %v121, %v121
    %v130 = vmul.f32 %v122, %v122
    %v131 = vmul.f32 %v123, %v123
    %v132 = vmul.f32 %v124, %v124
    %v133 = vmul.f32 %v125, %v125
    %v134 = vsel %vm94, %v126, 0.0
    %v135 = vsel %vm94, %v127, 0.0
    %v136 = vadd.f32 %v134, %v135
    %v137 = vsel %vm94, %v128, 0.0
    %v138 = vadd.f32 %v136, %v137
    %v139 = vsel %vm94, %v129, 0.0
    %v140 = vadd.f32 %v138, %v139
    %v141 = vsel %vm94, %v130, 0.0
    %v142 = vadd.f32 %v140, %v141
    %v143 = vsel %vm94, %v131, 0.0
    %v144 = vadd.f32 %v142, %v143
    %v145 = vsel %vm94, %v132, 0.0
    %v146 = vadd.f32 %v144, %v145
    %v147 = vsel %vm94, %v133, 0.0
    %v148 = vadd.f32 %v146, %v147
    %v149 = vrot.slane %v148, 4
    %v150 = vadd.f32 %v148, %v149
    %v151 = vrot.slane %v150, 2
    %v152 = vadd.f32 %v150, %v151
    %v153 = vrot.slane %v152, 1
    %v154 = vadd.f32 %v152, %v153
    %v155 = vmul.f32 %v154, %v116
    %v156 = vadd.f32 %v155, 1e-05
    %v157 = vrsqrt.pop %v156
    %v158 = vmul.f32 %v118, %v157
    %v159 = vmul.f32 %v119, %v157
    %v160 = vmul.f32 %v120, %v157
    %v161 = vmul.f32 %v121, %v157
    %v162 = vmul.f32 %v122, %v157
    %v163 = vmul.f32 %v123, %v157
    %v164 = vmul.f32 %v124, %v157
    %v165 = vmul.f32 %v125, %v157
    %v167 = vlaneseq
    %v168 = vshrl.u32 %v167, 7
    %v169 = vsub.s32 0, %v168
    %v170 = vrot.slane %v92, %v169
    %v172 = vmul.f32 %v158, %v170
    %v173 = vmul.f32 %v159, %v170
    %v174 = vmul.f32 %v160, %v170
    %v175 = vmul.f32 %v161, %v170
    %v176 = vmul.f32 %v162, %v170
    %v177 = vmul.f32 %v163, %v170
    %v178 = vmul.f32 %v164, %v170
    %v179 = vmul.f32 %v165, %v170
    %v181 = vlaneseq
    %v182 = vshrl.u32 %v181, 7
    %v183 = vsub.s32 0, %v182
    %v184 = vrot.slane %v93, %v183
    %v186 = vadd.f32 %v172, %v184
    %v187 = vadd.f32 %v173, %v184
    %v188 = vadd.f32 %v174, %v184
    %v189 = vadd.f32 %v175, %v184
    %v190 = vadd.f32 %v176, %v184
    %v191 = vadd.f32 %v177, %v184
    %v192 = vadd.f32 %v178, %v184
    %v193 = vadd.f32 %v179, %v184
    %v194 = vpack.c.bf16 %v187, %v186
    %v195 = vpack.c.bf16 %v189, %v188
    %v196 = vpack.c.bf16 %v191, %v190
    %v197 = vpack.c.bf16 %v193, %v192
    %v198 = vld [vmem:[#allocation8] sm:$0xf]
    %v199 = vld [vmem:[#allocation8 + $0x4] sm:$0xf]
    %v200 = vld [vmem:[#allocation8 + $0x8] sm:$0xf]
    %v201 = vld [vmem:[#allocation8 + $0xc] sm:$0xf]
    %v202 = vld [vmem:[#allocation10] sm:$0x1]
    %v204 = vlaneseq
    %v205 = vshrl.u32 %v204, 7
    %v206 = vsub.s32 0, %v205
    %v207 = vrot.slane %v202, %v206
    %v213 = vunpack.c.l.b16 %v198
    %v214 = vunpack.c.l.b16 %v199
    %v215 = vunpack.c.l.b16 %v200
    %v216 = vunpack.c.l.b16 %v201
    %v217 = vpack.c.b16 %v214, %v213
    %v218 = vpack.c.b16 %v216, %v215
    %v222 = vsel %vm94, %v194, 0
    %v225 = vsel %vm94, %v195, 0
    %v228 = vsel %vm94, %v196, 0
    %v231 = vsel %vm94, %v197, 0
    %233 = vmatprep.subr.bf16.mxu0 0
    %234 = vmatpush1.bf16.msra.mxu0 %v217
    %235 = vmatprep.subr.bf16.mxu0 0
    %236 = vmatpush1.bf16.msra.mxu0 %v218
    %237 = vmatprep.subr.bf16.mxu0 0
    %238 = vmatpush1.bf16.msra.mxu0 0
    %239 = vmatprep.subr.bf16.mxu0 0
    %240 = vmatpush1.bf16.msra.mxu0 0
    %241 = vmatprep.subr.bf16.mxu0 0
    %242 = vmatpush1.bf16.msra.mxu0 0
    %243 = vmatprep.subr.bf16.mxu0 0
    %244 = vmatpush1.bf16.msra.mxu0 0
    %245 = vmatprep.subr.bf16.mxu0 0
    %246 = vmatpush1.bf16.msra.mxu0 0
    %247 = vmatprep.subr.bf16.mxu0 0
    %248 = vmatpush1.bf16.msra.mxu0 0
    %249 = vmatprep.subr.bf16.mxu0 0
    %250 = vmatpush1.bf16.msra.mxu0 0
    %251 = vmatprep.subr.bf16.mxu0 0
    %252 = vmatpush1.bf16.msra.mxu0 0
    %253 = vmatprep.subr.bf16.mxu0 0
    %254 = vmatpush1.bf16.msra.mxu0 0
    %255 = vmatprep.subr.bf16.mxu0 0
    %256 = vmatpush1.bf16.msra.mxu0 0
    %257 = vmatprep.subr.bf16.mxu0 0
    %258 = vmatpush1.bf16.msra.mxu0 0
    %259 = vmatprep.subr.bf16.mxu0 0
    %260 = vmatpush1.bf16.msra.mxu0 0
    %261 = vmatprep.subr.bf16.mxu0 0
    %262 = vmatpush1.bf16.msra.mxu0 0
    %263 = vmatprep.subr.bf16.mxu0 0
    %264 = vmatpush1.bf16.msra.mxu0 0
    %265 = vmatprep.mubr.bf16.mxu0 0
    %266 = vmatmul.mubr.bf16.gmra.mrb[0].mxu0 %v222
    %v267 = vpop.f32.mrb[0].mxu0
    %v268 = vadd.f32 %v207, %v267
    %v269 = vpop.f32.mrb[0].mxu0
    %v270 = vpop.f32.mrb[0].mxu0
    %v271 = vadd.f32 %v207, %v270
    %v272 = vpop.f32.mrb[0].mxu0
    %273 = vmatprep.mubr.bf16.mxu0 0
    %274 = vmatmul.mubr.bf16.gmra.mrb[0].mxu0 %v225
    %v275 = vpop.f32.mrb[0].mxu0
    %v276 = vadd.f32 %v207, %v275
    %v277 = vpop.f32.mrb[0].mxu0
    %v278 = vpop.f32.mrb[0].mxu0
    %v279 = vadd.f32 %v207, %v278
    %v280 = vpop.f32.mrb[0].mxu0
    %281 = vmatprep.mubr.bf16.mxu0 0
    %282 = vmatmul.mubr.bf16.gmra.mrb[0].mxu0 %v228
    %v283 = vpop.f32.mrb[0].mxu0
    %v284 = vadd.f32 %v207, %v283
    %v285 = vpop.f32.mrb[0].mxu0
    %v286 = vpop.f32.mrb[0].mxu0
    %v287 = vadd.f32 %v207, %v286
    %v288 = vpop.f32.mrb[0].mxu0
    %289 = vmatprep.mubr.bf16.mxu0 0
    %290 = vmatmul.mubr.bf16.gmra.mrb[0].mxu0 %v231
    %v291 = vpop.f32.mrb[0].mxu0
    %v292 = vadd.f32 %v207, %v291
    %v293 = vpop.f32.mrb[0].mxu0
    %v294 = vpop.f32.mrb[0].mxu0
    %v295 = vadd.f32 %v207, %v294
    %v296 = vpop.f32.mrb[0].mxu0
    %297 = vdwg.mxu0
    %298 = vmax.xlane.f32.xlu0 %v268
    %v299 = vpop.xlane.xlu0 %298
    %300 = vmax.xlane.f32.xlu0 %v271
    %v301 = vpop.xlane.xlu0 %300
    %302 = vmax.xlane.f32.xlu0 %v276
    %v303 = vpop.xlane.xlu0 %302
    %304 = vmax.xlane.f32.xlu0 %v279
    %v305 = vpop.xlane.xlu0 %304
    %306 = vmax.xlane.f32.xlu0 %v284
    %v307 = vpop.xlane.xlu0 %306
    %308 = vmax.xlane.f32.xlu0 %v287
    %v309 = vpop.xlane.xlu0 %308
    %310 = vmax.xlane.f32.xlu0 %v292
    %v311 = vpop.xlane.xlu0 %310
    %312 = vmax.xlane.f32.xlu0 %v295
    %v313 = vpop.xlane.xlu0 %312
    %v314 = vsub.f32 %v268, %v299
    %v315 = vsub.f32 %v271, %v301
    %v316 = vsub.f32 %v276, %v303
    %v317 = vsub.f32 %v279, %v305
    %v318 = vsub.f32 %v284, %v307
    %v319 = vsub.f32 %v287, %v309
    %v320 = vsub.f32 %v292, %v311
    %v321 = vsub.f32 %v295, %v313
    %v322 = vmul.f32 %v314, 1.442695
    %v323 = vpow.pop %v322
    %v324 = vmul.f32 %v315, 1.442695
    %v325 = vpow.pop %v324
    %v326 = vmul.f32 %v316, 1.442695
    %v327 = vpow.pop %v326
    %v328 = vmul.f32 %v317, 1.442695
    %v329 = vpow.pop %v328
    %v330 = vmul.f32 %v318, 1.442695
    %v331 = vpow.pop %v330
    %v332 = vmul.f32 %v319, 1.442695
    %v333 = vpow.pop %v332
    %v334 = vmul.f32 %v320, 1.442695
    %v335 = vpow.pop %v334
    %v336 = vmul.f32 %v321, 1.442695
    %v337 = vpow.pop %v336
    %338 = vadd.xlane.f32.xlu0 %v323
    %v339 = vpop.xlane.xlu0 %338
    %340 = vadd.xlane.f32.xlu0 %v325
    %v341 = vpop.xlane.xlu0 %340
    %342 = vadd.xlane.f32.xlu0 %v327
    %v343 = vpop.xlane.xlu0 %342
    %344 = vadd.xlane.f32.xlu0 %v329
    %v345 = vpop.xlane.xlu0 %344
    %346 = vadd.xlane.f32.xlu0 %v331
    %v347 = vpop.xlane.xlu0 %346
    %348 = vadd.xlane.f32.xlu0 %v333
    %v349 = vpop.xlane.xlu0 %348
    %350 = vadd.xlane.f32.xlu0 %v335
    %v351 = vpop.xlane.xlu0 %350
    %352 = vadd.xlane.f32.xlu0 %v337
    %v353 = vpop.xlane.xlu0 %352
    %v354 = vlog2.pop %v339
    %v355 = vmul.f32 %v354, 0.6931472
    %v356 = vlog2.pop %v341
    %v357 = vmul.f32 %v356, 0.6931472
    %v358 = vlog2.pop %v343
    %v359 = vmul.f32 %v358, 0.6931472
    %v360 = vlog2.pop %v345
    %v361 = vmul.f32 %v360, 0.6931472
    %v362 = vlog2.pop %v347
    %v363 = vmul.f32 %v362, 0.6931472
    %v364 = vlog2.pop %v349
    %v365 = vmul.f32 %v364, 0.6931472
    %v366 = vlog2.pop %v351
    %v367 = vmul.f32 %v366, 0.6931472
    %v368 = vlog2.pop %v353
    %v369 = vmul.f32 %v368, 0.6931472
    %v370 = vsub.f32 %v314, %v355
    %v371 = vsub.f32 %v315, %v357
    %v372 = vsub.f32 %v316, %v359
    %v373 = vsub.f32 %v317, %v361
    %v374 = vsub.f32 %v318, %v363
    %v375 = vsub.f32 %v319, %v365
    %v376 = vsub.f32 %v320, %v367
    %v377 = vsub.f32 %v321, %v369
    %378 = vst [vmem:[#allocation11] sm:$0xff] %v370
    %379 = vst [vmem:[#allocation11 + $0x8] sm:$0xff] %v371
    %380 = vst [vmem:[#allocation11 + $0x10] sm:$0xff] %v372
    %381 = vst [vmem:[#allocation11 + $0x18] sm:$0xff] %v373
    %382 = vst [vmem:[#allocation11 + $0x20] sm:$0xff] %v374
    %383 = vst [vmem:[#allocation11 + $0x28] sm:$0xff] %v375
    %384 = vst [vmem:[#allocation11 + $0x30] sm:$0xff] %v376
    %385 = vst [vmem:[#allocation11 + $0x38] sm:$0xff] %v377
    // Predicated region
    $region42: #{build_model_mols_forward.11} parent=1 // pred_check
      _
    $region43: #{build_model_mols_forward.11} parent=1 // pred_check_branch
      %387 = sbr.rel (0) target = $region45
    $region44: #{build_model_mols_forward.11} parent=1 // pred_region
      %s389 = ssub.s32 1024, 1024
      %390 = vsyncadd [#allocation4], %s389
      %s391 = sshll.u32 [#allocation11], 4
      %s392 = int_to_ptr.vmem [resolvable:$true] %s391
      %397 = dma.vmem_to_hbm [thread:$0]  %s392, 1024, %s5, [#allocation4], 128, 128, 8
    $region45: #{build_model_mols_forward.11} parent=1 // pred_fallthru
      _
    // Predicated region
    $region46: #{build_model_mols_forward.11} parent=1 // pred_check
      _
    $region47: #{build_model_mols_forward.11} parent=1 // pred_check_branch
      %399 = sbr.rel (0) target = $region49
    $region48: #{build_model_mols_forward.11} parent=1 // pred_region
      %400 = dma.done [#allocation4], 1024
    $region49: #{build_model_mols_forward.11} parent=1 // pred_fallthru
      _
    %401 = vsyncpa [#allocation3], 1
    %402 = vsyncpa [#allocation6], 1
    %403 = vsyncpa [#allocation9], 1
    %404 = vsyncpa [#allocation4], 1

</llo_original>
